<compile_context>
chip_gen: v7x
topology: tpu7x:2x2x1
jax: 0.10.0
libtpu: 0.0.40
codegen_flags: <defaults>
</compile_context>

<pallas_src>
import functools

import numpy as np
import jax
import jax.numpy as jnp
from jax import lax
from jax.experimental import pallas as pl
from jax.experimental.pallas import tpu as pltpu

SHIFTS = (3, 5, 7, 9)
K_MAX = 2 * max(SHIFTS) - 1
EPS = 1e-5


# ----------------------------- Pallas kernel ------------------------------ #
def c3modul2_kernel(C, H, W,
                    hw_ref, x_ref, w1_ref, wv_ref, wh_ref, k3_ref, wp_ref,
                    bn1s_ref, bn1b_ref, a1_ref, bn2s_ref, bn2b_ref,
                    bnfs_ref, bnfb_ref, af_ref, out_ref):
    NCH = C // 4
    S = H * W

    # Precomputed (row, col) index maps of the flattened spatial axis.
    hidx = hw_ref[0:1, :]            # (1, S)  h = f // W
    widx = hw_ref[1:2, :]            # (1, S)  w = f %  W

    x_f32 = x_ref[0]                                 # (C, S) f32
    x_bf16 = x_f32.astype(jnp.bfloat16)

    def shift_masked(t, off_h, off_w):
        """t[c, h + off_h, w + off_w] with zero padding at the image border,
        evaluated on the flattened (NCH, S) layout with one XLU lane roll."""
        shift = (-(off_h * W + off_w)) % S
        rolled = pltpu.roll(t, shift, 1) if shift != 0 else t
        conds = []
        if off_h > 0:
            conds.append(hidx < H - off_h)
        elif off_h < 0:
            conds.append(hidx >= -off_h)
        if off_w > 0:
            conds.append(widx < W - off_w)
        elif off_w < 0:
            conds.append(widx >= -off_w)
        if not conds:
            return rolled
        mask = conds[0]
        for extra in conds[1:]:
            mask = jnp.logical_and(mask, extra)
        return jnp.where(mask, rolled, 0.0)

    # ---- c1: 1x1 conv C -> NCH as one bf16 MXU matmul (f32 accumulate) ----
    y1 = jnp.dot(w1_ref[...].astype(jnp.bfloat16), x_bf16,
                 preferred_element_type=jnp.float32)          # (NCH, S)

    # ---- four C3block branches (dilations SHIFTS), statically unrolled ----
    for b, d in enumerate(SHIFTS):
        K = 2 * d - 1

        # depthwise (K, 1) vertical conv: K roll-scale-accumulates
        t = wv_ref[b, 0] * shift_masked(y1, -(d - 1), 0)
        for k in range(1, K):
            t = t + wv_ref[b, k] * shift_masked(y1, k - (d - 1), 0)
        t = t * bn1s_ref[b] + bn1b_ref[b]                     # BN1 (affine)
        t = jnp.where(t > 0, t, a1_ref[b] * t)                # PReLU1

        # depthwise (1, K) horizontal conv: K roll-scale-accumulates
        u = wh_ref[b, 0] * shift_masked(t, 0, -(d - 1))
        for k in range(1, K):
            u = u + wh_ref[b, k] * shift_masked(t, 0, k - (d - 1))
        u = u * bn2s_ref[b] + bn2b_ref[b]                     # BN2 (affine)

        # depthwise dilated 3x3 conv: 9 shifted taps (offsets in {-d, 0, d})
        v = None
        for i in range(3):
            for j in range(3):
                term = k3_ref[b, 3 * i + j] * shift_masked(
                    u, (i - 1) * d, (j - 1) * d)
                v = term if v is None else v + term

        # pointwise 1x1 conv (NCH -> NCH) on the MXU (bf16 in, f32 acc)
        z = jnp.dot(wp_ref[b].astype(jnp.bfloat16), v.astype(jnp.bfloat16),
                    preferred_element_type=jnp.float32)

        # residual + final BN + PReLU; write this branch's channel slab
        z = z + x_f32[b * NCH:(b + 1) * NCH, :]
        z = z * bnfs_ref[b] + bnfb_ref[b]
        z = jnp.where(z > 0, z, af_ref[b] * z)
        out_ref[0, b * NCH:(b + 1) * NCH, :] = z


def _full_spec(arr):
    zeros = (0,) * arr.ndim
    return pl.BlockSpec(arr.shape, lambda nb: zeros)


def c3modul2_pallas(x, packed):
    B, C, H, W = x.shape
    S = H * W
    x_flat = x.reshape(B, C, S)                     # lane-dense spatial layout

    hw = jnp.stack([
        jnp.repeat(jnp.arange(H, dtype=jnp.int32), W),
        jnp.tile(jnp.arange(W, dtype=jnp.int32), H)])          # (2, S)

    inputs = (hw, x_flat, packed['w1'], packed['wv'], packed['wh'],
              packed['k3'], packed['wp'], packed['bn1s'], packed['bn1b'],
              packed['a1'], packed['bn2s'], packed['bn2b'],
              packed['bnfs'], packed['bnfb'], packed['af'])

    in_specs = ([_full_spec(hw),
                 pl.BlockSpec((1, C, S), lambda nb: (nb, 0, 0))]
                + [_full_spec(a) for a in inputs[2:]])

    kern = functools.partial(c3modul2_kernel, C, H, W)
    out = pl.pallas_call(
        kern,
        out_shape=jax.ShapeDtypeStruct((B, C, S), jnp.float32),
        grid=(B,),
        in_specs=in_specs,
        out_specs=pl.BlockSpec((1, C, S), lambda nb: (nb, 0, 0)),
        compiler_params=pltpu.CompilerParams(
            dimension_semantics=("parallel",),
            vmem_limit_bytes=32 * 1024 * 1024),
    )(*inputs)
    return out.reshape(B, C, H, W)


# -------------------- parameter init (deterministic) ---------------------- #
def init_params(key, C):
    NCH = C // 4
    ks = iter(jax.random.split(key, 64))

    def uconv(shape, fan_in):
        b = 1.0 / np.sqrt(fan_in)
        return jax.random.uniform(next(ks), shape, jnp.float32, -b, b)

    def bn_params(nc):
        return dict(
            gamma=jax.random.uniform(next(ks), (nc,), jnp.float32, 0.5, 1.5),
            beta=jax.random.uniform(next(ks), (nc,), jnp.float32, -0.5, 0.5),
            mean=0.5 * jax.random.normal(next(ks), (nc,), jnp.float32),
            var=jax.random.uniform(next(ks), (nc,), jnp.float32, 0.5, 1.5))

    P = dict(w_c1=uconv((NCH, C, 1, 1), C), branch=[])
    for d in SHIFTS:
        K = 2 * d - 1
        P['branch'].append(dict(
            wv=uconv((NCH, 1, K, 1), K),
            bn1=bn_params(NCH),
            a1=jax.random.uniform(next(ks), (NCH,), jnp.float32, 0.05, 0.3),
            wh=uconv((NCH, 1, 1, K), K),
            bn2=bn_params(NCH),
            k3=uconv((NCH, 1, 3, 3), 9),
            wp=uconv((NCH, NCH, 1, 1), NCH)))
    P['bnf'] = bn_params(C)
    P['af'] = jax.random.uniform(next(ks), (C,), jnp.float32, 0.05, 0.3)
    return P


# --------------------- weight re-packing (plain JAX) ----------------------- #
def bn_affine(bn):
    s = bn['gamma'] / jnp.sqrt(bn['var'] + EPS)
    return s, bn['beta'] - bn['mean'] * s


def pack_params(P, C):
    NCH = C // 4
    wv_l, wh_l, k3_l, wp_l = [], [], [], []
    bn1s, bn1b, a1, bn2s, bn2b = [], [], [], [], []
    for b, d in enumerate(SHIFTS):
        Pb = P['branch'][b]
        K = 2 * d - 1
        wv_k = Pb['wv'].reshape(NCH, K).T[:, :, None]          # (K, NCH, 1)
        wh_k = Pb['wh'].reshape(NCH, K).T[:, :, None]
        pad = ((0, K_MAX - K), (0, 0), (0, 0))
        wv_l.append(jnp.pad(wv_k, pad))
        wh_l.append(jnp.pad(wh_k, pad))
        k3_l.append(Pb['k3'].reshape(NCH, 9).T[:, :, None])    # (9, NCH, 1)
        wp_l.append(Pb['wp'].reshape(NCH, NCH))
        s1, sh1 = bn_affine(Pb['bn1']); bn1s.append(s1[:, None]); bn1b.append(sh1[:, None])
        a1.append(Pb['a1'][:, None])
        s2, sh2 = bn_affine(Pb['bn2']); bn2s.append(s2[:, None]); bn2b.append(sh2[:, None])
    sf, shf = bn_affine(P['bnf'])
    return dict(
        w1=P['w_c1'].reshape(NCH, C),
        wv=jnp.stack(wv_l), wh=jnp.stack(wh_l),
        k3=jnp.stack(k3_l), wp=jnp.stack(wp_l),
        bn1s=jnp.stack(bn1s), bn1b=jnp.stack(bn1b), a1=jnp.stack(a1),
        bn2s=jnp.stack(bn2s), bn2b=jnp.stack(bn2b),
        bnfs=sf.reshape(4, NCH, 1), bnfb=shf.reshape(4, NCH, 1),
        af=P['af'].reshape(4, NCH, 1))


# ------------------------ pure-JAX reference check ------------------------- #
def conv2d(x, w, padding=(0, 0), dilation=(1, 1), groups=1):
    return lax.conv_general_dilated(
        x, w, window_strides=(1, 1),
        padding=((padding[0], padding[0]), (padding[1], padding[1])),
        rhs_dilation=dilation,
        dimension_numbers=('NCHW', 'OIHW', 'NCHW'),
        feature_group_count=groups,
        precision=lax.Precision.HIGHEST)


def bn_apply(x, bn):
    s, sh = bn_affine(bn)
    return x * s[None, :, None, None] + sh[None, :, None, None]


def prelu(x, a):
    return jnp.where(x > 0, x, a[None, :, None, None] * x)


def reference_forward(x, P):
    C = x.shape[1]
    NCH = C // 4
    y1 = conv2d(x, P['w_c1'])
    outs = []
    for b, d in enumerate(SHIFTS):
        Pb = P['branch'][b]
        t = conv2d(y1, Pb['wv'], padding=(d - 1, 0), groups=NCH)
        t = bn_apply(t, Pb['bn1'])
        t = prelu(t, Pb['a1'])
        t = conv2d(t, Pb['wh'], padding=(0, d - 1), groups=NCH)
        t = bn_apply(t, Pb['bn2'])
        t = conv2d(t, Pb['k3'], padding=(d, d), dilation=(d, d), groups=NCH)
        t = conv2d(t, Pb['wp'])
        outs.append(t)
    comb = jnp.concatenate(outs, axis=1) + x
    comb = bn_apply(comb, P['bnf'])
    return prelu(comb, P['af'])


# --------------------------------- main ------------------------------------ #
if __name__ == "__main__":
    B, C, H, W = 2, 8, 16, 16          # channels divisible by 4 -> n = 2
    key = jax.random.PRNGKey(0)
    kx, kp = jax.random.split(key)
    x = jax.random.normal(kx, (B, C, H, W), jnp.float32)

    P = init_params(kp, C)
    packed = pack_params(P, C)

    out = jax.block_until_ready(c3modul2_pallas(x, packed))
    ref = jax.block_until_ready(reference_forward(x, P))

    # bf16 MXU operands (f32 accumulation) -> slightly looser tolerance.
    np.testing.assert_allclose(np.asarray(out), np.asarray(ref),
                               rtol=3e-2, atol=3e-2)
    print("KERNEL_OK")
</pallas_src>

<mosaic_0001>
module attributes {stable_mosaic.version = 11 : i64} {
  func.func @c3modul2_kernel(%arg0: i32, %arg1: memref<2x256xi32, #tpu.memory_space<vmem>>, %arg2: memref<1x8x256xf32, #tpu.memory_space<vmem>>, %arg3: memref<2x8xf32, #tpu.memory_space<vmem>>, %arg4: memref<4x17x2x1xf32, #tpu.memory_space<vmem>>, %arg5: memref<4x17x2x1xf32, #tpu.memory_space<vmem>>, %arg6: memref<4x9x2x1xf32, #tpu.memory_space<vmem>>, %arg7: memref<4x2x2xf32, #tpu.memory_space<vmem>>, %arg8: memref<4x2x1xf32, #tpu.memory_space<vmem>>, %arg9: memref<4x2x1xf32, #tpu.memory_space<vmem>>, %arg10: memref<4x2x1xf32, #tpu.memory_space<vmem>>, %arg11: memref<4x2x1xf32, #tpu.memory_space<vmem>>, %arg12: memref<4x2x1xf32, #tpu.memory_space<vmem>>, %arg13: memref<4x2x1xf32, #tpu.memory_space<vmem>>, %arg14: memref<4x2x1xf32, #tpu.memory_space<vmem>>, %arg15: memref<4x2x1xf32, #tpu.memory_space<vmem>>, %arg16: memref<1x8x256xf32, #tpu.memory_space<vmem>>) attributes {dimension_semantics = [#tpu.dimension_semantics<parallel>], iteration_bounds = array<i64: 2>, scalar_prefetch = 0 : i64, scratch_operands = 0 : i64, tpu.core_type = #tpu.core_type<tc>, window_params = [{pipeline_mode = #tpu.pipeline_mode<synchronous>, transform_indices = @transform_0, window_bounds = array<i64: 2, 256>}, {transform_indices = @transform_1, window_bounds = array<i64: 1, 8, 256>}, {pipeline_mode = #tpu.pipeline_mode<synchronous>, transform_indices = @transform_2, window_bounds = array<i64: 2, 8>}, {pipeline_mode = #tpu.pipeline_mode<synchronous>, transform_indices = @transform_3, window_bounds = array<i64: 4, 17, 2, 1>}, {pipeline_mode = #tpu.pipeline_mode<synchronous>, transform_indices = @transform_4, window_bounds = array<i64: 4, 17, 2, 1>}, {pipeline_mode = #tpu.pipeline_mode<synchronous>, transform_indices = @transform_5, window_bounds = array<i64: 4, 9, 2, 1>}, {pipeline_mode = #tpu.pipeline_mode<synchronous>, transform_indices = @transform_6, window_bounds = array<i64: 4, 2, 2>}, {pipeline_mode = #tpu.pipeline_mode<synchronous>, transform_indices = @transform_7, window_bounds = array<i64: 4, 2, 1>}, {pipeline_mode = #tpu.pipeline_mode<synchronous>, transform_indices = @transform_8, window_bounds = array<i64: 4, 2, 1>}, {pipeline_mode = #tpu.pipeline_mode<synchronous>, transform_indices = @transform_9, window_bounds = array<i64: 4, 2, 1>}, {pipeline_mode = #tpu.pipeline_mode<synchronous>, transform_indices = @transform_10, window_bounds = array<i64: 4, 2, 1>}, {pipeline_mode = #tpu.pipeline_mode<synchronous>, transform_indices = @transform_11, window_bounds = array<i64: 4, 2, 1>}, {pipeline_mode = #tpu.pipeline_mode<synchronous>, transform_indices = @transform_12, window_bounds = array<i64: 4, 2, 1>}, {pipeline_mode = #tpu.pipeline_mode<synchronous>, transform_indices = @transform_13, window_bounds = array<i64: 4, 2, 1>}, {pipeline_mode = #tpu.pipeline_mode<synchronous>, transform_indices = @transform_14, window_bounds = array<i64: 4, 2, 1>}, {transform_indices = @transform_15, window_bounds = array<i64: 1, 8, 256>}]} {
    %c0 = arith.constant 0 : index
    %c0_0 = arith.constant 0 : index
    %0 = vector.load %arg1[%c0, %c0_0] : memref<2x256xi32, #tpu.memory_space<vmem>>, vector<1x256xi32>
    %c1 = arith.constant 1 : index
    %c0_1 = arith.constant 0 : index
    %1 = vector.load %arg1[%c1, %c0_1] : memref<2x256xi32, #tpu.memory_space<vmem>>, vector<1x256xi32>
    %c0_2 = arith.constant 0 : index
    %c0_3 = arith.constant 0 : index
    %c0_4 = arith.constant 0 : index
    %2 = vector.load %arg2[%c0_2, %c0_3, %c0_4] : memref<1x8x256xf32, #tpu.memory_space<vmem>>, vector<1x8x256xf32>
    %3 = vector.shape_cast %2 : vector<1x8x256xf32> to vector<8x256xf32>
    %4 = arith.truncf %3 : vector<8x256xf32> to vector<8x256xbf16>
    %c0_5 = arith.constant 0 : index
    %c0_6 = arith.constant 0 : index
    %5 = vector.load %arg3[%c0_5, %c0_6] : memref<2x8xf32, #tpu.memory_space<vmem>>, vector<2x8xf32>
    %6 = arith.truncf %5 : vector<2x8xf32> to vector<2x8xbf16>
    %cst = arith.constant dense<0.000000e+00> : vector<2x256xf32>
    %7 = tpu.matmul %6, %4, %cst {dimension_numbers = #tpu.dot_dimension_numbers<[1], [0], [0], [1], [0, 0, 1, 1], [], []>} : vector<2x8xbf16>, vector<8x256xbf16>, vector<2x256xf32> -> vector<2x256xf32>
    %c0_7 = arith.constant 0 : index
    %c0_8 = arith.constant 0 : index
    %c0_9 = arith.constant 0 : index
    %c0_10 = arith.constant 0 : index
    %8 = vector.load %arg4[%c0_7, %c0_8, %c0_9, %c0_10] : memref<4x17x2x1xf32, #tpu.memory_space<vmem>>, vector<1x1x2x1xf32>
    %9 = vector.shape_cast %8 : vector<1x1x2x1xf32> to vector<2x1xf32>
    %c32_i32 = arith.constant 32 : i32
    %10 = tpu.dynamic_rotate %7 by %c32_i32 dim 1 : vector<2x256xf32>, i32 -> vector<2x256xf32>
    %c2_i32 = arith.constant 2 : i32
    %11 = vector.broadcast %c2_i32 : i32 to vector<1x256xi32>
    %12 = arith.cmpi sge, %0, %11 : vector<1x256xi32>
    %cst_11 = arith.constant 0.000000e+00 : f32
    %13 = vector.shape_cast %12 : vector<1x256xi1> to vector<1x256xi1>
    %14 = vector.broadcast %13 : vector<1x256xi1> to vector<2x256xi1>
    %15 = vector.broadcast %cst_11 : f32 to vector<2x256xf32>
    %16 = arith.select %14, %10, %15 : vector<2x256xi1>, vector<2x256xf32>
    %17 = vector.broadcast %9 : vector<2x1xf32> to vector<2x256xf32>
    %18 = arith.mulf %17, %16 : vector<2x256xf32>
    %c0_12 = arith.constant 0 : index
    %c1_13 = arith.constant 1 : index
    %c0_14 = arith.constant 0 : index
    %c0_15 = arith.constant 0 : index
    %19 = vector.load %arg4[%c0_12, %c1_13, %c0_14, %c0_15] : memref<4x17x2x1xf32, #tpu.memory_space<vmem>>, vector<1x1x2x1xf32>
    %20 = vector.shape_cast %19 : vector<1x1x2x1xf32> to vector<2x1xf32>
    %c16_i32 = arith.constant 16 : i32
    %21 = tpu.dynamic_rotate %7 by %c16_i32 dim 1 : vector<2x256xf32>, i32 -> vector<2x256xf32>
    %c1_i32 = arith.constant 1 : i32
    %22 = vector.broadcast %c1_i32 : i32 to vector<1x256xi32>
    %23 = arith.cmpi sge, %0, %22 : vector<1x256xi32>
    %cst_16 = arith.constant 0.000000e+00 : f32
    %24 = vector.shape_cast %23 : vector<1x256xi1> to vector<1x256xi1>
    %25 = vector.broadcast %24 : vector<1x256xi1> to vector<2x256xi1>
    %26 = vector.broadcast %cst_16 : f32 to vector<2x256xf32>
    %27 = arith.select %25, %21, %26 : vector<2x256xi1>, vector<2x256xf32>
    %28 = vector.broadcast %20 : vector<2x1xf32> to vector<2x256xf32>
    %29 = arith.mulf %28, %27 : vector<2x256xf32>
    %30 = arith.addf %18, %29 : vector<2x256xf32>
    %c0_17 = arith.constant 0 : index
    %c2 = arith.constant 2 : index
    %c0_18 = arith.constant 0 : index
    %c0_19 = arith.constant 0 : index
    %31 = vector.load %arg4[%c0_17, %c2, %c0_18, %c0_19] : memref<4x17x2x1xf32, #tpu.memory_space<vmem>>, vector<1x1x2x1xf32>
    %32 = vector.shape_cast %31 : vector<1x1x2x1xf32> to vector<2x1xf32>
    %33 = vector.broadcast %32 : vector<2x1xf32> to vector<2x256xf32>
    %34 = arith.mulf %33, %7 : vector<2x256xf32>
    %35 = arith.addf %30, %34 : vector<2x256xf32>
    %c0_20 = arith.constant 0 : index
    %c3 = arith.constant 3 : index
    %c0_21 = arith.constant 0 : index
    %c0_22 = arith.constant 0 : index
    %36 = vector.load %arg4[%c0_20, %c3, %c0_21, %c0_22] : memref<4x17x2x1xf32, #tpu.memory_space<vmem>>, vector<1x1x2x1xf32>
    %37 = vector.shape_cast %36 : vector<1x1x2x1xf32> to vector<2x1xf32>
    %c240_i32 = arith.constant 240 : i32
    %38 = tpu.dynamic_rotate %7 by %c240_i32 dim 1 : vector<2x256xf32>, i32 -> vector<2x256xf32>
    %c15_i32 = arith.constant 15 : i32
    %39 = vector.broadcast %c15_i32 : i32 to vector<1x256xi32>
    %40 = arith.cmpi slt, %0, %39 : vector<1x256xi32>
    %cst_23 = arith.constant 0.000000e+00 : f32
    %41 = vector.shape_cast %40 : vector<1x256xi1> to vector<1x256xi1>
    %42 = vector.broadcast %41 : vector<1x256xi1> to vector<2x256xi1>
    %43 = vector.broadcast %cst_23 : f32 to vector<2x256xf32>
    %44 = arith.select %42, %38, %43 : vector<2x256xi1>, vector<2x256xf32>
    %45 = vector.broadcast %37 : vector<2x1xf32> to vector<2x256xf32>
    %46 = arith.mulf %45, %44 : vector<2x256xf32>
    %47 = arith.addf %35, %46 : vector<2x256xf32>
    %c0_24 = arith.constant 0 : index
    %c4 = arith.constant 4 : index
    %c0_25 = arith.constant 0 : index
    %c0_26 = arith.constant 0 : index
    %48 = vector.load %arg4[%c0_24, %c4, %c0_25, %c0_26] : memref<4x17x2x1xf32, #tpu.memory_space<vmem>>, vector<1x1x2x1xf32>
    %49 = vector.shape_cast %48 : vector<1x1x2x1xf32> to vector<2x1xf32>
    %c224_i32 = arith.constant 224 : i32
    %50 = tpu.dynamic_rotate %7 by %c224_i32 dim 1 : vector<2x256xf32>, i32 -> vector<2x256xf32>
    %c14_i32 = arith.constant 14 : i32
    %51 = vector.broadcast %c14_i32 : i32 to vector<1x256xi32>
    %52 = arith.cmpi slt, %0, %51 : vector<1x256xi32>
    %cst_27 = arith.constant 0.000000e+00 : f32
    %53 = vector.shape_cast %52 : vector<1x256xi1> to vector<1x256xi1>
    %54 = vector.broadcast %53 : vector<1x256xi1> to vector<2x256xi1>
    %55 = vector.broadcast %cst_27 : f32 to vector<2x256xf32>
    %56 = arith.select %54, %50, %55 : vector<2x256xi1>, vector<2x256xf32>
    %57 = vector.broadcast %49 : vector<2x1xf32> to vector<2x256xf32>
    %58 = arith.mulf %57, %56 : vector<2x256xf32>
    %59 = arith.addf %47, %58 : vector<2x256xf32>
    %c0_28 = arith.constant 0 : index
    %c0_29 = arith.constant 0 : index
    %c0_30 = arith.constant 0 : index
    %60 = vector.load %arg8[%c0_28, %c0_29, %c0_30] : memref<4x2x1xf32, #tpu.memory_space<vmem>>, vector<1x2x1xf32>
    %61 = vector.shape_cast %60 : vector<1x2x1xf32> to vector<2x1xf32>
    %62 = vector.broadcast %61 : vector<2x1xf32> to vector<2x256xf32>
    %63 = arith.mulf %59, %62 : vector<2x256xf32>
    %c0_31 = arith.constant 0 : index
    %c0_32 = arith.constant 0 : index
    %c0_33 = arith.constant 0 : index
    %64 = vector.load %arg9[%c0_31, %c0_32, %c0_33] : memref<4x2x1xf32, #tpu.memory_space<vmem>>, vector<1x2x1xf32>
    %65 = vector.shape_cast %64 : vector<1x2x1xf32> to vector<2x1xf32>
    %66 = vector.broadcast %65 : vector<2x1xf32> to vector<2x256xf32>
    %67 = arith.addf %63, %66 : vector<2x256xf32>
    %cst_34 = arith.constant 0.000000e+00 : f32
    %68 = vector.broadcast %cst_34 : f32 to vector<2x256xf32>
    %69 = arith.cmpf ogt, %67, %68 : vector<2x256xf32>
    %c0_35 = arith.constant 0 : index
    %c0_36 = arith.constant 0 : index
    %c0_37 = arith.constant 0 : index
    %70 = vector.load %arg10[%c0_35, %c0_36, %c0_37] : memref<4x2x1xf32, #tpu.memory_space<vmem>>, vector<1x2x1xf32>
    %71 = vector.shape_cast %70 : vector<1x2x1xf32> to vector<2x1xf32>
    %72 = vector.broadcast %71 : vector<2x1xf32> to vector<2x256xf32>
    %73 = arith.mulf %72, %67 : vector<2x256xf32>
    %74 = arith.select %69, %67, %73 : vector<2x256xi1>, vector<2x256xf32>
    %c0_38 = arith.constant 0 : index
    %c0_39 = arith.constant 0 : index
    %c0_40 = arith.constant 0 : index
    %c0_41 = arith.constant 0 : index
    %75 = vector.load %arg5[%c0_38, %c0_39, %c0_40, %c0_41] : memref<4x17x2x1xf32, #tpu.memory_space<vmem>>, vector<1x1x2x1xf32>
    %76 = vector.shape_cast %75 : vector<1x1x2x1xf32> to vector<2x1xf32>
    %c2_i32_42 = arith.constant 2 : i32
    %77 = tpu.dynamic_rotate %74 by %c2_i32_42 dim 1 : vector<2x256xf32>, i32 -> vector<2x256xf32>
    %c2_i32_43 = arith.constant 2 : i32
    %78 = vector.broadcast %c2_i32_43 : i32 to vector<1x256xi32>
    %79 = arith.cmpi sge, %1, %78 : vector<1x256xi32>
    %cst_44 = arith.constant 0.000000e+00 : f32
    %80 = vector.shape_cast %79 : vector<1x256xi1> to vector<1x256xi1>
    %81 = vector.broadcast %80 : vector<1x256xi1> to vector<2x256xi1>
    %82 = vector.broadcast %cst_44 : f32 to vector<2x256xf32>
    %83 = arith.select %81, %77, %82 : vector<2x256xi1>, vector<2x256xf32>
    %84 = vector.broadcast %76 : vector<2x1xf32> to vector<2x256xf32>
    %85 = arith.mulf %84, %83 : vector<2x256xf32>
    %c0_45 = arith.constant 0 : index
    %c1_46 = arith.constant 1 : index
    %c0_47 = arith.constant 0 : index
    %c0_48 = arith.constant 0 : index
    %86 = vector.load %arg5[%c0_45, %c1_46, %c0_47, %c0_48] : memref<4x17x2x1xf32, #tpu.memory_space<vmem>>, vector<1x1x2x1xf32>
    %87 = vector.shape_cast %86 : vector<1x1x2x1xf32> to vector<2x1xf32>
    %c1_i32_49 = arith.constant 1 : i32
    %88 = tpu.dynamic_rotate %74 by %c1_i32_49 dim 1 : vector<2x256xf32>, i32 -> vector<2x256xf32>
    %c1_i32_50 = arith.constant 1 : i32
    %89 = vector.broadcast %c1_i32_50 : i32 to vector<1x256xi32>
    %90 = arith.cmpi sge, %1, %89 : vector<1x256xi32>
    %cst_51 = arith.constant 0.000000e+00 : f32
    %91 = vector.shape_cast %90 : vector<1x256xi1> to vector<1x256xi1>
    %92 = vector.broadcast %91 : vector<1x256xi1> to vector<2x256xi1>
    %93 = vector.broadcast %cst_51 : f32 to vector<2x256xf32>
    %94 = arith.select %92, %88, %93 : vector<2x256xi1>, vector<2x256xf32>
    %95 = vector.broadcast %87 : vector<2x1xf32> to vector<2x256xf32>
    %96 = arith.mulf %95, %94 : vector<2x256xf32>
    %97 = arith.addf %85, %96 : vector<2x256xf32>
    %c0_52 = arith.constant 0 : index
    %c2_53 = arith.constant 2 : index
    %c0_54 = arith.constant 0 : index
    %c0_55 = arith.constant 0 : index
    %98 = vector.load %arg5[%c0_52, %c2_53, %c0_54, %c0_55] : memref<4x17x2x1xf32, #tpu.memory_space<vmem>>, vector<1x1x2x1xf32>
    %99 = vector.shape_cast %98 : vector<1x1x2x1xf32> to vector<2x1xf32>
    %100 = vector.broadcast %99 : vector<2x1xf32> to vector<2x256xf32>
    %101 = arith.mulf %100, %74 : vector<2x256xf32>
    %102 = arith.addf %97, %101 : vector<2x256xf32>
    %c0_56 = arith.constant 0 : index
    %c3_57 = arith.constant 3 : index
    %c0_58 = arith.constant 0 : index
    %c0_59 = arith.constant 0 : index
    %103 = vector.load %arg5[%c0_56, %c3_57, %c0_58, %c0_59] : memref<4x17x2x1xf32, #tpu.memory_space<vmem>>, vector<1x1x2x1xf32>
    %104 = vector.shape_cast %103 : vector<1x1x2x1xf32> to vector<2x1xf32>
    %c255_i32 = arith.constant 255 : i32
    %105 = tpu.dynamic_rotate %74 by %c255_i32 dim 1 : vector<2x256xf32>, i32 -> vector<2x256xf32>
    %c15_i32_60 = arith.constant 15 : i32
    %106 = vector.broadcast %c15_i32_60 : i32 to vector<1x256xi32>
    %107 = arith.cmpi slt, %1, %106 : vector<1x256xi32>
    %cst_61 = arith.constant 0.000000e+00 : f32
    %108 = vector.shape_cast %107 : vector<1x256xi1> to vector<1x256xi1>
    %109 = vector.broadcast %108 : vector<1x256xi1> to vector<2x256xi1>
    %110 = vector.broadcast %cst_61 : f32 to vector<2x256xf32>
    %111 = arith.select %109, %105, %110 : vector<2x256xi1>, vector<2x256xf32>
    %112 = vector.broadcast %104 : vector<2x1xf32> to vector<2x256xf32>
    %113 = arith.mulf %112, %111 : vector<2x256xf32>
    %114 = arith.addf %102, %113 : vector<2x256xf32>
    %c0_62 = arith.constant 0 : index
    %c4_63 = arith.constant 4 : index
    %c0_64 = arith.constant 0 : index
    %c0_65 = arith.constant 0 : index
    %115 = vector.load %arg5[%c0_62, %c4_63, %c0_64, %c0_65] : memref<4x17x2x1xf32, #tpu.memory_space<vmem>>, vector<1x1x2x1xf32>
    %116 = vector.shape_cast %115 : vector<1x1x2x1xf32> to vector<2x1xf32>
    %c254_i32 = arith.constant 254 : i32
    %117 = tpu.dynamic_rotate %74 by %c254_i32 dim 1 : vector<2x256xf32>, i32 -> vector<2x256xf32>
    %c14_i32_66 = arith.constant 14 : i32
    %118 = vector.broadcast %c14_i32_66 : i32 to vector<1x256xi32>
    %119 = arith.cmpi slt, %1, %118 : vector<1x256xi32>
    %cst_67 = arith.constant 0.000000e+00 : f32
    %120 = vector.shape_cast %119 : vector<1x256xi1> to vector<1x256xi1>
    %121 = vector.broadcast %120 : vector<1x256xi1> to vector<2x256xi1>
    %122 = vector.broadcast %cst_67 : f32 to vector<2x256xf32>
    %123 = arith.select %121, %117, %122 : vector<2x256xi1>, vector<2x256xf32>
    %124 = vector.broadcast %116 : vector<2x1xf32> to vector<2x256xf32>
    %125 = arith.mulf %124, %123 : vector<2x256xf32>
    %126 = arith.addf %114, %125 : vector<2x256xf32>
    %c0_68 = arith.constant 0 : index
    %c0_69 = arith.constant 0 : index
    %c0_70 = arith.constant 0 : index
    %127 = vector.load %arg11[%c0_68, %c0_69, %c0_70] : memref<4x2x1xf32, #tpu.memory_space<vmem>>, vector<1x2x1xf32>
    %128 = vector.shape_cast %127 : vector<1x2x1xf32> to vector<2x1xf32>
    %129 = vector.broadcast %128 : vector<2x1xf32> to vector<2x256xf32>
    %130 = arith.mulf %126, %129 : vector<2x256xf32>
    %c0_71 = arith.constant 0 : index
    %c0_72 = arith.constant 0 : index
    %c0_73 = arith.constant 0 : index
    %131 = vector.load %arg12[%c0_71, %c0_72, %c0_73] : memref<4x2x1xf32, #tpu.memory_space<vmem>>, vector<1x2x1xf32>
    %132 = vector.shape_cast %131 : vector<1x2x1xf32> to vector<2x1xf32>
    %133 = vector.broadcast %132 : vector<2x1xf32> to vector<2x256xf32>
    %134 = arith.addf %130, %133 : vector<2x256xf32>
    %c0_74 = arith.constant 0 : index
    %c0_75 = arith.constant 0 : index
    %c0_76 = arith.constant 0 : index
    %c0_77 = arith.constant 0 : index
    %135 = vector.load %arg6[%c0_74, %c0_75, %c0_76, %c0_77] : memref<4x9x2x1xf32, #tpu.memory_space<vmem>>, vector<1x1x2x1xf32>
    %136 = vector.shape_cast %135 : vector<1x1x2x1xf32> to vector<2x1xf32>
    %c51_i32 = arith.constant 51 : i32
    %137 = tpu.dynamic_rotate %134 by %c51_i32 dim 1 : vector<2x256xf32>, i32 -> vector<2x256xf32>
    %c3_i32 = arith.constant 3 : i32
    %138 = vector.broadcast %c3_i32 : i32 to vector<1x256xi32>
    %139 = arith.cmpi sge, %0, %138 : vector<1x256xi32>
    %c3_i32_78 = arith.constant 3 : i32
    %140 = vector.broadcast %c3_i32_78 : i32 to vector<1x256xi32>
    %141 = arith.cmpi sge, %1, %140 : vector<1x256xi32>
    %142 = arith.andi %139, %141 : vector<1x256xi1>
    %cst_79 = arith.constant 0.000000e+00 : f32
    %143 = vector.shape_cast %142 : vector<1x256xi1> to vector<1x256xi1>
    %144 = vector.broadcast %143 : vector<1x256xi1> to vector<2x256xi1>
    %145 = vector.broadcast %cst_79 : f32 to vector<2x256xf32>
    %146 = arith.select %144, %137, %145 : vector<2x256xi1>, vector<2x256xf32>
    %147 = vector.broadcast %136 : vector<2x1xf32> to vector<2x256xf32>
    %148 = arith.mulf %147, %146 : vector<2x256xf32>
    %c0_80 = arith.constant 0 : index
    %c1_81 = arith.constant 1 : index
    %c0_82 = arith.constant 0 : index
    %c0_83 = arith.constant 0 : index
    %149 = vector.load %arg6[%c0_80, %c1_81, %c0_82, %c0_83] : memref<4x9x2x1xf32, #tpu.memory_space<vmem>>, vector<1x1x2x1xf32>
    %150 = vector.shape_cast %149 : vector<1x1x2x1xf32> to vector<2x1xf32>
    %c48_i32 = arith.constant 48 : i32
    %151 = tpu.dynamic_rotate %134 by %c48_i32 dim 1 : vector<2x256xf32>, i32 -> vector<2x256xf32>
    %c3_i32_84 = arith.constant 3 : i32
    %152 = vector.broadcast %c3_i32_84 : i32 to vector<1x256xi32>
    %153 = arith.cmpi sge, %0, %152 : vector<1x256xi32>
    %cst_85 = arith.constant 0.000000e+00 : f32
    %154 = vector.shape_cast %153 : vector<1x256xi1> to vector<1x256xi1>
    %155 = vector.broadcast %154 : vector<1x256xi1> to vector<2x256xi1>
    %156 = vector.broadcast %cst_85 : f32 to vector<2x256xf32>
    %157 = arith.select %155, %151, %156 : vector<2x256xi1>, vector<2x256xf32>
    %158 = vector.broadcast %150 : vector<2x1xf32> to vector<2x256xf32>
    %159 = arith.mulf %158, %157 : vector<2x256xf32>
    %160 = arith.addf %148, %159 : vector<2x256xf32>
    %c0_86 = arith.constant 0 : index
    %c2_87 = arith.constant 2 : index
    %c0_88 = arith.constant 0 : index
    %c0_89 = arith.constant 0 : index
    %161 = vector.load %arg6[%c0_86, %c2_87, %c0_88, %c0_89] : memref<4x9x2x1xf32, #tpu.memory_space<vmem>>, vector<1x1x2x1xf32>
    %162 = vector.shape_cast %161 : vector<1x1x2x1xf32> to vector<2x1xf32>
    %c45_i32 = arith.constant 45 : i32
    %163 = tpu.dynamic_rotate %134 by %c45_i32 dim 1 : vector<2x256xf32>, i32 -> vector<2x256xf32>
    %c3_i32_90 = arith.constant 3 : i32
    %164 = vector.broadcast %c3_i32_90 : i32 to vector<1x256xi32>
    %165 = arith.cmpi sge, %0, %164 : vector<1x256xi32>
    %c13_i32 = arith.constant 13 : i32
    %166 = vector.broadcast %c13_i32 : i32 to vector<1x256xi32>
    %167 = arith.cmpi slt, %1, %166 : vector<1x256xi32>
    %168 = arith.andi %165, %167 : vector<1x256xi1>
    %cst_91 = arith.constant 0.000000e+00 : f32
    %169 = vector.shape_cast %168 : vector<1x256xi1> to vector<1x256xi1>
    %170 = vector.broadcast %169 : vector<1x256xi1> to vector<2x256xi1>
    %171 = vector.broadcast %cst_91 : f32 to vector<2x256xf32>
    %172 = arith.select %170, %163, %171 : vector<2x256xi1>, vector<2x256xf32>
    %173 = vector.broadcast %162 : vector<2x1xf32> to vector<2x256xf32>
    %174 = arith.mulf %173, %172 : vector<2x256xf32>
    %175 = arith.addf %160, %174 : vector<2x256xf32>
    %c0_92 = arith.constant 0 : index
    %c3_93 = arith.constant 3 : index
    %c0_94 = arith.constant 0 : index
    %c0_95 = arith.constant 0 : index
    %176 = vector.load %arg6[%c0_92, %c3_93, %c0_94, %c0_95] : memref<4x9x2x1xf32, #tpu.memory_space<vmem>>, vector<1x1x2x1xf32>
    %177 = vector.shape_cast %176 : vector<1x1x2x1xf32> to vector<2x1xf32>
    %c3_i32_96 = arith.constant 3 : i32
    %178 = tpu.dynamic_rotate %134 by %c3_i32_96 dim 1 : vector<2x256xf32>, i32 -> vector<2x256xf32>
    %c3_i32_97 = arith.constant 3 : i32
    %179 = vector.broadcast %c3_i32_97 : i32 to vector<1x256xi32>
    %180 = arith.cmpi sge, %1, %179 : vector<1x256xi32>
    %cst_98 = arith.constant 0.000000e+00 : f32
    %181 = vector.shape_cast %180 : vector<1x256xi1> to vector<1x256xi1>
    %182 = vector.broadcast %181 : vector<1x256xi1> to vector<2x256xi1>
    %183 = vector.broadcast %cst_98 : f32 to vector<2x256xf32>
    %184 = arith.select %182, %178, %183 : vector<2x256xi1>, vector<2x256xf32>
    %185 = vector.broadcast %177 : vector<2x1xf32> to vector<2x256xf32>
    %186 = arith.mulf %185, %184 : vector<2x256xf32>
    %187 = arith.addf %175, %186 : vector<2x256xf32>
    %c0_99 = arith.constant 0 : index
    %c4_100 = arith.constant 4 : index
    %c0_101 = arith.constant 0 : index
    %c0_102 = arith.constant 0 : index
    %188 = vector.load %arg6[%c0_99, %c4_100, %c0_101, %c0_102] : memref<4x9x2x1xf32, #tpu.memory_space<vmem>>, vector<1x1x2x1xf32>
    %189 = vector.shape_cast %188 : vector<1x1x2x1xf32> to vector<2x1xf32>
    %190 = vector.broadcast %189 : vector<2x1xf32> to vector<2x256xf32>
    %191 = arith.mulf %190, %134 : vector<2x256xf32>
    %192 = arith.addf %187, %191 : vector<2x256xf32>
    %c0_103 = arith.constant 0 : index
    %c5 = arith.constant 5 : index
    %c0_104 = arith.constant 0 : index
    %c0_105 = arith.constant 0 : index
    %193 = vector.load %arg6[%c0_103, %c5, %c0_104, %c0_105] : memref<4x9x2x1xf32, #tpu.memory_space<vmem>>, vector<1x1x2x1xf32>
    %194 = vector.shape_cast %193 : vector<1x1x2x1xf32> to vector<2x1xf32>
    %c253_i32 = arith.constant 253 : i32
    %195 = tpu.dynamic_rotate %134 by %c253_i32 dim 1 : vector<2x256xf32>, i32 -> vector<2x256xf32>
    %c13_i32_106 = arith.constant 13 : i32
    %196 = vector.broadcast %c13_i32_106 : i32 to vector<1x256xi32>
    %197 = arith.cmpi slt, %1, %196 : vector<1x256xi32>
    %cst_107 = arith.constant 0.000000e+00 : f32
    %198 = vector.shape_cast %197 : vector<1x256xi1> to vector<1x256xi1>
    %199 = vector.broadcast %198 : vector<1x256xi1> to vector<2x256xi1>
    %200 = vector.broadcast %cst_107 : f32 to vector<2x256xf32>
    %201 = arith.select %199, %195, %200 : vector<2x256xi1>, vector<2x256xf32>
    %202 = vector.broadcast %194 : vector<2x1xf32> to vector<2x256xf32>
    %203 = arith.mulf %202, %201 : vector<2x256xf32>
    %204 = arith.addf %192, %203 : vector<2x256xf32>
    %c0_108 = arith.constant 0 : index
    %c6 = arith.constant 6 : index
    %c0_109 = arith.constant 0 : index
    %c0_110 = arith.constant 0 : index
    %205 = vector.load %arg6[%c0_108, %c6, %c0_109, %c0_110] : memref<4x9x2x1xf32, #tpu.memory_space<vmem>>, vector<1x1x2x1xf32>
    %206 = vector.shape_cast %205 : vector<1x1x2x1xf32> to vector<2x1xf32>
    %c211_i32 = arith.constant 211 : i32
    %207 = tpu.dynamic_rotate %134 by %c211_i32 dim 1 : vector<2x256xf32>, i32 -> vector<2x256xf32>
    %c13_i32_111 = arith.constant 13 : i32
    %208 = vector.broadcast %c13_i32_111 : i32 to vector<1x256xi32>
    %209 = arith.cmpi slt, %0, %208 : vector<1x256xi32>
    %c3_i32_112 = arith.constant 3 : i32
    %210 = vector.broadcast %c3_i32_112 : i32 to vector<1x256xi32>
    %211 = arith.cmpi sge, %1, %210 : vector<1x256xi32>
    %212 = arith.andi %209, %211 : vector<1x256xi1>
    %cst_113 = arith.constant 0.000000e+00 : f32
    %213 = vector.shape_cast %212 : vector<1x256xi1> to vector<1x256xi1>
    %214 = vector.broadcast %213 : vector<1x256xi1> to vector<2x256xi1>
    %215 = vector.broadcast %cst_113 : f32 to vector<2x256xf32>
    %216 = arith.select %214, %207, %215 : vector<2x256xi1>, vector<2x256xf32>
    %217 = vector.broadcast %206 : vector<2x1xf32> to vector<2x256xf32>
    %218 = arith.mulf %217, %216 : vector<2x256xf32>
    %219 = arith.addf %204, %218 : vector<2x256xf32>
    %c0_114 = arith.constant 0 : index
    %c7 = arith.constant 7 : index
    %c0_115 = arith.constant 0 : index
    %c0_116 = arith.constant 0 : index
    %220 = vector.load %arg6[%c0_114, %c7, %c0_115, %c0_116] : memref<4x9x2x1xf32, #tpu.memory_space<vmem>>, vector<1x1x2x1xf32>
    %221 = vector.shape_cast %220 : vector<1x1x2x1xf32> to vector<2x1xf32>
    %c208_i32 = arith.constant 208 : i32
    %222 = tpu.dynamic_rotate %134 by %c208_i32 dim 1 : vector<2x256xf32>, i32 -> vector<2x256xf32>
    %c13_i32_117 = arith.constant 13 : i32
    %223 = vector.broadcast %c13_i32_117 : i32 to vector<1x256xi32>
    %224 = arith.cmpi slt, %0, %223 : vector<1x256xi32>
    %cst_118 = arith.constant 0.000000e+00 : f32
    %225 = vector.shape_cast %224 : vector<1x256xi1> to vector<1x256xi1>
    %226 = vector.broadcast %225 : vector<1x256xi1> to vector<2x256xi1>
    %227 = vector.broadcast %cst_118 : f32 to vector<2x256xf32>
    %228 = arith.select %226, %222, %227 : vector<2x256xi1>, vector<2x256xf32>
    %229 = vector.broadcast %221 : vector<2x1xf32> to vector<2x256xf32>
    %230 = arith.mulf %229, %228 : vector<2x256xf32>
    %231 = arith.addf %219, %230 : vector<2x256xf32>
    %c0_119 = arith.constant 0 : index
    %c8 = arith.constant 8 : index
    %c0_120 = arith.constant 0 : index
    %c0_121 = arith.constant 0 : index
    %232 = vector.load %arg6[%c0_119, %c8, %c0_120, %c0_121] : memref<4x9x2x1xf32, #tpu.memory_space<vmem>>, vector<1x1x2x1xf32>
    %233 = vector.shape_cast %232 : vector<1x1x2x1xf32> to vector<2x1xf32>
    %c205_i32 = arith.constant 205 : i32
    %234 = tpu.dynamic_rotate %134 by %c205_i32 dim 1 : vector<2x256xf32>, i32 -> vector<2x256xf32>
    %c13_i32_122 = arith.constant 13 : i32
    %235 = vector.broadcast %c13_i32_122 : i32 to vector<1x256xi32>
    %236 = arith.cmpi slt, %0, %235 : vector<1x256xi32>
    %c13_i32_123 = arith.constant 13 : i32
    %237 = vector.broadcast %c13_i32_123 : i32 to vector<1x256xi32>
    %238 = arith.cmpi slt, %1, %237 : vector<1x256xi32>
    %239 = arith.andi %236, %238 : vector<1x256xi1>
    %cst_124 = arith.constant 0.000000e+00 : f32
    %240 = vector.shape_cast %239 : vector<1x256xi1> to vector<1x256xi1>
    %241 = vector.broadcast %240 : vector<1x256xi1> to vector<2x256xi1>
    %242 = vector.broadcast %cst_124 : f32 to vector<2x256xf32>
    %243 = arith.select %241, %234, %242 : vector<2x256xi1>, vector<2x256xf32>
    %244 = vector.broadcast %233 : vector<2x1xf32> to vector<2x256xf32>
    %245 = arith.mulf %244, %243 : vector<2x256xf32>
    %246 = arith.addf %231, %245 : vector<2x256xf32>
    %c0_125 = arith.constant 0 : index
    %c0_126 = arith.constant 0 : index
    %c0_127 = arith.constant 0 : index
    %247 = vector.load %arg7[%c0_125, %c0_126, %c0_127] : memref<4x2x2xf32, #tpu.memory_space<vmem>>, vector<1x2x2xf32>
    %248 = vector.shape_cast %247 : vector<1x2x2xf32> to vector<2x2xf32>
    %249 = arith.truncf %248 : vector<2x2xf32> to vector<2x2xbf16>
    %250 = arith.truncf %246 : vector<2x256xf32> to vector<2x256xbf16>
    %cst_128 = arith.constant dense<0.000000e+00> : vector<2x256xf32>
    %251 = tpu.matmul %249, %250, %cst_128 {dimension_numbers = #tpu.dot_dimension_numbers<[1], [0], [0], [1], [0, 0, 1, 1], [], []>} : vector<2x2xbf16>, vector<2x256xbf16>, vector<2x256xf32> -> vector<2x256xf32>
    %252 = vector.extract_strided_slice %3 {offsets = [0, 0], sizes = [2, 256], strides = [1, 1]} : vector<8x256xf32> to vector<2x256xf32>
    %253 = arith.addf %251, %252 : vector<2x256xf32>
    %c0_129 = arith.constant 0 : index
    %c0_130 = arith.constant 0 : index
    %c0_131 = arith.constant 0 : index
    %254 = vector.load %arg13[%c0_129, %c0_130, %c0_131] : memref<4x2x1xf32, #tpu.memory_space<vmem>>, vector<1x2x1xf32>
    %255 = vector.shape_cast %254 : vector<1x2x1xf32> to vector<2x1xf32>
    %256 = vector.broadcast %255 : vector<2x1xf32> to vector<2x256xf32>
    %257 = arith.mulf %253, %256 : vector<2x256xf32>
    %c0_132 = arith.constant 0 : index
    %c0_133 = arith.constant 0 : index
    %c0_134 = arith.constant 0 : index
    %258 = vector.load %arg14[%c0_132, %c0_133, %c0_134] : memref<4x2x1xf32, #tpu.memory_space<vmem>>, vector<1x2x1xf32>
    %259 = vector.shape_cast %258 : vector<1x2x1xf32> to vector<2x1xf32>
    %260 = vector.broadcast %259 : vector<2x1xf32> to vector<2x256xf32>
    %261 = arith.addf %257, %260 : vector<2x256xf32>
    %cst_135 = arith.constant 0.000000e+00 : f32
    %262 = vector.broadcast %cst_135 : f32 to vector<2x256xf32>
    %263 = arith.cmpf ogt, %261, %262 : vector<2x256xf32>
    %c0_136 = arith.constant 0 : index
    %c0_137 = arith.constant 0 : index
    %c0_138 = arith.constant 0 : index
    %264 = vector.load %arg15[%c0_136, %c0_137, %c0_138] : memref<4x2x1xf32, #tpu.memory_space<vmem>>, vector<1x2x1xf32>
    %265 = vector.shape_cast %264 : vector<1x2x1xf32> to vector<2x1xf32>
    %266 = vector.broadcast %265 : vector<2x1xf32> to vector<2x256xf32>
    %267 = arith.mulf %266, %261 : vector<2x256xf32>
    %268 = arith.select %263, %261, %267 : vector<2x256xi1>, vector<2x256xf32>
    %c0_139 = arith.constant 0 : index
    %c0_140 = arith.constant 0 : index
    %c0_141 = arith.constant 0 : index
    %269 = vector.load %arg16[%c0_139, %c0_140, %c0_141] : memref<1x8x256xf32, #tpu.memory_space<vmem>>, vector<1x2x256xf32>
    %270 = vector.shape_cast %269 : vector<1x2x256xf32> to vector<2x256xf32>
    %271 = vector.shape_cast %268 : vector<2x256xf32> to vector<1x2x256xf32>
    tpu.vector_store %arg16[%c0_139, %c0_140, %c0_141], %271 {strides = array<i32>} : memref<1x8x256xf32, #tpu.memory_space<vmem>>, vector<1x2x256xf32>,
    %c1_142 = arith.constant 1 : index
    %c0_143 = arith.constant 0 : index
    %c0_144 = arith.constant 0 : index
    %c0_145 = arith.constant 0 : index
    %272 = vector.load %arg4[%c1_142, %c0_143, %c0_144, %c0_145] : memref<4x17x2x1xf32, #tpu.memory_space<vmem>>, vector<1x1x2x1xf32>
    %273 = vector.shape_cast %272 : vector<1x1x2x1xf32> to vector<2x1xf32>
    %c64_i32 = arith.constant 64 : i32
    %274 = tpu.dynamic_rotate %7 by %c64_i32 dim 1 : vector<2x256xf32>, i32 -> vector<2x256xf32>
    %c4_i32 = arith.constant 4 : i32
    %275 = vector.broadcast %c4_i32 : i32 to vector<1x256xi32>
    %276 = arith.cmpi sge, %0, %275 : vector<1x256xi32>
    %cst_146 = arith.constant 0.000000e+00 : f32
    %277 = vector.shape_cast %276 : vector<1x256xi1> to vector<1x256xi1>
    %278 = vector.broadcast %277 : vector<1x256xi1> to vector<2x256xi1>
    %279 = vector.broadcast %cst_146 : f32 to vector<2x256xf32>
    %280 = arith.select %278, %274, %279 : vector<2x256xi1>, vector<2x256xf32>
    %281 = vector.broadcast %273 : vector<2x1xf32> to vector<2x256xf32>
    %282 = arith.mulf %281, %280 : vector<2x256xf32>
    %c1_147 = arith.constant 1 : index
    %c1_148 = arith.constant 1 : index
    %c0_149 = arith.constant 0 : index
    %c0_150 = arith.constant 0 : index
    %283 = vector.load %arg4[%c1_147, %c1_148, %c0_149, %c0_150] : memref<4x17x2x1xf32, #tpu.memory_space<vmem>>, vector<1x1x2x1xf32>
    %284 = vector.shape_cast %283 : vector<1x1x2x1xf32> to vector<2x1xf32>
    %c48_i32_151 = arith.constant 48 : i32
    %285 = tpu.dynamic_rotate %7 by %c48_i32_151 dim 1 : vector<2x256xf32>, i32 -> vector<2x256xf32>
    %c3_i32_152 = arith.constant 3 : i32
    %286 = vector.broadcast %c3_i32_152 : i32 to vector<1x256xi32>
    %287 = arith.cmpi sge, %0, %286 : vector<1x256xi32>
    %cst_153 = arith.constant 0.000000e+00 : f32
    %288 = vector.shape_cast %287 : vector<1x256xi1> to vector<1x256xi1>
    %289 = vector.broadcast %288 : vector<1x256xi1> to vector<2x256xi1>
    %290 = vector.broadcast %cst_153 : f32 to vector<2x256xf32>
    %291 = arith.select %289, %285, %290 : vector<2x256xi1>, vector<2x256xf32>
    %292 = vector.broadcast %284 : vector<2x1xf32> to vector<2x256xf32>
    %293 = arith.mulf %292, %291 : vector<2x256xf32>
    %294 = arith.addf %282, %293 : vector<2x256xf32>
    %c1_154 = arith.constant 1 : index
    %c2_155 = arith.constant 2 : index
    %c0_156 = arith.constant 0 : index
    %c0_157 = arith.constant 0 : index
    %295 = vector.load %arg4[%c1_154, %c2_155, %c0_156, %c0_157] : memref<4x17x2x1xf32, #tpu.memory_space<vmem>>, vector<1x1x2x1xf32>
    %296 = vector.shape_cast %295 : vector<1x1x2x1xf32> to vector<2x1xf32>
    %c32_i32_158 = arith.constant 32 : i32
    %297 = tpu.dynamic_rotate %7 by %c32_i32_158 dim 1 : vector<2x256xf32>, i32 -> vector<2x256xf32>
    %c2_i32_159 = arith.constant 2 : i32
    %298 = vector.broadcast %c2_i32_159 : i32 to vector<1x256xi32>
    %299 = arith.cmpi sge, %0, %298 : vector<1x256xi32>
    %cst_160 = arith.constant 0.000000e+00 : f32
    %300 = vector.shape_cast %299 : vector<1x256xi1> to vector<1x256xi1>
    %301 = vector.broadcast %300 : vector<1x256xi1> to vector<2x256xi1>
    %302 = vector.broadcast %cst_160 : f32 to vector<2x256xf32>
    %303 = arith.select %301, %297, %302 : vector<2x256xi1>, vector<2x256xf32>
    %304 = vector.broadcast %296 : vector<2x1xf32> to vector<2x256xf32>
    %305 = arith.mulf %304, %303 : vector<2x256xf32>
    %306 = arith.addf %294, %305 : vector<2x256xf32>
    %c1_161 = arith.constant 1 : index
    %c3_162 = arith.constant 3 : index
    %c0_163 = arith.constant 0 : index
    %c0_164 = arith.constant 0 : index
    %307 = vector.load %arg4[%c1_161, %c3_162, %c0_163, %c0_164] : memref<4x17x2x1xf32, #tpu.memory_space<vmem>>, vector<1x1x2x1xf32>
    %308 = vector.shape_cast %307 : vector<1x1x2x1xf32> to vector<2x1xf32>
    %c16_i32_165 = arith.constant 16 : i32
    %309 = tpu.dynamic_rotate %7 by %c16_i32_165 dim 1 : vector<2x256xf32>, i32 -> vector<2x256xf32>
    %c1_i32_166 = arith.constant 1 : i32
    %310 = vector.broadcast %c1_i32_166 : i32 to vector<1x256xi32>
    %311 = arith.cmpi sge, %0, %310 : vector<1x256xi32>
    %cst_167 = arith.constant 0.000000e+00 : f32
    %312 = vector.shape_cast %311 : vector<1x256xi1> to vector<1x256xi1>
    %313 = vector.broadcast %312 : vector<1x256xi1> to vector<2x256xi1>
    %314 = vector.broadcast %cst_167 : f32 to vector<2x256xf32>
    %315 = arith.select %313, %309, %314 : vector<2x256xi1>, vector<2x256xf32>
    %316 = vector.broadcast %308 : vector<2x1xf32> to vector<2x256xf32>
    %317 = arith.mulf %316, %315 : vector<2x256xf32>
    %318 = arith.addf %306, %317 : vector<2x256xf32>
    %c1_168 = arith.constant 1 : index
    %c4_169 = arith.constant 4 : index
    %c0_170 = arith.constant 0 : index
    %c0_171 = arith.constant 0 : index
    %319 = vector.load %arg4[%c1_168, %c4_169, %c0_170, %c0_171] : memref<4x17x2x1xf32, #tpu.memory_space<vmem>>, vector<1x1x2x1xf32>
    %320 = vector.shape_cast %319 : vector<1x1x2x1xf32> to vector<2x1xf32>
    %321 = vector.broadcast %320 : vector<2x1xf32> to vector<2x256xf32>
    %322 = arith.mulf %321, %7 : vector<2x256xf32>
    %323 = arith.addf %318, %322 : vector<2x256xf32>
    %c1_172 = arith.constant 1 : index
    %c5_173 = arith.constant 5 : index
    %c0_174 = arith.constant 0 : index
    %c0_175 = arith.constant 0 : index
    %324 = vector.load %arg4[%c1_172, %c5_173, %c0_174, %c0_175] : memref<4x17x2x1xf32, #tpu.memory_space<vmem>>, vector<1x1x2x1xf32>
    %325 = vector.shape_cast %324 : vector<1x1x2x1xf32> to vector<2x1xf32>
    %c240_i32_176 = arith.constant 240 : i32
    %326 = tpu.dynamic_rotate %7 by %c240_i32_176 dim 1 : vector<2x256xf32>, i32 -> vector<2x256xf32>
    %c15_i32_177 = arith.constant 15 : i32
    %327 = vector.broadcast %c15_i32_177 : i32 to vector<1x256xi32>
    %328 = arith.cmpi slt, %0, %327 : vector<1x256xi32>
    %cst_178 = arith.constant 0.000000e+00 : f32
    %329 = vector.shape_cast %328 : vector<1x256xi1> to vector<1x256xi1>
    %330 = vector.broadcast %329 : vector<1x256xi1> to vector<2x256xi1>
    %331 = vector.broadcast %cst_178 : f32 to vector<2x256xf32>
    %332 = arith.select %330, %326, %331 : vector<2x256xi1>, vector<2x256xf32>
    %333 = vector.broadcast %325 : vector<2x1xf32> to vector<2x256xf32>
    %334 = arith.mulf %333, %332 : vector<2x256xf32>
    %335 = arith.addf %323, %334 : vector<2x256xf32>
    %c1_179 = arith.constant 1 : index
    %c6_180 = arith.constant 6 : index
    %c0_181 = arith.constant 0 : index
    %c0_182 = arith.constant 0 : index
    %336 = vector.load %arg4[%c1_179, %c6_180, %c0_181, %c0_182] : memref<4x17x2x1xf32, #tpu.memory_space<vmem>>, vector<1x1x2x1xf32>
    %337 = vector.shape_cast %336 : vector<1x1x2x1xf32> to vector<2x1xf32>
    %c224_i32_183 = arith.constant 224 : i32
    %338 = tpu.dynamic_rotate %7 by %c224_i32_183 dim 1 : vector<2x256xf32>, i32 -> vector<2x256xf32>
    %c14_i32_184 = arith.constant 14 : i32
    %339 = vector.broadcast %c14_i32_184 : i32 to vector<1x256xi32>
    %340 = arith.cmpi slt, %0, %339 : vector<1x256xi32>
    %cst_185 = arith.constant 0.000000e+00 : f32
    %341 = vector.shape_cast %340 : vector<1x256xi1> to vector<1x256xi1>
    %342 = vector.broadcast %341 : vector<1x256xi1> to vector<2x256xi1>
    %343 = vector.broadcast %cst_185 : f32 to vector<2x256xf32>
    %344 = arith.select %342, %338, %343 : vector<2x256xi1>, vector<2x256xf32>
    %345 = vector.broadcast %337 : vector<2x1xf32> to vector<2x256xf32>
    %346 = arith.mulf %345, %344 : vector<2x256xf32>
    %347 = arith.addf %335, %346 : vector<2x256xf32>
    %c1_186 = arith.constant 1 : index
    %c7_187 = arith.constant 7 : index
    %c0_188 = arith.constant 0 : index
    %c0_189 = arith.constant 0 : index
    %348 = vector.load %arg4[%c1_186, %c7_187, %c0_188, %c0_189] : memref<4x17x2x1xf32, #tpu.memory_space<vmem>>, vector<1x1x2x1xf32>
    %349 = vector.shape_cast %348 : vector<1x1x2x1xf32> to vector<2x1xf32>
    %c208_i32_190 = arith.constant 208 : i32
    %350 = tpu.dynamic_rotate %7 by %c208_i32_190 dim 1 : vector<2x256xf32>, i32 -> vector<2x256xf32>
    %c13_i32_191 = arith.constant 13 : i32
    %351 = vector.broadcast %c13_i32_191 : i32 to vector<1x256xi32>
    %352 = arith.cmpi slt, %0, %351 : vector<1x256xi32>
    %cst_192 = arith.constant 0.000000e+00 : f32
    %353 = vector.shape_cast %352 : vector<1x256xi1> to vector<1x256xi1>
    %354 = vector.broadcast %353 : vector<1x256xi1> to vector<2x256xi1>
    %355 = vector.broadcast %cst_192 : f32 to vector<2x256xf32>
    %356 = arith.select %354, %350, %355 : vector<2x256xi1>, vector<2x256xf32>
    %357 = vector.broadcast %349 : vector<2x1xf32> to vector<2x256xf32>
    %358 = arith.mulf %357, %356 : vector<2x256xf32>
    %359 = arith.addf %347, %358 : vector<2x256xf32>
    %c1_193 = arith.constant 1 : index
    %c8_194 = arith.constant 8 : index
    %c0_195 = arith.constant 0 : index
    %c0_196 = arith.constant 0 : index
    %360 = vector.load %arg4[%c1_193, %c8_194, %c0_195, %c0_196] : memref<4x17x2x1xf32, #tpu.memory_space<vmem>>, vector<1x1x2x1xf32>
    %361 = vector.shape_cast %360 : vector<1x1x2x1xf32> to vector<2x1xf32>
    %c192_i32 = arith.constant 192 : i32
    %362 = tpu.dynamic_rotate %7 by %c192_i32 dim 1 : vector<2x256xf32>, i32 -> vector<2x256xf32>
    %c12_i32 = arith.constant 12 : i32
    %363 = vector.broadcast %c12_i32 : i32 to vector<1x256xi32>
    %364 = arith.cmpi slt, %0, %363 : vector<1x256xi32>
    %cst_197 = arith.constant 0.000000e+00 : f32
    %365 = vector.shape_cast %364 : vector<1x256xi1> to vector<1x256xi1>
    %366 = vector.broadcast %365 : vector<1x256xi1> to vector<2x256xi1>
    %367 = vector.broadcast %cst_197 : f32 to vector<2x256xf32>
    %368 = arith.select %366, %362, %367 : vector<2x256xi1>, vector<2x256xf32>
    %369 = vector.broadcast %361 : vector<2x1xf32> to vector<2x256xf32>
    %370 = arith.mulf %369, %368 : vector<2x256xf32>
    %371 = arith.addf %359, %370 : vector<2x256xf32>
    %c1_198 = arith.constant 1 : index
    %c0_199 = arith.constant 0 : index
    %c0_200 = arith.constant 0 : index
    %372 = vector.load %arg8[%c1_198, %c0_199, %c0_200] : memref<4x2x1xf32, #tpu.memory_space<vmem>>, vector<1x2x1xf32>
    %373 = vector.shape_cast %372 : vector<1x2x1xf32> to vector<2x1xf32>
    %374 = vector.broadcast %373 : vector<2x1xf32> to vector<2x256xf32>
    %375 = arith.mulf %371, %374 : vector<2x256xf32>
    %c1_201 = arith.constant 1 : index
    %c0_202 = arith.constant 0 : index
    %c0_203 = arith.constant 0 : index
    %376 = vector.load %arg9[%c1_201, %c0_202, %c0_203] : memref<4x2x1xf32, #tpu.memory_space<vmem>>, vector<1x2x1xf32>
    %377 = vector.shape_cast %376 : vector<1x2x1xf32> to vector<2x1xf32>
    %378 = vector.broadcast %377 : vector<2x1xf32> to vector<2x256xf32>
    %379 = arith.addf %375, %378 : vector<2x256xf32>
    %cst_204 = arith.constant 0.000000e+00 : f32
    %380 = vector.broadcast %cst_204 : f32 to vector<2x256xf32>
    %381 = arith.cmpf ogt, %379, %380 : vector<2x256xf32>
    %c1_205 = arith.constant 1 : index
    %c0_206 = arith.constant 0 : index
    %c0_207 = arith.constant 0 : index
    %382 = vector.load %arg10[%c1_205, %c0_206, %c0_207] : memref<4x2x1xf32, #tpu.memory_space<vmem>>, vector<1x2x1xf32>
    %383 = vector.shape_cast %382 : vector<1x2x1xf32> to vector<2x1xf32>
    %384 = vector.broadcast %383 : vector<2x1xf32> to vector<2x256xf32>
    %385 = arith.mulf %384, %379 : vector<2x256xf32>
    %386 = arith.select %381, %379, %385 : vector<2x256xi1>, vector<2x256xf32>
    %c1_208 = arith.constant 1 : index
    %c0_209 = arith.constant 0 : index
    %c0_210 = arith.constant 0 : index
    %c0_211 = arith.constant 0 : index
    %387 = vector.load %arg5[%c1_208, %c0_209, %c0_210, %c0_211] : memref<4x17x2x1xf32, #tpu.memory_space<vmem>>, vector<1x1x2x1xf32>
    %388 = vector.shape_cast %387 : vector<1x1x2x1xf32> to vector<2x1xf32>
    %c4_i32_212 = arith.constant 4 : i32
    %389 = tpu.dynamic_rotate %386 by %c4_i32_212 dim 1 : vector<2x256xf32>, i32 -> vector<2x256xf32>
    %c4_i32_213 = arith.constant 4 : i32
    %390 = vector.broadcast %c4_i32_213 : i32 to vector<1x256xi32>
    %391 = arith.cmpi sge, %1, %390 : vector<1x256xi32>
    %cst_214 = arith.constant 0.000000e+00 : f32
    %392 = vector.shape_cast %391 : vector<1x256xi1> to vector<1x256xi1>
    %393 = vector.broadcast %392 : vector<1x256xi1> to vector<2x256xi1>
    %394 = vector.broadcast %cst_214 : f32 to vector<2x256xf32>
    %395 = arith.select %393, %389, %394 : vector<2x256xi1>, vector<2x256xf32>
    %396 = vector.broadcast %388 : vector<2x1xf32> to vector<2x256xf32>
    %397 = arith.mulf %396, %395 : vector<2x256xf32>
    %c1_215 = arith.constant 1 : index
    %c1_216 = arith.constant 1 : index
    %c0_217 = arith.constant 0 : index
    %c0_218 = arith.constant 0 : index
    %398 = vector.load %arg5[%c1_215, %c1_216, %c0_217, %c0_218] : memref<4x17x2x1xf32, #tpu.memory_space<vmem>>, vector<1x1x2x1xf32>
    %399 = vector.shape_cast %398 : vector<1x1x2x1xf32> to vector<2x1xf32>
    %c3_i32_219 = arith.constant 3 : i32
    %400 = tpu.dynamic_rotate %386 by %c3_i32_219 dim 1 : vector<2x256xf32>, i32 -> vector<2x256xf32>
    %c3_i32_220 = arith.constant 3 : i32
    %401 = vector.broadcast %c3_i32_220 : i32 to vector<1x256xi32>
    %402 = arith.cmpi sge, %1, %401 : vector<1x256xi32>
    %cst_221 = arith.constant 0.000000e+00 : f32
    %403 = vector.shape_cast %402 : vector<1x256xi1> to vector<1x256xi1>
    %404 = vector.broadcast %403 : vector<1x256xi1> to vector<2x256xi1>
    %405 = vector.broadcast %cst_221 : f32 to vector<2x256xf32>
    %406 = arith.select %404, %400, %405 : vector<2x256xi1>, vector<2x256xf32>
    %407 = vector.broadcast %399 : vector<2x1xf32> to vector<2x256xf32>
    %408 = arith.mulf %407, %406 : vector<2x256xf32>
    %409 = arith.addf %397, %408 : vector<2x256xf32>
    %c1_222 = arith.constant 1 : index
    %c2_223 = arith.constant 2 : index
    %c0_224 = arith.constant 0 : index
    %c0_225 = arith.constant 0 : index
    %410 = vector.load %arg5[%c1_222, %c2_223, %c0_224, %c0_225] : memref<4x17x2x1xf32, #tpu.memory_space<vmem>>, vector<1x1x2x1xf32>
    %411 = vector.shape_cast %410 : vector<1x1x2x1xf32> to vector<2x1xf32>
    %c2_i32_226 = arith.constant 2 : i32
    %412 = tpu.dynamic_rotate %386 by %c2_i32_226 dim 1 : vector<2x256xf32>, i32 -> vector<2x256xf32>
    %c2_i32_227 = arith.constant 2 : i32
    %413 = vector.broadcast %c2_i32_227 : i32 to vector<1x256xi32>
    %414 = arith.cmpi sge, %1, %413 : vector<1x256xi32>
    %cst_228 = arith.constant 0.000000e+00 : f32
    %415 = vector.shape_cast %414 : vector<1x256xi1> to vector<1x256xi1>
    %416 = vector.broadcast %415 : vector<1x256xi1> to vector<2x256xi1>
    %417 = vector.broadcast %cst_228 : f32 to vector<2x256xf32>
    %418 = arith.select %416, %412, %417 : vector<2x256xi1>, vector<2x256xf32>
    %419 = vector.broadcast %411 : vector<2x1xf32> to vector<2x256xf32>
    %420 = arith.mulf %419, %418 : vector<2x256xf32>
    %421 = arith.addf %409, %420 : vector<2x256xf32>
    %c1_229 = arith.constant 1 : index
    %c3_230 = arith.constant 3 : index
    %c0_231 = arith.constant 0 : index
    %c0_232 = arith.constant 0 : index
    %422 = vector.load %arg5[%c1_229, %c3_230, %c0_231, %c0_232] : memref<4x17x2x1xf32, #tpu.memory_space<vmem>>, vector<1x1x2x1xf32>
    %423 = vector.shape_cast %422 : vector<1x1x2x1xf32> to vector<2x1xf32>
    %c1_i32_233 = arith.constant 1 : i32
    %424 = tpu.dynamic_rotate %386 by %c1_i32_233 dim 1 : vector<2x256xf32>, i32 -> vector<2x256xf32>
    %c1_i32_234 = arith.constant 1 : i32
    %425 = vector.broadcast %c1_i32_234 : i32 to vector<1x256xi32>
    %426 = arith.cmpi sge, %1, %425 : vector<1x256xi32>
    %cst_235 = arith.constant 0.000000e+00 : f32
    %427 = vector.shape_cast %426 : vector<1x256xi1> to vector<1x256xi1>
    %428 = vector.broadcast %427 : vector<1x256xi1> to vector<2x256xi1>
    %429 = vector.broadcast %cst_235 : f32 to vector<2x256xf32>
    %430 = arith.select %428, %424, %429 : vector<2x256xi1>, vector<2x256xf32>
    %431 = vector.broadcast %423 : vector<2x1xf32> to vector<2x256xf32>
    %432 = arith.mulf %431, %430 : vector<2x256xf32>
    %433 = arith.addf %421, %432 : vector<2x256xf32>
    %c1_236 = arith.constant 1 : index
    %c4_237 = arith.constant 4 : index
    %c0_238 = arith.constant 0 : index
    %c0_239 = arith.constant 0 : index
    %434 = vector.load %arg5[%c1_236, %c4_237, %c0_238, %c0_239] : memref<4x17x2x1xf32, #tpu.memory_space<vmem>>, vector<1x1x2x1xf32>
    %435 = vector.shape_cast %434 : vector<1x1x2x1xf32> to vector<2x1xf32>
    %436 = vector.broadcast %435 : vector<2x1xf32> to vector<2x256xf32>
    %437 = arith.mulf %436, %386 : vector<2x256xf32>
    %438 = arith.addf %433, %437 : vector<2x256xf32>
    %c1_240 = arith.constant 1 : index
    %c5_241 = arith.constant 5 : index
    %c0_242 = arith.constant 0 : index
    %c0_243 = arith.constant 0 : index
    %439 = vector.load %arg5[%c1_240, %c5_241, %c0_242, %c0_243] : memref<4x17x2x1xf32, #tpu.memory_space<vmem>>, vector<1x1x2x1xf32>
    %440 = vector.shape_cast %439 : vector<1x1x2x1xf32> to vector<2x1xf32>
    %c255_i32_244 = arith.constant 255 : i32
    %441 = tpu.dynamic_rotate %386 by %c255_i32_244 dim 1 : vector<2x256xf32>, i32 -> vector<2x256xf32>
    %c15_i32_245 = arith.constant 15 : i32
    %442 = vector.broadcast %c15_i32_245 : i32 to vector<1x256xi32>
    %443 = arith.cmpi slt, %1, %442 : vector<1x256xi32>
    %cst_246 = arith.constant 0.000000e+00 : f32
    %444 = vector.shape_cast %443 : vector<1x256xi1> to vector<1x256xi1>
    %445 = vector.broadcast %444 : vector<1x256xi1> to vector<2x256xi1>
    %446 = vector.broadcast %cst_246 : f32 to vector<2x256xf32>
    %447 = arith.select %445, %441, %446 : vector<2x256xi1>, vector<2x256xf32>
    %448 = vector.broadcast %440 : vector<2x1xf32> to vector<2x256xf32>
    %449 = arith.mulf %448, %447 : vector<2x256xf32>
    %450 = arith.addf %438, %449 : vector<2x256xf32>
    %c1_247 = arith.constant 1 : index
    %c6_248 = arith.constant 6 : index
    %c0_249 = arith.constant 0 : index
    %c0_250 = arith.constant 0 : index
    %451 = vector.load %arg5[%c1_247, %c6_248, %c0_249, %c0_250] : memref<4x17x2x1xf32, #tpu.memory_space<vmem>>, vector<1x1x2x1xf32>
    %452 = vector.shape_cast %451 : vector<1x1x2x1xf32> to vector<2x1xf32>
    %c254_i32_251 = arith.constant 254 : i32
    %453 = tpu.dynamic_rotate %386 by %c254_i32_251 dim 1 : vector<2x256xf32>, i32 -> vector<2x256xf32>
    %c14_i32_252 = arith.constant 14 : i32
    %454 = vector.broadcast %c14_i32_252 : i32 to vector<1x256xi32>
    %455 = arith.cmpi slt, %1, %454 : vector<1x256xi32>
    %cst_253 = arith.constant 0.000000e+00 : f32
    %456 = vector.shape_cast %455 : vector<1x256xi1> to vector<1x256xi1>
    %457 = vector.broadcast %456 : vector<1x256xi1> to vector<2x256xi1>
    %458 = vector.broadcast %cst_253 : f32 to vector<2x256xf32>
    %459 = arith.select %457, %453, %458 : vector<2x256xi1>, vector<2x256xf32>
    %460 = vector.broadcast %452 : vector<2x1xf32> to vector<2x256xf32>
    %461 = arith.mulf %460, %459 : vector<2x256xf32>
    %462 = arith.addf %450, %461 : vector<2x256xf32>
    %c1_254 = arith.constant 1 : index
    %c7_255 = arith.constant 7 : index
    %c0_256 = arith.constant 0 : index
    %c0_257 = arith.constant 0 : index
    %463 = vector.load %arg5[%c1_254, %c7_255, %c0_256, %c0_257] : memref<4x17x2x1xf32, #tpu.memory_space<vmem>>, vector<1x1x2x1xf32>
    %464 = vector.shape_cast %463 : vector<1x1x2x1xf32> to vector<2x1xf32>
    %c253_i32_258 = arith.constant 253 : i32
    %465 = tpu.dynamic_rotate %386 by %c253_i32_258 dim 1 : vector<2x256xf32>, i32 -> vector<2x256xf32>
    %c13_i32_259 = arith.constant 13 : i32
    %466 = vector.broadcast %c13_i32_259 : i32 to vector<1x256xi32>
    %467 = arith.cmpi slt, %1, %466 : vector<1x256xi32>
    %cst_260 = arith.constant 0.000000e+00 : f32
    %468 = vector.shape_cast %467 : vector<1x256xi1> to vector<1x256xi1>
    %469 = vector.broadcast %468 : vector<1x256xi1> to vector<2x256xi1>
    %470 = vector.broadcast %cst_260 : f32 to vector<2x256xf32>
    %471 = arith.select %469, %465, %470 : vector<2x256xi1>, vector<2x256xf32>
    %472 = vector.broadcast %464 : vector<2x1xf32> to vector<2x256xf32>
    %473 = arith.mulf %472, %471 : vector<2x256xf32>
    %474 = arith.addf %462, %473 : vector<2x256xf32>
    %c1_261 = arith.constant 1 : index
    %c8_262 = arith.constant 8 : index
    %c0_263 = arith.constant 0 : index
    %c0_264 = arith.constant 0 : index
    %475 = vector.load %arg5[%c1_261, %c8_262, %c0_263, %c0_264] : memref<4x17x2x1xf32, #tpu.memory_space<vmem>>, vector<1x1x2x1xf32>
    %476 = vector.shape_cast %475 : vector<1x1x2x1xf32> to vector<2x1xf32>
    %c252_i32 = arith.constant 252 : i32
    %477 = tpu.dynamic_rotate %386 by %c252_i32 dim 1 : vector<2x256xf32>, i32 -> vector<2x256xf32>
    %c12_i32_265 = arith.constant 12 : i32
    %478 = vector.broadcast %c12_i32_265 : i32 to vector<1x256xi32>
    %479 = arith.cmpi slt, %1, %478 : vector<1x256xi32>
    %cst_266 = arith.constant 0.000000e+00 : f32
    %480 = vector.shape_cast %479 : vector<1x256xi1> to vector<1x256xi1>
    %481 = vector.broadcast %480 : vector<1x256xi1> to vector<2x256xi1>
    %482 = vector.broadcast %cst_266 : f32 to vector<2x256xf32>
    %483 = arith.select %481, %477, %482 : vector<2x256xi1>, vector<2x256xf32>
    %484 = vector.broadcast %476 : vector<2x1xf32> to vector<2x256xf32>
    %485 = arith.mulf %484, %483 : vector<2x256xf32>
    %486 = arith.addf %474, %485 : vector<2x256xf32>
    %c1_267 = arith.constant 1 : index
    %c0_268 = arith.constant 0 : index
    %c0_269 = arith.constant 0 : index
    %487 = vector.load %arg11[%c1_267, %c0_268, %c0_269] : memref<4x2x1xf32, #tpu.memory_space<vmem>>, vector<1x2x1xf32>
    %488 = vector.shape_cast %487 : vector<1x2x1xf32> to vector<2x1xf32>
    %489 = vector.broadcast %488 : vector<2x1xf32> to vector<2x256xf32>
    %490 = arith.mulf %486, %489 : vector<2x256xf32>
    %c1_270 = arith.constant 1 : index
    %c0_271 = arith.constant 0 : index
    %c0_272 = arith.constant 0 : index
    %491 = vector.load %arg12[%c1_270, %c0_271, %c0_272] : memref<4x2x1xf32, #tpu.memory_space<vmem>>, vector<1x2x1xf32>
    %492 = vector.shape_cast %491 : vector<1x2x1xf32> to vector<2x1xf32>
    %493 = vector.broadcast %492 : vector<2x1xf32> to vector<2x256xf32>
    %494 = arith.addf %490, %493 : vector<2x256xf32>
    %c1_273 = arith.constant 1 : index
    %c0_274 = arith.constant 0 : index
    %c0_275 = arith.constant 0 : index
    %c0_276 = arith.constant 0 : index
    %495 = vector.load %arg6[%c1_273, %c0_274, %c0_275, %c0_276] : memref<4x9x2x1xf32, #tpu.memory_space<vmem>>, vector<1x1x2x1xf32>
    %496 = vector.shape_cast %495 : vector<1x1x2x1xf32> to vector<2x1xf32>
    %c85_i32 = arith.constant 85 : i32
    %497 = tpu.dynamic_rotate %494 by %c85_i32 dim 1 : vector<2x256xf32>, i32 -> vector<2x256xf32>
    %c5_i32 = arith.constant 5 : i32
    %498 = vector.broadcast %c5_i32 : i32 to vector<1x256xi32>
    %499 = arith.cmpi sge, %0, %498 : vector<1x256xi32>
    %c5_i32_277 = arith.constant 5 : i32
    %500 = vector.broadcast %c5_i32_277 : i32 to vector<1x256xi32>
    %501 = arith.cmpi sge, %1, %500 : vector<1x256xi32>
    %502 = arith.andi %499, %501 : vector<1x256xi1>
    %cst_278 = arith.constant 0.000000e+00 : f32
    %503 = vector.shape_cast %502 : vector<1x256xi1> to vector<1x256xi1>
    %504 = vector.broadcast %503 : vector<1x256xi1> to vector<2x256xi1>
    %505 = vector.broadcast %cst_278 : f32 to vector<2x256xf32>
    %506 = arith.select %504, %497, %505 : vector<2x256xi1>, vector<2x256xf32>
    %507 = vector.broadcast %496 : vector<2x1xf32> to vector<2x256xf32>
    %508 = arith.mulf %507, %506 : vector<2x256xf32>
    %c1_279 = arith.constant 1 : index
    %c1_280 = arith.constant 1 : index
    %c0_281 = arith.constant 0 : index
    %c0_282 = arith.constant 0 : index
    %509 = vector.load %arg6[%c1_279, %c1_280, %c0_281, %c0_282] : memref<4x9x2x1xf32, #tpu.memory_space<vmem>>, vector<1x1x2x1xf32>
    %510 = vector.shape_cast %509 : vector<1x1x2x1xf32> to vector<2x1xf32>
    %c80_i32 = arith.constant 80 : i32
    %511 = tpu.dynamic_rotate %494 by %c80_i32 dim 1 : vector<2x256xf32>, i32 -> vector<2x256xf32>
    %c5_i32_283 = arith.constant 5 : i32
    %512 = vector.broadcast %c5_i32_283 : i32 to vector<1x256xi32>
    %513 = arith.cmpi sge, %0, %512 : vector<1x256xi32>
    %cst_284 = arith.constant 0.000000e+00 : f32
    %514 = vector.shape_cast %513 : vector<1x256xi1> to vector<1x256xi1>
    %515 = vector.broadcast %514 : vector<1x256xi1> to vector<2x256xi1>
    %516 = vector.broadcast %cst_284 : f32 to vector<2x256xf32>
    %517 = arith.select %515, %511, %516 : vector<2x256xi1>, vector<2x256xf32>
    %518 = vector.broadcast %510 : vector<2x1xf32> to vector<2x256xf32>
    %519 = arith.mulf %518, %517 : vector<2x256xf32>
    %520 = arith.addf %508, %519 : vector<2x256xf32>
    %c1_285 = arith.constant 1 : index
    %c2_286 = arith.constant 2 : index
    %c0_287 = arith.constant 0 : index
    %c0_288 = arith.constant 0 : index
    %521 = vector.load %arg6[%c1_285, %c2_286, %c0_287, %c0_288] : memref<4x9x2x1xf32, #tpu.memory_space<vmem>>, vector<1x1x2x1xf32>
    %522 = vector.shape_cast %521 : vector<1x1x2x1xf32> to vector<2x1xf32>
    %c75_i32 = arith.constant 75 : i32
    %523 = tpu.dynamic_rotate %494 by %c75_i32 dim 1 : vector<2x256xf32>, i32 -> vector<2x256xf32>
    %c5_i32_289 = arith.constant 5 : i32
    %524 = vector.broadcast %c5_i32_289 : i32 to vector<1x256xi32>
    %525 = arith.cmpi sge, %0, %524 : vector<1x256xi32>
    %c11_i32 = arith.constant 11 : i32
    %526 = vector.broadcast %c11_i32 : i32 to vector<1x256xi32>
    %527 = arith.cmpi slt, %1, %526 : vector<1x256xi32>
    %528 = arith.andi %525, %527 : vector<1x256xi1>
    %cst_290 = arith.constant 0.000000e+00 : f32
    %529 = vector.shape_cast %528 : vector<1x256xi1> to vector<1x256xi1>
    %530 = vector.broadcast %529 : vector<1x256xi1> to vector<2x256xi1>
    %531 = vector.broadcast %cst_290 : f32 to vector<2x256xf32>
    %532 = arith.select %530, %523, %531 : vector<2x256xi1>, vector<2x256xf32>
    %533 = vector.broadcast %522 : vector<2x1xf32> to vector<2x256xf32>
    %534 = arith.mulf %533, %532 : vector<2x256xf32>
    %535 = arith.addf %520, %534 : vector<2x256xf32>
    %c1_291 = arith.constant 1 : index
    %c3_292 = arith.constant 3 : index
    %c0_293 = arith.constant 0 : index
    %c0_294 = arith.constant 0 : index
    %536 = vector.load %arg6[%c1_291, %c3_292, %c0_293, %c0_294] : memref<4x9x2x1xf32, #tpu.memory_space<vmem>>, vector<1x1x2x1xf32>
    %537 = vector.shape_cast %536 : vector<1x1x2x1xf32> to vector<2x1xf32>
    %c5_i32_295 = arith.constant 5 : i32
    %538 = tpu.dynamic_rotate %494 by %c5_i32_295 dim 1 : vector<2x256xf32>, i32 -> vector<2x256xf32>
    %c5_i32_296 = arith.constant 5 : i32
    %539 = vector.broadcast %c5_i32_296 : i32 to vector<1x256xi32>
    %540 = arith.cmpi sge, %1, %539 : vector<1x256xi32>
    %cst_297 = arith.constant 0.000000e+00 : f32
    %541 = vector.shape_cast %540 : vector<1x256xi1> to vector<1x256xi1>
    %542 = vector.broadcast %541 : vector<1x256xi1> to vector<2x256xi1>
    %543 = vector.broadcast %cst_297 : f32 to vector<2x256xf32>
    %544 = arith.select %542, %538, %543 : vector<2x256xi1>, vector<2x256xf32>
    %545 = vector.broadcast %537 : vector<2x1xf32> to vector<2x256xf32>
    %546 = arith.mulf %545, %544 : vector<2x256xf32>
    %547 = arith.addf %535, %546 : vector<2x256xf32>
    %c1_298 = arith.constant 1 : index
    %c4_299 = arith.constant 4 : index
    %c0_300 = arith.constant 0 : index
    %c0_301 = arith.constant 0 : index
    %548 = vector.load %arg6[%c1_298, %c4_299, %c0_300, %c0_301] : memref<4x9x2x1xf32, #tpu.memory_space<vmem>>, vector<1x1x2x1xf32>
    %549 = vector.shape_cast %548 : vector<1x1x2x1xf32> to vector<2x1xf32>
    %550 = vector.broadcast %549 : vector<2x1xf32> to vector<2x256xf32>
    %551 = arith.mulf %550, %494 : vector<2x256xf32>
    %552 = arith.addf %547, %551 : vector<2x256xf32>
    %c1_302 = arith.constant 1 : index
    %c5_303 = arith.constant 5 : index
    %c0_304 = arith.constant 0 : index
    %c0_305 = arith.constant 0 : index
    %553 = vector.load %arg6[%c1_302, %c5_303, %c0_304, %c0_305] : memref<4x9x2x1xf32, #tpu.memory_space<vmem>>, vector<1x1x2x1xf32>
    %554 = vector.shape_cast %553 : vector<1x1x2x1xf32> to vector<2x1xf32>
    %c251_i32 = arith.constant 251 : i32
    %555 = tpu.dynamic_rotate %494 by %c251_i32 dim 1 : vector<2x256xf32>, i32 -> vector<2x256xf32>
    %c11_i32_306 = arith.constant 11 : i32
    %556 = vector.broadcast %c11_i32_306 : i32 to vector<1x256xi32>
    %557 = arith.cmpi slt, %1, %556 : vector<1x256xi32>
    %cst_307 = arith.constant 0.000000e+00 : f32
    %558 = vector.shape_cast %557 : vector<1x256xi1> to vector<1x256xi1>
    %559 = vector.broadcast %558 : vector<1x256xi1> to vector<2x256xi1>
    %560 = vector.broadcast %cst_307 : f32 to vector<2x256xf32>
    %561 = arith.select %559, %555, %560 : vector<2x256xi1>, vector<2x256xf32>
    %562 = vector.broadcast %554 : vector<2x1xf32> to vector<2x256xf32>
    %563 = arith.mulf %562, %561 : vector<2x256xf32>
    %564 = arith.addf %552, %563 : vector<2x256xf32>
    %c1_308 = arith.constant 1 : index
    %c6_309 = arith.constant 6 : index
    %c0_310 = arith.constant 0 : index
    %c0_311 = arith.constant 0 : index
    %565 = vector.load %arg6[%c1_308, %c6_309, %c0_310, %c0_311] : memref<4x9x2x1xf32, #tpu.memory_space<vmem>>, vector<1x1x2x1xf32>
    %566 = vector.shape_cast %565 : vector<1x1x2x1xf32> to vector<2x1xf32>
    %c181_i32 = arith.constant 181 : i32
    %567 = tpu.dynamic_rotate %494 by %c181_i32 dim 1 : vector<2x256xf32>, i32 -> vector<2x256xf32>
    %c11_i32_312 = arith.constant 11 : i32
    %568 = vector.broadcast %c11_i32_312 : i32 to vector<1x256xi32>
    %569 = arith.cmpi slt, %0, %568 : vector<1x256xi32>
    %c5_i32_313 = arith.constant 5 : i32
    %570 = vector.broadcast %c5_i32_313 : i32 to vector<1x256xi32>
    %571 = arith.cmpi sge, %1, %570 : vector<1x256xi32>
    %572 = arith.andi %569, %571 : vector<1x256xi1>
    %cst_314 = arith.constant 0.000000e+00 : f32
    %573 = vector.shape_cast %572 : vector<1x256xi1> to vector<1x256xi1>
    %574 = vector.broadcast %573 : vector<1x256xi1> to vector<2x256xi1>
    %575 = vector.broadcast %cst_314 : f32 to vector<2x256xf32>
    %576 = arith.select %574, %567, %575 : vector<2x256xi1>, vector<2x256xf32>
    %577 = vector.broadcast %566 : vector<2x1xf32> to vector<2x256xf32>
    %578 = arith.mulf %577, %576 : vector<2x256xf32>
    %579 = arith.addf %564, %578 : vector<2x256xf32>
    %c1_315 = arith.constant 1 : index
    %c7_316 = arith.constant 7 : index
    %c0_317 = arith.constant 0 : index
    %c0_318 = arith.constant 0 : index
    %580 = vector.load %arg6[%c1_315, %c7_316, %c0_317, %c0_318] : memref<4x9x2x1xf32, #tpu.memory_space<vmem>>, vector<1x1x2x1xf32>
    %581 = vector.shape_cast %580 : vector<1x1x2x1xf32> to vector<2x1xf32>
    %c176_i32 = arith.constant 176 : i32
    %582 = tpu.dynamic_rotate %494 by %c176_i32 dim 1 : vector<2x256xf32>, i32 -> vector<2x256xf32>
    %c11_i32_319 = arith.constant 11 : i32
    %583 = vector.broadcast %c11_i32_319 : i32 to vector<1x256xi32>
    %584 = arith.cmpi slt, %0, %583 : vector<1x256xi32>
    %cst_320 = arith.constant 0.000000e+00 : f32
    %585 = vector.shape_cast %584 : vector<1x256xi1> to vector<1x256xi1>
    %586 = vector.broadcast %585 : vector<1x256xi1> to vector<2x256xi1>
    %587 = vector.broadcast %cst_320 : f32 to vector<2x256xf32>
    %588 = arith.select %586, %582, %587 : vector<2x256xi1>, vector<2x256xf32>
    %589 = vector.broadcast %581 : vector<2x1xf32> to vector<2x256xf32>
    %590 = arith.mulf %589, %588 : vector<2x256xf32>
    %591 = arith.addf %579, %590 : vector<2x256xf32>
    %c1_321 = arith.constant 1 : index
    %c8_322 = arith.constant 8 : index
    %c0_323 = arith.constant 0 : index
    %c0_324 = arith.constant 0 : index
    %592 = vector.load %arg6[%c1_321, %c8_322, %c0_323, %c0_324] : memref<4x9x2x1xf32, #tpu.memory_space<vmem>>, vector<1x1x2x1xf32>
    %593 = vector.shape_cast %592 : vector<1x1x2x1xf32> to vector<2x1xf32>
    %c171_i32 = arith.constant 171 : i32
    %594 = tpu.dynamic_rotate %494 by %c171_i32 dim 1 : vector<2x256xf32>, i32 -> vector<2x256xf32>
    %c11_i32_325 = arith.constant 11 : i32
    %595 = vector.broadcast %c11_i32_325 : i32 to vector<1x256xi32>
    %596 = arith.cmpi slt, %0, %595 : vector<1x256xi32>
    %c11_i32_326 = arith.constant 11 : i32
    %597 = vector.broadcast %c11_i32_326 : i32 to vector<1x256xi32>
    %598 = arith.cmpi slt, %1, %597 : vector<1x256xi32>
    %599 = arith.andi %596, %598 : vector<1x256xi1>
    %cst_327 = arith.constant 0.000000e+00 : f32
    %600 = vector.shape_cast %599 : vector<1x256xi1> to vector<1x256xi1>
    %601 = vector.broadcast %600 : vector<1x256xi1> to vector<2x256xi1>
    %602 = vector.broadcast %cst_327 : f32 to vector<2x256xf32>
    %603 = arith.select %601, %594, %602 : vector<2x256xi1>, vector<2x256xf32>
    %604 = vector.broadcast %593 : vector<2x1xf32> to vector<2x256xf32>
    %605 = arith.mulf %604, %603 : vector<2x256xf32>
    %606 = arith.addf %591, %605 : vector<2x256xf32>
    %c1_328 = arith.constant 1 : index
    %c0_329 = arith.constant 0 : index
    %c0_330 = arith.constant 0 : index
    %607 = vector.load %arg7[%c1_328, %c0_329, %c0_330] : memref<4x2x2xf32, #tpu.memory_space<vmem>>, vector<1x2x2xf32>
    %608 = vector.shape_cast %607 : vector<1x2x2xf32> to vector<2x2xf32>
    %609 = arith.truncf %608 : vector<2x2xf32> to vector<2x2xbf16>
    %610 = arith.truncf %606 : vector<2x256xf32> to vector<2x256xbf16>
    %cst_331 = arith.constant dense<0.000000e+00> : vector<2x256xf32>
    %611 = tpu.matmul %609, %610, %cst_331 {dimension_numbers = #tpu.dot_dimension_numbers<[1], [0], [0], [1], [0, 0, 1, 1], [], []>} : vector<2x2xbf16>, vector<2x256xbf16>, vector<2x256xf32> -> vector<2x256xf32>
    %612 = vector.extract_strided_slice %3 {offsets = [2, 0], sizes = [2, 256], strides = [1, 1]} : vector<8x256xf32> to vector<2x256xf32>
    %613 = arith.addf %611, %612 : vector<2x256xf32>
    %c1_332 = arith.constant 1 : index
    %c0_333 = arith.constant 0 : index
    %c0_334 = arith.constant 0 : index
    %614 = vector.load %arg13[%c1_332, %c0_333, %c0_334] : memref<4x2x1xf32, #tpu.memory_space<vmem>>, vector<1x2x1xf32>
    %615 = vector.shape_cast %614 : vector<1x2x1xf32> to vector<2x1xf32>
    %616 = vector.broadcast %615 : vector<2x1xf32> to vector<2x256xf32>
    %617 = arith.mulf %613, %616 : vector<2x256xf32>
    %c1_335 = arith.constant 1 : index
    %c0_336 = arith.constant 0 : index
    %c0_337 = arith.constant 0 : index
    %618 = vector.load %arg14[%c1_335, %c0_336, %c0_337] : memref<4x2x1xf32, #tpu.memory_space<vmem>>, vector<1x2x1xf32>
    %619 = vector.shape_cast %618 : vector<1x2x1xf32> to vector<2x1xf32>
    %620 = vector.broadcast %619 : vector<2x1xf32> to vector<2x256xf32>
    %621 = arith.addf %617, %620 : vector<2x256xf32>
    %cst_338 = arith.constant 0.000000e+00 : f32
    %622 = vector.broadcast %cst_338 : f32 to vector<2x256xf32>
    %623 = arith.cmpf ogt, %621, %622 : vector<2x256xf32>
    %c1_339 = arith.constant 1 : index
    %c0_340 = arith.constant 0 : index
    %c0_341 = arith.constant 0 : index
    %624 = vector.load %arg15[%c1_339, %c0_340, %c0_341] : memref<4x2x1xf32, #tpu.memory_space<vmem>>, vector<1x2x1xf32>
    %625 = vector.shape_cast %624 : vector<1x2x1xf32> to vector<2x1xf32>
    %626 = vector.broadcast %625 : vector<2x1xf32> to vector<2x256xf32>
    %627 = arith.mulf %626, %621 : vector<2x256xf32>
    %628 = arith.select %623, %621, %627 : vector<2x256xi1>, vector<2x256xf32>
    %c0_342 = arith.constant 0 : index
    %c2_343 = arith.constant 2 : index
    %c0_344 = arith.constant 0 : index
    %629 = vector.load %arg16[%c0_342, %c2_343, %c0_344] : memref<1x8x256xf32, #tpu.memory_space<vmem>>, vector<1x2x256xf32>
    %630 = vector.shape_cast %629 : vector<1x2x256xf32> to vector<2x256xf32>
    %631 = vector.shape_cast %628 : vector<2x256xf32> to vector<1x2x256xf32>
    tpu.vector_store %arg16[%c0_342, %c2_343, %c0_344], %631 {strides = array<i32>} : memref<1x8x256xf32, #tpu.memory_space<vmem>>, vector<1x2x256xf32>,
    %c2_345 = arith.constant 2 : index
    %c0_346 = arith.constant 0 : index
    %c0_347 = arith.constant 0 : index
    %c0_348 = arith.constant 0 : index
    %632 = vector.load %arg4[%c2_345, %c0_346, %c0_347, %c0_348] : memref<4x17x2x1xf32, #tpu.memory_space<vmem>>, vector<1x1x2x1xf32>
    %633 = vector.shape_cast %632 : vector<1x1x2x1xf32> to vector<2x1xf32>
    %c96_i32 = arith.constant 96 : i32
    %634 = tpu.dynamic_rotate %7 by %c96_i32 dim 1 : vector<2x256xf32>, i32 -> vector<2x256xf32>
    %c6_i32 = arith.constant 6 : i32
    %635 = vector.broadcast %c6_i32 : i32 to vector<1x256xi32>
    %636 = arith.cmpi sge, %0, %635 : vector<1x256xi32>
    %cst_349 = arith.constant 0.000000e+00 : f32
    %637 = vector.shape_cast %636 : vector<1x256xi1> to vector<1x256xi1>
    %638 = vector.broadcast %637 : vector<1x256xi1> to vector<2x256xi1>
    %639 = vector.broadcast %cst_349 : f32 to vector<2x256xf32>
    %640 = arith.select %638, %634, %639 : vector<2x256xi1>, vector<2x256xf32>
    %641 = vector.broadcast %633 : vector<2x1xf32> to vector<2x256xf32>
    %642 = arith.mulf %641, %640 : vector<2x256xf32>
    %c2_350 = arith.constant 2 : index
    %c1_351 = arith.constant 1 : index
    %c0_352 = arith.constant 0 : index
    %c0_353 = arith.constant 0 : index
    %643 = vector.load %arg4[%c2_350, %c1_351, %c0_352, %c0_353] : memref<4x17x2x1xf32, #tpu.memory_space<vmem>>, vector<1x1x2x1xf32>
    %644 = vector.shape_cast %643 : vector<1x1x2x1xf32> to vector<2x1xf32>
    %c80_i32_354 = arith.constant 80 : i32
    %645 = tpu.dynamic_rotate %7 by %c80_i32_354 dim 1 : vector<2x256xf32>, i32 -> vector<2x256xf32>
    %c5_i32_355 = arith.constant 5 : i32
    %646 = vector.broadcast %c5_i32_355 : i32 to vector<1x256xi32>
    %647 = arith.cmpi sge, %0, %646 : vector<1x256xi32>
    %cst_356 = arith.constant 0.000000e+00 : f32
    %648 = vector.shape_cast %647 : vector<1x256xi1> to vector<1x256xi1>
    %649 = vector.broadcast %648 : vector<1x256xi1> to vector<2x256xi1>
    %650 = vector.broadcast %cst_356 : f32 to vector<2x256xf32>
    %651 = arith.select %649, %645, %650 : vector<2x256xi1>, vector<2x256xf32>
    %652 = vector.broadcast %644 : vector<2x1xf32> to vector<2x256xf32>
    %653 = arith.mulf %652, %651 : vector<2x256xf32>
    %654 = arith.addf %642, %653 : vector<2x256xf32>
    %c2_357 = arith.constant 2 : index
    %c2_358 = arith.constant 2 : index
    %c0_359 = arith.constant 0 : index
    %c0_360 = arith.constant 0 : index
    %655 = vector.load %arg4[%c2_357, %c2_358, %c0_359, %c0_360] : memref<4x17x2x1xf32, #tpu.memory_space<vmem>>, vector<1x1x2x1xf32>
    %656 = vector.shape_cast %655 : vector<1x1x2x1xf32> to vector<2x1xf32>
    %c64_i32_361 = arith.constant 64 : i32
    %657 = tpu.dynamic_rotate %7 by %c64_i32_361 dim 1 : vector<2x256xf32>, i32 -> vector<2x256xf32>
    %c4_i32_362 = arith.constant 4 : i32
    %658 = vector.broadcast %c4_i32_362 : i32 to vector<1x256xi32>
    %659 = arith.cmpi sge, %0, %658 : vector<1x256xi32>
    %cst_363 = arith.constant 0.000000e+00 : f32
    %660 = vector.shape_cast %659 : vector<1x256xi1> to vector<1x256xi1>
    %661 = vector.broadcast %660 : vector<1x256xi1> to vector<2x256xi1>
    %662 = vector.broadcast %cst_363 : f32 to vector<2x256xf32>
    %663 = arith.select %661, %657, %662 : vector<2x256xi1>, vector<2x256xf32>
    %664 = vector.broadcast %656 : vector<2x1xf32> to vector<2x256xf32>
    %665 = arith.mulf %664, %663 : vector<2x256xf32>
    %666 = arith.addf %654, %665 : vector<2x256xf32>
    %c2_364 = arith.constant 2 : index
    %c3_365 = arith.constant 3 : index
    %c0_366 = arith.constant 0 : index
    %c0_367 = arith.constant 0 : index
    %667 = vector.load %arg4[%c2_364, %c3_365, %c0_366, %c0_367] : memref<4x17x2x1xf32, #tpu.memory_space<vmem>>, vector<1x1x2x1xf32>
    %668 = vector.shape_cast %667 : vector<1x1x2x1xf32> to vector<2x1xf32>
    %c48_i32_368 = arith.constant 48 : i32
    %669 = tpu.dynamic_rotate %7 by %c48_i32_368 dim 1 : vector<2x256xf32>, i32 -> vector<2x256xf32>
    %c3_i32_369 = arith.constant 3 : i32
    %670 = vector.broadcast %c3_i32_369 : i32 to vector<1x256xi32>
    %671 = arith.cmpi sge, %0, %670 : vector<1x256xi32>
    %cst_370 = arith.constant 0.000000e+00 : f32
    %672 = vector.shape_cast %671 : vector<1x256xi1> to vector<1x256xi1>
    %673 = vector.broadcast %672 : vector<1x256xi1> to vector<2x256xi1>
    %674 = vector.broadcast %cst_370 : f32 to vector<2x256xf32>
    %675 = arith.select %673, %669, %674 : vector<2x256xi1>, vector<2x256xf32>
    %676 = vector.broadcast %668 : vector<2x1xf32> to vector<2x256xf32>
    %677 = arith.mulf %676, %675 : vector<2x256xf32>
    %678 = arith.addf %666, %677 : vector<2x256xf32>
    %c2_371 = arith.constant 2 : index
    %c4_372 = arith.constant 4 : index
    %c0_373 = arith.constant 0 : index
    %c0_374 = arith.constant 0 : index
    %679 = vector.load %arg4[%c2_371, %c4_372, %c0_373, %c0_374] : memref<4x17x2x1xf32, #tpu.memory_space<vmem>>, vector<1x1x2x1xf32>
    %680 = vector.shape_cast %679 : vector<1x1x2x1xf32> to vector<2x1xf32>
    %c32_i32_375 = arith.constant 32 : i32
    %681 = tpu.dynamic_rotate %7 by %c32_i32_375 dim 1 : vector<2x256xf32>, i32 -> vector<2x256xf32>
    %c2_i32_376 = arith.constant 2 : i32
    %682 = vector.broadcast %c2_i32_376 : i32 to vector<1x256xi32>
    %683 = arith.cmpi sge, %0, %682 : vector<1x256xi32>
    %cst_377 = arith.constant 0.000000e+00 : f32
    %684 = vector.shape_cast %683 : vector<1x256xi1> to vector<1x256xi1>
    %685 = vector.broadcast %684 : vector<1x256xi1> to vector<2x256xi1>
    %686 = vector.broadcast %cst_377 : f32 to vector<2x256xf32>
    %687 = arith.select %685, %681, %686 : vector<2x256xi1>, vector<2x256xf32>
    %688 = vector.broadcast %680 : vector<2x1xf32> to vector<2x256xf32>
    %689 = arith.mulf %688, %687 : vector<2x256xf32>
    %690 = arith.addf %678, %689 : vector<2x256xf32>
    %c2_378 = arith.constant 2 : index
    %c5_379 = arith.constant 5 : index
    %c0_380 = arith.constant 0 : index
    %c0_381 = arith.constant 0 : index
    %691 = vector.load %arg4[%c2_378, %c5_379, %c0_380, %c0_381] : memref<4x17x2x1xf32, #tpu.memory_space<vmem>>, vector<1x1x2x1xf32>
    %692 = vector.shape_cast %691 : vector<1x1x2x1xf32> to vector<2x1xf32>
    %c16_i32_382 = arith.constant 16 : i32
    %693 = tpu.dynamic_rotate %7 by %c16_i32_382 dim 1 : vector<2x256xf32>, i32 -> vector<2x256xf32>
    %c1_i32_383 = arith.constant 1 : i32
    %694 = vector.broadcast %c1_i32_383 : i32 to vector<1x256xi32>
    %695 = arith.cmpi sge, %0, %694 : vector<1x256xi32>
    %cst_384 = arith.constant 0.000000e+00 : f32
    %696 = vector.shape_cast %695 : vector<1x256xi1> to vector<1x256xi1>
    %697 = vector.broadcast %696 : vector<1x256xi1> to vector<2x256xi1>
    %698 = vector.broadcast %cst_384 : f32 to vector<2x256xf32>
    %699 = arith.select %697, %693, %698 : vector<2x256xi1>, vector<2x256xf32>
    %700 = vector.broadcast %692 : vector<2x1xf32> to vector<2x256xf32>
    %701 = arith.mulf %700, %699 : vector<2x256xf32>
    %702 = arith.addf %690, %701 : vector<2x256xf32>
    %c2_385 = arith.constant 2 : index
    %c6_386 = arith.constant 6 : index
    %c0_387 = arith.constant 0 : index
    %c0_388 = arith.constant 0 : index
    %703 = vector.load %arg4[%c2_385, %c6_386, %c0_387, %c0_388] : memref<4x17x2x1xf32, #tpu.memory_space<vmem>>, vector<1x1x2x1xf32>
    %704 = vector.shape_cast %703 : vector<1x1x2x1xf32> to vector<2x1xf32>
    %705 = vector.broadcast %704 : vector<2x1xf32> to vector<2x256xf32>
    %706 = arith.mulf %705, %7 : vector<2x256xf32>
    %707 = arith.addf %702, %706 : vector<2x256xf32>
    %c2_389 = arith.constant 2 : index
    %c7_390 = arith.constant 7 : index
    %c0_391 = arith.constant 0 : index
    %c0_392 = arith.constant 0 : index
    %708 = vector.load %arg4[%c2_389, %c7_390, %c0_391, %c0_392] : memref<4x17x2x1xf32, #tpu.memory_space<vmem>>, vector<1x1x2x1xf32>
    %709 = vector.shape_cast %708 : vector<1x1x2x1xf32> to vector<2x1xf32>
    %c240_i32_393 = arith.constant 240 : i32
    %710 = tpu.dynamic_rotate %7 by %c240_i32_393 dim 1 : vector<2x256xf32>, i32 -> vector<2x256xf32>
    %c15_i32_394 = arith.constant 15 : i32
    %711 = vector.broadcast %c15_i32_394 : i32 to vector<1x256xi32>
    %712 = arith.cmpi slt, %0, %711 : vector<1x256xi32>
    %cst_395 = arith.constant 0.000000e+00 : f32
    %713 = vector.shape_cast %712 : vector<1x256xi1> to vector<1x256xi1>
    %714 = vector.broadcast %713 : vector<1x256xi1> to vector<2x256xi1>
    %715 = vector.broadcast %cst_395 : f32 to vector<2x256xf32>
    %716 = arith.select %714, %710, %715 : vector<2x256xi1>, vector<2x256xf32>
    %717 = vector.broadcast %709 : vector<2x1xf32> to vector<2x256xf32>
    %718 = arith.mulf %717, %716 : vector<2x256xf32>
    %719 = arith.addf %707, %718 : vector<2x256xf32>
    %c2_396 = arith.constant 2 : index
    %c8_397 = arith.constant 8 : index
    %c0_398 = arith.constant 0 : index
    %c0_399 = arith.constant 0 : index
    %720 = vector.load %arg4[%c2_396, %c8_397, %c0_398, %c0_399] : memref<4x17x2x1xf32, #tpu.memory_space<vmem>>, vector<1x1x2x1xf32>
    %721 = vector.shape_cast %720 : vector<1x1x2x1xf32> to vector<2x1xf32>
    %c224_i32_400 = arith.constant 224 : i32
    %722 = tpu.dynamic_rotate %7 by %c224_i32_400 dim 1 : vector<2x256xf32>, i32 -> vector<2x256xf32>
    %c14_i32_401 = arith.constant 14 : i32
    %723 = vector.broadcast %c14_i32_401 : i32 to vector<1x256xi32>
    %724 = arith.cmpi slt, %0, %723 : vector<1x256xi32>
    %cst_402 = arith.constant 0.000000e+00 : f32
    %725 = vector.shape_cast %724 : vector<1x256xi1> to vector<1x256xi1>
    %726 = vector.broadcast %725 : vector<1x256xi1> to vector<2x256xi1>
    %727 = vector.broadcast %cst_402 : f32 to vector<2x256xf32>
    %728 = arith.select %726, %722, %727 : vector<2x256xi1>, vector<2x256xf32>
    %729 = vector.broadcast %721 : vector<2x1xf32> to vector<2x256xf32>
    %730 = arith.mulf %729, %728 : vector<2x256xf32>
    %731 = arith.addf %719, %730 : vector<2x256xf32>
    %c2_403 = arith.constant 2 : index
    %c9 = arith.constant 9 : index
    %c0_404 = arith.constant 0 : index
    %c0_405 = arith.constant 0 : index
    %732 = vector.load %arg4[%c2_403, %c9, %c0_404, %c0_405] : memref<4x17x2x1xf32, #tpu.memory_space<vmem>>, vector<1x1x2x1xf32>
    %733 = vector.shape_cast %732 : vector<1x1x2x1xf32> to vector<2x1xf32>
    %c208_i32_406 = arith.constant 208 : i32
    %734 = tpu.dynamic_rotate %7 by %c208_i32_406 dim 1 : vector<2x256xf32>, i32 -> vector<2x256xf32>
    %c13_i32_407 = arith.constant 13 : i32
    %735 = vector.broadcast %c13_i32_407 : i32 to vector<1x256xi32>
    %736 = arith.cmpi slt, %0, %735 : vector<1x256xi32>
    %cst_408 = arith.constant 0.000000e+00 : f32
    %737 = vector.shape_cast %736 : vector<1x256xi1> to vector<1x256xi1>
    %738 = vector.broadcast %737 : vector<1x256xi1> to vector<2x256xi1>
    %739 = vector.broadcast %cst_408 : f32 to vector<2x256xf32>
    %740 = arith.select %738, %734, %739 : vector<2x256xi1>, vector<2x256xf32>
    %741 = vector.broadcast %733 : vector<2x1xf32> to vector<2x256xf32>
    %742 = arith.mulf %741, %740 : vector<2x256xf32>
    %743 = arith.addf %731, %742 : vector<2x256xf32>
    %c2_409 = arith.constant 2 : index
    %c10 = arith.constant 10 : index
    %c0_410 = arith.constant 0 : index
    %c0_411 = arith.constant 0 : index
    %744 = vector.load %arg4[%c2_409, %c10, %c0_410, %c0_411] : memref<4x17x2x1xf32, #tpu.memory_space<vmem>>, vector<1x1x2x1xf32>
    %745 = vector.shape_cast %744 : vector<1x1x2x1xf32> to vector<2x1xf32>
    %c192_i32_412 = arith.constant 192 : i32
    %746 = tpu.dynamic_rotate %7 by %c192_i32_412 dim 1 : vector<2x256xf32>, i32 -> vector<2x256xf32>
    %c12_i32_413 = arith.constant 12 : i32
    %747 = vector.broadcast %c12_i32_413 : i32 to vector<1x256xi32>
    %748 = arith.cmpi slt, %0, %747 : vector<1x256xi32>
    %cst_414 = arith.constant 0.000000e+00 : f32
    %749 = vector.shape_cast %748 : vector<1x256xi1> to vector<1x256xi1>
    %750 = vector.broadcast %749 : vector<1x256xi1> to vector<2x256xi1>
    %751 = vector.broadcast %cst_414 : f32 to vector<2x256xf32>
    %752 = arith.select %750, %746, %751 : vector<2x256xi1>, vector<2x256xf32>
    %753 = vector.broadcast %745 : vector<2x1xf32> to vector<2x256xf32>
    %754 = arith.mulf %753, %752 : vector<2x256xf32>
    %755 = arith.addf %743, %754 : vector<2x256xf32>
    %c2_415 = arith.constant 2 : index
    %c11 = arith.constant 11 : index
    %c0_416 = arith.constant 0 : index
    %c0_417 = arith.constant 0 : index
    %756 = vector.load %arg4[%c2_415, %c11, %c0_416, %c0_417] : memref<4x17x2x1xf32, #tpu.memory_space<vmem>>, vector<1x1x2x1xf32>
    %757 = vector.shape_cast %756 : vector<1x1x2x1xf32> to vector<2x1xf32>
    %c176_i32_418 = arith.constant 176 : i32
    %758 = tpu.dynamic_rotate %7 by %c176_i32_418 dim 1 : vector<2x256xf32>, i32 -> vector<2x256xf32>
    %c11_i32_419 = arith.constant 11 : i32
    %759 = vector.broadcast %c11_i32_419 : i32 to vector<1x256xi32>
    %760 = arith.cmpi slt, %0, %759 : vector<1x256xi32>
    %cst_420 = arith.constant 0.000000e+00 : f32
    %761 = vector.shape_cast %760 : vector<1x256xi1> to vector<1x256xi1>
    %762 = vector.broadcast %761 : vector<1x256xi1> to vector<2x256xi1>
    %763 = vector.broadcast %cst_420 : f32 to vector<2x256xf32>
    %764 = arith.select %762, %758, %763 : vector<2x256xi1>, vector<2x256xf32>
    %765 = vector.broadcast %757 : vector<2x1xf32> to vector<2x256xf32>
    %766 = arith.mulf %765, %764 : vector<2x256xf32>
    %767 = arith.addf %755, %766 : vector<2x256xf32>
    %c2_421 = arith.constant 2 : index
    %c12 = arith.constant 12 : index
    %c0_422 = arith.constant 0 : index
    %c0_423 = arith.constant 0 : index
    %768 = vector.load %arg4[%c2_421, %c12, %c0_422, %c0_423] : memref<4x17x2x1xf32, #tpu.memory_space<vmem>>, vector<1x1x2x1xf32>
    %769 = vector.shape_cast %768 : vector<1x1x2x1xf32> to vector<2x1xf32>
    %c160_i32 = arith.constant 160 : i32
    %770 = tpu.dynamic_rotate %7 by %c160_i32 dim 1 : vector<2x256xf32>, i32 -> vector<2x256xf32>
    %c10_i32 = arith.constant 10 : i32
    %771 = vector.broadcast %c10_i32 : i32 to vector<1x256xi32>
    %772 = arith.cmpi slt, %0, %771 : vector<1x256xi32>
    %cst_424 = arith.constant 0.000000e+00 : f32
    %773 = vector.shape_cast %772 : vector<1x256xi1> to vector<1x256xi1>
    %774 = vector.broadcast %773 : vector<1x256xi1> to vector<2x256xi1>
    %775 = vector.broadcast %cst_424 : f32 to vector<2x256xf32>
    %776 = arith.select %774, %770, %775 : vector<2x256xi1>, vector<2x256xf32>
    %777 = vector.broadcast %769 : vector<2x1xf32> to vector<2x256xf32>
    %778 = arith.mulf %777, %776 : vector<2x256xf32>
    %779 = arith.addf %767, %778 : vector<2x256xf32>
    %c2_425 = arith.constant 2 : index
    %c0_426 = arith.constant 0 : index
    %c0_427 = arith.constant 0 : index
    %780 = vector.load %arg8[%c2_425, %c0_426, %c0_427] : memref<4x2x1xf32, #tpu.memory_space<vmem>>, vector<1x2x1xf32>
    %781 = vector.shape_cast %780 : vector<1x2x1xf32> to vector<2x1xf32>
    %782 = vector.broadcast %781 : vector<2x1xf32> to vector<2x256xf32>
    %783 = arith.mulf %779, %782 : vector<2x256xf32>
    %c2_428 = arith.constant 2 : index
    %c0_429 = arith.constant 0 : index
    %c0_430 = arith.constant 0 : index
    %784 = vector.load %arg9[%c2_428, %c0_429, %c0_430] : memref<4x2x1xf32, #tpu.memory_space<vmem>>, vector<1x2x1xf32>
    %785 = vector.shape_cast %784 : vector<1x2x1xf32> to vector<2x1xf32>
    %786 = vector.broadcast %785 : vector<2x1xf32> to vector<2x256xf32>
    %787 = arith.addf %783, %786 : vector<2x256xf32>
    %cst_431 = arith.constant 0.000000e+00 : f32
    %788 = vector.broadcast %cst_431 : f32 to vector<2x256xf32>
    %789 = arith.cmpf ogt, %787, %788 : vector<2x256xf32>
    %c2_432 = arith.constant 2 : index
    %c0_433 = arith.constant 0 : index
    %c0_434 = arith.constant 0 : index
    %790 = vector.load %arg10[%c2_432, %c0_433, %c0_434] : memref<4x2x1xf32, #tpu.memory_space<vmem>>, vector<1x2x1xf32>
    %791 = vector.shape_cast %790 : vector<1x2x1xf32> to vector<2x1xf32>
    %792 = vector.broadcast %791 : vector<2x1xf32> to vector<2x256xf32>
    %793 = arith.mulf %792, %787 : vector<2x256xf32>
    %794 = arith.select %789, %787, %793 : vector<2x256xi1>, vector<2x256xf32>
    %c2_435 = arith.constant 2 : index
    %c0_436 = arith.constant 0 : index
    %c0_437 = arith.constant 0 : index
    %c0_438 = arith.constant 0 : index
    %795 = vector.load %arg5[%c2_435, %c0_436, %c0_437, %c0_438] : memref<4x17x2x1xf32, #tpu.memory_space<vmem>>, vector<1x1x2x1xf32>
    %796 = vector.shape_cast %795 : vector<1x1x2x1xf32> to vector<2x1xf32>
    %c6_i32_439 = arith.constant 6 : i32
    %797 = tpu.dynamic_rotate %794 by %c6_i32_439 dim 1 : vector<2x256xf32>, i32 -> vector<2x256xf32>
    %c6_i32_440 = arith.constant 6 : i32
    %798 = vector.broadcast %c6_i32_440 : i32 to vector<1x256xi32>
    %799 = arith.cmpi sge, %1, %798 : vector<1x256xi32>
    %cst_441 = arith.constant 0.000000e+00 : f32
    %800 = vector.shape_cast %799 : vector<1x256xi1> to vector<1x256xi1>
    %801 = vector.broadcast %800 : vector<1x256xi1> to vector<2x256xi1>
    %802 = vector.broadcast %cst_441 : f32 to vector<2x256xf32>
    %803 = arith.select %801, %797, %802 : vector<2x256xi1>, vector<2x256xf32>
    %804 = vector.broadcast %796 : vector<2x1xf32> to vector<2x256xf32>
    %805 = arith.mulf %804, %803 : vector<2x256xf32>
    %c2_442 = arith.constant 2 : index
    %c1_443 = arith.constant 1 : index
    %c0_444 = arith.constant 0 : index
    %c0_445 = arith.constant 0 : index
    %806 = vector.load %arg5[%c2_442, %c1_443, %c0_444, %c0_445] : memref<4x17x2x1xf32, #tpu.memory_space<vmem>>, vector<1x1x2x1xf32>
    %807 = vector.shape_cast %806 : vector<1x1x2x1xf32> to vector<2x1xf32>
    %c5_i32_446 = arith.constant 5 : i32
    %808 = tpu.dynamic_rotate %794 by %c5_i32_446 dim 1 : vector<2x256xf32>, i32 -> vector<2x256xf32>
    %c5_i32_447 = arith.constant 5 : i32
    %809 = vector.broadcast %c5_i32_447 : i32 to vector<1x256xi32>
    %810 = arith.cmpi sge, %1, %809 : vector<1x256xi32>
    %cst_448 = arith.constant 0.000000e+00 : f32
    %811 = vector.shape_cast %810 : vector<1x256xi1> to vector<1x256xi1>
    %812 = vector.broadcast %811 : vector<1x256xi1> to vector<2x256xi1>
    %813 = vector.broadcast %cst_448 : f32 to vector<2x256xf32>
    %814 = arith.select %812, %808, %813 : vector<2x256xi1>, vector<2x256xf32>
    %815 = vector.broadcast %807 : vector<2x1xf32> to vector<2x256xf32>
    %816 = arith.mulf %815, %814 : vector<2x256xf32>
    %817 = arith.addf %805, %816 : vector<2x256xf32>
    %c2_449 = arith.constant 2 : index
    %c2_450 = arith.constant 2 : index
    %c0_451 = arith.constant 0 : index
    %c0_452 = arith.constant 0 : index
    %818 = vector.load %arg5[%c2_449, %c2_450, %c0_451, %c0_452] : memref<4x17x2x1xf32, #tpu.memory_space<vmem>>, vector<1x1x2x1xf32>
    %819 = vector.shape_cast %818 : vector<1x1x2x1xf32> to vector<2x1xf32>
    %c4_i32_453 = arith.constant 4 : i32
    %820 = tpu.dynamic_rotate %794 by %c4_i32_453 dim 1 : vector<2x256xf32>, i32 -> vector<2x256xf32>
    %c4_i32_454 = arith.constant 4 : i32
    %821 = vector.broadcast %c4_i32_454 : i32 to vector<1x256xi32>
    %822 = arith.cmpi sge, %1, %821 : vector<1x256xi32>
    %cst_455 = arith.constant 0.000000e+00 : f32
    %823 = vector.shape_cast %822 : vector<1x256xi1> to vector<1x256xi1>
    %824 = vector.broadcast %823 : vector<1x256xi1> to vector<2x256xi1>
    %825 = vector.broadcast %cst_455 : f32 to vector<2x256xf32>
    %826 = arith.select %824, %820, %825 : vector<2x256xi1>, vector<2x256xf32>
    %827 = vector.broadcast %819 : vector<2x1xf32> to vector<2x256xf32>
    %828 = arith.mulf %827, %826 : vector<2x256xf32>
    %829 = arith.addf %817, %828 : vector<2x256xf32>
    %c2_456 = arith.constant 2 : index
    %c3_457 = arith.constant 3 : index
    %c0_458 = arith.constant 0 : index
    %c0_459 = arith.constant 0 : index
    %830 = vector.load %arg5[%c2_456, %c3_457, %c0_458, %c0_459] : memref<4x17x2x1xf32, #tpu.memory_space<vmem>>, vector<1x1x2x1xf32>
    %831 = vector.shape_cast %830 : vector<1x1x2x1xf32> to vector<2x1xf32>
    %c3_i32_460 = arith.constant 3 : i32
    %832 = tpu.dynamic_rotate %794 by %c3_i32_460 dim 1 : vector<2x256xf32>, i32 -> vector<2x256xf32>
    %c3_i32_461 = arith.constant 3 : i32
    %833 = vector.broadcast %c3_i32_461 : i32 to vector<1x256xi32>
    %834 = arith.cmpi sge, %1, %833 : vector<1x256xi32>
    %cst_462 = arith.constant 0.000000e+00 : f32
    %835 = vector.shape_cast %834 : vector<1x256xi1> to vector<1x256xi1>
    %836 = vector.broadcast %835 : vector<1x256xi1> to vector<2x256xi1>
    %837 = vector.broadcast %cst_462 : f32 to vector<2x256xf32>
    %838 = arith.select %836, %832, %837 : vector<2x256xi1>, vector<2x256xf32>
    %839 = vector.broadcast %831 : vector<2x1xf32> to vector<2x256xf32>
    %840 = arith.mulf %839, %838 : vector<2x256xf32>
    %841 = arith.addf %829, %840 : vector<2x256xf32>
    %c2_463 = arith.constant 2 : index
    %c4_464 = arith.constant 4 : index
    %c0_465 = arith.constant 0 : index
    %c0_466 = arith.constant 0 : index
    %842 = vector.load %arg5[%c2_463, %c4_464, %c0_465, %c0_466] : memref<4x17x2x1xf32, #tpu.memory_space<vmem>>, vector<1x1x2x1xf32>
    %843 = vector.shape_cast %842 : vector<1x1x2x1xf32> to vector<2x1xf32>
    %c2_i32_467 = arith.constant 2 : i32
    %844 = tpu.dynamic_rotate %794 by %c2_i32_467 dim 1 : vector<2x256xf32>, i32 -> vector<2x256xf32>
    %c2_i32_468 = arith.constant 2 : i32
    %845 = vector.broadcast %c2_i32_468 : i32 to vector<1x256xi32>
    %846 = arith.cmpi sge, %1, %845 : vector<1x256xi32>
    %cst_469 = arith.constant 0.000000e+00 : f32
    %847 = vector.shape_cast %846 : vector<1x256xi1> to vector<1x256xi1>
    %848 = vector.broadcast %847 : vector<1x256xi1> to vector<2x256xi1>
    %849 = vector.broadcast %cst_469 : f32 to vector<2x256xf32>
    %850 = arith.select %848, %844, %849 : vector<2x256xi1>, vector<2x256xf32>
    %851 = vector.broadcast %843 : vector<2x1xf32> to vector<2x256xf32>
    %852 = arith.mulf %851, %850 : vector<2x256xf32>
    %853 = arith.addf %841, %852 : vector<2x256xf32>
    %c2_470 = arith.constant 2 : index
    %c5_471 = arith.constant 5 : index
    %c0_472 = arith.constant 0 : index
    %c0_473 = arith.constant 0 : index
    %854 = vector.load %arg5[%c2_470, %c5_471, %c0_472, %c0_473] : memref<4x17x2x1xf32, #tpu.memory_space<vmem>>, vector<1x1x2x1xf32>
    %855 = vector.shape_cast %854 : vector<1x1x2x1xf32> to vector<2x1xf32>
    %c1_i32_474 = arith.constant 1 : i32
    %856 = tpu.dynamic_rotate %794 by %c1_i32_474 dim 1 : vector<2x256xf32>, i32 -> vector<2x256xf32>
    %c1_i32_475 = arith.constant 1 : i32
    %857 = vector.broadcast %c1_i32_475 : i32 to vector<1x256xi32>
    %858 = arith.cmpi sge, %1, %857 : vector<1x256xi32>
    %cst_476 = arith.constant 0.000000e+00 : f32
    %859 = vector.shape_cast %858 : vector<1x256xi1> to vector<1x256xi1>
    %860 = vector.broadcast %859 : vector<1x256xi1> to vector<2x256xi1>
    %861 = vector.broadcast %cst_476 : f32 to vector<2x256xf32>
    %862 = arith.select %860, %856, %861 : vector<2x256xi1>, vector<2x256xf32>
    %863 = vector.broadcast %855 : vector<2x1xf32> to vector<2x256xf32>
    %864 = arith.mulf %863, %862 : vector<2x256xf32>
    %865 = arith.addf %853, %864 : vector<2x256xf32>
    %c2_477 = arith.constant 2 : index
    %c6_478 = arith.constant 6 : index
    %c0_479 = arith.constant 0 : index
    %c0_480 = arith.constant 0 : index
    %866 = vector.load %arg5[%c2_477, %c6_478, %c0_479, %c0_480] : memref<4x17x2x1xf32, #tpu.memory_space<vmem>>, vector<1x1x2x1xf32>
    %867 = vector.shape_cast %866 : vector<1x1x2x1xf32> to vector<2x1xf32>
    %868 = vector.broadcast %867 : vector<2x1xf32> to vector<2x256xf32>
    %869 = arith.mulf %868, %794 : vector<2x256xf32>
    %870 = arith.addf %865, %869 : vector<2x256xf32>
    %c2_481 = arith.constant 2 : index
    %c7_482 = arith.constant 7 : index
    %c0_483 = arith.constant 0 : index
    %c0_484 = arith.constant 0 : index
    %871 = vector.load %arg5[%c2_481, %c7_482, %c0_483, %c0_484] : memref<4x17x2x1xf32, #tpu.memory_space<vmem>>, vector<1x1x2x1xf32>
    %872 = vector.shape_cast %871 : vector<1x1x2x1xf32> to vector<2x1xf32>
    %c255_i32_485 = arith.constant 255 : i32
    %873 = tpu.dynamic_rotate %794 by %c255_i32_485 dim 1 : vector<2x256xf32>, i32 -> vector<2x256xf32>
    %c15_i32_486 = arith.constant 15 : i32
    %874 = vector.broadcast %c15_i32_486 : i32 to vector<1x256xi32>
    %875 = arith.cmpi slt, %1, %874 : vector<1x256xi32>
    %cst_487 = arith.constant 0.000000e+00 : f32
    %876 = vector.shape_cast %875 : vector<1x256xi1> to vector<1x256xi1>
    %877 = vector.broadcast %876 : vector<1x256xi1> to vector<2x256xi1>
    %878 = vector.broadcast %cst_487 : f32 to vector<2x256xf32>
    %879 = arith.select %877, %873, %878 : vector<2x256xi1>, vector<2x256xf32>
    %880 = vector.broadcast %872 : vector<2x1xf32> to vector<2x256xf32>
    %881 = arith.mulf %880, %879 : vector<2x256xf32>
    %882 = arith.addf %870, %881 : vector<2x256xf32>
    %c2_488 = arith.constant 2 : index
    %c8_489 = arith.constant 8 : index
    %c0_490 = arith.constant 0 : index
    %c0_491 = arith.constant 0 : index
    %883 = vector.load %arg5[%c2_488, %c8_489, %c0_490, %c0_491] : memref<4x17x2x1xf32, #tpu.memory_space<vmem>>, vector<1x1x2x1xf32>
    %884 = vector.shape_cast %883 : vector<1x1x2x1xf32> to vector<2x1xf32>
    %c254_i32_492 = arith.constant 254 : i32
    %885 = tpu.dynamic_rotate %794 by %c254_i32_492 dim 1 : vector<2x256xf32>, i32 -> vector<2x256xf32>
    %c14_i32_493 = arith.constant 14 : i32
    %886 = vector.broadcast %c14_i32_493 : i32 to vector<1x256xi32>
    %887 = arith.cmpi slt, %1, %886 : vector<1x256xi32>
    %cst_494 = arith.constant 0.000000e+00 : f32
    %888 = vector.shape_cast %887 : vector<1x256xi1> to vector<1x256xi1>
    %889 = vector.broadcast %888 : vector<1x256xi1> to vector<2x256xi1>
    %890 = vector.broadcast %cst_494 : f32 to vector<2x256xf32>
    %891 = arith.select %889, %885, %890 : vector<2x256xi1>, vector<2x256xf32>
    %892 = vector.broadcast %884 : vector<2x1xf32> to vector<2x256xf32>
    %893 = arith.mulf %892, %891 : vector<2x256xf32>
    %894 = arith.addf %882, %893 : vector<2x256xf32>
    %c2_495 = arith.constant 2 : index
    %c9_496 = arith.constant 9 : index
    %c0_497 = arith.constant 0 : index
    %c0_498 = arith.constant 0 : index
    %895 = vector.load %arg5[%c2_495, %c9_496, %c0_497, %c0_498] : memref<4x17x2x1xf32, #tpu.memory_space<vmem>>, vector<1x1x2x1xf32>
    %896 = vector.shape_cast %895 : vector<1x1x2x1xf32> to vector<2x1xf32>
    %c253_i32_499 = arith.constant 253 : i32
    %897 = tpu.dynamic_rotate %794 by %c253_i32_499 dim 1 : vector<2x256xf32>, i32 -> vector<2x256xf32>
    %c13_i32_500 = arith.constant 13 : i32
    %898 = vector.broadcast %c13_i32_500 : i32 to vector<1x256xi32>
    %899 = arith.cmpi slt, %1, %898 : vector<1x256xi32>
    %cst_501 = arith.constant 0.000000e+00 : f32
    %900 = vector.shape_cast %899 : vector<1x256xi1> to vector<1x256xi1>
    %901 = vector.broadcast %900 : vector<1x256xi1> to vector<2x256xi1>
    %902 = vector.broadcast %cst_501 : f32 to vector<2x256xf32>
    %903 = arith.select %901, %897, %902 : vector<2x256xi1>, vector<2x256xf32>
    %904 = vector.broadcast %896 : vector<2x1xf32> to vector<2x256xf32>
    %905 = arith.mulf %904, %903 : vector<2x256xf32>
    %906 = arith.addf %894, %905 : vector<2x256xf32>
    %c2_502 = arith.constant 2 : index
    %c10_503 = arith.constant 10 : index
    %c0_504 = arith.constant 0 : index
    %c0_505 = arith.constant 0 : index
    %907 = vector.load %arg5[%c2_502, %c10_503, %c0_504, %c0_505] : memref<4x17x2x1xf32, #tpu.memory_space<vmem>>, vector<1x1x2x1xf32>
    %908 = vector.shape_cast %907 : vector<1x1x2x1xf32> to vector<2x1xf32>
    %c252_i32_506 = arith.constant 252 : i32
    %909 = tpu.dynamic_rotate %794 by %c252_i32_506 dim 1 : vector<2x256xf32>, i32 -> vector<2x256xf32>
    %c12_i32_507 = arith.constant 12 : i32
    %910 = vector.broadcast %c12_i32_507 : i32 to vector<1x256xi32>
    %911 = arith.cmpi slt, %1, %910 : vector<1x256xi32>
    %cst_508 = arith.constant 0.000000e+00 : f32
    %912 = vector.shape_cast %911 : vector<1x256xi1> to vector<1x256xi1>
    %913 = vector.broadcast %912 : vector<1x256xi1> to vector<2x256xi1>
    %914 = vector.broadcast %cst_508 : f32 to vector<2x256xf32>
    %915 = arith.select %913, %909, %914 : vector<2x256xi1>, vector<2x256xf32>
    %916 = vector.broadcast %908 : vector<2x1xf32> to vector<2x256xf32>
    %917 = arith.mulf %916, %915 : vector<2x256xf32>
    %918 = arith.addf %906, %917 : vector<2x256xf32>
    %c2_509 = arith.constant 2 : index
    %c11_510 = arith.constant 11 : index
    %c0_511 = arith.constant 0 : index
    %c0_512 = arith.constant 0 : index
    %919 = vector.load %arg5[%c2_509, %c11_510, %c0_511, %c0_512] : memref<4x17x2x1xf32, #tpu.memory_space<vmem>>, vector<1x1x2x1xf32>
    %920 = vector.shape_cast %919 : vector<1x1x2x1xf32> to vector<2x1xf32>
    %c251_i32_513 = arith.constant 251 : i32
    %921 = tpu.dynamic_rotate %794 by %c251_i32_513 dim 1 : vector<2x256xf32>, i32 -> vector<2x256xf32>
    %c11_i32_514 = arith.constant 11 : i32
    %922 = vector.broadcast %c11_i32_514 : i32 to vector<1x256xi32>
    %923 = arith.cmpi slt, %1, %922 : vector<1x256xi32>
    %cst_515 = arith.constant 0.000000e+00 : f32
    %924 = vector.shape_cast %923 : vector<1x256xi1> to vector<1x256xi1>
    %925 = vector.broadcast %924 : vector<1x256xi1> to vector<2x256xi1>
    %926 = vector.broadcast %cst_515 : f32 to vector<2x256xf32>
    %927 = arith.select %925, %921, %926 : vector<2x256xi1>, vector<2x256xf32>
    %928 = vector.broadcast %920 : vector<2x1xf32> to vector<2x256xf32>
    %929 = arith.mulf %928, %927 : vector<2x256xf32>
    %930 = arith.addf %918, %929 : vector<2x256xf32>
    %c2_516 = arith.constant 2 : index
    %c12_517 = arith.constant 12 : index
    %c0_518 = arith.constant 0 : index
    %c0_519 = arith.constant 0 : index
    %931 = vector.load %arg5[%c2_516, %c12_517, %c0_518, %c0_519] : memref<4x17x2x1xf32, #tpu.memory_space<vmem>>, vector<1x1x2x1xf32>
    %932 = vector.shape_cast %931 : vector<1x1x2x1xf32> to vector<2x1xf32>
    %c250_i32 = arith.constant 250 : i32
    %933 = tpu.dynamic_rotate %794 by %c250_i32 dim 1 : vector<2x256xf32>, i32 -> vector<2x256xf32>
    %c10_i32_520 = arith.constant 10 : i32
    %934 = vector.broadcast %c10_i32_520 : i32 to vector<1x256xi32>
    %935 = arith.cmpi slt, %1, %934 : vector<1x256xi32>
    %cst_521 = arith.constant 0.000000e+00 : f32
    %936 = vector.shape_cast %935 : vector<1x256xi1> to vector<1x256xi1>
    %937 = vector.broadcast %936 : vector<1x256xi1> to vector<2x256xi1>
    %938 = vector.broadcast %cst_521 : f32 to vector<2x256xf32>
    %939 = arith.select %937, %933, %938 : vector<2x256xi1>, vector<2x256xf32>
    %940 = vector.broadcast %932 : vector<2x1xf32> to vector<2x256xf32>
    %941 = arith.mulf %940, %939 : vector<2x256xf32>
    %942 = arith.addf %930, %941 : vector<2x256xf32>
    %c2_522 = arith.constant 2 : index
    %c0_523 = arith.constant 0 : index
    %c0_524 = arith.constant 0 : index
    %943 = vector.load %arg11[%c2_522, %c0_523, %c0_524] : memref<4x2x1xf32, #tpu.memory_space<vmem>>, vector<1x2x1xf32>
    %944 = vector.shape_cast %943 : vector<1x2x1xf32> to vector<2x1xf32>
    %945 = vector.broadcast %944 : vector<2x1xf32> to vector<2x256xf32>
    %946 = arith.mulf %942, %945 : vector<2x256xf32>
    %c2_525 = arith.constant 2 : index
    %c0_526 = arith.constant 0 : index
    %c0_527 = arith.constant 0 : index
    %947 = vector.load %arg12[%c2_525, %c0_526, %c0_527] : memref<4x2x1xf32, #tpu.memory_space<vmem>>, vector<1x2x1xf32>
    %948 = vector.shape_cast %947 : vector<1x2x1xf32> to vector<2x1xf32>
    %949 = vector.broadcast %948 : vector<2x1xf32> to vector<2x256xf32>
    %950 = arith.addf %946, %949 : vector<2x256xf32>
    %c2_528 = arith.constant 2 : index
    %c0_529 = arith.constant 0 : index
    %c0_530 = arith.constant 0 : index
    %c0_531 = arith.constant 0 : index
    %951 = vector.load %arg6[%c2_528, %c0_529, %c0_530, %c0_531] : memref<4x9x2x1xf32, #tpu.memory_space<vmem>>, vector<1x1x2x1xf32>
    %952 = vector.shape_cast %951 : vector<1x1x2x1xf32> to vector<2x1xf32>
    %c119_i32 = arith.constant 119 : i32
    %953 = tpu.dynamic_rotate %950 by %c119_i32 dim 1 : vector<2x256xf32>, i32 -> vector<2x256xf32>
    %c7_i32 = arith.constant 7 : i32
    %954 = vector.broadcast %c7_i32 : i32 to vector<1x256xi32>
    %955 = arith.cmpi sge, %0, %954 : vector<1x256xi32>
    %c7_i32_532 = arith.constant 7 : i32
    %956 = vector.broadcast %c7_i32_532 : i32 to vector<1x256xi32>
    %957 = arith.cmpi sge, %1, %956 : vector<1x256xi32>
    %958 = arith.andi %955, %957 : vector<1x256xi1>
    %cst_533 = arith.constant 0.000000e+00 : f32
    %959 = vector.shape_cast %958 : vector<1x256xi1> to vector<1x256xi1>
    %960 = vector.broadcast %959 : vector<1x256xi1> to vector<2x256xi1>
    %961 = vector.broadcast %cst_533 : f32 to vector<2x256xf32>
    %962 = arith.select %960, %953, %961 : vector<2x256xi1>, vector<2x256xf32>
    %963 = vector.broadcast %952 : vector<2x1xf32> to vector<2x256xf32>
    %964 = arith.mulf %963, %962 : vector<2x256xf32>
    %c2_534 = arith.constant 2 : index
    %c1_535 = arith.constant 1 : index
    %c0_536 = arith.constant 0 : index
    %c0_537 = arith.constant 0 : index
    %965 = vector.load %arg6[%c2_534, %c1_535, %c0_536, %c0_537] : memref<4x9x2x1xf32, #tpu.memory_space<vmem>>, vector<1x1x2x1xf32>
    %966 = vector.shape_cast %965 : vector<1x1x2x1xf32> to vector<2x1xf32>
    %c112_i32 = arith.constant 112 : i32
    %967 = tpu.dynamic_rotate %950 by %c112_i32 dim 1 : vector<2x256xf32>, i32 -> vector<2x256xf32>
    %c7_i32_538 = arith.constant 7 : i32
    %968 = vector.broadcast %c7_i32_538 : i32 to vector<1x256xi32>
    %969 = arith.cmpi sge, %0, %968 : vector<1x256xi32>
    %cst_539 = arith.constant 0.000000e+00 : f32
    %970 = vector.shape_cast %969 : vector<1x256xi1> to vector<1x256xi1>
    %971 = vector.broadcast %970 : vector<1x256xi1> to vector<2x256xi1>
    %972 = vector.broadcast %cst_539 : f32 to vector<2x256xf32>
    %973 = arith.select %971, %967, %972 : vector<2x256xi1>, vector<2x256xf32>
    %974 = vector.broadcast %966 : vector<2x1xf32> to vector<2x256xf32>
    %975 = arith.mulf %974, %973 : vector<2x256xf32>
    %976 = arith.addf %964, %975 : vector<2x256xf32>
    %c2_540 = arith.constant 2 : index
    %c2_541 = arith.constant 2 : index
    %c0_542 = arith.constant 0 : index
    %c0_543 = arith.constant 0 : index
    %977 = vector.load %arg6[%c2_540, %c2_541, %c0_542, %c0_543] : memref<4x9x2x1xf32, #tpu.memory_space<vmem>>, vector<1x1x2x1xf32>
    %978 = vector.shape_cast %977 : vector<1x1x2x1xf32> to vector<2x1xf32>
    %c105_i32 = arith.constant 105 : i32
    %979 = tpu.dynamic_rotate %950 by %c105_i32 dim 1 : vector<2x256xf32>, i32 -> vector<2x256xf32>
    %c7_i32_544 = arith.constant 7 : i32
    %980 = vector.broadcast %c7_i32_544 : i32 to vector<1x256xi32>
    %981 = arith.cmpi sge, %0, %980 : vector<1x256xi32>
    %c9_i32 = arith.constant 9 : i32
    %982 = vector.broadcast %c9_i32 : i32 to vector<1x256xi32>
    %983 = arith.cmpi slt, %1, %982 : vector<1x256xi32>
    %984 = arith.andi %981, %983 : vector<1x256xi1>
    %cst_545 = arith.constant 0.000000e+00 : f32
    %985 = vector.shape_cast %984 : vector<1x256xi1> to vector<1x256xi1>
    %986 = vector.broadcast %985 : vector<1x256xi1> to vector<2x256xi1>
    %987 = vector.broadcast %cst_545 : f32 to vector<2x256xf32>
    %988 = arith.select %986, %979, %987 : vector<2x256xi1>, vector<2x256xf32>
    %989 = vector.broadcast %978 : vector<2x1xf32> to vector<2x256xf32>
    %990 = arith.mulf %989, %988 : vector<2x256xf32>
    %991 = arith.addf %976, %990 : vector<2x256xf32>
    %c2_546 = arith.constant 2 : index
    %c3_547 = arith.constant 3 : index
    %c0_548 = arith.constant 0 : index
    %c0_549 = arith.constant 0 : index
    %992 = vector.load %arg6[%c2_546, %c3_547, %c0_548, %c0_549] : memref<4x9x2x1xf32, #tpu.memory_space<vmem>>, vector<1x1x2x1xf32>
    %993 = vector.shape_cast %992 : vector<1x1x2x1xf32> to vector<2x1xf32>
    %c7_i32_550 = arith.constant 7 : i32
    %994 = tpu.dynamic_rotate %950 by %c7_i32_550 dim 1 : vector<2x256xf32>, i32 -> vector<2x256xf32>
    %c7_i32_551 = arith.constant 7 : i32
    %995 = vector.broadcast %c7_i32_551 : i32 to vector<1x256xi32>
    %996 = arith.cmpi sge, %1, %995 : vector<1x256xi32>
    %cst_552 = arith.constant 0.000000e+00 : f32
    %997 = vector.shape_cast %996 : vector<1x256xi1> to vector<1x256xi1>
    %998 = vector.broadcast %997 : vector<1x256xi1> to vector<2x256xi1>
    %999 = vector.broadcast %cst_552 : f32 to vector<2x256xf32>
    %1000 = arith.select %998, %994, %999 : vector<2x256xi1>, vector<2x256xf32>
    %1001 = vector.broadcast %993 : vector<2x1xf32> to vector<2x256xf32>
    %1002 = arith.mulf %1001, %1000 : vector<2x256xf32>
    %1003 = arith.addf %991, %1002 : vector<2x256xf32>
    %c2_553 = arith.constant 2 : index
    %c4_554 = arith.constant 4 : index
    %c0_555 = arith.constant 0 : index
    %c0_556 = arith.constant 0 : index
    %1004 = vector.load %arg6[%c2_553, %c4_554, %c0_555, %c0_556] : memref<4x9x2x1xf32, #tpu.memory_space<vmem>>, vector<1x1x2x1xf32>
    %1005 = vector.shape_cast %1004 : vector<1x1x2x1xf32> to vector<2x1xf32>
    %1006 = vector.broadcast %1005 : vector<2x1xf32> to vector<2x256xf32>
    %1007 = arith.mulf %1006, %950 : vector<2x256xf32>
    %1008 = arith.addf %1003, %1007 : vector<2x256xf32>
    %c2_557 = arith.constant 2 : index
    %c5_558 = arith.constant 5 : index
    %c0_559 = arith.constant 0 : index
    %c0_560 = arith.constant 0 : index
    %1009 = vector.load %arg6[%c2_557, %c5_558, %c0_559, %c0_560] : memref<4x9x2x1xf32, #tpu.memory_space<vmem>>, vector<1x1x2x1xf32>
    %1010 = vector.shape_cast %1009 : vector<1x1x2x1xf32> to vector<2x1xf32>
    %c249_i32 = arith.constant 249 : i32
    %1011 = tpu.dynamic_rotate %950 by %c249_i32 dim 1 : vector<2x256xf32>, i32 -> vector<2x256xf32>
    %c9_i32_561 = arith.constant 9 : i32
    %1012 = vector.broadcast %c9_i32_561 : i32 to vector<1x256xi32>
    %1013 = arith.cmpi slt, %1, %1012 : vector<1x256xi32>
    %cst_562 = arith.constant 0.000000e+00 : f32
    %1014 = vector.shape_cast %1013 : vector<1x256xi1> to vector<1x256xi1>
    %1015 = vector.broadcast %1014 : vector<1x256xi1> to vector<2x256xi1>
    %1016 = vector.broadcast %cst_562 : f32 to vector<2x256xf32>
    %1017 = arith.select %1015, %1011, %1016 : vector<2x256xi1>, vector<2x256xf32>
    %1018 = vector.broadcast %1010 : vector<2x1xf32> to vector<2x256xf32>
    %1019 = arith.mulf %1018, %1017 : vector<2x256xf32>
    %1020 = arith.addf %1008, %1019 : vector<2x256xf32>
    %c2_563 = arith.constant 2 : index
    %c6_564 = arith.constant 6 : index
    %c0_565 = arith.constant 0 : index
    %c0_566 = arith.constant 0 : index
    %1021 = vector.load %arg6[%c2_563, %c6_564, %c0_565, %c0_566] : memref<4x9x2x1xf32, #tpu.memory_space<vmem>>, vector<1x1x2x1xf32>
    %1022 = vector.shape_cast %1021 : vector<1x1x2x1xf32> to vector<2x1xf32>
    %c151_i32 = arith.constant 151 : i32
    %1023 = tpu.dynamic_rotate %950 by %c151_i32 dim 1 : vector<2x256xf32>, i32 -> vector<2x256xf32>
    %c9_i32_567 = arith.constant 9 : i32
    %1024 = vector.broadcast %c9_i32_567 : i32 to vector<1x256xi32>
    %1025 = arith.cmpi slt, %0, %1024 : vector<1x256xi32>
    %c7_i32_568 = arith.constant 7 : i32
    %1026 = vector.broadcast %c7_i32_568 : i32 to vector<1x256xi32>
    %1027 = arith.cmpi sge, %1, %1026 : vector<1x256xi32>
    %1028 = arith.andi %1025, %1027 : vector<1x256xi1>
    %cst_569 = arith.constant 0.000000e+00 : f32
    %1029 = vector.shape_cast %1028 : vector<1x256xi1> to vector<1x256xi1>
    %1030 = vector.broadcast %1029 : vector<1x256xi1> to vector<2x256xi1>
    %1031 = vector.broadcast %cst_569 : f32 to vector<2x256xf32>
    %1032 = arith.select %1030, %1023, %1031 : vector<2x256xi1>, vector<2x256xf32>
    %1033 = vector.broadcast %1022 : vector<2x1xf32> to vector<2x256xf32>
    %1034 = arith.mulf %1033, %1032 : vector<2x256xf32>
    %1035 = arith.addf %1020, %1034 : vector<2x256xf32>
    %c2_570 = arith.constant 2 : index
    %c7_571 = arith.constant 7 : index
    %c0_572 = arith.constant 0 : index
    %c0_573 = arith.constant 0 : index
    %1036 = vector.load %arg6[%c2_570, %c7_571, %c0_572, %c0_573] : memref<4x9x2x1xf32, #tpu.memory_space<vmem>>, vector<1x1x2x1xf32>
    %1037 = vector.shape_cast %1036 : vector<1x1x2x1xf32> to vector<2x1xf32>
    %c144_i32 = arith.constant 144 : i32
    %1038 = tpu.dynamic_rotate %950 by %c144_i32 dim 1 : vector<2x256xf32>, i32 -> vector<2x256xf32>
    %c9_i32_574 = arith.constant 9 : i32
    %1039 = vector.broadcast %c9_i32_574 : i32 to vector<1x256xi32>
    %1040 = arith.cmpi slt, %0, %1039 : vector<1x256xi32>
    %cst_575 = arith.constant 0.000000e+00 : f32
    %1041 = vector.shape_cast %1040 : vector<1x256xi1> to vector<1x256xi1>
    %1042 = vector.broadcast %1041 : vector<1x256xi1> to vector<2x256xi1>
    %1043 = vector.broadcast %cst_575 : f32 to vector<2x256xf32>
    %1044 = arith.select %1042, %1038, %1043 : vector<2x256xi1>, vector<2x256xf32>
    %1045 = vector.broadcast %1037 : vector<2x1xf32> to vector<2x256xf32>
    %1046 = arith.mulf %1045, %1044 : vector<2x256xf32>
    %1047 = arith.addf %1035, %1046 : vector<2x256xf32>
    %c2_576 = arith.constant 2 : index
    %c8_577 = arith.constant 8 : index
    %c0_578 = arith.constant 0 : index
    %c0_579 = arith.constant 0 : index
    %1048 = vector.load %arg6[%c2_576, %c8_577, %c0_578, %c0_579] : memref<4x9x2x1xf32, #tpu.memory_space<vmem>>, vector<1x1x2x1xf32>
    %1049 = vector.shape_cast %1048 : vector<1x1x2x1xf32> to vector<2x1xf32>
    %c137_i32 = arith.constant 137 : i32
    %1050 = tpu.dynamic_rotate %950 by %c137_i32 dim 1 : vector<2x256xf32>, i32 -> vector<2x256xf32>
    %c9_i32_580 = arith.constant 9 : i32
    %1051 = vector.broadcast %c9_i32_580 : i32 to vector<1x256xi32>
    %1052 = arith.cmpi slt, %0, %1051 : vector<1x256xi32>
    %c9_i32_581 = arith.constant 9 : i32
    %1053 = vector.broadcast %c9_i32_581 : i32 to vector<1x256xi32>
    %1054 = arith.cmpi slt, %1, %1053 : vector<1x256xi32>
    %1055 = arith.andi %1052, %1054 : vector<1x256xi1>
    %cst_582 = arith.constant 0.000000e+00 : f32
    %1056 = vector.shape_cast %1055 : vector<1x256xi1> to vector<1x256xi1>
    %1057 = vector.broadcast %1056 : vector<1x256xi1> to vector<2x256xi1>
    %1058 = vector.broadcast %cst_582 : f32 to vector<2x256xf32>
    %1059 = arith.select %1057, %1050, %1058 : vector<2x256xi1>, vector<2x256xf32>
    %1060 = vector.broadcast %1049 : vector<2x1xf32> to vector<2x256xf32>
    %1061 = arith.mulf %1060, %1059 : vector<2x256xf32>
    %1062 = arith.addf %1047, %1061 : vector<2x256xf32>
    %c2_583 = arith.constant 2 : index
    %c0_584 = arith.constant 0 : index
    %c0_585 = arith.constant 0 : index
    %1063 = vector.load %arg7[%c2_583, %c0_584, %c0_585] : memref<4x2x2xf32, #tpu.memory_space<vmem>>, vector<1x2x2xf32>
    %1064 = vector.shape_cast %1063 : vector<1x2x2xf32> to vector<2x2xf32>
    %1065 = arith.truncf %1064 : vector<2x2xf32> to vector<2x2xbf16>
    %1066 = arith.truncf %1062 : vector<2x256xf32> to vector<2x256xbf16>
    %cst_586 = arith.constant dense<0.000000e+00> : vector<2x256xf32>
    %1067 = tpu.matmul %1065, %1066, %cst_586 {dimension_numbers = #tpu.dot_dimension_numbers<[1], [0], [0], [1], [0, 0, 1, 1], [], []>} : vector<2x2xbf16>, vector<2x256xbf16>, vector<2x256xf32> -> vector<2x256xf32>
    %1068 = vector.extract_strided_slice %3 {offsets = [4, 0], sizes = [2, 256], strides = [1, 1]} : vector<8x256xf32> to vector<2x256xf32>
    %1069 = arith.addf %1067, %1068 : vector<2x256xf32>
    %c2_587 = arith.constant 2 : index
    %c0_588 = arith.constant 0 : index
    %c0_589 = arith.constant 0 : index
    %1070 = vector.load %arg13[%c2_587, %c0_588, %c0_589] : memref<4x2x1xf32, #tpu.memory_space<vmem>>, vector<1x2x1xf32>
    %1071 = vector.shape_cast %1070 : vector<1x2x1xf32> to vector<2x1xf32>
    %1072 = vector.broadcast %1071 : vector<2x1xf32> to vector<2x256xf32>
    %1073 = arith.mulf %1069, %1072 : vector<2x256xf32>
    %c2_590 = arith.constant 2 : index
    %c0_591 = arith.constant 0 : index
    %c0_592 = arith.constant 0 : index
    %1074 = vector.load %arg14[%c2_590, %c0_591, %c0_592] : memref<4x2x1xf32, #tpu.memory_space<vmem>>, vector<1x2x1xf32>
    %1075 = vector.shape_cast %1074 : vector<1x2x1xf32> to vector<2x1xf32>
    %1076 = vector.broadcast %1075 : vector<2x1xf32> to vector<2x256xf32>
    %1077 = arith.addf %1073, %1076 : vector<2x256xf32>
    %cst_593 = arith.constant 0.000000e+00 : f32
    %1078 = vector.broadcast %cst_593 : f32 to vector<2x256xf32>
    %1079 = arith.cmpf ogt, %1077, %1078 : vector<2x256xf32>
    %c2_594 = arith.constant 2 : index
    %c0_595 = arith.constant 0 : index
    %c0_596 = arith.constant 0 : index
    %1080 = vector.load %arg15[%c2_594, %c0_595, %c0_596] : memref<4x2x1xf32, #tpu.memory_space<vmem>>, vector<1x2x1xf32>
    %1081 = vector.shape_cast %1080 : vector<1x2x1xf32> to vector<2x1xf32>
    %1082 = vector.broadcast %1081 : vector<2x1xf32> to vector<2x256xf32>
    %1083 = arith.mulf %1082, %1077 : vector<2x256xf32>
    %1084 = arith.select %1079, %1077, %1083 : vector<2x256xi1>, vector<2x256xf32>
    %c0_597 = arith.constant 0 : index
    %c4_598 = arith.constant 4 : index
    %c0_599 = arith.constant 0 : index
    %1085 = vector.load %arg16[%c0_597, %c4_598, %c0_599] : memref<1x8x256xf32, #tpu.memory_space<vmem>>, vector<1x2x256xf32>
    %1086 = vector.shape_cast %1085 : vector<1x2x256xf32> to vector<2x256xf32>
    %1087 = vector.shape_cast %1084 : vector<2x256xf32> to vector<1x2x256xf32>
    tpu.vector_store %arg16[%c0_597, %c4_598, %c0_599], %1087 {strides = array<i32>} : memref<1x8x256xf32, #tpu.memory_space<vmem>>, vector<1x2x256xf32>,
    %c3_600 = arith.constant 3 : index
    %c0_601 = arith.constant 0 : index
    %c0_602 = arith.constant 0 : index
    %c0_603 = arith.constant 0 : index
    %1088 = vector.load %arg4[%c3_600, %c0_601, %c0_602, %c0_603] : memref<4x17x2x1xf32, #tpu.memory_space<vmem>>, vector<1x1x2x1xf32>
    %1089 = vector.shape_cast %1088 : vector<1x1x2x1xf32> to vector<2x1xf32>
    %c128_i32 = arith.constant 128 : i32
    %1090 = tpu.dynamic_rotate %7 by %c128_i32 dim 1 : vector<2x256xf32>, i32 -> vector<2x256xf32>
    %c8_i32 = arith.constant 8 : i32
    %1091 = vector.broadcast %c8_i32 : i32 to vector<1x256xi32>
    %1092 = arith.cmpi sge, %0, %1091 : vector<1x256xi32>
    %cst_604 = arith.constant 0.000000e+00 : f32
    %1093 = vector.shape_cast %1092 : vector<1x256xi1> to vector<1x256xi1>
    %1094 = vector.broadcast %1093 : vector<1x256xi1> to vector<2x256xi1>
    %1095 = vector.broadcast %cst_604 : f32 to vector<2x256xf32>
    %1096 = arith.select %1094, %1090, %1095 : vector<2x256xi1>, vector<2x256xf32>
    %1097 = vector.broadcast %1089 : vector<2x1xf32> to vector<2x256xf32>
    %1098 = arith.mulf %1097, %1096 : vector<2x256xf32>
    %c3_605 = arith.constant 3 : index
    %c1_606 = arith.constant 1 : index
    %c0_607 = arith.constant 0 : index
    %c0_608 = arith.constant 0 : index
    %1099 = vector.load %arg4[%c3_605, %c1_606, %c0_607, %c0_608] : memref<4x17x2x1xf32, #tpu.memory_space<vmem>>, vector<1x1x2x1xf32>
    %1100 = vector.shape_cast %1099 : vector<1x1x2x1xf32> to vector<2x1xf32>
    %c112_i32_609 = arith.constant 112 : i32
    %1101 = tpu.dynamic_rotate %7 by %c112_i32_609 dim 1 : vector<2x256xf32>, i32 -> vector<2x256xf32>
    %c7_i32_610 = arith.constant 7 : i32
    %1102 = vector.broadcast %c7_i32_610 : i32 to vector<1x256xi32>
    %1103 = arith.cmpi sge, %0, %1102 : vector<1x256xi32>
    %cst_611 = arith.constant 0.000000e+00 : f32
    %1104 = vector.shape_cast %1103 : vector<1x256xi1> to vector<1x256xi1>
    %1105 = vector.broadcast %1104 : vector<1x256xi1> to vector<2x256xi1>
    %1106 = vector.broadcast %cst_611 : f32 to vector<2x256xf32>
    %1107 = arith.select %1105, %1101, %1106 : vector<2x256xi1>, vector<2x256xf32>
    %1108 = vector.broadcast %1100 : vector<2x1xf32> to vector<2x256xf32>
    %1109 = arith.mulf %1108, %1107 : vector<2x256xf32>
    %1110 = arith.addf %1098, %1109 : vector<2x256xf32>
    %c3_612 = arith.constant 3 : index
    %c2_613 = arith.constant 2 : index
    %c0_614 = arith.constant 0 : index
    %c0_615 = arith.constant 0 : index
    %1111 = vector.load %arg4[%c3_612, %c2_613, %c0_614, %c0_615] : memref<4x17x2x1xf32, #tpu.memory_space<vmem>>, vector<1x1x2x1xf32>
    %1112 = vector.shape_cast %1111 : vector<1x1x2x1xf32> to vector<2x1xf32>
    %c96_i32_616 = arith.constant 96 : i32
    %1113 = tpu.dynamic_rotate %7 by %c96_i32_616 dim 1 : vector<2x256xf32>, i32 -> vector<2x256xf32>
    %c6_i32_617 = arith.constant 6 : i32
    %1114 = vector.broadcast %c6_i32_617 : i32 to vector<1x256xi32>
    %1115 = arith.cmpi sge, %0, %1114 : vector<1x256xi32>
    %cst_618 = arith.constant 0.000000e+00 : f32
    %1116 = vector.shape_cast %1115 : vector<1x256xi1> to vector<1x256xi1>
    %1117 = vector.broadcast %1116 : vector<1x256xi1> to vector<2x256xi1>
    %1118 = vector.broadcast %cst_618 : f32 to vector<2x256xf32>
    %1119 = arith.select %1117, %1113, %1118 : vector<2x256xi1>, vector<2x256xf32>
    %1120 = vector.broadcast %1112 : vector<2x1xf32> to vector<2x256xf32>
    %1121 = arith.mulf %1120, %1119 : vector<2x256xf32>
    %1122 = arith.addf %1110, %1121 : vector<2x256xf32>
    %c3_619 = arith.constant 3 : index
    %c3_620 = arith.constant 3 : index
    %c0_621 = arith.constant 0 : index
    %c0_622 = arith.constant 0 : index
    %1123 = vector.load %arg4[%c3_619, %c3_620, %c0_621, %c0_622] : memref<4x17x2x1xf32, #tpu.memory_space<vmem>>, vector<1x1x2x1xf32>
    %1124 = vector.shape_cast %1123 : vector<1x1x2x1xf32> to vector<2x1xf32>
    %c80_i32_623 = arith.constant 80 : i32
    %1125 = tpu.dynamic_rotate %7 by %c80_i32_623 dim 1 : vector<2x256xf32>, i32 -> vector<2x256xf32>
    %c5_i32_624 = arith.constant 5 : i32
    %1126 = vector.broadcast %c5_i32_624 : i32 to vector<1x256xi32>
    %1127 = arith.cmpi sge, %0, %1126 : vector<1x256xi32>
    %cst_625 = arith.constant 0.000000e+00 : f32
    %1128 = vector.shape_cast %1127 : vector<1x256xi1> to vector<1x256xi1>
    %1129 = vector.broadcast %1128 : vector<1x256xi1> to vector<2x256xi1>
    %1130 = vector.broadcast %cst_625 : f32 to vector<2x256xf32>
    %1131 = arith.select %1129, %1125, %1130 : vector<2x256xi1>, vector<2x256xf32>
    %1132 = vector.broadcast %1124 : vector<2x1xf32> to vector<2x256xf32>
    %1133 = arith.mulf %1132, %1131 : vector<2x256xf32>
    %1134 = arith.addf %1122, %1133 : vector<2x256xf32>
    %c3_626 = arith.constant 3 : index
    %c4_627 = arith.constant 4 : index
    %c0_628 = arith.constant 0 : index
    %c0_629 = arith.constant 0 : index
    %1135 = vector.load %arg4[%c3_626, %c4_627, %c0_628, %c0_629] : memref<4x17x2x1xf32, #tpu.memory_space<vmem>>, vector<1x1x2x1xf32>
    %1136 = vector.shape_cast %1135 : vector<1x1x2x1xf32> to vector<2x1xf32>
    %c64_i32_630 = arith.constant 64 : i32
    %1137 = tpu.dynamic_rotate %7 by %c64_i32_630 dim 1 : vector<2x256xf32>, i32 -> vector<2x256xf32>
    %c4_i32_631 = arith.constant 4 : i32
    %1138 = vector.broadcast %c4_i32_631 : i32 to vector<1x256xi32>
    %1139 = arith.cmpi sge, %0, %1138 : vector<1x256xi32>
    %cst_632 = arith.constant 0.000000e+00 : f32
    %1140 = vector.shape_cast %1139 : vector<1x256xi1> to vector<1x256xi1>
    %1141 = vector.broadcast %1140 : vector<1x256xi1> to vector<2x256xi1>
    %1142 = vector.broadcast %cst_632 : f32 to vector<2x256xf32>
    %1143 = arith.select %1141, %1137, %1142 : vector<2x256xi1>, vector<2x256xf32>
    %1144 = vector.broadcast %1136 : vector<2x1xf32> to vector<2x256xf32>
    %1145 = arith.mulf %1144, %1143 : vector<2x256xf32>
    %1146 = arith.addf %1134, %1145 : vector<2x256xf32>
    %c3_633 = arith.constant 3 : index
    %c5_634 = arith.constant 5 : index
    %c0_635 = arith.constant 0 : index
    %c0_636 = arith.constant 0 : index
    %1147 = vector.load %arg4[%c3_633, %c5_634, %c0_635, %c0_636] : memref<4x17x2x1xf32, #tpu.memory_space<vmem>>, vector<1x1x2x1xf32>
    %1148 = vector.shape_cast %1147 : vector<1x1x2x1xf32> to vector<2x1xf32>
    %c48_i32_637 = arith.constant 48 : i32
    %1149 = tpu.dynamic_rotate %7 by %c48_i32_637 dim 1 : vector<2x256xf32>, i32 -> vector<2x256xf32>
    %c3_i32_638 = arith.constant 3 : i32
    %1150 = vector.broadcast %c3_i32_638 : i32 to vector<1x256xi32>
    %1151 = arith.cmpi sge, %0, %1150 : vector<1x256xi32>
    %cst_639 = arith.constant 0.000000e+00 : f32
    %1152 = vector.shape_cast %1151 : vector<1x256xi1> to vector<1x256xi1>
    %1153 = vector.broadcast %1152 : vector<1x256xi1> to vector<2x256xi1>
    %1154 = vector.broadcast %cst_639 : f32 to vector<2x256xf32>
    %1155 = arith.select %1153, %1149, %1154 : vector<2x256xi1>, vector<2x256xf32>
    %1156 = vector.broadcast %1148 : vector<2x1xf32> to vector<2x256xf32>
    %1157 = arith.mulf %1156, %1155 : vector<2x256xf32>
    %1158 = arith.addf %1146, %1157 : vector<2x256xf32>
    %c3_640 = arith.constant 3 : index
    %c6_641 = arith.constant 6 : index
    %c0_642 = arith.constant 0 : index
    %c0_643 = arith.constant 0 : index
    %1159 = vector.load %arg4[%c3_640, %c6_641, %c0_642, %c0_643] : memref<4x17x2x1xf32, #tpu.memory_space<vmem>>, vector<1x1x2x1xf32>
    %1160 = vector.shape_cast %1159 : vector<1x1x2x1xf32> to vector<2x1xf32>
    %c32_i32_644 = arith.constant 32 : i32
    %1161 = tpu.dynamic_rotate %7 by %c32_i32_644 dim 1 : vector<2x256xf32>, i32 -> vector<2x256xf32>
    %c2_i32_645 = arith.constant 2 : i32
    %1162 = vector.broadcast %c2_i32_645 : i32 to vector<1x256xi32>
    %1163 = arith.cmpi sge, %0, %1162 : vector<1x256xi32>
    %cst_646 = arith.constant 0.000000e+00 : f32
    %1164 = vector.shape_cast %1163 : vector<1x256xi1> to vector<1x256xi1>
    %1165 = vector.broadcast %1164 : vector<1x256xi1> to vector<2x256xi1>
    %1166 = vector.broadcast %cst_646 : f32 to vector<2x256xf32>
    %1167 = arith.select %1165, %1161, %1166 : vector<2x256xi1>, vector<2x256xf32>
    %1168 = vector.broadcast %1160 : vector<2x1xf32> to vector<2x256xf32>
    %1169 = arith.mulf %1168, %1167 : vector<2x256xf32>
    %1170 = arith.addf %1158, %1169 : vector<2x256xf32>
    %c3_647 = arith.constant 3 : index
    %c7_648 = arith.constant 7 : index
    %c0_649 = arith.constant 0 : index
    %c0_650 = arith.constant 0 : index
    %1171 = vector.load %arg4[%c3_647, %c7_648, %c0_649, %c0_650] : memref<4x17x2x1xf32, #tpu.memory_space<vmem>>, vector<1x1x2x1xf32>
    %1172 = vector.shape_cast %1171 : vector<1x1x2x1xf32> to vector<2x1xf32>
    %c16_i32_651 = arith.constant 16 : i32
    %1173 = tpu.dynamic_rotate %7 by %c16_i32_651 dim 1 : vector<2x256xf32>, i32 -> vector<2x256xf32>
    %c1_i32_652 = arith.constant 1 : i32
    %1174 = vector.broadcast %c1_i32_652 : i32 to vector<1x256xi32>
    %1175 = arith.cmpi sge, %0, %1174 : vector<1x256xi32>
    %cst_653 = arith.constant 0.000000e+00 : f32
    %1176 = vector.shape_cast %1175 : vector<1x256xi1> to vector<1x256xi1>
    %1177 = vector.broadcast %1176 : vector<1x256xi1> to vector<2x256xi1>
    %1178 = vector.broadcast %cst_653 : f32 to vector<2x256xf32>
    %1179 = arith.select %1177, %1173, %1178 : vector<2x256xi1>, vector<2x256xf32>
    %1180 = vector.broadcast %1172 : vector<2x1xf32> to vector<2x256xf32>
    %1181 = arith.mulf %1180, %1179 : vector<2x256xf32>
    %1182 = arith.addf %1170, %1181 : vector<2x256xf32>
    %c3_654 = arith.constant 3 : index
    %c8_655 = arith.constant 8 : index
    %c0_656 = arith.constant 0 : index
    %c0_657 = arith.constant 0 : index
    %1183 = vector.load %arg4[%c3_654, %c8_655, %c0_656, %c0_657] : memref<4x17x2x1xf32, #tpu.memory_space<vmem>>, vector<1x1x2x1xf32>
    %1184 = vector.shape_cast %1183 : vector<1x1x2x1xf32> to vector<2x1xf32>
    %1185 = vector.broadcast %1184 : vector<2x1xf32> to vector<2x256xf32>
    %1186 = arith.mulf %1185, %7 : vector<2x256xf32>
    %1187 = arith.addf %1182, %1186 : vector<2x256xf32>
    %c3_658 = arith.constant 3 : index
    %c9_659 = arith.constant 9 : index
    %c0_660 = arith.constant 0 : index
    %c0_661 = arith.constant 0 : index
    %1188 = vector.load %arg4[%c3_658, %c9_659, %c0_660, %c0_661] : memref<4x17x2x1xf32, #tpu.memory_space<vmem>>, vector<1x1x2x1xf32>
    %1189 = vector.shape_cast %1188 : vector<1x1x2x1xf32> to vector<2x1xf32>
    %c240_i32_662 = arith.constant 240 : i32
    %1190 = tpu.dynamic_rotate %7 by %c240_i32_662 dim 1 : vector<2x256xf32>, i32 -> vector<2x256xf32>
    %c15_i32_663 = arith.constant 15 : i32
    %1191 = vector.broadcast %c15_i32_663 : i32 to vector<1x256xi32>
    %1192 = arith.cmpi slt, %0, %1191 : vector<1x256xi32>
    %cst_664 = arith.constant 0.000000e+00 : f32
    %1193 = vector.shape_cast %1192 : vector<1x256xi1> to vector<1x256xi1>
    %1194 = vector.broadcast %1193 : vector<1x256xi1> to vector<2x256xi1>
    %1195 = vector.broadcast %cst_664 : f32 to vector<2x256xf32>
    %1196 = arith.select %1194, %1190, %1195 : vector<2x256xi1>, vector<2x256xf32>
    %1197 = vector.broadcast %1189 : vector<2x1xf32> to vector<2x256xf32>
    %1198 = arith.mulf %1197, %1196 : vector<2x256xf32>
    %1199 = arith.addf %1187, %1198 : vector<2x256xf32>
    %c3_665 = arith.constant 3 : index
    %c10_666 = arith.constant 10 : index
    %c0_667 = arith.constant 0 : index
    %c0_668 = arith.constant 0 : index
    %1200 = vector.load %arg4[%c3_665, %c10_666, %c0_667, %c0_668] : memref<4x17x2x1xf32, #tpu.memory_space<vmem>>, vector<1x1x2x1xf32>
    %1201 = vector.shape_cast %1200 : vector<1x1x2x1xf32> to vector<2x1xf32>
    %c224_i32_669 = arith.constant 224 : i32
    %1202 = tpu.dynamic_rotate %7 by %c224_i32_669 dim 1 : vector<2x256xf32>, i32 -> vector<2x256xf32>
    %c14_i32_670 = arith.constant 14 : i32
    %1203 = vector.broadcast %c14_i32_670 : i32 to vector<1x256xi32>
    %1204 = arith.cmpi slt, %0, %1203 : vector<1x256xi32>
    %cst_671 = arith.constant 0.000000e+00 : f32
    %1205 = vector.shape_cast %1204 : vector<1x256xi1> to vector<1x256xi1>
    %1206 = vector.broadcast %1205 : vector<1x256xi1> to vector<2x256xi1>
    %1207 = vector.broadcast %cst_671 : f32 to vector<2x256xf32>
    %1208 = arith.select %1206, %1202, %1207 : vector<2x256xi1>, vector<2x256xf32>
    %1209 = vector.broadcast %1201 : vector<2x1xf32> to vector<2x256xf32>
    %1210 = arith.mulf %1209, %1208 : vector<2x256xf32>
    %1211 = arith.addf %1199, %1210 : vector<2x256xf32>
    %c3_672 = arith.constant 3 : index
    %c11_673 = arith.constant 11 : index
    %c0_674 = arith.constant 0 : index
    %c0_675 = arith.constant 0 : index
    %1212 = vector.load %arg4[%c3_672, %c11_673, %c0_674, %c0_675] : memref<4x17x2x1xf32, #tpu.memory_space<vmem>>, vector<1x1x2x1xf32>
    %1213 = vector.shape_cast %1212 : vector<1x1x2x1xf32> to vector<2x1xf32>
    %c208_i32_676 = arith.constant 208 : i32
    %1214 = tpu.dynamic_rotate %7 by %c208_i32_676 dim 1 : vector<2x256xf32>, i32 -> vector<2x256xf32>
    %c13_i32_677 = arith.constant 13 : i32
    %1215 = vector.broadcast %c13_i32_677 : i32 to vector<1x256xi32>
    %1216 = arith.cmpi slt, %0, %1215 : vector<1x256xi32>
    %cst_678 = arith.constant 0.000000e+00 : f32
    %1217 = vector.shape_cast %1216 : vector<1x256xi1> to vector<1x256xi1>
    %1218 = vector.broadcast %1217 : vector<1x256xi1> to vector<2x256xi1>
    %1219 = vector.broadcast %cst_678 : f32 to vector<2x256xf32>
    %1220 = arith.select %1218, %1214, %1219 : vector<2x256xi1>, vector<2x256xf32>
    %1221 = vector.broadcast %1213 : vector<2x1xf32> to vector<2x256xf32>
    %1222 = arith.mulf %1221, %1220 : vector<2x256xf32>
    %1223 = arith.addf %1211, %1222 : vector<2x256xf32>
    %c3_679 = arith.constant 3 : index
    %c12_680 = arith.constant 12 : index
    %c0_681 = arith.constant 0 : index
    %c0_682 = arith.constant 0 : index
    %1224 = vector.load %arg4[%c3_679, %c12_680, %c0_681, %c0_682] : memref<4x17x2x1xf32, #tpu.memory_space<vmem>>, vector<1x1x2x1xf32>
    %1225 = vector.shape_cast %1224 : vector<1x1x2x1xf32> to vector<2x1xf32>
    %c192_i32_683 = arith.constant 192 : i32
    %1226 = tpu.dynamic_rotate %7 by %c192_i32_683 dim 1 : vector<2x256xf32>, i32 -> vector<2x256xf32>
    %c12_i32_684 = arith.constant 12 : i32
    %1227 = vector.broadcast %c12_i32_684 : i32 to vector<1x256xi32>
    %1228 = arith.cmpi slt, %0, %1227 : vector<1x256xi32>
    %cst_685 = arith.constant 0.000000e+00 : f32
    %1229 = vector.shape_cast %1228 : vector<1x256xi1> to vector<1x256xi1>
    %1230 = vector.broadcast %1229 : vector<1x256xi1> to vector<2x256xi1>
    %1231 = vector.broadcast %cst_685 : f32 to vector<2x256xf32>
    %1232 = arith.select %1230, %1226, %1231 : vector<2x256xi1>, vector<2x256xf32>
    %1233 = vector.broadcast %1225 : vector<2x1xf32> to vector<2x256xf32>
    %1234 = arith.mulf %1233, %1232 : vector<2x256xf32>
    %1235 = arith.addf %1223, %1234 : vector<2x256xf32>
    %c3_686 = arith.constant 3 : index
    %c13 = arith.constant 13 : index
    %c0_687 = arith.constant 0 : index
    %c0_688 = arith.constant 0 : index
    %1236 = vector.load %arg4[%c3_686, %c13, %c0_687, %c0_688] : memref<4x17x2x1xf32, #tpu.memory_space<vmem>>, vector<1x1x2x1xf32>
    %1237 = vector.shape_cast %1236 : vector<1x1x2x1xf32> to vector<2x1xf32>
    %c176_i32_689 = arith.constant 176 : i32
    %1238 = tpu.dynamic_rotate %7 by %c176_i32_689 dim 1 : vector<2x256xf32>, i32 -> vector<2x256xf32>
    %c11_i32_690 = arith.constant 11 : i32
    %1239 = vector.broadcast %c11_i32_690 : i32 to vector<1x256xi32>
    %1240 = arith.cmpi slt, %0, %1239 : vector<1x256xi32>
    %cst_691 = arith.constant 0.000000e+00 : f32
    %1241 = vector.shape_cast %1240 : vector<1x256xi1> to vector<1x256xi1>
    %1242 = vector.broadcast %1241 : vector<1x256xi1> to vector<2x256xi1>
    %1243 = vector.broadcast %cst_691 : f32 to vector<2x256xf32>
    %1244 = arith.select %1242, %1238, %1243 : vector<2x256xi1>, vector<2x256xf32>
    %1245 = vector.broadcast %1237 : vector<2x1xf32> to vector<2x256xf32>
    %1246 = arith.mulf %1245, %1244 : vector<2x256xf32>
    %1247 = arith.addf %1235, %1246 : vector<2x256xf32>
    %c3_692 = arith.constant 3 : index
    %c14 = arith.constant 14 : index
    %c0_693 = arith.constant 0 : index
    %c0_694 = arith.constant 0 : index
    %1248 = vector.load %arg4[%c3_692, %c14, %c0_693, %c0_694] : memref<4x17x2x1xf32, #tpu.memory_space<vmem>>, vector<1x1x2x1xf32>
    %1249 = vector.shape_cast %1248 : vector<1x1x2x1xf32> to vector<2x1xf32>
    %c160_i32_695 = arith.constant 160 : i32
    %1250 = tpu.dynamic_rotate %7 by %c160_i32_695 dim 1 : vector<2x256xf32>, i32 -> vector<2x256xf32>
    %c10_i32_696 = arith.constant 10 : i32
    %1251 = vector.broadcast %c10_i32_696 : i32 to vector<1x256xi32>
    %1252 = arith.cmpi slt, %0, %1251 : vector<1x256xi32>
    %cst_697 = arith.constant 0.000000e+00 : f32
    %1253 = vector.shape_cast %1252 : vector<1x256xi1> to vector<1x256xi1>
    %1254 = vector.broadcast %1253 : vector<1x256xi1> to vector<2x256xi1>
    %1255 = vector.broadcast %cst_697 : f32 to vector<2x256xf32>
    %1256 = arith.select %1254, %1250, %1255 : vector<2x256xi1>, vector<2x256xf32>
    %1257 = vector.broadcast %1249 : vector<2x1xf32> to vector<2x256xf32>
    %1258 = arith.mulf %1257, %1256 : vector<2x256xf32>
    %1259 = arith.addf %1247, %1258 : vector<2x256xf32>
    %c3_698 = arith.constant 3 : index
    %c15 = arith.constant 15 : index
    %c0_699 = arith.constant 0 : index
    %c0_700 = arith.constant 0 : index
    %1260 = vector.load %arg4[%c3_698, %c15, %c0_699, %c0_700] : memref<4x17x2x1xf32, #tpu.memory_space<vmem>>, vector<1x1x2x1xf32>
    %1261 = vector.shape_cast %1260 : vector<1x1x2x1xf32> to vector<2x1xf32>
    %c144_i32_701 = arith.constant 144 : i32
    %1262 = tpu.dynamic_rotate %7 by %c144_i32_701 dim 1 : vector<2x256xf32>, i32 -> vector<2x256xf32>
    %c9_i32_702 = arith.constant 9 : i32
    %1263 = vector.broadcast %c9_i32_702 : i32 to vector<1x256xi32>
    %1264 = arith.cmpi slt, %0, %1263 : vector<1x256xi32>
    %cst_703 = arith.constant 0.000000e+00 : f32
    %1265 = vector.shape_cast %1264 : vector<1x256xi1> to vector<1x256xi1>
    %1266 = vector.broadcast %1265 : vector<1x256xi1> to vector<2x256xi1>
    %1267 = vector.broadcast %cst_703 : f32 to vector<2x256xf32>
    %1268 = arith.select %1266, %1262, %1267 : vector<2x256xi1>, vector<2x256xf32>
    %1269 = vector.broadcast %1261 : vector<2x1xf32> to vector<2x256xf32>
    %1270 = arith.mulf %1269, %1268 : vector<2x256xf32>
    %1271 = arith.addf %1259, %1270 : vector<2x256xf32>
    %c3_704 = arith.constant 3 : index
    %c16 = arith.constant 16 : index
    %c0_705 = arith.constant 0 : index
    %c0_706 = arith.constant 0 : index
    %1272 = vector.load %arg4[%c3_704, %c16, %c0_705, %c0_706] : memref<4x17x2x1xf32, #tpu.memory_space<vmem>>, vector<1x1x2x1xf32>
    %1273 = vector.shape_cast %1272 : vector<1x1x2x1xf32> to vector<2x1xf32>
    %c128_i32_707 = arith.constant 128 : i32
    %1274 = tpu.dynamic_rotate %7 by %c128_i32_707 dim 1 : vector<2x256xf32>, i32 -> vector<2x256xf32>
    %c8_i32_708 = arith.constant 8 : i32
    %1275 = vector.broadcast %c8_i32_708 : i32 to vector<1x256xi32>
    %1276 = arith.cmpi slt, %0, %1275 : vector<1x256xi32>
    %cst_709 = arith.constant 0.000000e+00 : f32
    %1277 = vector.shape_cast %1276 : vector<1x256xi1> to vector<1x256xi1>
    %1278 = vector.broadcast %1277 : vector<1x256xi1> to vector<2x256xi1>
    %1279 = vector.broadcast %cst_709 : f32 to vector<2x256xf32>
    %1280 = arith.select %1278, %1274, %1279 : vector<2x256xi1>, vector<2x256xf32>
    %1281 = vector.broadcast %1273 : vector<2x1xf32> to vector<2x256xf32>
    %1282 = arith.mulf %1281, %1280 : vector<2x256xf32>
    %1283 = arith.addf %1271, %1282 : vector<2x256xf32>
    %c3_710 = arith.constant 3 : index
    %c0_711 = arith.constant 0 : index
    %c0_712 = arith.constant 0 : index
    %1284 = vector.load %arg8[%c3_710, %c0_711, %c0_712] : memref<4x2x1xf32, #tpu.memory_space<vmem>>, vector<1x2x1xf32>
    %1285 = vector.shape_cast %1284 : vector<1x2x1xf32> to vector<2x1xf32>
    %1286 = vector.broadcast %1285 : vector<2x1xf32> to vector<2x256xf32>
    %1287 = arith.mulf %1283, %1286 : vector<2x256xf32>
    %c3_713 = arith.constant 3 : index
    %c0_714 = arith.constant 0 : index
    %c0_715 = arith.constant 0 : index
    %1288 = vector.load %arg9[%c3_713, %c0_714, %c0_715] : memref<4x2x1xf32, #tpu.memory_space<vmem>>, vector<1x2x1xf32>
    %1289 = vector.shape_cast %1288 : vector<1x2x1xf32> to vector<2x1xf32>
    %1290 = vector.broadcast %1289 : vector<2x1xf32> to vector<2x256xf32>
    %1291 = arith.addf %1287, %1290 : vector<2x256xf32>
    %cst_716 = arith.constant 0.000000e+00 : f32
    %1292 = vector.broadcast %cst_716 : f32 to vector<2x256xf32>
    %1293 = arith.cmpf ogt, %1291, %1292 : vector<2x256xf32>
    %c3_717 = arith.constant 3 : index
    %c0_718 = arith.constant 0 : index
    %c0_719 = arith.constant 0 : index
    %1294 = vector.load %arg10[%c3_717, %c0_718, %c0_719] : memref<4x2x1xf32, #tpu.memory_space<vmem>>, vector<1x2x1xf32>
    %1295 = vector.shape_cast %1294 : vector<1x2x1xf32> to vector<2x1xf32>
    %1296 = vector.broadcast %1295 : vector<2x1xf32> to vector<2x256xf32>
    %1297 = arith.mulf %1296, %1291 : vector<2x256xf32>
    %1298 = arith.select %1293, %1291, %1297 : vector<2x256xi1>, vector<2x256xf32>
    %c3_720 = arith.constant 3 : index
    %c0_721 = arith.constant 0 : index
    %c0_722 = arith.constant 0 : index
    %c0_723 = arith.constant 0 : index
    %1299 = vector.load %arg5[%c3_720, %c0_721, %c0_722, %c0_723] : memref<4x17x2x1xf32, #tpu.memory_space<vmem>>, vector<1x1x2x1xf32>
    %1300 = vector.shape_cast %1299 : vector<1x1x2x1xf32> to vector<2x1xf32>
    %c8_i32_724 = arith.constant 8 : i32
    %1301 = tpu.dynamic_rotate %1298 by %c8_i32_724 dim 1 : vector<2x256xf32>, i32 -> vector<2x256xf32>
    %c8_i32_725 = arith.constant 8 : i32
    %1302 = vector.broadcast %c8_i32_725 : i32 to vector<1x256xi32>
    %1303 = arith.cmpi sge, %1, %1302 : vector<1x256xi32>
    %cst_726 = arith.constant 0.000000e+00 : f32
    %1304 = vector.shape_cast %1303 : vector<1x256xi1> to vector<1x256xi1>
    %1305 = vector.broadcast %1304 : vector<1x256xi1> to vector<2x256xi1>
    %1306 = vector.broadcast %cst_726 : f32 to vector<2x256xf32>
    %1307 = arith.select %1305, %1301, %1306 : vector<2x256xi1>, vector<2x256xf32>
    %1308 = vector.broadcast %1300 : vector<2x1xf32> to vector<2x256xf32>
    %1309 = arith.mulf %1308, %1307 : vector<2x256xf32>
    %c3_727 = arith.constant 3 : index
    %c1_728 = arith.constant 1 : index
    %c0_729 = arith.constant 0 : index
    %c0_730 = arith.constant 0 : index
    %1310 = vector.load %arg5[%c3_727, %c1_728, %c0_729, %c0_730] : memref<4x17x2x1xf32, #tpu.memory_space<vmem>>, vector<1x1x2x1xf32>
    %1311 = vector.shape_cast %1310 : vector<1x1x2x1xf32> to vector<2x1xf32>
    %c7_i32_731 = arith.constant 7 : i32
    %1312 = tpu.dynamic_rotate %1298 by %c7_i32_731 dim 1 : vector<2x256xf32>, i32 -> vector<2x256xf32>
    %c7_i32_732 = arith.constant 7 : i32
    %1313 = vector.broadcast %c7_i32_732 : i32 to vector<1x256xi32>
    %1314 = arith.cmpi sge, %1, %1313 : vector<1x256xi32>
    %cst_733 = arith.constant 0.000000e+00 : f32
    %1315 = vector.shape_cast %1314 : vector<1x256xi1> to vector<1x256xi1>
    %1316 = vector.broadcast %1315 : vector<1x256xi1> to vector<2x256xi1>
    %1317 = vector.broadcast %cst_733 : f32 to vector<2x256xf32>
    %1318 = arith.select %1316, %1312, %1317 : vector<2x256xi1>, vector<2x256xf32>
    %1319 = vector.broadcast %1311 : vector<2x1xf32> to vector<2x256xf32>
    %1320 = arith.mulf %1319, %1318 : vector<2x256xf32>
    %1321 = arith.addf %1309, %1320 : vector<2x256xf32>
    %c3_734 = arith.constant 3 : index
    %c2_735 = arith.constant 2 : index
    %c0_736 = arith.constant 0 : index
    %c0_737 = arith.constant 0 : index
    %1322 = vector.load %arg5[%c3_734, %c2_735, %c0_736, %c0_737] : memref<4x17x2x1xf32, #tpu.memory_space<vmem>>, vector<1x1x2x1xf32>
    %1323 = vector.shape_cast %1322 : vector<1x1x2x1xf32> to vector<2x1xf32>
    %c6_i32_738 = arith.constant 6 : i32
    %1324 = tpu.dynamic_rotate %1298 by %c6_i32_738 dim 1 : vector<2x256xf32>, i32 -> vector<2x256xf32>
    %c6_i32_739 = arith.constant 6 : i32
    %1325 = vector.broadcast %c6_i32_739 : i32 to vector<1x256xi32>
    %1326 = arith.cmpi sge, %1, %1325 : vector<1x256xi32>
    %cst_740 = arith.constant 0.000000e+00 : f32
    %1327 = vector.shape_cast %1326 : vector<1x256xi1> to vector<1x256xi1>
    %1328 = vector.broadcast %1327 : vector<1x256xi1> to vector<2x256xi1>
    %1329 = vector.broadcast %cst_740 : f32 to vector<2x256xf32>
    %1330 = arith.select %1328, %1324, %1329 : vector<2x256xi1>, vector<2x256xf32>
    %1331 = vector.broadcast %1323 : vector<2x1xf32> to vector<2x256xf32>
    %1332 = arith.mulf %1331, %1330 : vector<2x256xf32>
    %1333 = arith.addf %1321, %1332 : vector<2x256xf32>
    %c3_741 = arith.constant 3 : index
    %c3_742 = arith.constant 3 : index
    %c0_743 = arith.constant 0 : index
    %c0_744 = arith.constant 0 : index
    %1334 = vector.load %arg5[%c3_741, %c3_742, %c0_743, %c0_744] : memref<4x17x2x1xf32, #tpu.memory_space<vmem>>, vector<1x1x2x1xf32>
    %1335 = vector.shape_cast %1334 : vector<1x1x2x1xf32> to vector<2x1xf32>
    %c5_i32_745 = arith.constant 5 : i32
    %1336 = tpu.dynamic_rotate %1298 by %c5_i32_745 dim 1 : vector<2x256xf32>, i32 -> vector<2x256xf32>
    %c5_i32_746 = arith.constant 5 : i32
    %1337 = vector.broadcast %c5_i32_746 : i32 to vector<1x256xi32>
    %1338 = arith.cmpi sge, %1, %1337 : vector<1x256xi32>
    %cst_747 = arith.constant 0.000000e+00 : f32
    %1339 = vector.shape_cast %1338 : vector<1x256xi1> to vector<1x256xi1>
    %1340 = vector.broadcast %1339 : vector<1x256xi1> to vector<2x256xi1>
    %1341 = vector.broadcast %cst_747 : f32 to vector<2x256xf32>
    %1342 = arith.select %1340, %1336, %1341 : vector<2x256xi1>, vector<2x256xf32>
    %1343 = vector.broadcast %1335 : vector<2x1xf32> to vector<2x256xf32>
    %1344 = arith.mulf %1343, %1342 : vector<2x256xf32>
    %1345 = arith.addf %1333, %1344 : vector<2x256xf32>
    %c3_748 = arith.constant 3 : index
    %c4_749 = arith.constant 4 : index
    %c0_750 = arith.constant 0 : index
    %c0_751 = arith.constant 0 : index
    %1346 = vector.load %arg5[%c3_748, %c4_749, %c0_750, %c0_751] : memref<4x17x2x1xf32, #tpu.memory_space<vmem>>, vector<1x1x2x1xf32>
    %1347 = vector.shape_cast %1346 : vector<1x1x2x1xf32> to vector<2x1xf32>
    %c4_i32_752 = arith.constant 4 : i32
    %1348 = tpu.dynamic_rotate %1298 by %c4_i32_752 dim 1 : vector<2x256xf32>, i32 -> vector<2x256xf32>
    %c4_i32_753 = arith.constant 4 : i32
    %1349 = vector.broadcast %c4_i32_753 : i32 to vector<1x256xi32>
    %1350 = arith.cmpi sge, %1, %1349 : vector<1x256xi32>
    %cst_754 = arith.constant 0.000000e+00 : f32
    %1351 = vector.shape_cast %1350 : vector<1x256xi1> to vector<1x256xi1>
    %1352 = vector.broadcast %1351 : vector<1x256xi1> to vector<2x256xi1>
    %1353 = vector.broadcast %cst_754 : f32 to vector<2x256xf32>
    %1354 = arith.select %1352, %1348, %1353 : vector<2x256xi1>, vector<2x256xf32>
    %1355 = vector.broadcast %1347 : vector<2x1xf32> to vector<2x256xf32>
    %1356 = arith.mulf %1355, %1354 : vector<2x256xf32>
    %1357 = arith.addf %1345, %1356 : vector<2x256xf32>
    %c3_755 = arith.constant 3 : index
    %c5_756 = arith.constant 5 : index
    %c0_757 = arith.constant 0 : index
    %c0_758 = arith.constant 0 : index
    %1358 = vector.load %arg5[%c3_755, %c5_756, %c0_757, %c0_758] : memref<4x17x2x1xf32, #tpu.memory_space<vmem>>, vector<1x1x2x1xf32>
    %1359 = vector.shape_cast %1358 : vector<1x1x2x1xf32> to vector<2x1xf32>
    %c3_i32_759 = arith.constant 3 : i32
    %1360 = tpu.dynamic_rotate %1298 by %c3_i32_759 dim 1 : vector<2x256xf32>, i32 -> vector<2x256xf32>
    %c3_i32_760 = arith.constant 3 : i32
    %1361 = vector.broadcast %c3_i32_760 : i32 to vector<1x256xi32>
    %1362 = arith.cmpi sge, %1, %1361 : vector<1x256xi32>
    %cst_761 = arith.constant 0.000000e+00 : f32
    %1363 = vector.shape_cast %1362 : vector<1x256xi1> to vector<1x256xi1>
    %1364 = vector.broadcast %1363 : vector<1x256xi1> to vector<2x256xi1>
    %1365 = vector.broadcast %cst_761 : f32 to vector<2x256xf32>
    %1366 = arith.select %1364, %1360, %1365 : vector<2x256xi1>, vector<2x256xf32>
    %1367 = vector.broadcast %1359 : vector<2x1xf32> to vector<2x256xf32>
    %1368 = arith.mulf %1367, %1366 : vector<2x256xf32>
    %1369 = arith.addf %1357, %1368 : vector<2x256xf32>
    %c3_762 = arith.constant 3 : index
    %c6_763 = arith.constant 6 : index
    %c0_764 = arith.constant 0 : index
    %c0_765 = arith.constant 0 : index
    %1370 = vector.load %arg5[%c3_762, %c6_763, %c0_764, %c0_765] : memref<4x17x2x1xf32, #tpu.memory_space<vmem>>, vector<1x1x2x1xf32>
    %1371 = vector.shape_cast %1370 : vector<1x1x2x1xf32> to vector<2x1xf32>
    %c2_i32_766 = arith.constant 2 : i32
    %1372 = tpu.dynamic_rotate %1298 by %c2_i32_766 dim 1 : vector<2x256xf32>, i32 -> vector<2x256xf32>
    %c2_i32_767 = arith.constant 2 : i32
    %1373 = vector.broadcast %c2_i32_767 : i32 to vector<1x256xi32>
    %1374 = arith.cmpi sge, %1, %1373 : vector<1x256xi32>
    %cst_768 = arith.constant 0.000000e+00 : f32
    %1375 = vector.shape_cast %1374 : vector<1x256xi1> to vector<1x256xi1>
    %1376 = vector.broadcast %1375 : vector<1x256xi1> to vector<2x256xi1>
    %1377 = vector.broadcast %cst_768 : f32 to vector<2x256xf32>
    %1378 = arith.select %1376, %1372, %1377 : vector<2x256xi1>, vector<2x256xf32>
    %1379 = vector.broadcast %1371 : vector<2x1xf32> to vector<2x256xf32>
    %1380 = arith.mulf %1379, %1378 : vector<2x256xf32>
    %1381 = arith.addf %1369, %1380 : vector<2x256xf32>
    %c3_769 = arith.constant 3 : index
    %c7_770 = arith.constant 7 : index
    %c0_771 = arith.constant 0 : index
    %c0_772 = arith.constant 0 : index
    %1382 = vector.load %arg5[%c3_769, %c7_770, %c0_771, %c0_772] : memref<4x17x2x1xf32, #tpu.memory_space<vmem>>, vector<1x1x2x1xf32>
    %1383 = vector.shape_cast %1382 : vector<1x1x2x1xf32> to vector<2x1xf32>
    %c1_i32_773 = arith.constant 1 : i32
    %1384 = tpu.dynamic_rotate %1298 by %c1_i32_773 dim 1 : vector<2x256xf32>, i32 -> vector<2x256xf32>
    %c1_i32_774 = arith.constant 1 : i32
    %1385 = vector.broadcast %c1_i32_774 : i32 to vector<1x256xi32>
    %1386 = arith.cmpi sge, %1, %1385 : vector<1x256xi32>
    %cst_775 = arith.constant 0.000000e+00 : f32
    %1387 = vector.shape_cast %1386 : vector<1x256xi1> to vector<1x256xi1>
    %1388 = vector.broadcast %1387 : vector<1x256xi1> to vector<2x256xi1>
    %1389 = vector.broadcast %cst_775 : f32 to vector<2x256xf32>
    %1390 = arith.select %1388, %1384, %1389 : vector<2x256xi1>, vector<2x256xf32>
    %1391 = vector.broadcast %1383 : vector<2x1xf32> to vector<2x256xf32>
    %1392 = arith.mulf %1391, %1390 : vector<2x256xf32>
    %1393 = arith.addf %1381, %1392 : vector<2x256xf32>
    %c3_776 = arith.constant 3 : index
    %c8_777 = arith.constant 8 : index
    %c0_778 = arith.constant 0 : index
    %c0_779 = arith.constant 0 : index
    %1394 = vector.load %arg5[%c3_776, %c8_777, %c0_778, %c0_779] : memref<4x17x2x1xf32, #tpu.memory_space<vmem>>, vector<1x1x2x1xf32>
    %1395 = vector.shape_cast %1394 : vector<1x1x2x1xf32> to vector<2x1xf32>
    %1396 = vector.broadcast %1395 : vector<2x1xf32> to vector<2x256xf32>
    %1397 = arith.mulf %1396, %1298 : vector<2x256xf32>
    %1398 = arith.addf %1393, %1397 : vector<2x256xf32>
    %c3_780 = arith.constant 3 : index
    %c9_781 = arith.constant 9 : index
    %c0_782 = arith.constant 0 : index
    %c0_783 = arith.constant 0 : index
    %1399 = vector.load %arg5[%c3_780, %c9_781, %c0_782, %c0_783] : memref<4x17x2x1xf32, #tpu.memory_space<vmem>>, vector<1x1x2x1xf32>
    %1400 = vector.shape_cast %1399 : vector<1x1x2x1xf32> to vector<2x1xf32>
    %c255_i32_784 = arith.constant 255 : i32
    %1401 = tpu.dynamic_rotate %1298 by %c255_i32_784 dim 1 : vector<2x256xf32>, i32 -> vector<2x256xf32>
    %c15_i32_785 = arith.constant 15 : i32
    %1402 = vector.broadcast %c15_i32_785 : i32 to vector<1x256xi32>
    %1403 = arith.cmpi slt, %1, %1402 : vector<1x256xi32>
    %cst_786 = arith.constant 0.000000e+00 : f32
    %1404 = vector.shape_cast %1403 : vector<1x256xi1> to vector<1x256xi1>
    %1405 = vector.broadcast %1404 : vector<1x256xi1> to vector<2x256xi1>
    %1406 = vector.broadcast %cst_786 : f32 to vector<2x256xf32>
    %1407 = arith.select %1405, %1401, %1406 : vector<2x256xi1>, vector<2x256xf32>
    %1408 = vector.broadcast %1400 : vector<2x1xf32> to vector<2x256xf32>
    %1409 = arith.mulf %1408, %1407 : vector<2x256xf32>
    %1410 = arith.addf %1398, %1409 : vector<2x256xf32>
    %c3_787 = arith.constant 3 : index
    %c10_788 = arith.constant 10 : index
    %c0_789 = arith.constant 0 : index
    %c0_790 = arith.constant 0 : index
    %1411 = vector.load %arg5[%c3_787, %c10_788, %c0_789, %c0_790] : memref<4x17x2x1xf32, #tpu.memory_space<vmem>>, vector<1x1x2x1xf32>
    %1412 = vector.shape_cast %1411 : vector<1x1x2x1xf32> to vector<2x1xf32>
    %c254_i32_791 = arith.constant 254 : i32
    %1413 = tpu.dynamic_rotate %1298 by %c254_i32_791 dim 1 : vector<2x256xf32>, i32 -> vector<2x256xf32>
    %c14_i32_792 = arith.constant 14 : i32
    %1414 = vector.broadcast %c14_i32_792 : i32 to vector<1x256xi32>
    %1415 = arith.cmpi slt, %1, %1414 : vector<1x256xi32>
    %cst_793 = arith.constant 0.000000e+00 : f32
    %1416 = vector.shape_cast %1415 : vector<1x256xi1> to vector<1x256xi1>
    %1417 = vector.broadcast %1416 : vector<1x256xi1> to vector<2x256xi1>
    %1418 = vector.broadcast %cst_793 : f32 to vector<2x256xf32>
    %1419 = arith.select %1417, %1413, %1418 : vector<2x256xi1>, vector<2x256xf32>
    %1420 = vector.broadcast %1412 : vector<2x1xf32> to vector<2x256xf32>
    %1421 = arith.mulf %1420, %1419 : vector<2x256xf32>
    %1422 = arith.addf %1410, %1421 : vector<2x256xf32>
    %c3_794 = arith.constant 3 : index
    %c11_795 = arith.constant 11 : index
    %c0_796 = arith.constant 0 : index
    %c0_797 = arith.constant 0 : index
    %1423 = vector.load %arg5[%c3_794, %c11_795, %c0_796, %c0_797] : memref<4x17x2x1xf32, #tpu.memory_space<vmem>>, vector<1x1x2x1xf32>
    %1424 = vector.shape_cast %1423 : vector<1x1x2x1xf32> to vector<2x1xf32>
    %c253_i32_798 = arith.constant 253 : i32
    %1425 = tpu.dynamic_rotate %1298 by %c253_i32_798 dim 1 : vector<2x256xf32>, i32 -> vector<2x256xf32>
    %c13_i32_799 = arith.constant 13 : i32
    %1426 = vector.broadcast %c13_i32_799 : i32 to vector<1x256xi32>
    %1427 = arith.cmpi slt, %1, %1426 : vector<1x256xi32>
    %cst_800 = arith.constant 0.000000e+00 : f32
    %1428 = vector.shape_cast %1427 : vector<1x256xi1> to vector<1x256xi1>
    %1429 = vector.broadcast %1428 : vector<1x256xi1> to vector<2x256xi1>
    %1430 = vector.broadcast %cst_800 : f32 to vector<2x256xf32>
    %1431 = arith.select %1429, %1425, %1430 : vector<2x256xi1>, vector<2x256xf32>
    %1432 = vector.broadcast %1424 : vector<2x1xf32> to vector<2x256xf32>
    %1433 = arith.mulf %1432, %1431 : vector<2x256xf32>
    %1434 = arith.addf %1422, %1433 : vector<2x256xf32>
    %c3_801 = arith.constant 3 : index
    %c12_802 = arith.constant 12 : index
    %c0_803 = arith.constant 0 : index
    %c0_804 = arith.constant 0 : index
    %1435 = vector.load %arg5[%c3_801, %c12_802, %c0_803, %c0_804] : memref<4x17x2x1xf32, #tpu.memory_space<vmem>>, vector<1x1x2x1xf32>
    %1436 = vector.shape_cast %1435 : vector<1x1x2x1xf32> to vector<2x1xf32>
    %c252_i32_805 = arith.constant 252 : i32
    %1437 = tpu.dynamic_rotate %1298 by %c252_i32_805 dim 1 : vector<2x256xf32>, i32 -> vector<2x256xf32>
    %c12_i32_806 = arith.constant 12 : i32
    %1438 = vector.broadcast %c12_i32_806 : i32 to vector<1x256xi32>
    %1439 = arith.cmpi slt, %1, %1438 : vector<1x256xi32>
    %cst_807 = arith.constant 0.000000e+00 : f32
    %1440 = vector.shape_cast %1439 : vector<1x256xi1> to vector<1x256xi1>
    %1441 = vector.broadcast %1440 : vector<1x256xi1> to vector<2x256xi1>
    %1442 = vector.broadcast %cst_807 : f32 to vector<2x256xf32>
    %1443 = arith.select %1441, %1437, %1442 : vector<2x256xi1>, vector<2x256xf32>
    %1444 = vector.broadcast %1436 : vector<2x1xf32> to vector<2x256xf32>
    %1445 = arith.mulf %1444, %1443 : vector<2x256xf32>
    %1446 = arith.addf %1434, %1445 : vector<2x256xf32>
    %c3_808 = arith.constant 3 : index
    %c13_809 = arith.constant 13 : index
    %c0_810 = arith.constant 0 : index
    %c0_811 = arith.constant 0 : index
    %1447 = vector.load %arg5[%c3_808, %c13_809, %c0_810, %c0_811] : memref<4x17x2x1xf32, #tpu.memory_space<vmem>>, vector<1x1x2x1xf32>
    %1448 = vector.shape_cast %1447 : vector<1x1x2x1xf32> to vector<2x1xf32>
    %c251_i32_812 = arith.constant 251 : i32
    %1449 = tpu.dynamic_rotate %1298 by %c251_i32_812 dim 1 : vector<2x256xf32>, i32 -> vector<2x256xf32>
    %c11_i32_813 = arith.constant 11 : i32
    %1450 = vector.broadcast %c11_i32_813 : i32 to vector<1x256xi32>
    %1451 = arith.cmpi slt, %1, %1450 : vector<1x256xi32>
    %cst_814 = arith.constant 0.000000e+00 : f32
    %1452 = vector.shape_cast %1451 : vector<1x256xi1> to vector<1x256xi1>
    %1453 = vector.broadcast %1452 : vector<1x256xi1> to vector<2x256xi1>
    %1454 = vector.broadcast %cst_814 : f32 to vector<2x256xf32>
    %1455 = arith.select %1453, %1449, %1454 : vector<2x256xi1>, vector<2x256xf32>
    %1456 = vector.broadcast %1448 : vector<2x1xf32> to vector<2x256xf32>
    %1457 = arith.mulf %1456, %1455 : vector<2x256xf32>
    %1458 = arith.addf %1446, %1457 : vector<2x256xf32>
    %c3_815 = arith.constant 3 : index
    %c14_816 = arith.constant 14 : index
    %c0_817 = arith.constant 0 : index
    %c0_818 = arith.constant 0 : index
    %1459 = vector.load %arg5[%c3_815, %c14_816, %c0_817, %c0_818] : memref<4x17x2x1xf32, #tpu.memory_space<vmem>>, vector<1x1x2x1xf32>
    %1460 = vector.shape_cast %1459 : vector<1x1x2x1xf32> to vector<2x1xf32>
    %c250_i32_819 = arith.constant 250 : i32
    %1461 = tpu.dynamic_rotate %1298 by %c250_i32_819 dim 1 : vector<2x256xf32>, i32 -> vector<2x256xf32>
    %c10_i32_820 = arith.constant 10 : i32
    %1462 = vector.broadcast %c10_i32_820 : i32 to vector<1x256xi32>
    %1463 = arith.cmpi slt, %1, %1462 : vector<1x256xi32>
    %cst_821 = arith.constant 0.000000e+00 : f32
    %1464 = vector.shape_cast %1463 : vector<1x256xi1> to vector<1x256xi1>
    %1465 = vector.broadcast %1464 : vector<1x256xi1> to vector<2x256xi1>
    %1466 = vector.broadcast %cst_821 : f32 to vector<2x256xf32>
    %1467 = arith.select %1465, %1461, %1466 : vector<2x256xi1>, vector<2x256xf32>
    %1468 = vector.broadcast %1460 : vector<2x1xf32> to vector<2x256xf32>
    %1469 = arith.mulf %1468, %1467 : vector<2x256xf32>
    %1470 = arith.addf %1458, %1469 : vector<2x256xf32>
    %c3_822 = arith.constant 3 : index
    %c15_823 = arith.constant 15 : index
    %c0_824 = arith.constant 0 : index
    %c0_825 = arith.constant 0 : index
    %1471 = vector.load %arg5[%c3_822, %c15_823, %c0_824, %c0_825] : memref<4x17x2x1xf32, #tpu.memory_space<vmem>>, vector<1x1x2x1xf32>
    %1472 = vector.shape_cast %1471 : vector<1x1x2x1xf32> to vector<2x1xf32>
    %c249_i32_826 = arith.constant 249 : i32
    %1473 = tpu.dynamic_rotate %1298 by %c249_i32_826 dim 1 : vector<2x256xf32>, i32 -> vector<2x256xf32>
    %c9_i32_827 = arith.constant 9 : i32
    %1474 = vector.broadcast %c9_i32_827 : i32 to vector<1x256xi32>
    %1475 = arith.cmpi slt, %1, %1474 : vector<1x256xi32>
    %cst_828 = arith.constant 0.000000e+00 : f32
    %1476 = vector.shape_cast %1475 : vector<1x256xi1> to vector<1x256xi1>
    %1477 = vector.broadcast %1476 : vector<1x256xi1> to vector<2x256xi1>
    %1478 = vector.broadcast %cst_828 : f32 to vector<2x256xf32>
    %1479 = arith.select %1477, %1473, %1478 : vector<2x256xi1>, vector<2x256xf32>
    %1480 = vector.broadcast %1472 : vector<2x1xf32> to vector<2x256xf32>
    %1481 = arith.mulf %1480, %1479 : vector<2x256xf32>
    %1482 = arith.addf %1470, %1481 : vector<2x256xf32>
    %c3_829 = arith.constant 3 : index
    %c16_830 = arith.constant 16 : index
    %c0_831 = arith.constant 0 : index
    %c0_832 = arith.constant 0 : index
    %1483 = vector.load %arg5[%c3_829, %c16_830, %c0_831, %c0_832] : memref<4x17x2x1xf32, #tpu.memory_space<vmem>>, vector<1x1x2x1xf32>
    %1484 = vector.shape_cast %1483 : vector<1x1x2x1xf32> to vector<2x1xf32>
    %c248_i32 = arith.constant 248 : i32
    %1485 = tpu.dynamic_rotate %1298 by %c248_i32 dim 1 : vector<2x256xf32>, i32 -> vector<2x256xf32>
    %c8_i32_833 = arith.constant 8 : i32
    %1486 = vector.broadcast %c8_i32_833 : i32 to vector<1x256xi32>
    %1487 = arith.cmpi slt, %1, %1486 : vector<1x256xi32>
    %cst_834 = arith.constant 0.000000e+00 : f32
    %1488 = vector.shape_cast %1487 : vector<1x256xi1> to vector<1x256xi1>
    %1489 = vector.broadcast %1488 : vector<1x256xi1> to vector<2x256xi1>
    %1490 = vector.broadcast %cst_834 : f32 to vector<2x256xf32>
    %1491 = arith.select %1489, %1485, %1490 : vector<2x256xi1>, vector<2x256xf32>
    %1492 = vector.broadcast %1484 : vector<2x1xf32> to vector<2x256xf32>
    %1493 = arith.mulf %1492, %1491 : vector<2x256xf32>
    %1494 = arith.addf %1482, %1493 : vector<2x256xf32>
    %c3_835 = arith.constant 3 : index
    %c0_836 = arith.constant 0 : index
    %c0_837 = arith.constant 0 : index
    %1495 = vector.load %arg11[%c3_835, %c0_836, %c0_837] : memref<4x2x1xf32, #tpu.memory_space<vmem>>, vector<1x2x1xf32>
    %1496 = vector.shape_cast %1495 : vector<1x2x1xf32> to vector<2x1xf32>
    %1497 = vector.broadcast %1496 : vector<2x1xf32> to vector<2x256xf32>
    %1498 = arith.mulf %1494, %1497 : vector<2x256xf32>
    %c3_838 = arith.constant 3 : index
    %c0_839 = arith.constant 0 : index
    %c0_840 = arith.constant 0 : index
    %1499 = vector.load %arg12[%c3_838, %c0_839, %c0_840] : memref<4x2x1xf32, #tpu.memory_space<vmem>>, vector<1x2x1xf32>
    %1500 = vector.shape_cast %1499 : vector<1x2x1xf32> to vector<2x1xf32>
    %1501 = vector.broadcast %1500 : vector<2x1xf32> to vector<2x256xf32>
    %1502 = arith.addf %1498, %1501 : vector<2x256xf32>
    %c3_841 = arith.constant 3 : index
    %c0_842 = arith.constant 0 : index
    %c0_843 = arith.constant 0 : index
    %c0_844 = arith.constant 0 : index
    %1503 = vector.load %arg6[%c3_841, %c0_842, %c0_843, %c0_844] : memref<4x9x2x1xf32, #tpu.memory_space<vmem>>, vector<1x1x2x1xf32>
    %1504 = vector.shape_cast %1503 : vector<1x1x2x1xf32> to vector<2x1xf32>
    %c153_i32 = arith.constant 153 : i32
    %1505 = tpu.dynamic_rotate %1502 by %c153_i32 dim 1 : vector<2x256xf32>, i32 -> vector<2x256xf32>
    %c9_i32_845 = arith.constant 9 : i32
    %1506 = vector.broadcast %c9_i32_845 : i32 to vector<1x256xi32>
    %1507 = arith.cmpi sge, %0, %1506 : vector<1x256xi32>
    %c9_i32_846 = arith.constant 9 : i32
    %1508 = vector.broadcast %c9_i32_846 : i32 to vector<1x256xi32>
    %1509 = arith.cmpi sge, %1, %1508 : vector<1x256xi32>
    %1510 = arith.andi %1507, %1509 : vector<1x256xi1>
    %cst_847 = arith.constant 0.000000e+00 : f32
    %1511 = vector.shape_cast %1510 : vector<1x256xi1> to vector<1x256xi1>
    %1512 = vector.broadcast %1511 : vector<1x256xi1> to vector<2x256xi1>
    %1513 = vector.broadcast %cst_847 : f32 to vector<2x256xf32>
    %1514 = arith.select %1512, %1505, %1513 : vector<2x256xi1>, vector<2x256xf32>
    %1515 = vector.broadcast %1504 : vector<2x1xf32> to vector<2x256xf32>
    %1516 = arith.mulf %1515, %1514 : vector<2x256xf32>
    %c3_848 = arith.constant 3 : index
    %c1_849 = arith.constant 1 : index
    %c0_850 = arith.constant 0 : index
    %c0_851 = arith.constant 0 : index
    %1517 = vector.load %arg6[%c3_848, %c1_849, %c0_850, %c0_851] : memref<4x9x2x1xf32, #tpu.memory_space<vmem>>, vector<1x1x2x1xf32>
    %1518 = vector.shape_cast %1517 : vector<1x1x2x1xf32> to vector<2x1xf32>
    %c144_i32_852 = arith.constant 144 : i32
    %1519 = tpu.dynamic_rotate %1502 by %c144_i32_852 dim 1 : vector<2x256xf32>, i32 -> vector<2x256xf32>
    %c9_i32_853 = arith.constant 9 : i32
    %1520 = vector.broadcast %c9_i32_853 : i32 to vector<1x256xi32>
    %1521 = arith.cmpi sge, %0, %1520 : vector<1x256xi32>
    %cst_854 = arith.constant 0.000000e+00 : f32
    %1522 = vector.shape_cast %1521 : vector<1x256xi1> to vector<1x256xi1>
    %1523 = vector.broadcast %1522 : vector<1x256xi1> to vector<2x256xi1>
    %1524 = vector.broadcast %cst_854 : f32 to vector<2x256xf32>
    %1525 = arith.select %1523, %1519, %1524 : vector<2x256xi1>, vector<2x256xf32>
    %1526 = vector.broadcast %1518 : vector<2x1xf32> to vector<2x256xf32>
    %1527 = arith.mulf %1526, %1525 : vector<2x256xf32>
    %1528 = arith.addf %1516, %1527 : vector<2x256xf32>
    %c3_855 = arith.constant 3 : index
    %c2_856 = arith.constant 2 : index
    %c0_857 = arith.constant 0 : index
    %c0_858 = arith.constant 0 : index
    %1529 = vector.load %arg6[%c3_855, %c2_856, %c0_857, %c0_858] : memref<4x9x2x1xf32, #tpu.memory_space<vmem>>, vector<1x1x2x1xf32>
    %1530 = vector.shape_cast %1529 : vector<1x1x2x1xf32> to vector<2x1xf32>
    %c135_i32 = arith.constant 135 : i32
    %1531 = tpu.dynamic_rotate %1502 by %c135_i32 dim 1 : vector<2x256xf32>, i32 -> vector<2x256xf32>
    %c9_i32_859 = arith.constant 9 : i32
    %1532 = vector.broadcast %c9_i32_859 : i32 to vector<1x256xi32>
    %1533 = arith.cmpi sge, %0, %1532 : vector<1x256xi32>
    %c7_i32_860 = arith.constant 7 : i32
    %1534 = vector.broadcast %c7_i32_860 : i32 to vector<1x256xi32>
    %1535 = arith.cmpi slt, %1, %1534 : vector<1x256xi32>
    %1536 = arith.andi %1533, %1535 : vector<1x256xi1>
    %cst_861 = arith.constant 0.000000e+00 : f32
    %1537 = vector.shape_cast %1536 : vector<1x256xi1> to vector<1x256xi1>
    %1538 = vector.broadcast %1537 : vector<1x256xi1> to vector<2x256xi1>
    %1539 = vector.broadcast %cst_861 : f32 to vector<2x256xf32>
    %1540 = arith.select %1538, %1531, %1539 : vector<2x256xi1>, vector<2x256xf32>
    %1541 = vector.broadcast %1530 : vector<2x1xf32> to vector<2x256xf32>
    %1542 = arith.mulf %1541, %1540 : vector<2x256xf32>
    %1543 = arith.addf %1528, %1542 : vector<2x256xf32>
    %c3_862 = arith.constant 3 : index
    %c3_863 = arith.constant 3 : index
    %c0_864 = arith.constant 0 : index
    %c0_865 = arith.constant 0 : index
    %1544 = vector.load %arg6[%c3_862, %c3_863, %c0_864, %c0_865] : memref<4x9x2x1xf32, #tpu.memory_space<vmem>>, vector<1x1x2x1xf32>
    %1545 = vector.shape_cast %1544 : vector<1x1x2x1xf32> to vector<2x1xf32>
    %c9_i32_866 = arith.constant 9 : i32
    %1546 = tpu.dynamic_rotate %1502 by %c9_i32_866 dim 1 : vector<2x256xf32>, i32 -> vector<2x256xf32>
    %c9_i32_867 = arith.constant 9 : i32
    %1547 = vector.broadcast %c9_i32_867 : i32 to vector<1x256xi32>
    %1548 = arith.cmpi sge, %1, %1547 : vector<1x256xi32>
    %cst_868 = arith.constant 0.000000e+00 : f32
    %1549 = vector.shape_cast %1548 : vector<1x256xi1> to vector<1x256xi1>
    %1550 = vector.broadcast %1549 : vector<1x256xi1> to vector<2x256xi1>
    %1551 = vector.broadcast %cst_868 : f32 to vector<2x256xf32>
    %1552 = arith.select %1550, %1546, %1551 : vector<2x256xi1>, vector<2x256xf32>
    %1553 = vector.broadcast %1545 : vector<2x1xf32> to vector<2x256xf32>
    %1554 = arith.mulf %1553, %1552 : vector<2x256xf32>
    %1555 = arith.addf %1543, %1554 : vector<2x256xf32>
    %c3_869 = arith.constant 3 : index
    %c4_870 = arith.constant 4 : index
    %c0_871 = arith.constant 0 : index
    %c0_872 = arith.constant 0 : index
    %1556 = vector.load %arg6[%c3_869, %c4_870, %c0_871, %c0_872] : memref<4x9x2x1xf32, #tpu.memory_space<vmem>>, vector<1x1x2x1xf32>
    %1557 = vector.shape_cast %1556 : vector<1x1x2x1xf32> to vector<2x1xf32>
    %1558 = vector.broadcast %1557 : vector<2x1xf32> to vector<2x256xf32>
    %1559 = arith.mulf %1558, %1502 : vector<2x256xf32>
    %1560 = arith.addf %1555, %1559 : vector<2x256xf32>
    %c3_873 = arith.constant 3 : index
    %c5_874 = arith.constant 5 : index
    %c0_875 = arith.constant 0 : index
    %c0_876 = arith.constant 0 : index
    %1561 = vector.load %arg6[%c3_873, %c5_874, %c0_875, %c0_876] : memref<4x9x2x1xf32, #tpu.memory_space<vmem>>, vector<1x1x2x1xf32>
    %1562 = vector.shape_cast %1561 : vector<1x1x2x1xf32> to vector<2x1xf32>
    %c247_i32 = arith.constant 247 : i32
    %1563 = tpu.dynamic_rotate %1502 by %c247_i32 dim 1 : vector<2x256xf32>, i32 -> vector<2x256xf32>
    %c7_i32_877 = arith.constant 7 : i32
    %1564 = vector.broadcast %c7_i32_877 : i32 to vector<1x256xi32>
    %1565 = arith.cmpi slt, %1, %1564 : vector<1x256xi32>
    %cst_878 = arith.constant 0.000000e+00 : f32
    %1566 = vector.shape_cast %1565 : vector<1x256xi1> to vector<1x256xi1>
    %1567 = vector.broadcast %1566 : vector<1x256xi1> to vector<2x256xi1>
    %1568 = vector.broadcast %cst_878 : f32 to vector<2x256xf32>
    %1569 = arith.select %1567, %1563, %1568 : vector<2x256xi1>, vector<2x256xf32>
    %1570 = vector.broadcast %1562 : vector<2x1xf32> to vector<2x256xf32>
    %1571 = arith.mulf %1570, %1569 : vector<2x256xf32>
    %1572 = arith.addf %1560, %1571 : vector<2x256xf32>
    %c3_879 = arith.constant 3 : index
    %c6_880 = arith.constant 6 : index
    %c0_881 = arith.constant 0 : index
    %c0_882 = arith.constant 0 : index
    %1573 = vector.load %arg6[%c3_879, %c6_880, %c0_881, %c0_882] : memref<4x9x2x1xf32, #tpu.memory_space<vmem>>, vector<1x1x2x1xf32>
    %1574 = vector.shape_cast %1573 : vector<1x1x2x1xf32> to vector<2x1xf32>
    %c121_i32 = arith.constant 121 : i32
    %1575 = tpu.dynamic_rotate %1502 by %c121_i32 dim 1 : vector<2x256xf32>, i32 -> vector<2x256xf32>
    %c7_i32_883 = arith.constant 7 : i32
    %1576 = vector.broadcast %c7_i32_883 : i32 to vector<1x256xi32>
    %1577 = arith.cmpi slt, %0, %1576 : vector<1x256xi32>
    %c9_i32_884 = arith.constant 9 : i32
    %1578 = vector.broadcast %c9_i32_884 : i32 to vector<1x256xi32>
    %1579 = arith.cmpi sge, %1, %1578 : vector<1x256xi32>
    %1580 = arith.andi %1577, %1579 : vector<1x256xi1>
    %cst_885 = arith.constant 0.000000e+00 : f32
    %1581 = vector.shape_cast %1580 : vector<1x256xi1> to vector<1x256xi1>
    %1582 = vector.broadcast %1581 : vector<1x256xi1> to vector<2x256xi1>
    %1583 = vector.broadcast %cst_885 : f32 to vector<2x256xf32>
    %1584 = arith.select %1582, %1575, %1583 : vector<2x256xi1>, vector<2x256xf32>
    %1585 = vector.broadcast %1574 : vector<2x1xf32> to vector<2x256xf32>
    %1586 = arith.mulf %1585, %1584 : vector<2x256xf32>
    %1587 = arith.addf %1572, %1586 : vector<2x256xf32>
    %c3_886 = arith.constant 3 : index
    %c7_887 = arith.constant 7 : index
    %c0_888 = arith.constant 0 : index
    %c0_889 = arith.constant 0 : index
    %1588 = vector.load %arg6[%c3_886, %c7_887, %c0_888, %c0_889] : memref<4x9x2x1xf32, #tpu.memory_space<vmem>>, vector<1x1x2x1xf32>
    %1589 = vector.shape_cast %1588 : vector<1x1x2x1xf32> to vector<2x1xf32>
    %c112_i32_890 = arith.constant 112 : i32
    %1590 = tpu.dynamic_rotate %1502 by %c112_i32_890 dim 1 : vector<2x256xf32>, i32 -> vector<2x256xf32>
    %c7_i32_891 = arith.constant 7 : i32
    %1591 = vector.broadcast %c7_i32_891 : i32 to vector<1x256xi32>
    %1592 = arith.cmpi slt, %0, %1591 : vector<1x256xi32>
    %cst_892 = arith.constant 0.000000e+00 : f32
    %1593 = vector.shape_cast %1592 : vector<1x256xi1> to vector<1x256xi1>
    %1594 = vector.broadcast %1593 : vector<1x256xi1> to vector<2x256xi1>
    %1595 = vector.broadcast %cst_892 : f32 to vector<2x256xf32>
    %1596 = arith.select %1594, %1590, %1595 : vector<2x256xi1>, vector<2x256xf32>
    %1597 = vector.broadcast %1589 : vector<2x1xf32> to vector<2x256xf32>
    %1598 = arith.mulf %1597, %1596 : vector<2x256xf32>
    %1599 = arith.addf %1587, %1598 : vector<2x256xf32>
    %c3_893 = arith.constant 3 : index
    %c8_894 = arith.constant 8 : index
    %c0_895 = arith.constant 0 : index
    %c0_896 = arith.constant 0 : index
    %1600 = vector.load %arg6[%c3_893, %c8_894, %c0_895, %c0_896] : memref<4x9x2x1xf32, #tpu.memory_space<vmem>>, vector<1x1x2x1xf32>
    %1601 = vector.shape_cast %1600 : vector<1x1x2x1xf32> to vector<2x1xf32>
    %c103_i32 = arith.constant 103 : i32
    %1602 = tpu.dynamic_rotate %1502 by %c103_i32 dim 1 : vector<2x256xf32>, i32 -> vector<2x256xf32>
    %c7_i32_897 = arith.constant 7 : i32
    %1603 = vector.broadcast %c7_i32_897 : i32 to vector<1x256xi32>
    %1604 = arith.cmpi slt, %0, %1603 : vector<1x256xi32>
    %c7_i32_898 = arith.constant 7 : i32
    %1605 = vector.broadcast %c7_i32_898 : i32 to vector<1x256xi32>
    %1606 = arith.cmpi slt, %1, %1605 : vector<1x256xi32>
    %1607 = arith.andi %1604, %1606 : vector<1x256xi1>
    %cst_899 = arith.constant 0.000000e+00 : f32
    %1608 = vector.shape_cast %1607 : vector<1x256xi1> to vector<1x256xi1>
    %1609 = vector.broadcast %1608 : vector<1x256xi1> to vector<2x256xi1>
    %1610 = vector.broadcast %cst_899 : f32 to vector<2x256xf32>
    %1611 = arith.select %1609, %1602, %1610 : vector<2x256xi1>, vector<2x256xf32>
    %1612 = vector.broadcast %1601 : vector<2x1xf32> to vector<2x256xf32>
    %1613 = arith.mulf %1612, %1611 : vector<2x256xf32>
    %1614 = arith.addf %1599, %1613 : vector<2x256xf32>
    %c3_900 = arith.constant 3 : index
    %c0_901 = arith.constant 0 : index
    %c0_902 = arith.constant 0 : index
    %1615 = vector.load %arg7[%c3_900, %c0_901, %c0_902] : memref<4x2x2xf32, #tpu.memory_space<vmem>>, vector<1x2x2xf32>
    %1616 = vector.shape_cast %1615 : vector<1x2x2xf32> to vector<2x2xf32>
    %1617 = arith.truncf %1616 : vector<2x2xf32> to vector<2x2xbf16>
    %1618 = arith.truncf %1614 : vector<2x256xf32> to vector<2x256xbf16>
    %cst_903 = arith.constant dense<0.000000e+00> : vector<2x256xf32>
    %1619 = tpu.matmul %1617, %1618, %cst_903 {dimension_numbers = #tpu.dot_dimension_numbers<[1], [0], [0], [1], [0, 0, 1, 1], [], []>} : vector<2x2xbf16>, vector<2x256xbf16>, vector<2x256xf32> -> vector<2x256xf32>
    %1620 = vector.extract_strided_slice %3 {offsets = [6, 0], sizes = [2, 256], strides = [1, 1]} : vector<8x256xf32> to vector<2x256xf32>
    %1621 = arith.addf %1619, %1620 : vector<2x256xf32>
    %c3_904 = arith.constant 3 : index
    %c0_905 = arith.constant 0 : index
    %c0_906 = arith.constant 0 : index
    %1622 = vector.load %arg13[%c3_904, %c0_905, %c0_906] : memref<4x2x1xf32, #tpu.memory_space<vmem>>, vector<1x2x1xf32>
    %1623 = vector.shape_cast %1622 : vector<1x2x1xf32> to vector<2x1xf32>
    %1624 = vector.broadcast %1623 : vector<2x1xf32> to vector<2x256xf32>
    %1625 = arith.mulf %1621, %1624 : vector<2x256xf32>
    %c3_907 = arith.constant 3 : index
    %c0_908 = arith.constant 0 : index
    %c0_909 = arith.constant 0 : index
    %1626 = vector.load %arg14[%c3_907, %c0_908, %c0_909] : memref<4x2x1xf32, #tpu.memory_space<vmem>>, vector<1x2x1xf32>
    %1627 = vector.shape_cast %1626 : vector<1x2x1xf32> to vector<2x1xf32>
    %1628 = vector.broadcast %1627 : vector<2x1xf32> to vector<2x256xf32>
    %1629 = arith.addf %1625, %1628 : vector<2x256xf32>
    %cst_910 = arith.constant 0.000000e+00 : f32
    %1630 = vector.broadcast %cst_910 : f32 to vector<2x256xf32>
    %1631 = arith.cmpf ogt, %1629, %1630 : vector<2x256xf32>
    %c3_911 = arith.constant 3 : index
    %c0_912 = arith.constant 0 : index
    %c0_913 = arith.constant 0 : index
    %1632 = vector.load %arg15[%c3_911, %c0_912, %c0_913] : memref<4x2x1xf32, #tpu.memory_space<vmem>>, vector<1x2x1xf32>
    %1633 = vector.shape_cast %1632 : vector<1x2x1xf32> to vector<2x1xf32>
    %1634 = vector.broadcast %1633 : vector<2x1xf32> to vector<2x256xf32>
    %1635 = arith.mulf %1634, %1629 : vector<2x256xf32>
    %1636 = arith.select %1631, %1629, %1635 : vector<2x256xi1>, vector<2x256xf32>
    %c0_914 = arith.constant 0 : index
    %c6_915 = arith.constant 6 : index
    %c0_916 = arith.constant 0 : index
    %1637 = vector.load %arg16[%c0_914, %c6_915, %c0_916] : memref<1x8x256xf32, #tpu.memory_space<vmem>>, vector<1x2x256xf32>
    %1638 = vector.shape_cast %1637 : vector<1x2x256xf32> to vector<2x256xf32>
    %1639 = vector.shape_cast %1636 : vector<2x256xf32> to vector<1x2x256xf32>
    tpu.vector_store %arg16[%c0_914, %c6_915, %c0_916], %1639 {strides = array<i32>} : memref<1x8x256xf32, #tpu.memory_space<vmem>>, vector<1x2x256xf32>,
    return
  }
  func.func @transform_0(%arg0: i32) -> (i32, i32) {
    %c0_i32 = arith.constant 0 : i32
    %c0_i32_0 = arith.constant 0 : i32
    %c0_i32_1 = arith.constant 0 : i32
    return %c0_i32, %c0_i32_0 : i32, i32
  }
  func.func @transform_1(%arg0: i32) -> (i32, i32, i32) {
    %c0_i32 = arith.constant 0 : i32
    %c0_i32_0 = arith.constant 0 : i32
    %c0_i32_1 = arith.constant 0 : i32
    return %arg0, %c0_i32, %c0_i32_0 : i32, i32, i32
  }
  func.func @transform_2(%arg0: i32) -> (i32, i32) {
    %c0_i32 = arith.constant 0 : i32
    %c0_i32_0 = arith.constant 0 : i32
    %c0_i32_1 = arith.constant 0 : i32
    return %c0_i32, %c0_i32_0 : i32, i32
  }
  func.func @transform_3(%arg0: i32) -> (i32, i32, i32, i32) {
    %c0_i32 = arith.constant 0 : i32
    %c0_i32_0 = arith.constant 0 : i32
    %c0_i32_1 = arith.constant 0 : i32
    %c0_i32_2 = arith.constant 0 : i32
    %c0_i32_3 = arith.constant 0 : i32
    return %c0_i32, %c0_i32_0, %c0_i32_1, %c0_i32_2 : i32, i32, i32, i32
  }
  func.func @transform_4(%arg0: i32) -> (i32, i32, i32, i32) {
    %c0_i32 = arith.constant 0 : i32
    %c0_i32_0 = arith.constant 0 : i32
    %c0_i32_1 = arith.constant 0 : i32
    %c0_i32_2 = arith.constant 0 : i32
    %c0_i32_3 = arith.constant 0 : i32
    return %c0_i32, %c0_i32_0, %c0_i32_1, %c0_i32_2 : i32, i32, i32, i32
  }
  func.func @transform_5(%arg0: i32) -> (i32, i32, i32, i32) {
    %c0_i32 = arith.constant 0 : i32
    %c0_i32_0 = arith.constant 0 : i32
    %c0_i32_1 = arith.constant 0 : i32
    %c0_i32_2 = arith.constant 0 : i32
    %c0_i32_3 = arith.constant 0 : i32
    return %c0_i32, %c0_i32_0, %c0_i32_1, %c0_i32_2 : i32, i32, i32, i32
  }
  func.func @transform_6(%arg0: i32) -> (i32, i32, i32) {
    %c0_i32 = arith.constant 0 : i32
    %c0_i32_0 = arith.constant 0 : i32
    %c0_i32_1 = arith.constant 0 : i32
    %c0_i32_2 = arith.constant 0 : i32
    return %c0_i32, %c0_i32_0, %c0_i32_1 : i32, i32, i32
  }
  func.func @transform_7(%arg0: i32) -> (i32, i32, i32) {
    %c0_i32 = arith.constant 0 : i32
    %c0_i32_0 = arith.constant 0 : i32
    %c0_i32_1 = arith.constant 0 : i32
    %c0_i32_2 = arith.constant 0 : i32
    return %c0_i32, %c0_i32_0, %c0_i32_1 : i32, i32, i32
  }
  func.func @transform_8(%arg0: i32) -> (i32, i32, i32) {
    %c0_i32 = arith.constant 0 : i32
    %c0_i32_0 = arith.constant 0 : i32
    %c0_i32_1 = arith.constant 0 : i32
    %c0_i32_2 = arith.constant 0 : i32
    return %c0_i32, %c0_i32_0, %c0_i32_1 : i32, i32, i32
  }
  func.func @transform_9(%arg0: i32) -> (i32, i32, i32) {
    %c0_i32 = arith.constant 0 : i32
    %c0_i32_0 = arith.constant 0 : i32
    %c0_i32_1 = arith.constant 0 : i32
    %c0_i32_2 = arith.constant 0 : i32
    return %c0_i32, %c0_i32_0, %c0_i32_1 : i32, i32, i32
  }
  func.func @transform_10(%arg0: i32) -> (i32, i32, i32) {
    %c0_i32 = arith.constant 0 : i32
    %c0_i32_0 = arith.constant 0 : i32
    %c0_i32_1 = arith.constant 0 : i32
    %c0_i32_2 = arith.constant 0 : i32
    return %c0_i32, %c0_i32_0, %c0_i32_1 : i32, i32, i32
  }
  func.func @transform_11(%arg0: i32) -> (i32, i32, i32) {
    %c0_i32 = arith.constant 0 : i32
    %c0_i32_0 = arith.constant 0 : i32
    %c0_i32_1 = arith.constant 0 : i32
    %c0_i32_2 = arith.constant 0 : i32
    return %c0_i32, %c0_i32_0, %c0_i32_1 : i32, i32, i32
  }
  func.func @transform_12(%arg0: i32) -> (i32, i32, i32) {
    %c0_i32 = arith.constant 0 : i32
    %c0_i32_0 = arith.constant 0 : i32
    %c0_i32_1 = arith.constant 0 : i32
    %c0_i32_2 = arith.constant 0 : i32
    return %c0_i32, %c0_i32_0, %c0_i32_1 : i32, i32, i32
  }
  func.func @transform_13(%arg0: i32) -> (i32, i32, i32) {
    %c0_i32 = arith.constant 0 : i32
    %c0_i32_0 = arith.constant 0 : i32
    %c0_i32_1 = arith.constant 0 : i32
    %c0_i32_2 = arith.constant 0 : i32
    return %c0_i32, %c0_i32_0, %c0_i32_1 : i32, i32, i32
  }
  func.func @transform_14(%arg0: i32) -> (i32, i32, i32) {
    %c0_i32 = arith.constant 0 : i32
    %c0_i32_0 = arith.constant 0 : i32
    %c0_i32_1 = arith.constant 0 : i32
    %c0_i32_2 = arith.constant 0 : i32
    return %c0_i32, %c0_i32_0, %c0_i32_1 : i32, i32, i32
  }
  func.func @transform_15(%arg0: i32) -> (i32, i32, i32) {
    %c0_i32 = arith.constant 0 : i32
    %c0_i32_0 = arith.constant 0 : i32
    %c0_i32_1 = arith.constant 0 : i32
    return %arg0, %c0_i32, %c0_i32_0 : i32, i32, i32
  }
}

</mosaic_0001>

<llo_original>
// kernel: tpu_custom_call.1
$region0: #{tpu_custom_call.1}
  #allocation0 [shape = 'u32[]', space=smem, size = 0x4, offset = 0x4, fixed_abs, tag = 'smem constant byte address 0x4 - core index']
  #allocation1 [shape = 'u32[144,128]{1,0:T(1,128)}', space=vmem, size = 0x12000, scoped, tag = 'internal scratch']
  %s0 = inlined_call_operand.vmem [shape: s32[2,256], index: 0, kind: input, shape index: {}]
  %s1 = inlined_call_operand.vmem [shape: f32[2,8,256], index: 1, kind: input, shape index: {}]
  %s2 = inlined_call_operand.vmem [shape: f32[2,8], index: 2, kind: input, shape index: {}]
  %s3 = inlined_call_operand.vmem [shape: f32[4,17,2,1], index: 3, kind: input, shape index: {}]
  %s4 = inlined_call_operand.vmem [shape: f32[4,17,2,1], index: 4, kind: input, shape index: {}]
  %s5 = inlined_call_operand.vmem [shape: f32[4,9,2,1], index: 5, kind: input, shape index: {}]
  %s6 = inlined_call_operand.vmem [shape: f32[4,2,2], index: 6, kind: input, shape index: {}]
  %s7 = inlined_call_operand.vmem [shape: f32[4,2,1], index: 7, kind: input, shape index: {}]
  %s8 = inlined_call_operand.vmem [shape: f32[4,2,1], index: 8, kind: input, shape index: {}]
  %s9 = inlined_call_operand.vmem [shape: f32[4,2,1], index: 9, kind: input, shape index: {}]
  %s10 = inlined_call_operand.vmem [shape: f32[4,2,1], index: 10, kind: input, shape index: {}]
  %s11 = inlined_call_operand.vmem [shape: f32[4,2,1], index: 11, kind: input, shape index: {}]
  %s12 = inlined_call_operand.vmem [shape: f32[4,2,1], index: 12, kind: input, shape index: {}]
  %s13 = inlined_call_operand.vmem [shape: f32[4,2,1], index: 13, kind: input, shape index: {}]
  %s14 = inlined_call_operand.vmem [shape: f32[4,2,1], index: 14, kind: input, shape index: {}]
  %s15 = inlined_call_operand.hbm [shape: f32[2,8,256], index: 15, kind: output, shape index: {}]
  %s16 = sld [smem:[#allocation0]]
  $region93: #{tpu_custom_call.1} parent=0
    _
  %s18 = ssub.s32 1, %s16
  %s19 = scalar_select 0, %s18, %s16
  $region1: #{tpu_custom_call.1} parent=0
    #allocation2 [shape = 'u8[16384]{0}', space=vmem, size = 0x4000, scoped, tag = 'output window, operand 0']
    #allocation3 [shape = 's32[2]{0}', space=sflag, size = 0x8, scoped, tag = 'scoped memory for tpu_custom_call.1']
    %20 = vsyncpa [#allocation3], 0
    %s21 = scalar_lea.sflag [#allocation3], 1
    %22 = vsyncpa %s21, 0
    loop: start=0, step=1, limit=4
    $region2: #{tpu_custom_call.1} parent=1 // loop_pre_header
      _
    $region3: #{tpu_custom_call.1} parent=1 // loop_header
      %s24 = sphi 0, %s28
      %p25 = scmp.ge.s32.totalorder %s24, 4
      %s32 = sphi 0, %s32
      %s34 = sphi 0, %s32
      %s35 = sphi 0, %s34
      %s49 = sphi 0, %s35
      %s55 = sphi 0, %s57
      %s58 = sphi 0, %s55
      %s59 = sphi 0, %s58
      %s75 = sphi 0, %s59
      %s79 = sphi 0, %s79
      %s81 = sphi 0, %s79
      %s82 = sphi 0, %s81
      %s96 = sphi 0, %s82
      %s100 = sphi 0, %s100
      %s102 = sphi 0, %s100
      %s103 = sphi 0, %s102
      %s117 = sphi 0, %s103
      %s121 = sphi 0, %s121
      %s123 = sphi 0, %s121
      %s124 = sphi 0, %s123
      %s138 = sphi 0, %s124
      %s142 = sphi 0, %s142
      %s144 = sphi 0, %s142
      %s145 = sphi 0, %s144
      %s159 = sphi 0, %s145
      %s163 = sphi 0, %s163
      %s165 = sphi 0, %s163
      %s166 = sphi 0, %s165
      %s180 = sphi 0, %s166
      %s184 = sphi 0, %s184
      %s186 = sphi 0, %s184
      %s187 = sphi 0, %s186
      %s201 = sphi 0, %s187
      %s205 = sphi 0, %s205
      %s207 = sphi 0, %s205
      %s208 = sphi 0, %s207
      %s222 = sphi 0, %s208
      %s226 = sphi 0, %s226
      %s228 = sphi 0, %s226
      %s229 = sphi 0, %s228
      %s243 = sphi 0, %s229
      %s247 = sphi 0, %s247
      %s249 = sphi 0, %s247
      %s250 = sphi 0, %s249
      %s264 = sphi 0, %s250
      %s268 = sphi 0, %s268
      %s270 = sphi 0, %s268
      %s271 = sphi 0, %s270
      %s285 = sphi 0, %s271
      %s289 = sphi 0, %s289
      %s291 = sphi 0, %s289
      %s292 = sphi 0, %s291
      %s306 = sphi 0, %s292
      %s310 = sphi 0, %s310
      %s312 = sphi 0, %s310
      %s313 = sphi 0, %s312
      %s327 = sphi 0, %s313
      %s331 = sphi 0, %s331
      %s333 = sphi 0, %s331
      %s334 = sphi 0, %s333
      %s348 = sphi 0, %s334
      %s354 = sphi 0, %s356
      %s357 = sphi 0, %s354
      %s358 = sphi 0, %s357
      %s374 = sphi 0, %s358
    $region4: #{tpu_custom_call.1} parent=1 // loop_header_branch
      %27 = sbr.rel (%p25) target = $region8
    $region5: #{tpu_custom_call.1} parent=1 // loop_body
      %s29 = ssub.s32 %s24, 1
      %s30 = ssub.s32 %s24, 2
      %s31 = sadd.s32 %s24, 1
      %s33 = sadd.s32 %s32, 1
      %p36 = scmp.eq.s32.totalorder %s24, 1
      %p37 = scmp.ne.s32.totalorder %s32, %s34
      %p38 = scmp.eq.s32.totalorder %s24, 0
      %p39 = por %p37, %p38
      %p40 = scmp.ne.s32.totalorder %s32, %s34
      %p41 = scmp.eq.s32.totalorder %s29, 1
      %p42 = por %p40, %p41
      %p43 = scmp.ne.s32.totalorder %s34, %s35
      %p44 = scmp.eq.s32.totalorder %s29, 0
      %p45 = por %p43, %p44
      %p46 = scmp.ne.s32.totalorder %s34, %s35
      %p47 = scmp.eq.s32.totalorder %s30, 1
      %p48 = por %p46, %p47
      %p50 = scmp.ne.s32.totalorder %s35, %s49
      %p51 = scmp.eq.s32.totalorder %s30, 0
      %p52 = por %p50, %p51
      %s53 = ssub.s32 %s24, %s31
      %p54 = scmp.eq.s32.totalorder %s53, 0
      %s56 = sadd.s32 %s55, 1
      %s57 = scalar_select %p54, %s55, %s56
      %p60 = pneg %p54
      %p61 = scmp.eq.s32.totalorder %s24, 1
      %p62 = por %p60, %p61
      %p63 = scmp.ne.s32.totalorder %s55, %s58
      %p64 = scmp.eq.s32.totalorder %s24, 0
      %p65 = por %p63, %p64
      %p66 = scmp.ne.s32.totalorder %s55, %s58
      %p67 = scmp.eq.s32.totalorder %s29, 1
      %p68 = por %p66, %p67
      %p69 = scmp.ne.s32.totalorder %s58, %s59
      %p70 = scmp.eq.s32.totalorder %s29, 0
      %p71 = por %p69, %p70
      %p72 = scmp.ne.s32.totalorder %s58, %s59
      %p73 = scmp.eq.s32.totalorder %s30, 1
      %p74 = por %p72, %p73
      %p76 = scmp.ne.s32.totalorder %s59, %s75
      %p77 = scmp.eq.s32.totalorder %s30, 0
      %p78 = por %p76, %p77
      %s80 = sadd.s32 %s79, 1
      %p83 = scmp.eq.s32.totalorder %s24, 1
      %p84 = scmp.ne.s32.totalorder %s79, %s81
      %p85 = scmp.eq.s32.totalorder %s24, 0
      %p86 = por %p84, %p85
      %p87 = scmp.ne.s32.totalorder %s79, %s81
      %p88 = scmp.eq.s32.totalorder %s29, 1
      %p89 = por %p87, %p88
      %p90 = scmp.ne.s32.totalorder %s81, %s82
      %p91 = scmp.eq.s32.totalorder %s29, 0
      %p92 = por %p90, %p91
      %p93 = scmp.ne.s32.totalorder %s81, %s82
      %p94 = scmp.eq.s32.totalorder %s30, 1
      %p95 = por %p93, %p94
      %p97 = scmp.ne.s32.totalorder %s82, %s96
      %p98 = scmp.eq.s32.totalorder %s30, 0
      %p99 = por %p97, %p98
      %s101 = sadd.s32 %s100, 1
      %p104 = scmp.eq.s32.totalorder %s24, 1
      %p105 = scmp.ne.s32.totalorder %s100, %s102
      %p106 = scmp.eq.s32.totalorder %s24, 0
      %p107 = por %p105, %p106
      %p108 = scmp.ne.s32.totalorder %s100, %s102
      %p109 = scmp.eq.s32.totalorder %s29, 1
      %p110 = por %p108, %p109
      %p111 = scmp.ne.s32.totalorder %s102, %s103
      %p112 = scmp.eq.s32.totalorder %s29, 0
      %p113 = por %p111, %p112
      %p114 = scmp.ne.s32.totalorder %s102, %s103
      %p115 = scmp.eq.s32.totalorder %s30, 1
      %p116 = por %p114, %p115
      %p118 = scmp.ne.s32.totalorder %s103, %s117
      %p119 = scmp.eq.s32.totalorder %s30, 0
      %p120 = por %p118, %p119
      %s122 = sadd.s32 %s121, 1
      %p125 = scmp.eq.s32.totalorder %s24, 1
      %p126 = scmp.ne.s32.totalorder %s121, %s123
      %p127 = scmp.eq.s32.totalorder %s24, 0
      %p128 = por %p126, %p127
      %p129 = scmp.ne.s32.totalorder %s121, %s123
      %p130 = scmp.eq.s32.totalorder %s29, 1
      %p131 = por %p129, %p130
      %p132 = scmp.ne.s32.totalorder %s123, %s124
      %p133 = scmp.eq.s32.totalorder %s29, 0
      %p134 = por %p132, %p133
      %p135 = scmp.ne.s32.totalorder %s123, %s124
      %p136 = scmp.eq.s32.totalorder %s30, 1
      %p137 = por %p135, %p136
      %p139 = scmp.ne.s32.totalorder %s124, %s138
      %p140 = scmp.eq.s32.totalorder %s30, 0
      %p141 = por %p139, %p140
      %s143 = sadd.s32 %s142, 1
      %p146 = scmp.eq.s32.totalorder %s24, 1
      %p147 = scmp.ne.s32.totalorder %s142, %s144
      %p148 = scmp.eq.s32.totalorder %s24, 0
      %p149 = por %p147, %p148
      %p150 = scmp.ne.s32.totalorder %s142, %s144
      %p151 = scmp.eq.s32.totalorder %s29, 1
      %p152 = por %p150, %p151
      %p153 = scmp.ne.s32.totalorder %s144, %s145
      %p154 = scmp.eq.s32.totalorder %s29, 0
      %p155 = por %p153, %p154
      %p156 = scmp.ne.s32.totalorder %s144, %s145
      %p157 = scmp.eq.s32.totalorder %s30, 1
      %p158 = por %p156, %p157
      %p160 = scmp.ne.s32.totalorder %s145, %s159
      %p161 = scmp.eq.s32.totalorder %s30, 0
      %p162 = por %p160, %p161
      %s164 = sadd.s32 %s163, 1
      %p167 = scmp.eq.s32.totalorder %s24, 1
      %p168 = scmp.ne.s32.totalorder %s163, %s165
      %p169 = scmp.eq.s32.totalorder %s24, 0
      %p170 = por %p168, %p169
      %p171 = scmp.ne.s32.totalorder %s163, %s165
      %p172 = scmp.eq.s32.totalorder %s29, 1
      %p173 = por %p171, %p172
      %p174 = scmp.ne.s32.totalorder %s165, %s166
      %p175 = scmp.eq.s32.totalorder %s29, 0
      %p176 = por %p174, %p175
      %p177 = scmp.ne.s32.totalorder %s165, %s166
      %p178 = scmp.eq.s32.totalorder %s30, 1
      %p179 = por %p177, %p178
      %p181 = scmp.ne.s32.totalorder %s166, %s180
      %p182 = scmp.eq.s32.totalorder %s30, 0
      %p183 = por %p181, %p182
      %s185 = sadd.s32 %s184, 1
      %p188 = scmp.eq.s32.totalorder %s24, 1
      %p189 = scmp.ne.s32.totalorder %s184, %s186
      %p190 = scmp.eq.s32.totalorder %s24, 0
      %p191 = por %p189, %p190
      %p192 = scmp.ne.s32.totalorder %s184, %s186
      %p193 = scmp.eq.s32.totalorder %s29, 1
      %p194 = por %p192, %p193
      %p195 = scmp.ne.s32.totalorder %s186, %s187
      %p196 = scmp.eq.s32.totalorder %s29, 0
      %p197 = por %p195, %p196
      %p198 = scmp.ne.s32.totalorder %s186, %s187
      %p199 = scmp.eq.s32.totalorder %s30, 1
      %p200 = por %p198, %p199
      %p202 = scmp.ne.s32.totalorder %s187, %s201
      %p203 = scmp.eq.s32.totalorder %s30, 0
      %p204 = por %p202, %p203
      %s206 = sadd.s32 %s205, 1
      %p209 = scmp.eq.s32.totalorder %s24, 1
      %p210 = scmp.ne.s32.totalorder %s205, %s207
      %p211 = scmp.eq.s32.totalorder %s24, 0
      %p212 = por %p210, %p211
      %p213 = scmp.ne.s32.totalorder %s205, %s207
      %p214 = scmp.eq.s32.totalorder %s29, 1
      %p215 = por %p213, %p214
      %p216 = scmp.ne.s32.totalorder %s207, %s208
      %p217 = scmp.eq.s32.totalorder %s29, 0
      %p218 = por %p216, %p217
      %p219 = scmp.ne.s32.totalorder %s207, %s208
      %p220 = scmp.eq.s32.totalorder %s30, 1
      %p221 = por %p219, %p220
      %p223 = scmp.ne.s32.totalorder %s208, %s222
      %p224 = scmp.eq.s32.totalorder %s30, 0
      %p225 = por %p223, %p224
      %s227 = sadd.s32 %s226, 1
      %p230 = scmp.eq.s32.totalorder %s24, 1
      %p231 = scmp.ne.s32.totalorder %s226, %s228
      %p232 = scmp.eq.s32.totalorder %s24, 0
      %p233 = por %p231, %p232
      %p234 = scmp.ne.s32.totalorder %s226, %s228
      %p235 = scmp.eq.s32.totalorder %s29, 1
      %p236 = por %p234, %p235
      %p237 = scmp.ne.s32.totalorder %s228, %s229
      %p238 = scmp.eq.s32.totalorder %s29, 0
      %p239 = por %p237, %p238
      %p240 = scmp.ne.s32.totalorder %s228, %s229
      %p241 = scmp.eq.s32.totalorder %s30, 1
      %p242 = por %p240, %p241
      %p244 = scmp.ne.s32.totalorder %s229, %s243
      %p245 = scmp.eq.s32.totalorder %s30, 0
      %p246 = por %p244, %p245
      %s248 = sadd.s32 %s247, 1
      %p251 = scmp.eq.s32.totalorder %s24, 1
      %p252 = scmp.ne.s32.totalorder %s247, %s249
      %p253 = scmp.eq.s32.totalorder %s24, 0
      %p254 = por %p252, %p253
      %p255 = scmp.ne.s32.totalorder %s247, %s249
      %p256 = scmp.eq.s32.totalorder %s29, 1
      %p257 = por %p255, %p256
      %p258 = scmp.ne.s32.totalorder %s249, %s250
      %p259 = scmp.eq.s32.totalorder %s29, 0
      %p260 = por %p258, %p259
      %p261 = scmp.ne.s32.totalorder %s249, %s250
      %p262 = scmp.eq.s32.totalorder %s30, 1
      %p263 = por %p261, %p262
      %p265 = scmp.ne.s32.totalorder %s250, %s264
      %p266 = scmp.eq.s32.totalorder %s30, 0
      %p267 = por %p265, %p266
      %s269 = sadd.s32 %s268, 1
      %p272 = scmp.eq.s32.totalorder %s24, 1
      %p273 = scmp.ne.s32.totalorder %s268, %s270
      %p274 = scmp.eq.s32.totalorder %s24, 0
      %p275 = por %p273, %p274
      %p276 = scmp.ne.s32.totalorder %s268, %s270
      %p277 = scmp.eq.s32.totalorder %s29, 1
      %p278 = por %p276, %p277
      %p279 = scmp.ne.s32.totalorder %s270, %s271
      %p280 = scmp.eq.s32.totalorder %s29, 0
      %p281 = por %p279, %p280
      %p282 = scmp.ne.s32.totalorder %s270, %s271
      %p283 = scmp.eq.s32.totalorder %s30, 1
      %p284 = por %p282, %p283
      %p286 = scmp.ne.s32.totalorder %s271, %s285
      %p287 = scmp.eq.s32.totalorder %s30, 0
      %p288 = por %p286, %p287
      %s290 = sadd.s32 %s289, 1
      %p293 = scmp.eq.s32.totalorder %s24, 1
      %p294 = scmp.ne.s32.totalorder %s289, %s291
      %p295 = scmp.eq.s32.totalorder %s24, 0
      %p296 = por %p294, %p295
      %p297 = scmp.ne.s32.totalorder %s289, %s291
      %p298 = scmp.eq.s32.totalorder %s29, 1
      %p299 = por %p297, %p298
      %p300 = scmp.ne.s32.totalorder %s291, %s292
      %p301 = scmp.eq.s32.totalorder %s29, 0
      %p302 = por %p300, %p301
      %p303 = scmp.ne.s32.totalorder %s291, %s292
      %p304 = scmp.eq.s32.totalorder %s30, 1
      %p305 = por %p303, %p304
      %p307 = scmp.ne.s32.totalorder %s292, %s306
      %p308 = scmp.eq.s32.totalorder %s30, 0
      %p309 = por %p307, %p308
      %s311 = sadd.s32 %s310, 1
      %p314 = scmp.eq.s32.totalorder %s24, 1
      %p315 = scmp.ne.s32.totalorder %s310, %s312
      %p316 = scmp.eq.s32.totalorder %s24, 0
      %p317 = por %p315, %p316
      %p318 = scmp.ne.s32.totalorder %s310, %s312
      %p319 = scmp.eq.s32.totalorder %s29, 1
      %p320 = por %p318, %p319
      %p321 = scmp.ne.s32.totalorder %s312, %s313
      %p322 = scmp.eq.s32.totalorder %s29, 0
      %p323 = por %p321, %p322
      %p324 = scmp.ne.s32.totalorder %s312, %s313
      %p325 = scmp.eq.s32.totalorder %s30, 1
      %p326 = por %p324, %p325
      %p328 = scmp.ne.s32.totalorder %s313, %s327
      %p329 = scmp.eq.s32.totalorder %s30, 0
      %p330 = por %p328, %p329
      %s332 = sadd.s32 %s331, 1
      %p335 = scmp.eq.s32.totalorder %s24, 1
      %p336 = scmp.ne.s32.totalorder %s331, %s333
      %p337 = scmp.eq.s32.totalorder %s24, 0
      %p338 = por %p336, %p337
      %p339 = scmp.ne.s32.totalorder %s331, %s333
      %p340 = scmp.eq.s32.totalorder %s29, 1
      %p341 = por %p339, %p340
      %p342 = scmp.ne.s32.totalorder %s333, %s334
      %p343 = scmp.eq.s32.totalorder %s29, 0
      %p344 = por %p342, %p343
      %p345 = scmp.ne.s32.totalorder %s333, %s334
      %p346 = scmp.eq.s32.totalorder %s30, 1
      %p347 = por %p345, %p346
      %p349 = scmp.ne.s32.totalorder %s334, %s348
      %p350 = scmp.eq.s32.totalorder %s30, 0
      %p351 = por %p349, %p350
      %s352 = ssub.s32 %s24, %s31
      %p353 = scmp.eq.s32.totalorder %s352, 0
      %s355 = sadd.s32 %s354, 1
      %s356 = scalar_select %p353, %s354, %s355
      %p359 = pneg %p353
      %p360 = scmp.eq.s32.totalorder %s24, 1
      %p361 = por %p359, %p360
      %p362 = scmp.ne.s32.totalorder %s354, %s357
      %p363 = scmp.eq.s32.totalorder %s24, 0
      %p364 = por %p362, %p363
      %p365 = scmp.ne.s32.totalorder %s354, %s357
      %p366 = scmp.eq.s32.totalorder %s29, 1
      %p367 = por %p365, %p366
      %p368 = scmp.ne.s32.totalorder %s357, %s358
      %p369 = scmp.eq.s32.totalorder %s29, 0
      %p370 = por %p368, %p369
      %p371 = scmp.ne.s32.totalorder %s357, %s358
      %p372 = scmp.eq.s32.totalorder %s30, 1
      %p373 = por %p371, %p372
      %p375 = scmp.ne.s32.totalorder %s358, %s374
      %p376 = scmp.eq.s32.totalorder %s30, 0
      %p377 = por %p375, %p376
      %p378 = scmp.le.s32.totalorder 1, %s24
      %p379 = scmp.lt.s32.totalorder %s24, 3
      %p380 = pnand %p378, %p379
      %p381 = pneg %p380
      // Predicated region
      $region9: #{tpu_custom_call.1} parent=5 // pred_check
        _
      $region10: #{tpu_custom_call.1} parent=5 // pred_check_branch
        %383 = sbr.rel (%p380) target = $region12
      $region11: #{tpu_custom_call.1} parent=5 // pred_region
        %s384 = ssub.s32 %s24, 1
        // Predicated region
        $region13: #{tpu_custom_call.1} parent=11 // pred_check
          %p385 = pneg %p45
        $region14: #{tpu_custom_call.1} parent=11 // pred_check_branch
          %387 = sbr.rel (%p385) target = $region16
        $region15: #{tpu_custom_call.1} parent=11 // pred_region
          _
        $region16: #{tpu_custom_call.1} parent=11 // pred_fallthru
          _
        // Predicated region
        $region17: #{tpu_custom_call.1} parent=11 // pred_check
          %p388 = pneg %p92
        $region18: #{tpu_custom_call.1} parent=11 // pred_check_branch
          %390 = sbr.rel (%p388) target = $region20
        $region19: #{tpu_custom_call.1} parent=11 // pred_region
          _
        $region20: #{tpu_custom_call.1} parent=11 // pred_fallthru
          _
        // Predicated region
        $region21: #{tpu_custom_call.1} parent=11 // pred_check
          %p391 = pneg %p113
        $region22: #{tpu_custom_call.1} parent=11 // pred_check_branch
          %393 = sbr.rel (%p391) target = $region24
        $region23: #{tpu_custom_call.1} parent=11 // pred_region
          _
        $region24: #{tpu_custom_call.1} parent=11 // pred_fallthru
          _
        // Predicated region
        $region25: #{tpu_custom_call.1} parent=11 // pred_check
          %p394 = pneg %p134
        $region26: #{tpu_custom_call.1} parent=11 // pred_check_branch
          %396 = sbr.rel (%p394) target = $region28
        $region27: #{tpu_custom_call.1} parent=11 // pred_region
          _
        $region28: #{tpu_custom_call.1} parent=11 // pred_fallthru
          _
        // Predicated region
        $region29: #{tpu_custom_call.1} parent=11 // pred_check
          %p397 = pneg %p155
        $region30: #{tpu_custom_call.1} parent=11 // pred_check_branch
          %399 = sbr.rel (%p397) target = $region32
        $region31: #{tpu_custom_call.1} parent=11 // pred_region
          _
        $region32: #{tpu_custom_call.1} parent=11 // pred_fallthru
          _
        // Predicated region
        $region33: #{tpu_custom_call.1} parent=11 // pred_check
          %p400 = pneg %p176
        $region34: #{tpu_custom_call.1} parent=11 // pred_check_branch
          %402 = sbr.rel (%p400) target = $region36
        $region35: #{tpu_custom_call.1} parent=11 // pred_region
          _
        $region36: #{tpu_custom_call.1} parent=11 // pred_fallthru
          _
        // Predicated region
        $region37: #{tpu_custom_call.1} parent=11 // pred_check
          %p403 = pneg %p197
        $region38: #{tpu_custom_call.1} parent=11 // pred_check_branch
          %405 = sbr.rel (%p403) target = $region40
        $region39: #{tpu_custom_call.1} parent=11 // pred_region
          _
        $region40: #{tpu_custom_call.1} parent=11 // pred_fallthru
          _
        // Predicated region
        $region41: #{tpu_custom_call.1} parent=11 // pred_check
          %p406 = pneg %p218
        $region42: #{tpu_custom_call.1} parent=11 // pred_check_branch
          %408 = sbr.rel (%p406) target = $region44
        $region43: #{tpu_custom_call.1} parent=11 // pred_region
          _
        $region44: #{tpu_custom_call.1} parent=11 // pred_fallthru
          _
        // Predicated region
        $region45: #{tpu_custom_call.1} parent=11 // pred_check
          %p409 = pneg %p239
        $region46: #{tpu_custom_call.1} parent=11 // pred_check_branch
          %411 = sbr.rel (%p409) target = $region48
        $region47: #{tpu_custom_call.1} parent=11 // pred_region
          _
        $region48: #{tpu_custom_call.1} parent=11 // pred_fallthru
          _
        // Predicated region
        $region49: #{tpu_custom_call.1} parent=11 // pred_check
          %p412 = pneg %p260
        $region50: #{tpu_custom_call.1} parent=11 // pred_check_branch
          %414 = sbr.rel (%p412) target = $region52
        $region51: #{tpu_custom_call.1} parent=11 // pred_region
          _
        $region52: #{tpu_custom_call.1} parent=11 // pred_fallthru
          _
        // Predicated region
        $region53: #{tpu_custom_call.1} parent=11 // pred_check
          %p415 = pneg %p281
        $region54: #{tpu_custom_call.1} parent=11 // pred_check_branch
          %417 = sbr.rel (%p415) target = $region56
        $region55: #{tpu_custom_call.1} parent=11 // pred_region
          _
        $region56: #{tpu_custom_call.1} parent=11 // pred_fallthru
          _
        // Predicated region
        $region57: #{tpu_custom_call.1} parent=11 // pred_check
          %p418 = pneg %p302
        $region58: #{tpu_custom_call.1} parent=11 // pred_check_branch
          %420 = sbr.rel (%p418) target = $region60
        $region59: #{tpu_custom_call.1} parent=11 // pred_region
          _
        $region60: #{tpu_custom_call.1} parent=11 // pred_fallthru
          _
        // Predicated region
        $region61: #{tpu_custom_call.1} parent=11 // pred_check
          %p421 = pneg %p323
        $region62: #{tpu_custom_call.1} parent=11 // pred_check_branch
          %423 = sbr.rel (%p421) target = $region64
        $region63: #{tpu_custom_call.1} parent=11 // pred_region
          _
        $region64: #{tpu_custom_call.1} parent=11 // pred_fallthru
          _
        // Predicated region
        $region65: #{tpu_custom_call.1} parent=11 // pred_check
          %p424 = pneg %p344
        $region66: #{tpu_custom_call.1} parent=11 // pred_check_branch
          %426 = sbr.rel (%p424) target = $region68
        $region67: #{tpu_custom_call.1} parent=11 // pred_region
          _
        $region68: #{tpu_custom_call.1} parent=11 // pred_fallthru
          _
      $region12: #{tpu_custom_call.1} parent=5 // pred_fallthru
        _
      %p427 = scmp.lt.s32.totalorder %s24, 2
      // Predicated region
      $region69: #{tpu_custom_call.1} parent=5 // pred_check
        %p428 = pneg %p427
      $region70: #{tpu_custom_call.1} parent=5 // pred_check_branch
        %430 = sbr.rel (%p428) target = $region72
      $region71: #{tpu_custom_call.1} parent=5 // pred_region
        // Predicated region
        $region73: #{tpu_custom_call.1} parent=71 // pred_check
          %p431 = pneg %p65
        $region74: #{tpu_custom_call.1} parent=71 // pred_check_branch
          %433 = sbr.rel (%p431) target = $region76
        $region75: #{tpu_custom_call.1} parent=71 // pred_region
          %p434 = scmp.lt.s32.totalorder %s24, 1
          %s435 = scalar_select %p434, %s24, 1
          %s436 = smul.addr %s435, 2
          %s437 = smul.addr %s436, 8
          %s438 = scalar_lea.vmem %s1, %s437
        $region76: #{tpu_custom_call.1} parent=71 // pred_fallthru
          _
      $region72: #{tpu_custom_call.1} parent=5 // pred_fallthru
        _
      %p439 = scmp.le.s32.totalorder 1, %s24
      %p440 = scmp.lt.s32.totalorder %s24, 3
      %p441 = pnand %p439, %p440
      %p442 = pneg %p441
      // Predicated region
      $region77: #{tpu_custom_call.1} parent=5 // pred_check
        _
      $region78: #{tpu_custom_call.1} parent=5 // pred_check_branch
        %444 = sbr.rel (%p441) target = $region80
      $region79: #{tpu_custom_call.1} parent=5 // pred_region
        %s445 = ssub.s32 %s24, 1
        %p446 = pneg %p45
        %p447 = pneg %p42
        %p448 = scmp.lt.s32.totalorder %s29, 1
        %s449 = scalar_select %p448, %s29, 1
        %s450 = smul.addr %s449, 2
        %s451 = smul.addr %s450, 8
        %s452 = scalar_lea.vmem %s1, %s451
        %p453 = pneg %p71
        %p454 = pneg %p68
        %p455 = pneg %p92
        %p456 = pneg %p89
        %p457 = pneg %p113
        %p458 = pneg %p110
        %p459 = pneg %p134
        %p460 = pneg %p131
        %p461 = pneg %p155
        %p462 = pneg %p152
        %p463 = pneg %p176
        %p464 = pneg %p173
        %p465 = pneg %p197
        %p466 = pneg %p194
        %p467 = pneg %p218
        %p468 = pneg %p215
        %p469 = pneg %p239
        %p470 = pneg %p236
        %p471 = pneg %p260
        %p472 = pneg %p257
        %p473 = pneg %p281
        %p474 = pneg %p278
        %p475 = pneg %p302
        %p476 = pneg %p299
        %p477 = pneg %p323
        %p478 = pneg %p320
        %p479 = pneg %p344
        %p480 = pneg %p341
        %p481 = pneg %p370
        %p482 = pneg %p367
        %s483 = sand.u32 %s357, 1
        %s484 = scalar_lea.sflag [#allocation3], %s483
        %s485 = sand.u32 %s357, 1
        %s486 = smul.addr %s485, 16
        %s487 = scalar_lea.vmem [#allocation2], %s486
        %p488 = scmp.lt.s32.totalorder %s29, 1
        %s489 = scalar_select %p488, %s29, 1
        %s490 = smul.addr %s489, 2
        %s491 = smul.addr %s490, 8
        %s492 = scalar_lea.vmem %s1, %s491
        %v494 = vld [vmem:[%s0] ss:$2 sm:$0x3]
        %s495 = scalar_lea.vmem %s0, 1
        %v496 = vld [vmem:[%s495] ss:$2 sm:$0x3]
        %v497 = vld [vmem:[%s492] sm:$0xff]
        %v498 = vld [vmem:[%s492 + $0x8] sm:$0xff]
        %v499 = vpack.c.bf16 %v497, %v497
        %v500 = vpack.c.bf16 %v498, %v498
        %v501 = vld [vmem:[%s2] sm:$0x3]
        %v502 = vpack.c.bf16 %v501, %v501
        %vm503 = vcmask 64512
        %v505 = vsel %vm503, %v502, 0
        %vm507 = vcmask 1043456
        %v509 = vsel %vm507, %v499, 0
        %v512 = vsel %vm507, %v500, 0
        %514 = vmatprep.subr.bf16.mxu0 %v512
        %515 = vmatpush1.bf16.msra.mxu0 %v509
        %516 = vmatprep.subr.bf16.mxu0 0
        %517 = vmatpush1.bf16.msra.mxu0 0
        %518 = vmatprep.subr.bf16.mxu0 0
        %519 = vmatpush1.bf16.msra.mxu0 0
        %520 = vmatprep.subr.bf16.mxu0 0
        %521 = vmatpush1.bf16.msra.mxu0 0
        %522 = vmatprep.subr.bf16.mxu0 0
        %523 = vmatpush1.bf16.msra.mxu0 0
        %524 = vmatprep.subr.bf16.mxu0 0
        %525 = vmatpush1.bf16.msra.mxu0 0
        %526 = vmatprep.subr.bf16.mxu0 0
        %527 = vmatpush1.bf16.msra.mxu0 0
        %528 = vmatprep.subr.bf16.mxu0 0
        %529 = vmatpush1.bf16.msra.mxu0 0
        %530 = vmatprep.subr.bf16.mxu0 0
        %531 = vmatpush1.bf16.msra.mxu0 0
        %532 = vmatprep.subr.bf16.mxu0 0
        %533 = vmatpush1.bf16.msra.mxu0 0
        %534 = vmatprep.subr.bf16.mxu0 0
        %535 = vmatpush1.bf16.msra.mxu0 0
        %536 = vmatprep.subr.bf16.mxu0 0
        %537 = vmatpush1.bf16.msra.mxu0 0
        %538 = vmatprep.subr.bf16.mxu0 0
        %539 = vmatpush1.bf16.msra.mxu0 0
        %540 = vmatprep.subr.bf16.mxu0 0
        %541 = vmatpush1.bf16.msra.mxu0 0
        %542 = vmatprep.subr.bf16.mxu0 0
        %543 = vmatpush1.bf16.msra.mxu0 0
        %544 = vmatprep.subr.bf16.mxu0 0
        %545 = vmatpush1.bf16.msra.mxu0 0
        %546 = vmatprep.mubr.bf16.mxu0 0
        %547 = vmatmul.mubr.bf16.gmra.mrb[0].mxu0 %v505
        %v548 = vpop.f32.mrb[0].mxu0
        %v549 = vadd.f32 0.0, %v548
        %v550 = vpop.f32.mrb[0].mxu0
        %v551 = vadd.f32 0.0, %v550
        %v552 = vpop.f32.mrb[0].mxu0
        %v553 = vpop.f32.mrb[0].mxu0
        %554 = vdwg.mxu0
        %v555 = vld [vmem:[%s3] sm:$0x3]
        %556 = vrot.lane.b32.xlu0 %v549, 32
        %v557 = vpop.permute.xlu0 %556
        %558 = vrot.lane.b32.xlu0 %v551, 32
        %v559 = vpop.permute.xlu0 %558
        %v560 = vlaneseq
        %v561 = vand.u32 %v560, 127
        %vm562 = vcmp.lt.s32.totalorder %v561, 32
        %v563 = vsel %vm562, %v557, %v559
        %v564 = vsel %vm562, %v559, %v557
        %vm565 = vcmp.ge.s32.totalorder %v494, 2
        %v566 = vsel %vm565, 1, 0
        %v567 = vlaneseq
        %v568 = vshrl.u32 %v567, 7
        %v569 = vsub.s32 0, %v568
        %v570 = vrot.slane %v566, %v569
        %v571 = vlaneseq
        %v572 = vshrl.u32 %v571, 7
        %v573 = vsub.s32 1, %v572
        %v574 = vrot.slane %v566, %v573
        %vm575 = vcmp.eq.s32.totalorder %v570, 1
        %vm576 = vcmp.eq.s32.totalorder %v574, 1
        %v577 = vsel %vm575, %v564, 0.0
        %v578 = vsel %vm576, %v563, 0.0
        %580 = vset.pattern.permute.xlu0 0
        %581 = vperm.xlu0 %580, %v555
        %v582 = vpop.permute.xlu0 %581
        %v584 = vmul.f32 %v582, %v577
        %v585 = vmul.f32 %v582, %v578
        %s586 = scalar_lea.vmem %s3, 2
        %v587 = vld [vmem:[%s586] sm:$0x3]
        %588 = vrot.lane.b32.xlu0 %v549, 16
        %v589 = vpop.permute.xlu0 %588
        %590 = vrot.lane.b32.xlu0 %v551, 16
        %v591 = vpop.permute.xlu0 %590
        %vm592 = vcmp.lt.s32.totalorder %v561, 16
        %v593 = vsel %vm592, %v589, %v591
        %v594 = vsel %vm592, %v591, %v589
        %vm595 = vcmp.ge.s32.totalorder %v494, 1
        %v596 = vsel %vm595, 1, 0
        %v597 = vlaneseq
        %v598 = vshrl.u32 %v597, 7
        %v599 = vsub.s32 0, %v598
        %v600 = vrot.slane %v596, %v599
        %v601 = vlaneseq
        %v602 = vshrl.u32 %v601, 7
        %v603 = vsub.s32 1, %v602
        %v604 = vrot.slane %v596, %v603
        %vm605 = vcmp.eq.s32.totalorder %v600, 1
        %vm606 = vcmp.eq.s32.totalorder %v604, 1
        %v607 = vsel %vm605, %v594, 0.0
        %v608 = vsel %vm606, %v593, 0.0
        %610 = vset.pattern.permute.xlu0 0
        %611 = vperm.xlu0 %610, %v587
        %v612 = vpop.permute.xlu0 %611
        %v614 = vmul.f32 %v612, %v607
        %v615 = vmul.f32 %v612, %v608
        %v616 = vadd.f32 %v584, %v614
        %v617 = vadd.f32 %v585, %v615
        %s618 = scalar_lea.vmem %s3, 4
        %v619 = vld [vmem:[%s618] sm:$0x3]
        %621 = vset.pattern.permute.xlu0 0
        %622 = vperm.xlu0 %621, %v619
        %v623 = vpop.permute.xlu0 %622
        %v625 = vmul.f32 %v623, %v549
        %v626 = vmul.f32 %v623, %v551
        %v627 = vadd.f32 %v616, %v625
        %v628 = vadd.f32 %v617, %v626
        %s629 = scalar_lea.vmem %s3, 6
        %v630 = vld [vmem:[%s629] sm:$0x3]
        %631 = vrot.lane.b32.xlu0 %v549, 112
        %v632 = vpop.permute.xlu0 %631
        %633 = vrot.lane.b32.xlu0 %v551, 112
        %v634 = vpop.permute.xlu0 %633
        %vm635 = vcmp.lt.s32.totalorder %v561, 112
        %v636 = vsel %vm635, %v632, %v634
        %v637 = vsel %vm635, %v634, %v632
        %vm638 = vcmp.lt.s32.totalorder %v494, 15
        %v639 = vsel %vm638, 1, 0
        %v640 = vlaneseq
        %v641 = vshrl.u32 %v640, 7
        %v642 = vsub.s32 0, %v641
        %v643 = vrot.slane %v639, %v642
        %v644 = vlaneseq
        %v645 = vshrl.u32 %v644, 7
        %v646 = vsub.s32 1, %v645
        %v647 = vrot.slane %v639, %v646
        %vm648 = vcmp.eq.s32.totalorder %v643, 1
        %vm649 = vcmp.eq.s32.totalorder %v647, 1
        %v650 = vsel %vm648, %v636, 0.0
        %v651 = vsel %vm649, %v637, 0.0
        %653 = vset.pattern.permute.xlu0 0
        %654 = vperm.xlu0 %653, %v630
        %v655 = vpop.permute.xlu0 %654
        %v657 = vmul.f32 %v655, %v650
        %v658 = vmul.f32 %v655, %v651
        %v659 = vadd.f32 %v627, %v657
        %v660 = vadd.f32 %v628, %v658
        %s661 = scalar_lea.vmem %s3, 8
        %v662 = vld [vmem:[%s661] sm:$0x3]
        %663 = vrot.lane.b32.xlu0 %v549, 96
        %v664 = vpop.permute.xlu0 %663
        %665 = vrot.lane.b32.xlu0 %v551, 96
        %v666 = vpop.permute.xlu0 %665
        %vm667 = vcmp.lt.s32.totalorder %v561, 96
        %v668 = vsel %vm667, %v664, %v666
        %v669 = vsel %vm667, %v666, %v664
        %vm670 = vcmp.lt.s32.totalorder %v494, 14
        %v671 = vsel %vm670, 1, 0
        %v672 = vlaneseq
        %v673 = vshrl.u32 %v672, 7
        %v674 = vsub.s32 0, %v673
        %v675 = vrot.slane %v671, %v674
        %v676 = vlaneseq
        %v677 = vshrl.u32 %v676, 7
        %v678 = vsub.s32 1, %v677
        %v679 = vrot.slane %v671, %v678
        %vm680 = vcmp.eq.s32.totalorder %v675, 1
        %vm681 = vcmp.eq.s32.totalorder %v679, 1
        %v682 = vsel %vm680, %v668, 0.0
        %v683 = vsel %vm681, %v669, 0.0
        %685 = vset.pattern.permute.xlu0 0
        %686 = vperm.xlu0 %685, %v662
        %v687 = vpop.permute.xlu0 %686
        %v689 = vmul.f32 %v687, %v682
        %v690 = vmul.f32 %v687, %v683
        %v691 = vadd.f32 %v659, %v689
        %v692 = vadd.f32 %v660, %v690
        %v693 = vld [vmem:[%s7] sm:$0x3]
        %695 = vset.pattern.permute.xlu0 0
        %696 = vperm.xlu0 %695, %v693
        %v697 = vpop.permute.xlu0 %696
        %v699 = vmul.f32 %v691, %v697
        %v700 = vmul.f32 %v692, %v697
        %v701 = vld [vmem:[%s8] sm:$0x3]
        %703 = vset.pattern.permute.xlu0 0
        %704 = vperm.xlu0 %703, %v701
        %v705 = vpop.permute.xlu0 %704
        %v707 = vadd.f32 %v699, %v705
        %v708 = vadd.f32 %v700, %v705
        %vm709 = vcmp.gt.f32.partialorder %v707, 0.0
        %vm710 = vcmp.gt.f32.partialorder %v708, 0.0
        %v711 = vld [vmem:[%s9] sm:$0x3]
        %713 = vset.pattern.permute.xlu0 0
        %714 = vperm.xlu0 %713, %v711
        %v715 = vpop.permute.xlu0 %714
        %v717 = vmul.f32 %v715, %v707
        %v718 = vmul.f32 %v715, %v708
        %v719 = vsel %vm709, %v707, %v717
        %v720 = vsel %vm710, %v708, %v718
        %v721 = vld [vmem:[%s4] sm:$0x3]
        %722 = vrot.lane.b32.xlu0 %v719, 2
        %v723 = vpop.permute.xlu0 %722
        %724 = vrot.lane.b32.xlu0 %v720, 2
        %v725 = vpop.permute.xlu0 %724
        %vm726 = vcmp.lt.s32.totalorder %v561, 2
        %v727 = vsel %vm726, %v723, %v725
        %v728 = vsel %vm726, %v725, %v723
        %vm729 = vcmp.ge.s32.totalorder %v496, 2
        %v730 = vsel %vm729, 1, 0
        %v731 = vlaneseq
        %v732 = vshrl.u32 %v731, 7
        %v733 = vsub.s32 0, %v732
        %v734 = vrot.slane %v730, %v733
        %v735 = vlaneseq
        %v736 = vshrl.u32 %v735, 7
        %v737 = vsub.s32 1, %v736
        %v738 = vrot.slane %v730, %v737
        %vm739 = vcmp.eq.s32.totalorder %v734, 1
        %vm740 = vcmp.eq.s32.totalorder %v738, 1
        %v741 = vsel %vm739, %v728, 0.0
        %v742 = vsel %vm740, %v727, 0.0
        %744 = vset.pattern.permute.xlu0 0
        %745 = vperm.xlu0 %744, %v721
        %v746 = vpop.permute.xlu0 %745
        %v748 = vmul.f32 %v746, %v741
        %v749 = vmul.f32 %v746, %v742
        %s750 = scalar_lea.vmem %s4, 2
        %v751 = vld [vmem:[%s750] sm:$0x3]
        %752 = vrot.lane.b32.xlu0 %v719, 1
        %v753 = vpop.permute.xlu0 %752
        %754 = vrot.lane.b32.xlu0 %v720, 1
        %v755 = vpop.permute.xlu0 %754
        %vm756 = vcmp.lt.s32.totalorder %v561, 1
        %v757 = vsel %vm756, %v753, %v755
        %v758 = vsel %vm756, %v755, %v753
        %vm759 = vcmp.ge.s32.totalorder %v496, 1
        %v760 = vsel %vm759, 1, 0
        %v761 = vlaneseq
        %v762 = vshrl.u32 %v761, 7
        %v763 = vsub.s32 0, %v762
        %v764 = vrot.slane %v760, %v763
        %v765 = vlaneseq
        %v766 = vshrl.u32 %v765, 7
        %v767 = vsub.s32 1, %v766
        %v768 = vrot.slane %v760, %v767
        %vm769 = vcmp.eq.s32.totalorder %v764, 1
        %vm770 = vcmp.eq.s32.totalorder %v768, 1
        %v771 = vsel %vm769, %v758, 0.0
        %v772 = vsel %vm770, %v757, 0.0
        %774 = vset.pattern.permute.xlu0 0
        %775 = vperm.xlu0 %774, %v751
        %v776 = vpop.permute.xlu0 %775
        %v778 = vmul.f32 %v776, %v771
        %v779 = vmul.f32 %v776, %v772
        %v780 = vadd.f32 %v748, %v778
        %v781 = vadd.f32 %v749, %v779
        %s782 = scalar_lea.vmem %s4, 4
        %v783 = vld [vmem:[%s782] sm:$0x3]
        %785 = vset.pattern.permute.xlu0 0
        %786 = vperm.xlu0 %785, %v783
        %v787 = vpop.permute.xlu0 %786
        %v789 = vmul.f32 %v787, %v719
        %v790 = vmul.f32 %v787, %v720
        %v791 = vadd.f32 %v780, %v789
        %v792 = vadd.f32 %v781, %v790
        %s793 = scalar_lea.vmem %s4, 6
        %v794 = vld [vmem:[%s793] sm:$0x3]
        %795 = vrot.lane.b32.xlu0 %v719, 127
        %v796 = vpop.permute.xlu0 %795
        %797 = vrot.lane.b32.xlu0 %v720, 127
        %v798 = vpop.permute.xlu0 %797
        %vm799 = vcmp.lt.s32.totalorder %v561, 127
        %v800 = vsel %vm799, %v796, %v798
        %v801 = vsel %vm799, %v798, %v796
        %vm802 = vcmp.lt.s32.totalorder %v496, 15
        %v803 = vsel %vm802, 1, 0
        %v804 = vlaneseq
        %v805 = vshrl.u32 %v804, 7
        %v806 = vsub.s32 0, %v805
        %v807 = vrot.slane %v803, %v806
        %v808 = vlaneseq
        %v809 = vshrl.u32 %v808, 7
        %v810 = vsub.s32 1, %v809
        %v811 = vrot.slane %v803, %v810
        %vm812 = vcmp.eq.s32.totalorder %v807, 1
        %vm813 = vcmp.eq.s32.totalorder %v811, 1
        %v814 = vsel %vm812, %v800, 0.0
        %v815 = vsel %vm813, %v801, 0.0
        %817 = vset.pattern.permute.xlu0 0
        %818 = vperm.xlu0 %817, %v794
        %v819 = vpop.permute.xlu0 %818
        %v821 = vmul.f32 %v819, %v814
        %v822 = vmul.f32 %v819, %v815
        %v823 = vadd.f32 %v791, %v821
        %v824 = vadd.f32 %v792, %v822
        %s825 = scalar_lea.vmem %s4, 8
        %v826 = vld [vmem:[%s825] sm:$0x3]
        %827 = vrot.lane.b32.xlu0 %v719, 126
        %v828 = vpop.permute.xlu0 %827
        %829 = vrot.lane.b32.xlu0 %v720, 126
        %v830 = vpop.permute.xlu0 %829
        %vm831 = vcmp.lt.s32.totalorder %v561, 126
        %v832 = vsel %vm831, %v828, %v830
        %v833 = vsel %vm831, %v830, %v828
        %vm834 = vcmp.lt.s32.totalorder %v496, 14
        %v835 = vsel %vm834, 1, 0
        %v836 = vlaneseq
        %v837 = vshrl.u32 %v836, 7
        %v838 = vsub.s32 0, %v837
        %v839 = vrot.slane %v835, %v838
        %v840 = vlaneseq
        %v841 = vshrl.u32 %v840, 7
        %v842 = vsub.s32 1, %v841
        %v843 = vrot.slane %v835, %v842
        %vm844 = vcmp.eq.s32.totalorder %v839, 1
        %vm845 = vcmp.eq.s32.totalorder %v843, 1
        %v846 = vsel %vm844, %v832, 0.0
        %v847 = vsel %vm845, %v833, 0.0
        %849 = vset.pattern.permute.xlu0 0
        %850 = vperm.xlu0 %849, %v826
        %v851 = vpop.permute.xlu0 %850
        %v853 = vmul.f32 %v851, %v846
        %v854 = vmul.f32 %v851, %v847
        %v855 = vadd.f32 %v823, %v853
        %v856 = vadd.f32 %v824, %v854
        %v857 = vld [vmem:[%s10] sm:$0x3]
        %859 = vset.pattern.permute.xlu0 0
        %860 = vperm.xlu0 %859, %v857
        %v861 = vpop.permute.xlu0 %860
        %v863 = vmul.f32 %v855, %v861
        %v864 = vmul.f32 %v856, %v861
        %v865 = vld [vmem:[%s11] sm:$0x3]
        %867 = vset.pattern.permute.xlu0 0
        %868 = vperm.xlu0 %867, %v865
        %v869 = vpop.permute.xlu0 %868
        %v871 = vadd.f32 %v863, %v869
        %v872 = vadd.f32 %v864, %v869
        %v873 = vld [vmem:[%s5] sm:$0x3]
        %874 = vrot.lane.b32.xlu0 %v871, 51
        %v875 = vpop.permute.xlu0 %874
        %876 = vrot.lane.b32.xlu0 %v872, 51
        %v877 = vpop.permute.xlu0 %876
        %vm878 = vcmp.lt.s32.totalorder %v561, 51
        %v879 = vsel %vm878, %v875, %v877
        %v880 = vsel %vm878, %v877, %v875
        %vm881 = vcmp.ge.s32.totalorder %v494, 3
        %vm882 = vcmp.ge.s32.totalorder %v496, 3
        %vm883 = vmand %vm881, %vm882
        %v884 = vsel %vm883, 1, 0
        %v885 = vlaneseq
        %v886 = vshrl.u32 %v885, 7
        %v887 = vsub.s32 0, %v886
        %v888 = vrot.slane %v884, %v887
        %v889 = vlaneseq
        %v890 = vshrl.u32 %v889, 7
        %v891 = vsub.s32 1, %v890
        %v892 = vrot.slane %v884, %v891
        %vm893 = vcmp.eq.s32.totalorder %v888, 1
        %vm894 = vcmp.eq.s32.totalorder %v892, 1
        %v895 = vsel %vm893, %v880, 0.0
        %v896 = vsel %vm894, %v879, 0.0
        %898 = vset.pattern.permute.xlu0 0
        %899 = vperm.xlu0 %898, %v873
        %v900 = vpop.permute.xlu0 %899
        %v902 = vmul.f32 %v900, %v895
        %v903 = vmul.f32 %v900, %v896
        %s904 = scalar_lea.vmem %s5, 2
        %v905 = vld [vmem:[%s904] sm:$0x3]
        %906 = vrot.lane.b32.xlu0 %v871, 48
        %v907 = vpop.permute.xlu0 %906
        %908 = vrot.lane.b32.xlu0 %v872, 48
        %v909 = vpop.permute.xlu0 %908
        %vm910 = vcmp.lt.s32.totalorder %v561, 48
        %v911 = vsel %vm910, %v907, %v909
        %v912 = vsel %vm910, %v909, %v907
        %v913 = vsel %vm881, 1, 0
        %v914 = vlaneseq
        %v915 = vshrl.u32 %v914, 7
        %v916 = vsub.s32 0, %v915
        %v917 = vrot.slane %v913, %v916
        %v918 = vlaneseq
        %v919 = vshrl.u32 %v918, 7
        %v920 = vsub.s32 1, %v919
        %v921 = vrot.slane %v913, %v920
        %vm922 = vcmp.eq.s32.totalorder %v917, 1
        %vm923 = vcmp.eq.s32.totalorder %v921, 1
        %v924 = vsel %vm922, %v912, 0.0
        %v925 = vsel %vm923, %v911, 0.0
        %927 = vset.pattern.permute.xlu0 0
        %928 = vperm.xlu0 %927, %v905
        %v929 = vpop.permute.xlu0 %928
        %v931 = vmul.f32 %v929, %v924
        %v932 = vmul.f32 %v929, %v925
        %v933 = vadd.f32 %v902, %v931
        %v934 = vadd.f32 %v903, %v932
        %s935 = scalar_lea.vmem %s5, 4
        %v936 = vld [vmem:[%s935] sm:$0x3]
        %937 = vrot.lane.b32.xlu0 %v871, 45
        %v938 = vpop.permute.xlu0 %937
        %939 = vrot.lane.b32.xlu0 %v872, 45
        %v940 = vpop.permute.xlu0 %939
        %vm941 = vcmp.lt.s32.totalorder %v561, 45
        %v942 = vsel %vm941, %v938, %v940
        %v943 = vsel %vm941, %v940, %v938
        %vm944 = vcmp.lt.s32.totalorder %v496, 13
        %vm945 = vmand %vm881, %vm944
        %v946 = vsel %vm945, 1, 0
        %v947 = vlaneseq
        %v948 = vshrl.u32 %v947, 7
        %v949 = vsub.s32 0, %v948
        %v950 = vrot.slane %v946, %v949
        %v951 = vlaneseq
        %v952 = vshrl.u32 %v951, 7
        %v953 = vsub.s32 1, %v952
        %v954 = vrot.slane %v946, %v953
        %vm955 = vcmp.eq.s32.totalorder %v950, 1
        %vm956 = vcmp.eq.s32.totalorder %v954, 1
        %v957 = vsel %vm955, %v943, 0.0
        %v958 = vsel %vm956, %v942, 0.0
        %960 = vset.pattern.permute.xlu0 0
        %961 = vperm.xlu0 %960, %v936
        %v962 = vpop.permute.xlu0 %961
        %v964 = vmul.f32 %v962, %v957
        %v965 = vmul.f32 %v962, %v958
        %v966 = vadd.f32 %v933, %v964
        %v967 = vadd.f32 %v934, %v965
        %s968 = scalar_lea.vmem %s5, 6
        %v969 = vld [vmem:[%s968] sm:$0x3]
        %970 = vrot.lane.b32.xlu0 %v871, 3
        %v971 = vpop.permute.xlu0 %970
        %972 = vrot.lane.b32.xlu0 %v872, 3
        %v973 = vpop.permute.xlu0 %972
        %vm974 = vcmp.lt.s32.totalorder %v561, 3
        %v975 = vsel %vm974, %v971, %v973
        %v976 = vsel %vm974, %v973, %v971
        %v977 = vsel %vm882, 1, 0
        %v978 = vlaneseq
        %v979 = vshrl.u32 %v978, 7
        %v980 = vsub.s32 0, %v979
        %v981 = vrot.slane %v977, %v980
        %v982 = vlaneseq
        %v983 = vshrl.u32 %v982, 7
        %v984 = vsub.s32 1, %v983
        %v985 = vrot.slane %v977, %v984
        %vm986 = vcmp.eq.s32.totalorder %v981, 1
        %vm987 = vcmp.eq.s32.totalorder %v985, 1
        %v988 = vsel %vm986, %v976, 0.0
        %v989 = vsel %vm987, %v975, 0.0
        %991 = vset.pattern.permute.xlu0 0
        %992 = vperm.xlu0 %991, %v969
        %v993 = vpop.permute.xlu0 %992
        %v995 = vmul.f32 %v993, %v988
        %v996 = vmul.f32 %v993, %v989
        %v997 = vadd.f32 %v966, %v995
        %v998 = vadd.f32 %v967, %v996
        %s999 = scalar_lea.vmem %s5, 8
        %v1000 = vld [vmem:[%s999] sm:$0x3]
        %1002 = vset.pattern.permute.xlu0 0
        %1003 = vperm.xlu0 %1002, %v1000
        %v1004 = vpop.permute.xlu0 %1003
        %v1006 = vmul.f32 %v1004, %v871
        %v1007 = vmul.f32 %v1004, %v872
        %v1008 = vadd.f32 %v997, %v1006
        %v1009 = vadd.f32 %v998, %v1007
        %s1010 = scalar_lea.vmem %s5, 10
        %v1011 = vld [vmem:[%s1010] sm:$0x3]
        %1012 = vrot.lane.b32.xlu0 %v871, 125
        %v1013 = vpop.permute.xlu0 %1012
        %1014 = vrot.lane.b32.xlu0 %v872, 125
        %v1015 = vpop.permute.xlu0 %1014
        %vm1016 = vcmp.lt.s32.totalorder %v561, 125
        %v1017 = vsel %vm1016, %v1013, %v1015
        %v1018 = vsel %vm1016, %v1015, %v1013
        %v1019 = vsel %vm944, 1, 0
        %v1020 = vlaneseq
        %v1021 = vshrl.u32 %v1020, 7
        %v1022 = vsub.s32 0, %v1021
        %v1023 = vrot.slane %v1019, %v1022
        %v1024 = vlaneseq
        %v1025 = vshrl.u32 %v1024, 7
        %v1026 = vsub.s32 1, %v1025
        %v1027 = vrot.slane %v1019, %v1026
        %vm1028 = vcmp.eq.s32.totalorder %v1023, 1
        %vm1029 = vcmp.eq.s32.totalorder %v1027, 1
        %v1030 = vsel %vm1028, %v1017, 0.0
        %v1031 = vsel %vm1029, %v1018, 0.0
        %1033 = vset.pattern.permute.xlu0 0
        %1034 = vperm.xlu0 %1033, %v1011
        %v1035 = vpop.permute.xlu0 %1034
        %v1037 = vmul.f32 %v1035, %v1030
        %v1038 = vmul.f32 %v1035, %v1031
        %v1039 = vadd.f32 %v1008, %v1037
        %v1040 = vadd.f32 %v1009, %v1038
        %s1041 = scalar_lea.vmem %s5, 12
        %v1042 = vld [vmem:[%s1041] sm:$0x3]
        %1043 = vrot.lane.b32.xlu0 %v871, 83
        %v1044 = vpop.permute.xlu0 %1043
        %1045 = vrot.lane.b32.xlu0 %v872, 83
        %v1046 = vpop.permute.xlu0 %1045
        %vm1047 = vcmp.lt.s32.totalorder %v561, 83
        %v1048 = vsel %vm1047, %v1044, %v1046
        %v1049 = vsel %vm1047, %v1046, %v1044
        %vm1050 = vcmp.lt.s32.totalorder %v494, 13
        %vm1051 = vmand %vm1050, %vm882
        %v1052 = vsel %vm1051, 1, 0
        %v1053 = vlaneseq
        %v1054 = vshrl.u32 %v1053, 7
        %v1055 = vsub.s32 0, %v1054
        %v1056 = vrot.slane %v1052, %v1055
        %v1057 = vlaneseq
        %v1058 = vshrl.u32 %v1057, 7
        %v1059 = vsub.s32 1, %v1058
        %v1060 = vrot.slane %v1052, %v1059
        %vm1061 = vcmp.eq.s32.totalorder %v1056, 1
        %vm1062 = vcmp.eq.s32.totalorder %v1060, 1
        %v1063 = vsel %vm1061, %v1048, 0.0
        %v1064 = vsel %vm1062, %v1049, 0.0
        %1066 = vset.pattern.permute.xlu0 0
        %1067 = vperm.xlu0 %1066, %v1042
        %v1068 = vpop.permute.xlu0 %1067
        %v1070 = vmul.f32 %v1068, %v1063
        %v1071 = vmul.f32 %v1068, %v1064
        %v1072 = vadd.f32 %v1039, %v1070
        %v1073 = vadd.f32 %v1040, %v1071
        %s1074 = scalar_lea.vmem %s5, 14
        %v1075 = vld [vmem:[%s1074] sm:$0x3]
        %1076 = vrot.lane.b32.xlu0 %v871, 80
        %v1077 = vpop.permute.xlu0 %1076
        %1078 = vrot.lane.b32.xlu0 %v872, 80
        %v1079 = vpop.permute.xlu0 %1078
        %vm1080 = vcmp.lt.s32.totalorder %v561, 80
        %v1081 = vsel %vm1080, %v1077, %v1079
        %v1082 = vsel %vm1080, %v1079, %v1077
        %v1083 = vsel %vm1050, 1, 0
        %v1084 = vlaneseq
        %v1085 = vshrl.u32 %v1084, 7
        %v1086 = vsub.s32 0, %v1085
        %v1087 = vrot.slane %v1083, %v1086
        %v1088 = vlaneseq
        %v1089 = vshrl.u32 %v1088, 7
        %v1090 = vsub.s32 1, %v1089
        %v1091 = vrot.slane %v1083, %v1090
        %vm1092 = vcmp.eq.s32.totalorder %v1087, 1
        %vm1093 = vcmp.eq.s32.totalorder %v1091, 1
        %v1094 = vsel %vm1092, %v1081, 0.0
        %v1095 = vsel %vm1093, %v1082, 0.0
        %1097 = vset.pattern.permute.xlu0 0
        %1098 = vperm.xlu0 %1097, %v1075
        %v1099 = vpop.permute.xlu0 %1098
        %v1101 = vmul.f32 %v1099, %v1094
        %v1102 = vmul.f32 %v1099, %v1095
        %v1103 = vadd.f32 %v1072, %v1101
        %v1104 = vadd.f32 %v1073, %v1102
        %s1105 = scalar_lea.vmem %s5, 16
        %v1106 = vld [vmem:[%s1105] sm:$0x3]
        %1107 = vrot.lane.b32.xlu0 %v871, 77
        %v1108 = vpop.permute.xlu0 %1107
        %1109 = vrot.lane.b32.xlu0 %v872, 77
        %v1110 = vpop.permute.xlu0 %1109
        %vm1111 = vcmp.lt.s32.totalorder %v561, 77
        %v1112 = vsel %vm1111, %v1108, %v1110
        %v1113 = vsel %vm1111, %v1110, %v1108
        %vm1114 = vmand %vm1050, %vm944
        %v1115 = vsel %vm1114, 1, 0
        %v1116 = vlaneseq
        %v1117 = vshrl.u32 %v1116, 7
        %v1118 = vsub.s32 0, %v1117
        %v1119 = vrot.slane %v1115, %v1118
        %v1120 = vlaneseq
        %v1121 = vshrl.u32 %v1120, 7
        %v1122 = vsub.s32 1, %v1121
        %v1123 = vrot.slane %v1115, %v1122
        %vm1124 = vcmp.eq.s32.totalorder %v1119, 1
        %vm1125 = vcmp.eq.s32.totalorder %v1123, 1
        %v1126 = vsel %vm1124, %v1112, 0.0
        %v1127 = vsel %vm1125, %v1113, 0.0
        %1129 = vset.pattern.permute.xlu0 0
        %1130 = vperm.xlu0 %1129, %v1106
        %v1131 = vpop.permute.xlu0 %1130
        %v1133 = vmul.f32 %v1131, %v1126
        %v1134 = vmul.f32 %v1131, %v1127
        %v1135 = vadd.f32 %v1103, %v1133
        %v1136 = vadd.f32 %v1104, %v1134
        %v1137 = vld [vmem:[%s6] sm:$0x3]
        %v1138 = vpack.c.bf16 %v1137, %v1137
        %v1139 = vpack.c.bf16 %v1135, %v1135
        %v1140 = vpack.c.bf16 %v1136, %v1136
        %vm1141 = vcmask 15360
        %v1143 = vsel %vm1141, %v1138, 0
        %vm1145 = vcmask 1040384
        %v1147 = vsel %vm1145, %v1139, 0
        %v1150 = vsel %vm1145, %v1140, 0
        %1152 = vmatprep.subr.bf16.mxu0 %v1150
        %1153 = vmatpush1.bf16.msra.mxu0 %v1147
        %1154 = vmatprep.subr.bf16.mxu0 0
        %1155 = vmatpush1.bf16.msra.mxu0 0
        %1156 = vmatprep.subr.bf16.mxu0 0
        %1157 = vmatpush1.bf16.msra.mxu0 0
        %1158 = vmatprep.subr.bf16.mxu0 0
        %1159 = vmatpush1.bf16.msra.mxu0 0
        %1160 = vmatprep.subr.bf16.mxu0 0
        %1161 = vmatpush1.bf16.msra.mxu0 0
        %1162 = vmatprep.subr.bf16.mxu0 0
        %1163 = vmatpush1.bf16.msra.mxu0 0
        %1164 = vmatprep.subr.bf16.mxu0 0
        %1165 = vmatpush1.bf16.msra.mxu0 0
        %1166 = vmatprep.subr.bf16.mxu0 0
        %1167 = vmatpush1.bf16.msra.mxu0 0
        %1168 = vmatprep.subr.bf16.mxu0 0
        %1169 = vmatpush1.bf16.msra.mxu0 0
        %1170 = vmatprep.subr.bf16.mxu0 0
        %1171 = vmatpush1.bf16.msra.mxu0 0
        %1172 = vmatprep.subr.bf16.mxu0 0
        %1173 = vmatpush1.bf16.msra.mxu0 0
        %1174 = vmatprep.subr.bf16.mxu0 0
        %1175 = vmatpush1.bf16.msra.mxu0 0
        %1176 = vmatprep.subr.bf16.mxu0 0
        %1177 = vmatpush1.bf16.msra.mxu0 0
        %1178 = vmatprep.subr.bf16.mxu0 0
        %1179 = vmatpush1.bf16.msra.mxu0 0
        %1180 = vmatprep.subr.bf16.mxu0 0
        %1181 = vmatpush1.bf16.msra.mxu0 0
        %1182 = vmatprep.subr.bf16.mxu0 0
        %1183 = vmatpush1.bf16.msra.mxu0 0
        %1184 = vmatprep.mubr.bf16.mxu0 0
        %1185 = vmatmul.mubr.bf16.gmra.mrb[0].mxu0 %v1143
        %v1186 = vpop.f32.mrb[0].mxu0
        %v1187 = vadd.f32 %v497, %v1186
        %v1188 = vpop.f32.mrb[0].mxu0
        %v1189 = vadd.f32 %v498, %v1188
        %v1190 = vpop.f32.mrb[0].mxu0
        %v1191 = vpop.f32.mrb[0].mxu0
        %1192 = vdwg.mxu0
        %v1193 = vld [vmem:[%s12] sm:$0x3]
        %1195 = vset.pattern.permute.xlu0 0
        %1196 = vperm.xlu0 %1195, %v1193
        %v1197 = vpop.permute.xlu0 %1196
        %v1199 = vmul.f32 %v1187, %v1197
        %v1200 = vmul.f32 %v1189, %v1197
        %v1201 = vld [vmem:[%s13] sm:$0x3]
        %1203 = vset.pattern.permute.xlu0 0
        %1204 = vperm.xlu0 %1203, %v1201
        %v1205 = vpop.permute.xlu0 %1204
        %v1207 = vadd.f32 %v1199, %v1205
        %v1208 = vadd.f32 %v1200, %v1205
        %vm1209 = vcmp.gt.f32.partialorder %v1207, 0.0
        %vm1210 = vcmp.gt.f32.partialorder %v1208, 0.0
        %v1211 = vld [vmem:[%s14] sm:$0x3]
        %1213 = vset.pattern.permute.xlu0 0
        %1214 = vperm.xlu0 %1213, %v1211
        %v1215 = vpop.permute.xlu0 %1214
        %v1217 = vmul.f32 %v1215, %v1207
        %v1218 = vmul.f32 %v1215, %v1208
        %v1219 = vsel %vm1209, %v1207, %v1217
        %v1220 = vsel %vm1210, %v1208, %v1218
        %1221 = vst [vmem:[%s487] sm:$0x3] %v1219
        %1222 = vst [vmem:[%s487 + $0x8] sm:$0x3] %v1220
        %s1223 = scalar_lea.vmem %s3, 34
        %v1224 = vld [vmem:[%s1223] sm:$0x3]
        %1225 = vrot.lane.b32.xlu0 %v549, 64
        %v1226 = vpop.permute.xlu0 %1225
        %1227 = vrot.lane.b32.xlu0 %v551, 64
        %v1228 = vpop.permute.xlu0 %1227
        %vm1229 = vcmp.lt.s32.totalorder %v561, 64
        %v1230 = vsel %vm1229, %v1226, %v1228
        %v1231 = vsel %vm1229, %v1228, %v1226
        %vm1232 = vcmp.ge.s32.totalorder %v494, 4
        %v1233 = vsel %vm1232, 1, 0
        %v1234 = vlaneseq
        %v1235 = vshrl.u32 %v1234, 7
        %v1236 = vsub.s32 0, %v1235
        %v1237 = vrot.slane %v1233, %v1236
        %v1238 = vlaneseq
        %v1239 = vshrl.u32 %v1238, 7
        %v1240 = vsub.s32 1, %v1239
        %v1241 = vrot.slane %v1233, %v1240
        %vm1242 = vcmp.eq.s32.totalorder %v1237, 1
        %vm1243 = vcmp.eq.s32.totalorder %v1241, 1
        %v1244 = vsel %vm1242, %v1231, 0.0
        %v1245 = vsel %vm1243, %v1230, 0.0
        %1247 = vset.pattern.permute.xlu0 0
        %1248 = vperm.xlu0 %1247, %v1224
        %v1249 = vpop.permute.xlu0 %1248
        %v1251 = vmul.f32 %v1249, %v1244
        %v1252 = vmul.f32 %v1249, %v1245
        %s1253 = scalar_lea.vmem %s3, 36
        %v1254 = vld [vmem:[%s1253] sm:$0x3]
        %1255 = vrot.lane.b32.xlu0 %v549, 48
        %v1256 = vpop.permute.xlu0 %1255
        %1257 = vrot.lane.b32.xlu0 %v551, 48
        %v1258 = vpop.permute.xlu0 %1257
        %v1259 = vsel %vm910, %v1256, %v1258
        %v1260 = vsel %vm910, %v1258, %v1256
        %v1261 = vsel %vm922, %v1260, 0.0
        %v1262 = vsel %vm923, %v1259, 0.0
        %1264 = vset.pattern.permute.xlu0 0
        %1265 = vperm.xlu0 %1264, %v1254
        %v1266 = vpop.permute.xlu0 %1265
        %v1268 = vmul.f32 %v1266, %v1261
        %v1269 = vmul.f32 %v1266, %v1262
        %v1270 = vadd.f32 %v1251, %v1268
        %v1271 = vadd.f32 %v1252, %v1269
        %s1272 = scalar_lea.vmem %s3, 38
        %v1273 = vld [vmem:[%s1272] sm:$0x3]
        %1275 = vset.pattern.permute.xlu0 0
        %1276 = vperm.xlu0 %1275, %v1273
        %v1277 = vpop.permute.xlu0 %1276
        %v1279 = vmul.f32 %v1277, %v577
        %v1280 = vmul.f32 %v1277, %v578
        %v1281 = vadd.f32 %v1270, %v1279
        %v1282 = vadd.f32 %v1271, %v1280
        %s1283 = scalar_lea.vmem %s3, 40
        %v1284 = vld [vmem:[%s1283] sm:$0x3]
        %1286 = vset.pattern.permute.xlu0 0
        %1287 = vperm.xlu0 %1286, %v1284
        %v1288 = vpop.permute.xlu0 %1287
        %v1290 = vmul.f32 %v1288, %v607
        %v1291 = vmul.f32 %v1288, %v608
        %v1292 = vadd.f32 %v1281, %v1290
        %v1293 = vadd.f32 %v1282, %v1291
        %s1294 = scalar_lea.vmem %s3, 42
        %v1295 = vld [vmem:[%s1294] sm:$0x3]
        %1297 = vset.pattern.permute.xlu0 0
        %1298 = vperm.xlu0 %1297, %v1295
        %v1299 = vpop.permute.xlu0 %1298
        %v1301 = vmul.f32 %v1299, %v549
        %v1302 = vmul.f32 %v1299, %v551
        %v1303 = vadd.f32 %v1292, %v1301
        %v1304 = vadd.f32 %v1293, %v1302
        %s1305 = scalar_lea.vmem %s3, 44
        %v1306 = vld [vmem:[%s1305] sm:$0x3]
        %1308 = vset.pattern.permute.xlu0 0
        %1309 = vperm.xlu0 %1308, %v1306
        %v1310 = vpop.permute.xlu0 %1309
        %v1312 = vmul.f32 %v1310, %v650
        %v1313 = vmul.f32 %v1310, %v651
        %v1314 = vadd.f32 %v1303, %v1312
        %v1315 = vadd.f32 %v1304, %v1313
        %s1316 = scalar_lea.vmem %s3, 46
        %v1317 = vld [vmem:[%s1316] sm:$0x3]
        %1319 = vset.pattern.permute.xlu0 0
        %1320 = vperm.xlu0 %1319, %v1317
        %v1321 = vpop.permute.xlu0 %1320
        %v1323 = vmul.f32 %v1321, %v682
        %v1324 = vmul.f32 %v1321, %v683
        %v1325 = vadd.f32 %v1314, %v1323
        %v1326 = vadd.f32 %v1315, %v1324
        %s1327 = scalar_lea.vmem %s3, 48
        %v1328 = vld [vmem:[%s1327] sm:$0x3]
        %1329 = vrot.lane.b32.xlu0 %v549, 80
        %v1330 = vpop.permute.xlu0 %1329
        %1331 = vrot.lane.b32.xlu0 %v551, 80
        %v1332 = vpop.permute.xlu0 %1331
        %v1333 = vsel %vm1080, %v1330, %v1332
        %v1334 = vsel %vm1080, %v1332, %v1330
        %v1335 = vsel %vm1092, %v1333, 0.0
        %v1336 = vsel %vm1093, %v1334, 0.0
        %1338 = vset.pattern.permute.xlu0 0
        %1339 = vperm.xlu0 %1338, %v1328
        %v1340 = vpop.permute.xlu0 %1339
        %v1342 = vmul.f32 %v1340, %v1335
        %v1343 = vmul.f32 %v1340, %v1336
        %v1344 = vadd.f32 %v1325, %v1342
        %v1345 = vadd.f32 %v1326, %v1343
        %s1346 = scalar_lea.vmem %s3, 50
        %v1347 = vld [vmem:[%s1346] sm:$0x3]
        %vm1348 = vcmp.lt.s32.totalorder %v494, 12
        %v1349 = vsel %vm1348, 1, 0
        %v1350 = vlaneseq
        %v1351 = vshrl.u32 %v1350, 7
        %v1352 = vsub.s32 0, %v1351
        %v1353 = vrot.slane %v1349, %v1352
        %v1354 = vlaneseq
        %v1355 = vshrl.u32 %v1354, 7
        %v1356 = vsub.s32 1, %v1355
        %v1357 = vrot.slane %v1349, %v1356
        %vm1358 = vcmp.eq.s32.totalorder %v1353, 1
        %vm1359 = vcmp.eq.s32.totalorder %v1357, 1
        %v1360 = vsel %vm1358, %v1230, 0.0
        %v1361 = vsel %vm1359, %v1231, 0.0
        %1363 = vset.pattern.permute.xlu0 0
        %1364 = vperm.xlu0 %1363, %v1347
        %v1365 = vpop.permute.xlu0 %1364
        %v1367 = vmul.f32 %v1365, %v1360
        %v1368 = vmul.f32 %v1365, %v1361
        %v1369 = vadd.f32 %v1344, %v1367
        %v1370 = vadd.f32 %v1345, %v1368
        %s1371 = scalar_lea.vmem %s7, 2
        %v1372 = vld [vmem:[%s1371] sm:$0x3]
        %1374 = vset.pattern.permute.xlu0 0
        %1375 = vperm.xlu0 %1374, %v1372
        %v1376 = vpop.permute.xlu0 %1375
        %v1378 = vmul.f32 %v1369, %v1376
        %v1379 = vmul.f32 %v1370, %v1376
        %s1380 = scalar_lea.vmem %s8, 2
        %v1381 = vld [vmem:[%s1380] sm:$0x3]
        %1383 = vset.pattern.permute.xlu0 0
        %1384 = vperm.xlu0 %1383, %v1381
        %v1385 = vpop.permute.xlu0 %1384
        %v1387 = vadd.f32 %v1378, %v1385
        %v1388 = vadd.f32 %v1379, %v1385
        %vm1389 = vcmp.gt.f32.partialorder %v1387, 0.0
        %vm1390 = vcmp.gt.f32.partialorder %v1388, 0.0
        %s1391 = scalar_lea.vmem %s9, 2
        %v1392 = vld [vmem:[%s1391] sm:$0x3]
        %1394 = vset.pattern.permute.xlu0 0
        %1395 = vperm.xlu0 %1394, %v1392
        %v1396 = vpop.permute.xlu0 %1395
        %v1398 = vmul.f32 %v1396, %v1387
        %v1399 = vmul.f32 %v1396, %v1388
        %v1400 = vsel %vm1389, %v1387, %v1398
        %v1401 = vsel %vm1390, %v1388, %v1399
        %s1402 = scalar_lea.vmem %s4, 34
        %v1403 = vld [vmem:[%s1402] sm:$0x3]
        %1404 = vrot.lane.b32.xlu0 %v1400, 4
        %v1405 = vpop.permute.xlu0 %1404
        %1406 = vrot.lane.b32.xlu0 %v1401, 4
        %v1407 = vpop.permute.xlu0 %1406
        %vm1408 = vcmp.lt.s32.totalorder %v561, 4
        %v1409 = vsel %vm1408, %v1405, %v1407
        %v1410 = vsel %vm1408, %v1407, %v1405
        %vm1411 = vcmp.ge.s32.totalorder %v496, 4
        %v1412 = vsel %vm1411, 1, 0
        %v1413 = vlaneseq
        %v1414 = vshrl.u32 %v1413, 7
        %v1415 = vsub.s32 0, %v1414
        %v1416 = vrot.slane %v1412, %v1415
        %v1417 = vlaneseq
        %v1418 = vshrl.u32 %v1417, 7
        %v1419 = vsub.s32 1, %v1418
        %v1420 = vrot.slane %v1412, %v1419
        %vm1421 = vcmp.eq.s32.totalorder %v1416, 1
        %vm1422 = vcmp.eq.s32.totalorder %v1420, 1
        %v1423 = vsel %vm1421, %v1410, 0.0
        %v1424 = vsel %vm1422, %v1409, 0.0
        %1426 = vset.pattern.permute.xlu0 0
        %1427 = vperm.xlu0 %1426, %v1403
        %v1428 = vpop.permute.xlu0 %1427
        %v1430 = vmul.f32 %v1428, %v1423
        %v1431 = vmul.f32 %v1428, %v1424
        %s1432 = scalar_lea.vmem %s4, 36
        %v1433 = vld [vmem:[%s1432] sm:$0x3]
        %1434 = vrot.lane.b32.xlu0 %v1400, 3
        %v1435 = vpop.permute.xlu0 %1434
        %1436 = vrot.lane.b32.xlu0 %v1401, 3
        %v1437 = vpop.permute.xlu0 %1436
        %v1438 = vsel %vm974, %v1435, %v1437
        %v1439 = vsel %vm974, %v1437, %v1435
        %v1440 = vsel %vm986, %v1439, 0.0
        %v1441 = vsel %vm987, %v1438, 0.0
        %1443 = vset.pattern.permute.xlu0 0
        %1444 = vperm.xlu0 %1443, %v1433
        %v1445 = vpop.permute.xlu0 %1444
        %v1447 = vmul.f32 %v1445, %v1440
        %v1448 = vmul.f32 %v1445, %v1441
        %v1449 = vadd.f32 %v1430, %v1447
        %v1450 = vadd.f32 %v1431, %v1448
        %s1451 = scalar_lea.vmem %s4, 38
        %v1452 = vld [vmem:[%s1451] sm:$0x3]
        %1453 = vrot.lane.b32.xlu0 %v1400, 2
        %v1454 = vpop.permute.xlu0 %1453
        %1455 = vrot.lane.b32.xlu0 %v1401, 2
        %v1456 = vpop.permute.xlu0 %1455
        %v1457 = vsel %vm726, %v1454, %v1456
        %v1458 = vsel %vm726, %v1456, %v1454
        %v1459 = vsel %vm739, %v1458, 0.0
        %v1460 = vsel %vm740, %v1457, 0.0
        %1462 = vset.pattern.permute.xlu0 0
        %1463 = vperm.xlu0 %1462, %v1452
        %v1464 = vpop.permute.xlu0 %1463
        %v1466 = vmul.f32 %v1464, %v1459
        %v1467 = vmul.f32 %v1464, %v1460
        %v1468 = vadd.f32 %v1449, %v1466
        %v1469 = vadd.f32 %v1450, %v1467
        %s1470 = scalar_lea.vmem %s4, 40
        %v1471 = vld [vmem:[%s1470] sm:$0x3]
        %1472 = vrot.lane.b32.xlu0 %v1400, 1
        %v1473 = vpop.permute.xlu0 %1472
        %1474 = vrot.lane.b32.xlu0 %v1401, 1
        %v1475 = vpop.permute.xlu0 %1474
        %v1476 = vsel %vm756, %v1473, %v1475
        %v1477 = vsel %vm756, %v1475, %v1473
        %v1478 = vsel %vm769, %v1477, 0.0
        %v1479 = vsel %vm770, %v1476, 0.0
        %1481 = vset.pattern.permute.xlu0 0
        %1482 = vperm.xlu0 %1481, %v1471
        %v1483 = vpop.permute.xlu0 %1482
        %v1485 = vmul.f32 %v1483, %v1478
        %v1486 = vmul.f32 %v1483, %v1479
        %v1487 = vadd.f32 %v1468, %v1485
        %v1488 = vadd.f32 %v1469, %v1486
        %s1489 = scalar_lea.vmem %s4, 42
        %v1490 = vld [vmem:[%s1489] sm:$0x3]
        %1492 = vset.pattern.permute.xlu0 0
        %1493 = vperm.xlu0 %1492, %v1490
        %v1494 = vpop.permute.xlu0 %1493
        %v1496 = vmul.f32 %v1494, %v1400
        %v1497 = vmul.f32 %v1494, %v1401
        %v1498 = vadd.f32 %v1487, %v1496
        %v1499 = vadd.f32 %v1488, %v1497
        %s1500 = scalar_lea.vmem %s4, 44
        %v1501 = vld [vmem:[%s1500] sm:$0x3]
        %1502 = vrot.lane.b32.xlu0 %v1400, 127
        %v1503 = vpop.permute.xlu0 %1502
        %1504 = vrot.lane.b32.xlu0 %v1401, 127
        %v1505 = vpop.permute.xlu0 %1504
        %v1506 = vsel %vm799, %v1503, %v1505
        %v1507 = vsel %vm799, %v1505, %v1503
        %v1508 = vsel %vm812, %v1506, 0.0
        %v1509 = vsel %vm813, %v1507, 0.0
        %1511 = vset.pattern.permute.xlu0 0
        %1512 = vperm.xlu0 %1511, %v1501
        %v1513 = vpop.permute.xlu0 %1512
        %v1515 = vmul.f32 %v1513, %v1508
        %v1516 = vmul.f32 %v1513, %v1509
        %v1517 = vadd.f32 %v1498, %v1515
        %v1518 = vadd.f32 %v1499, %v1516
        %s1519 = scalar_lea.vmem %s4, 46
        %v1520 = vld [vmem:[%s1519] sm:$0x3]
        %1521 = vrot.lane.b32.xlu0 %v1400, 126
        %v1522 = vpop.permute.xlu0 %1521
        %1523 = vrot.lane.b32.xlu0 %v1401, 126
        %v1524 = vpop.permute.xlu0 %1523
        %v1525 = vsel %vm831, %v1522, %v1524
        %v1526 = vsel %vm831, %v1524, %v1522
        %v1527 = vsel %vm844, %v1525, 0.0
        %v1528 = vsel %vm845, %v1526, 0.0
        %1530 = vset.pattern.permute.xlu0 0
        %1531 = vperm.xlu0 %1530, %v1520
        %v1532 = vpop.permute.xlu0 %1531
        %v1534 = vmul.f32 %v1532, %v1527
        %v1535 = vmul.f32 %v1532, %v1528
        %v1536 = vadd.f32 %v1517, %v1534
        %v1537 = vadd.f32 %v1518, %v1535
        %s1538 = scalar_lea.vmem %s4, 48
        %v1539 = vld [vmem:[%s1538] sm:$0x3]
        %1540 = vrot.lane.b32.xlu0 %v1400, 125
        %v1541 = vpop.permute.xlu0 %1540
        %1542 = vrot.lane.b32.xlu0 %v1401, 125
        %v1543 = vpop.permute.xlu0 %1542
        %v1544 = vsel %vm1016, %v1541, %v1543
        %v1545 = vsel %vm1016, %v1543, %v1541
        %v1546 = vsel %vm1028, %v1544, 0.0
        %v1547 = vsel %vm1029, %v1545, 0.0
        %1549 = vset.pattern.permute.xlu0 0
        %1550 = vperm.xlu0 %1549, %v1539
        %v1551 = vpop.permute.xlu0 %1550
        %v1553 = vmul.f32 %v1551, %v1546
        %v1554 = vmul.f32 %v1551, %v1547
        %v1555 = vadd.f32 %v1536, %v1553
        %v1556 = vadd.f32 %v1537, %v1554
        %s1557 = scalar_lea.vmem %s4, 50
        %v1558 = vld [vmem:[%s1557] sm:$0x3]
        %1559 = vrot.lane.b32.xlu0 %v1400, 124
        %v1560 = vpop.permute.xlu0 %1559
        %1561 = vrot.lane.b32.xlu0 %v1401, 124
        %v1562 = vpop.permute.xlu0 %1561
        %vm1563 = vcmp.lt.s32.totalorder %v561, 124
        %v1564 = vsel %vm1563, %v1560, %v1562
        %v1565 = vsel %vm1563, %v1562, %v1560
        %vm1566 = vcmp.lt.s32.totalorder %v496, 12
        %v1567 = vsel %vm1566, 1, 0
        %v1568 = vlaneseq
        %v1569 = vshrl.u32 %v1568, 7
        %v1570 = vsub.s32 0, %v1569
        %v1571 = vrot.slane %v1567, %v1570
        %v1572 = vlaneseq
        %v1573 = vshrl.u32 %v1572, 7
        %v1574 = vsub.s32 1, %v1573
        %v1575 = vrot.slane %v1567, %v1574
        %vm1576 = vcmp.eq.s32.totalorder %v1571, 1
        %vm1577 = vcmp.eq.s32.totalorder %v1575, 1
        %v1578 = vsel %vm1576, %v1564, 0.0
        %v1579 = vsel %vm1577, %v1565, 0.0
        %1581 = vset.pattern.permute.xlu0 0
        %1582 = vperm.xlu0 %1581, %v1558
        %v1583 = vpop.permute.xlu0 %1582
        %v1585 = vmul.f32 %v1583, %v1578
        %v1586 = vmul.f32 %v1583, %v1579
        %v1587 = vadd.f32 %v1555, %v1585
        %v1588 = vadd.f32 %v1556, %v1586
        %s1589 = scalar_lea.vmem %s10, 2
        %v1590 = vld [vmem:[%s1589] sm:$0x3]
        %1592 = vset.pattern.permute.xlu0 0
        %1593 = vperm.xlu0 %1592, %v1590
        %v1594 = vpop.permute.xlu0 %1593
        %v1596 = vmul.f32 %v1587, %v1594
        %v1597 = vmul.f32 %v1588, %v1594
        %s1598 = scalar_lea.vmem %s11, 2
        %v1599 = vld [vmem:[%s1598] sm:$0x3]
        %1601 = vset.pattern.permute.xlu0 0
        %1602 = vperm.xlu0 %1601, %v1599
        %v1603 = vpop.permute.xlu0 %1602
        %v1605 = vadd.f32 %v1596, %v1603
        %v1606 = vadd.f32 %v1597, %v1603
        %s1607 = scalar_lea.vmem %s5, 18
        %v1608 = vld [vmem:[%s1607] sm:$0x3]
        %1609 = vrot.lane.b32.xlu0 %v1605, 85
        %v1610 = vpop.permute.xlu0 %1609
        %1611 = vrot.lane.b32.xlu0 %v1606, 85
        %v1612 = vpop.permute.xlu0 %1611
        %vm1613 = vcmp.lt.s32.totalorder %v561, 85
        %v1614 = vsel %vm1613, %v1610, %v1612
        %v1615 = vsel %vm1613, %v1612, %v1610
        %vm1616 = vcmp.ge.s32.totalorder %v494, 5
        %vm1617 = vcmp.ge.s32.totalorder %v496, 5
        %vm1618 = vmand %vm1616, %vm1617
        %v1619 = vsel %vm1618, 1, 0
        %v1620 = vlaneseq
        %v1621 = vshrl.u32 %v1620, 7
        %v1622 = vsub.s32 0, %v1621
        %v1623 = vrot.slane %v1619, %v1622
        %v1624 = vlaneseq
        %v1625 = vshrl.u32 %v1624, 7
        %v1626 = vsub.s32 1, %v1625
        %v1627 = vrot.slane %v1619, %v1626
        %vm1628 = vcmp.eq.s32.totalorder %v1623, 1
        %vm1629 = vcmp.eq.s32.totalorder %v1627, 1
        %v1630 = vsel %vm1628, %v1615, 0.0
        %v1631 = vsel %vm1629, %v1614, 0.0
        %1633 = vset.pattern.permute.xlu0 0
        %1634 = vperm.xlu0 %1633, %v1608
        %v1635 = vpop.permute.xlu0 %1634
        %v1637 = vmul.f32 %v1635, %v1630
        %v1638 = vmul.f32 %v1635, %v1631
        %s1639 = scalar_lea.vmem %s5, 20
        %v1640 = vld [vmem:[%s1639] sm:$0x3]
        %1641 = vrot.lane.b32.xlu0 %v1605, 80
        %v1642 = vpop.permute.xlu0 %1641
        %1643 = vrot.lane.b32.xlu0 %v1606, 80
        %v1644 = vpop.permute.xlu0 %1643
        %v1645 = vsel %vm1080, %v1642, %v1644
        %v1646 = vsel %vm1080, %v1644, %v1642
        %v1647 = vsel %vm1616, 1, 0
        %v1648 = vlaneseq
        %v1649 = vshrl.u32 %v1648, 7
        %v1650 = vsub.s32 0, %v1649
        %v1651 = vrot.slane %v1647, %v1650
        %v1652 = vlaneseq
        %v1653 = vshrl.u32 %v1652, 7
        %v1654 = vsub.s32 1, %v1653
        %v1655 = vrot.slane %v1647, %v1654
        %vm1656 = vcmp.eq.s32.totalorder %v1651, 1
        %vm1657 = vcmp.eq.s32.totalorder %v1655, 1
        %v1658 = vsel %vm1656, %v1646, 0.0
        %v1659 = vsel %vm1657, %v1645, 0.0
        %1661 = vset.pattern.permute.xlu0 0
        %1662 = vperm.xlu0 %1661, %v1640
        %v1663 = vpop.permute.xlu0 %1662
        %v1665 = vmul.f32 %v1663, %v1658
        %v1666 = vmul.f32 %v1663, %v1659
        %v1667 = vadd.f32 %v1637, %v1665
        %v1668 = vadd.f32 %v1638, %v1666
        %s1669 = scalar_lea.vmem %s5, 22
        %v1670 = vld [vmem:[%s1669] sm:$0x3]
        %1671 = vrot.lane.b32.xlu0 %v1605, 75
        %v1672 = vpop.permute.xlu0 %1671
        %1673 = vrot.lane.b32.xlu0 %v1606, 75
        %v1674 = vpop.permute.xlu0 %1673
        %vm1675 = vcmp.lt.s32.totalorder %v561, 75
        %v1676 = vsel %vm1675, %v1672, %v1674
        %v1677 = vsel %vm1675, %v1674, %v1672
        %vm1678 = vcmp.lt.s32.totalorder %v496, 11
        %vm1679 = vmand %vm1616, %vm1678
        %v1680 = vsel %vm1679, 1, 0
        %v1681 = vlaneseq
        %v1682 = vshrl.u32 %v1681, 7
        %v1683 = vsub.s32 0, %v1682
        %v1684 = vrot.slane %v1680, %v1683
        %v1685 = vlaneseq
        %v1686 = vshrl.u32 %v1685, 7
        %v1687 = vsub.s32 1, %v1686
        %v1688 = vrot.slane %v1680, %v1687
        %vm1689 = vcmp.eq.s32.totalorder %v1684, 1
        %vm1690 = vcmp.eq.s32.totalorder %v1688, 1
        %v1691 = vsel %vm1689, %v1677, 0.0
        %v1692 = vsel %vm1690, %v1676, 0.0
        %1694 = vset.pattern.permute.xlu0 0
        %1695 = vperm.xlu0 %1694, %v1670
        %v1696 = vpop.permute.xlu0 %1695
        %v1698 = vmul.f32 %v1696, %v1691
        %v1699 = vmul.f32 %v1696, %v1692
        %v1700 = vadd.f32 %v1667, %v1698
        %v1701 = vadd.f32 %v1668, %v1699
        %s1702 = scalar_lea.vmem %s5, 24
        %v1703 = vld [vmem:[%s1702] sm:$0x3]
        %1704 = vrot.lane.b32.xlu0 %v1605, 5
        %v1705 = vpop.permute.xlu0 %1704
        %1706 = vrot.lane.b32.xlu0 %v1606, 5
        %v1707 = vpop.permute.xlu0 %1706
        %vm1708 = vcmp.lt.s32.totalorder %v561, 5
        %v1709 = vsel %vm1708, %v1705, %v1707
        %v1710 = vsel %vm1708, %v1707, %v1705
        %v1711 = vsel %vm1617, 1, 0
        %v1712 = vlaneseq
        %v1713 = vshrl.u32 %v1712, 7
        %v1714 = vsub.s32 0, %v1713
        %v1715 = vrot.slane %v1711, %v1714
        %v1716 = vlaneseq
        %v1717 = vshrl.u32 %v1716, 7
        %v1718 = vsub.s32 1, %v1717
        %v1719 = vrot.slane %v1711, %v1718
        %vm1720 = vcmp.eq.s32.totalorder %v1715, 1
        %vm1721 = vcmp.eq.s32.totalorder %v1719, 1
        %v1722 = vsel %vm1720, %v1710, 0.0
        %v1723 = vsel %vm1721, %v1709, 0.0
        %1725 = vset.pattern.permute.xlu0 0
        %1726 = vperm.xlu0 %1725, %v1703
        %v1727 = vpop.permute.xlu0 %1726
        %v1729 = vmul.f32 %v1727, %v1722
        %v1730 = vmul.f32 %v1727, %v1723
        %v1731 = vadd.f32 %v1700, %v1729
        %v1732 = vadd.f32 %v1701, %v1730
        %s1733 = scalar_lea.vmem %s5, 26
        %v1734 = vld [vmem:[%s1733] sm:$0x3]
        %1736 = vset.pattern.permute.xlu0 0
        %1737 = vperm.xlu0 %1736, %v1734
        %v1738 = vpop.permute.xlu0 %1737
        %v1740 = vmul.f32 %v1738, %v1605
        %v1741 = vmul.f32 %v1738, %v1606
        %v1742 = vadd.f32 %v1731, %v1740
        %v1743 = vadd.f32 %v1732, %v1741
        %s1744 = scalar_lea.vmem %s5, 28
        %v1745 = vld [vmem:[%s1744] sm:$0x3]
        %1746 = vrot.lane.b32.xlu0 %v1605, 123
        %v1747 = vpop.permute.xlu0 %1746
        %1748 = vrot.lane.b32.xlu0 %v1606, 123
        %v1749 = vpop.permute.xlu0 %1748
        %vm1750 = vcmp.lt.s32.totalorder %v561, 123
        %v1751 = vsel %vm1750, %v1747, %v1749
        %v1752 = vsel %vm1750, %v1749, %v1747
        %v1753 = vsel %vm1678, 1, 0
        %v1754 = vlaneseq
        %v1755 = vshrl.u32 %v1754, 7
        %v1756 = vsub.s32 0, %v1755
        %v1757 = vrot.slane %v1753, %v1756
        %v1758 = vlaneseq
        %v1759 = vshrl.u32 %v1758, 7
        %v1760 = vsub.s32 1, %v1759
        %v1761 = vrot.slane %v1753, %v1760
        %vm1762 = vcmp.eq.s32.totalorder %v1757, 1
        %vm1763 = vcmp.eq.s32.totalorder %v1761, 1
        %v1764 = vsel %vm1762, %v1751, 0.0
        %v1765 = vsel %vm1763, %v1752, 0.0
        %1767 = vset.pattern.permute.xlu0 0
        %1768 = vperm.xlu0 %1767, %v1745
        %v1769 = vpop.permute.xlu0 %1768
        %v1771 = vmul.f32 %v1769, %v1764
        %v1772 = vmul.f32 %v1769, %v1765
        %v1773 = vadd.f32 %v1742, %v1771
        %v1774 = vadd.f32 %v1743, %v1772
        %s1775 = scalar_lea.vmem %s5, 30
        %v1776 = vld [vmem:[%s1775] sm:$0x3]
        %1777 = vrot.lane.b32.xlu0 %v1605, 53
        %v1778 = vpop.permute.xlu0 %1777
        %1779 = vrot.lane.b32.xlu0 %v1606, 53
        %v1780 = vpop.permute.xlu0 %1779
        %vm1781 = vcmp.lt.s32.totalorder %v561, 53
        %v1782 = vsel %vm1781, %v1778, %v1780
        %v1783 = vsel %vm1781, %v1780, %v1778
        %vm1784 = vcmp.lt.s32.totalorder %v494, 11
        %vm1785 = vmand %vm1784, %vm1617
        %v1786 = vsel %vm1785, 1, 0
        %v1787 = vlaneseq
        %v1788 = vshrl.u32 %v1787, 7
        %v1789 = vsub.s32 0, %v1788
        %v1790 = vrot.slane %v1786, %v1789
        %v1791 = vlaneseq
        %v1792 = vshrl.u32 %v1791, 7
        %v1793 = vsub.s32 1, %v1792
        %v1794 = vrot.slane %v1786, %v1793
        %vm1795 = vcmp.eq.s32.totalorder %v1790, 1
        %vm1796 = vcmp.eq.s32.totalorder %v1794, 1
        %v1797 = vsel %vm1795, %v1782, 0.0
        %v1798 = vsel %vm1796, %v1783, 0.0
        %1800 = vset.pattern.permute.xlu0 0
        %1801 = vperm.xlu0 %1800, %v1776
        %v1802 = vpop.permute.xlu0 %1801
        %v1804 = vmul.f32 %v1802, %v1797
        %v1805 = vmul.f32 %v1802, %v1798
        %v1806 = vadd.f32 %v1773, %v1804
        %v1807 = vadd.f32 %v1774, %v1805
        %s1808 = scalar_lea.vmem %s5, 32
        %v1809 = vld [vmem:[%s1808] sm:$0x3]
        %1810 = vrot.lane.b32.xlu0 %v1605, 48
        %v1811 = vpop.permute.xlu0 %1810
        %1812 = vrot.lane.b32.xlu0 %v1606, 48
        %v1813 = vpop.permute.xlu0 %1812
        %v1814 = vsel %vm910, %v1811, %v1813
        %v1815 = vsel %vm910, %v1813, %v1811
        %v1816 = vsel %vm1784, 1, 0
        %v1817 = vlaneseq
        %v1818 = vshrl.u32 %v1817, 7
        %v1819 = vsub.s32 0, %v1818
        %v1820 = vrot.slane %v1816, %v1819
        %v1821 = vlaneseq
        %v1822 = vshrl.u32 %v1821, 7
        %v1823 = vsub.s32 1, %v1822
        %v1824 = vrot.slane %v1816, %v1823
        %vm1825 = vcmp.eq.s32.totalorder %v1820, 1
        %vm1826 = vcmp.eq.s32.totalorder %v1824, 1
        %v1827 = vsel %vm1825, %v1814, 0.0
        %v1828 = vsel %vm1826, %v1815, 0.0
        %1830 = vset.pattern.permute.xlu0 0
        %1831 = vperm.xlu0 %1830, %v1809
        %v1832 = vpop.permute.xlu0 %1831
        %v1834 = vmul.f32 %v1832, %v1827
        %v1835 = vmul.f32 %v1832, %v1828
        %v1836 = vadd.f32 %v1806, %v1834
        %v1837 = vadd.f32 %v1807, %v1835
        %s1838 = scalar_lea.vmem %s5, 34
        %v1839 = vld [vmem:[%s1838] sm:$0x3]
        %1840 = vrot.lane.b32.xlu0 %v1605, 43
        %v1841 = vpop.permute.xlu0 %1840
        %1842 = vrot.lane.b32.xlu0 %v1606, 43
        %v1843 = vpop.permute.xlu0 %1842
        %vm1844 = vcmp.lt.s32.totalorder %v561, 43
        %v1845 = vsel %vm1844, %v1841, %v1843
        %v1846 = vsel %vm1844, %v1843, %v1841
        %vm1847 = vmand %vm1784, %vm1678
        %v1848 = vsel %vm1847, 1, 0
        %v1849 = vlaneseq
        %v1850 = vshrl.u32 %v1849, 7
        %v1851 = vsub.s32 0, %v1850
        %v1852 = vrot.slane %v1848, %v1851
        %v1853 = vlaneseq
        %v1854 = vshrl.u32 %v1853, 7
        %v1855 = vsub.s32 1, %v1854
        %v1856 = vrot.slane %v1848, %v1855
        %vm1857 = vcmp.eq.s32.totalorder %v1852, 1
        %vm1858 = vcmp.eq.s32.totalorder %v1856, 1
        %v1859 = vsel %vm1857, %v1845, 0.0
        %v1860 = vsel %vm1858, %v1846, 0.0
        %1862 = vset.pattern.permute.xlu0 0
        %1863 = vperm.xlu0 %1862, %v1839
        %v1864 = vpop.permute.xlu0 %1863
        %v1866 = vmul.f32 %v1864, %v1859
        %v1867 = vmul.f32 %v1864, %v1860
        %v1868 = vadd.f32 %v1836, %v1866
        %v1869 = vadd.f32 %v1837, %v1867
        %s1870 = scalar_lea.vmem %s6, 2
        %v1871 = vld [vmem:[%s1870] sm:$0x3]
        %v1872 = vpack.c.bf16 %v1871, %v1871
        %v1873 = vpack.c.bf16 %v1868, %v1868
        %v1874 = vpack.c.bf16 %v1869, %v1869
        %v1877 = vrot.slane %v497, 2
        %v1878 = vrot.slane %v498, 2
        %v1882 = vsel %vm1141, %v1872, 0
        %v1885 = vsel %vm1145, %v1873, 0
        %v1888 = vsel %vm1145, %v1874, 0
        %1890 = vmatprep.subr.bf16.mxu0 %v1888
        %1891 = vmatpush1.bf16.msra.mxu0 %v1885
        %1892 = vmatprep.subr.bf16.mxu0 0
        %1893 = vmatpush1.bf16.msra.mxu0 0
        %1894 = vmatprep.subr.bf16.mxu0 0
        %1895 = vmatpush1.bf16.msra.mxu0 0
        %1896 = vmatprep.subr.bf16.mxu0 0
        %1897 = vmatpush1.bf16.msra.mxu0 0
        %1898 = vmatprep.subr.bf16.mxu0 0
        %1899 = vmatpush1.bf16.msra.mxu0 0
        %1900 = vmatprep.subr.bf16.mxu0 0
        %1901 = vmatpush1.bf16.msra.mxu0 0
        %1902 = vmatprep.subr.bf16.mxu0 0
        %1903 = vmatpush1.bf16.msra.mxu0 0
        %1904 = vmatprep.subr.bf16.mxu0 0
        %1905 = vmatpush1.bf16.msra.mxu0 0
        %1906 = vmatprep.subr.bf16.mxu0 0
        %1907 = vmatpush1.bf16.msra.mxu0 0
        %1908 = vmatprep.subr.bf16.mxu0 0
        %1909 = vmatpush1.bf16.msra.mxu0 0
        %1910 = vmatprep.subr.bf16.mxu0 0
        %1911 = vmatpush1.bf16.msra.mxu0 0
        %1912 = vmatprep.subr.bf16.mxu0 0
        %1913 = vmatpush1.bf16.msra.mxu0 0
        %1914 = vmatprep.subr.bf16.mxu0 0
        %1915 = vmatpush1.bf16.msra.mxu0 0
        %1916 = vmatprep.subr.bf16.mxu0 0
        %1917 = vmatpush1.bf16.msra.mxu0 0
        %1918 = vmatprep.subr.bf16.mxu0 0
        %1919 = vmatpush1.bf16.msra.mxu0 0
        %1920 = vmatprep.subr.bf16.mxu0 0
        %1921 = vmatpush1.bf16.msra.mxu0 0
        %1922 = vmatprep.mubr.bf16.mxu0 0
        %1923 = vmatmul.mubr.bf16.gmra.mrb[0].mxu0 %v1882
        %v1924 = vpop.f32.mrb[0].mxu0
        %v1925 = vadd.f32 %v1877, %v1924
        %v1926 = vpop.f32.mrb[0].mxu0
        %v1927 = vadd.f32 %v1878, %v1926
        %v1928 = vpop.f32.mrb[0].mxu0
        %v1929 = vpop.f32.mrb[0].mxu0
        %1930 = vdwg.mxu0
        %s1931 = scalar_lea.vmem %s12, 2
        %v1932 = vld [vmem:[%s1931] sm:$0x3]
        %1934 = vset.pattern.permute.xlu0 0
        %1935 = vperm.xlu0 %1934, %v1932
        %v1936 = vpop.permute.xlu0 %1935
        %v1938 = vmul.f32 %v1925, %v1936
        %v1939 = vmul.f32 %v1927, %v1936
        %s1940 = scalar_lea.vmem %s13, 2
        %v1941 = vld [vmem:[%s1940] sm:$0x3]
        %1943 = vset.pattern.permute.xlu0 0
        %1944 = vperm.xlu0 %1943, %v1941
        %v1945 = vpop.permute.xlu0 %1944
        %v1947 = vadd.f32 %v1938, %v1945
        %v1948 = vadd.f32 %v1939, %v1945
        %vm1949 = vcmp.gt.f32.partialorder %v1947, 0.0
        %vm1950 = vcmp.gt.f32.partialorder %v1948, 0.0
        %s1951 = scalar_lea.vmem %s14, 2
        %v1952 = vld [vmem:[%s1951] sm:$0x3]
        %1954 = vset.pattern.permute.xlu0 0
        %1955 = vperm.xlu0 %1954, %v1952
        %v1956 = vpop.permute.xlu0 %1955
        %v1958 = vmul.f32 %v1956, %v1947
        %v1959 = vmul.f32 %v1956, %v1948
        %v1960 = vsel %vm1949, %v1947, %v1958
        %v1961 = vsel %vm1950, %v1948, %v1959
        %v1964 = vrot.slane %v1960, 6
        %v1965 = vrot.slane %v1961, 6
        %1968 = vst [vmem:[%s487] sm:$0xc] %v1964
        %1969 = vst [vmem:[%s487 + $0x8] sm:$0xc] %v1965
        %s1970 = scalar_lea.vmem %s3, 68
        %v1971 = vld [vmem:[%s1970] sm:$0x3]
        %vm1972 = vcmp.ge.s32.totalorder %v494, 6
        %v1973 = vsel %vm1972, 1, 0
        %v1974 = vlaneseq
        %v1975 = vshrl.u32 %v1974, 7
        %v1976 = vsub.s32 0, %v1975
        %v1977 = vrot.slane %v1973, %v1976
        %v1978 = vlaneseq
        %v1979 = vshrl.u32 %v1978, 7
        %v1980 = vsub.s32 1, %v1979
        %v1981 = vrot.slane %v1973, %v1980
        %vm1982 = vcmp.eq.s32.totalorder %v1977, 1
        %vm1983 = vcmp.eq.s32.totalorder %v1981, 1
        %v1984 = vsel %vm1982, %v669, 0.0
        %v1985 = vsel %vm1983, %v668, 0.0
        %1987 = vset.pattern.permute.xlu0 0
        %1988 = vperm.xlu0 %1987, %v1971
        %v1989 = vpop.permute.xlu0 %1988
        %v1991 = vmul.f32 %v1989, %v1984
        %v1992 = vmul.f32 %v1989, %v1985
        %s1993 = scalar_lea.vmem %s3, 70
        %v1994 = vld [vmem:[%s1993] sm:$0x3]
        %v1995 = vsel %vm1656, %v1334, 0.0
        %v1996 = vsel %vm1657, %v1333, 0.0
        %1998 = vset.pattern.permute.xlu0 0
        %1999 = vperm.xlu0 %1998, %v1994
        %v2000 = vpop.permute.xlu0 %1999
        %v2002 = vmul.f32 %v2000, %v1995
        %v2003 = vmul.f32 %v2000, %v1996
        %v2004 = vadd.f32 %v1991, %v2002
        %v2005 = vadd.f32 %v1992, %v2003
        %s2006 = scalar_lea.vmem %s3, 72
        %v2007 = vld [vmem:[%s2006] sm:$0x3]
        %2009 = vset.pattern.permute.xlu0 0
        %2010 = vperm.xlu0 %2009, %v2007
        %v2011 = vpop.permute.xlu0 %2010
        %v2013 = vmul.f32 %v2011, %v1244
        %v2014 = vmul.f32 %v2011, %v1245
        %v2015 = vadd.f32 %v2004, %v2013
        %v2016 = vadd.f32 %v2005, %v2014
        %s2017 = scalar_lea.vmem %s3, 74
        %v2018 = vld [vmem:[%s2017] sm:$0x3]
        %2020 = vset.pattern.permute.xlu0 0
        %2021 = vperm.xlu0 %2020, %v2018
        %v2022 = vpop.permute.xlu0 %2021
        %v2024 = vmul.f32 %v2022, %v1261
        %v2025 = vmul.f32 %v2022, %v1262
        %v2026 = vadd.f32 %v2015, %v2024
        %v2027 = vadd.f32 %v2016, %v2025
        %s2028 = scalar_lea.vmem %s3, 76
        %v2029 = vld [vmem:[%s2028] sm:$0x3]
        %2031 = vset.pattern.permute.xlu0 0
        %2032 = vperm.xlu0 %2031, %v2029
        %v2033 = vpop.permute.xlu0 %2032
        %v2035 = vmul.f32 %v2033, %v577
        %v2036 = vmul.f32 %v2033, %v578
        %v2037 = vadd.f32 %v2026, %v2035
        %v2038 = vadd.f32 %v2027, %v2036
        %s2039 = scalar_lea.vmem %s3, 78
        %v2040 = vld [vmem:[%s2039] sm:$0x3]
        %2042 = vset.pattern.permute.xlu0 0
        %2043 = vperm.xlu0 %2042, %v2040
        %v2044 = vpop.permute.xlu0 %2043
        %v2046 = vmul.f32 %v2044, %v607
        %v2047 = vmul.f32 %v2044, %v608
        %v2048 = vadd.f32 %v2037, %v2046
        %v2049 = vadd.f32 %v2038, %v2047
        %s2050 = scalar_lea.vmem %s3, 80
        %v2051 = vld [vmem:[%s2050] sm:$0x3]
        %2053 = vset.pattern.permute.xlu0 0
        %2054 = vperm.xlu0 %2053, %v2051
        %v2055 = vpop.permute.xlu0 %2054
        %v2057 = vmul.f32 %v2055, %v549
        %v2058 = vmul.f32 %v2055, %v551
        %v2059 = vadd.f32 %v2048, %v2057
        %v2060 = vadd.f32 %v2049, %v2058
        %s2061 = scalar_lea.vmem %s3, 82
        %v2062 = vld [vmem:[%s2061] sm:$0x3]
        %2064 = vset.pattern.permute.xlu0 0
        %2065 = vperm.xlu0 %2064, %v2062
        %v2066 = vpop.permute.xlu0 %2065
        %v2068 = vmul.f32 %v2066, %v650
        %v2069 = vmul.f32 %v2066, %v651
        %v2070 = vadd.f32 %v2059, %v2068
        %v2071 = vadd.f32 %v2060, %v2069
        %s2072 = scalar_lea.vmem %s3, 84
        %v2073 = vld [vmem:[%s2072] sm:$0x3]
        %2075 = vset.pattern.permute.xlu0 0
        %2076 = vperm.xlu0 %2075, %v2073
        %v2077 = vpop.permute.xlu0 %2076
        %v2079 = vmul.f32 %v2077, %v682
        %v2080 = vmul.f32 %v2077, %v683
        %v2081 = vadd.f32 %v2070, %v2079
        %v2082 = vadd.f32 %v2071, %v2080
        %s2083 = scalar_lea.vmem %s3, 86
        %v2084 = vld [vmem:[%s2083] sm:$0x3]
        %2086 = vset.pattern.permute.xlu0 0
        %2087 = vperm.xlu0 %2086, %v2084
        %v2088 = vpop.permute.xlu0 %2087
        %v2090 = vmul.f32 %v2088, %v1335
        %v2091 = vmul.f32 %v2088, %v1336
        %v2092 = vadd.f32 %v2081, %v2090
        %v2093 = vadd.f32 %v2082, %v2091
        %s2094 = scalar_lea.vmem %s3, 88
        %v2095 = vld [vmem:[%s2094] sm:$0x3]
        %2097 = vset.pattern.permute.xlu0 0
        %2098 = vperm.xlu0 %2097, %v2095
        %v2099 = vpop.permute.xlu0 %2098
        %v2101 = vmul.f32 %v2099, %v1360
        %v2102 = vmul.f32 %v2099, %v1361
        %v2103 = vadd.f32 %v2092, %v2101
        %v2104 = vadd.f32 %v2093, %v2102
        %s2105 = scalar_lea.vmem %s3, 90
        %v2106 = vld [vmem:[%s2105] sm:$0x3]
        %v2107 = vsel %vm1825, %v1259, 0.0
        %v2108 = vsel %vm1826, %v1260, 0.0
        %2110 = vset.pattern.permute.xlu0 0
        %2111 = vperm.xlu0 %2110, %v2106
        %v2112 = vpop.permute.xlu0 %2111
        %v2114 = vmul.f32 %v2112, %v2107
        %v2115 = vmul.f32 %v2112, %v2108
        %v2116 = vadd.f32 %v2103, %v2114
        %v2117 = vadd.f32 %v2104, %v2115
        %s2118 = scalar_lea.vmem %s3, 92
        %v2119 = vld [vmem:[%s2118] sm:$0x3]
        %vm2120 = vcmp.lt.s32.totalorder %v494, 10
        %v2121 = vsel %vm2120, 1, 0
        %v2122 = vlaneseq
        %v2123 = vshrl.u32 %v2122, 7
        %v2124 = vsub.s32 0, %v2123
        %v2125 = vrot.slane %v2121, %v2124
        %v2126 = vlaneseq
        %v2127 = vshrl.u32 %v2126, 7
        %v2128 = vsub.s32 1, %v2127
        %v2129 = vrot.slane %v2121, %v2128
        %vm2130 = vcmp.eq.s32.totalorder %v2125, 1
        %vm2131 = vcmp.eq.s32.totalorder %v2129, 1
        %v2132 = vsel %vm2130, %v563, 0.0
        %v2133 = vsel %vm2131, %v564, 0.0
        %2135 = vset.pattern.permute.xlu0 0
        %2136 = vperm.xlu0 %2135, %v2119
        %v2137 = vpop.permute.xlu0 %2136
        %v2139 = vmul.f32 %v2137, %v2132
        %v2140 = vmul.f32 %v2137, %v2133
        %v2141 = vadd.f32 %v2116, %v2139
        %v2142 = vadd.f32 %v2117, %v2140
        %s2143 = scalar_lea.vmem %s7, 4
        %v2144 = vld [vmem:[%s2143] sm:$0x3]
        %2146 = vset.pattern.permute.xlu0 0
        %2147 = vperm.xlu0 %2146, %v2144
        %v2148 = vpop.permute.xlu0 %2147
        %v2150 = vmul.f32 %v2141, %v2148
        %v2151 = vmul.f32 %v2142, %v2148
        %s2152 = scalar_lea.vmem %s8, 4
        %v2153 = vld [vmem:[%s2152] sm:$0x3]
        %2155 = vset.pattern.permute.xlu0 0
        %2156 = vperm.xlu0 %2155, %v2153
        %v2157 = vpop.permute.xlu0 %2156
        %v2159 = vadd.f32 %v2150, %v2157
        %v2160 = vadd.f32 %v2151, %v2157
        %vm2161 = vcmp.gt.f32.partialorder %v2159, 0.0
        %vm2162 = vcmp.gt.f32.partialorder %v2160, 0.0
        %s2163 = scalar_lea.vmem %s9, 4
        %v2164 = vld [vmem:[%s2163] sm:$0x3]
        %2166 = vset.pattern.permute.xlu0 0
        %2167 = vperm.xlu0 %2166, %v2164
        %v2168 = vpop.permute.xlu0 %2167
        %v2170 = vmul.f32 %v2168, %v2159
        %v2171 = vmul.f32 %v2168, %v2160
        %v2172 = vsel %vm2161, %v2159, %v2170
        %v2173 = vsel %vm2162, %v2160, %v2171
        %s2174 = scalar_lea.vmem %s4, 68
        %v2175 = vld [vmem:[%s2174] sm:$0x3]
        %2176 = vrot.lane.b32.xlu0 %v2172, 6
        %v2177 = vpop.permute.xlu0 %2176
        %2178 = vrot.lane.b32.xlu0 %v2173, 6
        %v2179 = vpop.permute.xlu0 %2178
        %vm2180 = vcmp.lt.s32.totalorder %v561, 6
        %v2181 = vsel %vm2180, %v2177, %v2179
        %v2182 = vsel %vm2180, %v2179, %v2177
        %vm2183 = vcmp.ge.s32.totalorder %v496, 6
        %v2184 = vsel %vm2183, 1, 0
        %v2185 = vlaneseq
        %v2186 = vshrl.u32 %v2185, 7
        %v2187 = vsub.s32 0, %v2186
        %v2188 = vrot.slane %v2184, %v2187
        %v2189 = vlaneseq
        %v2190 = vshrl.u32 %v2189, 7
        %v2191 = vsub.s32 1, %v2190
        %v2192 = vrot.slane %v2184, %v2191
        %vm2193 = vcmp.eq.s32.totalorder %v2188, 1
        %vm2194 = vcmp.eq.s32.totalorder %v2192, 1
        %v2195 = vsel %vm2193, %v2182, 0.0
        %v2196 = vsel %vm2194, %v2181, 0.0
        %2198 = vset.pattern.permute.xlu0 0
        %2199 = vperm.xlu0 %2198, %v2175
        %v2200 = vpop.permute.xlu0 %2199
        %v2202 = vmul.f32 %v2200, %v2195
        %v2203 = vmul.f32 %v2200, %v2196
        %s2204 = scalar_lea.vmem %s4, 70
        %v2205 = vld [vmem:[%s2204] sm:$0x3]
        %2206 = vrot.lane.b32.xlu0 %v2172, 5
        %v2207 = vpop.permute.xlu0 %2206
        %2208 = vrot.lane.b32.xlu0 %v2173, 5
        %v2209 = vpop.permute.xlu0 %2208
        %v2210 = vsel %vm1708, %v2207, %v2209
        %v2211 = vsel %vm1708, %v2209, %v2207
        %v2212 = vsel %vm1720, %v2211, 0.0
        %v2213 = vsel %vm1721, %v2210, 0.0
        %2215 = vset.pattern.permute.xlu0 0
        %2216 = vperm.xlu0 %2215, %v2205
        %v2217 = vpop.permute.xlu0 %2216
        %v2219 = vmul.f32 %v2217, %v2212
        %v2220 = vmul.f32 %v2217, %v2213
        %v2221 = vadd.f32 %v2202, %v2219
        %v2222 = vadd.f32 %v2203, %v2220
        %s2223 = scalar_lea.vmem %s4, 72
        %v2224 = vld [vmem:[%s2223] sm:$0x3]
        %2225 = vrot.lane.b32.xlu0 %v2172, 4
        %v2226 = vpop.permute.xlu0 %2225
        %2227 = vrot.lane.b32.xlu0 %v2173, 4
        %v2228 = vpop.permute.xlu0 %2227
        %v2229 = vsel %vm1408, %v2226, %v2228
        %v2230 = vsel %vm1408, %v2228, %v2226
        %v2231 = vsel %vm1421, %v2230, 0.0
        %v2232 = vsel %vm1422, %v2229, 0.0
        %2234 = vset.pattern.permute.xlu0 0
        %2235 = vperm.xlu0 %2234, %v2224
        %v2236 = vpop.permute.xlu0 %2235
        %v2238 = vmul.f32 %v2236, %v2231
        %v2239 = vmul.f32 %v2236, %v2232
        %v2240 = vadd.f32 %v2221, %v2238
        %v2241 = vadd.f32 %v2222, %v2239
        %s2242 = scalar_lea.vmem %s4, 74
        %v2243 = vld [vmem:[%s2242] sm:$0x3]
        %2244 = vrot.lane.b32.xlu0 %v2172, 3
        %v2245 = vpop.permute.xlu0 %2244
        %2246 = vrot.lane.b32.xlu0 %v2173, 3
        %v2247 = vpop.permute.xlu0 %2246
        %v2248 = vsel %vm974, %v2245, %v2247
        %v2249 = vsel %vm974, %v2247, %v2245
        %v2250 = vsel %vm986, %v2249, 0.0
        %v2251 = vsel %vm987, %v2248, 0.0
        %2253 = vset.pattern.permute.xlu0 0
        %2254 = vperm.xlu0 %2253, %v2243
        %v2255 = vpop.permute.xlu0 %2254
        %v2257 = vmul.f32 %v2255, %v2250
        %v2258 = vmul.f32 %v2255, %v2251
        %v2259 = vadd.f32 %v2240, %v2257
        %v2260 = vadd.f32 %v2241, %v2258
        %s2261 = scalar_lea.vmem %s4, 76
        %v2262 = vld [vmem:[%s2261] sm:$0x3]
        %2263 = vrot.lane.b32.xlu0 %v2172, 2
        %v2264 = vpop.permute.xlu0 %2263
        %2265 = vrot.lane.b32.xlu0 %v2173, 2
        %v2266 = vpop.permute.xlu0 %2265
        %v2267 = vsel %vm726, %v2264, %v2266
        %v2268 = vsel %vm726, %v2266, %v2264
        %v2269 = vsel %vm739, %v2268, 0.0
        %v2270 = vsel %vm740, %v2267, 0.0
        %2272 = vset.pattern.permute.xlu0 0
        %2273 = vperm.xlu0 %2272, %v2262
        %v2274 = vpop.permute.xlu0 %2273
        %v2276 = vmul.f32 %v2274, %v2269
        %v2277 = vmul.f32 %v2274, %v2270
        %v2278 = vadd.f32 %v2259, %v2276
        %v2279 = vadd.f32 %v2260, %v2277
        %s2280 = scalar_lea.vmem %s4, 78
        %v2281 = vld [vmem:[%s2280] sm:$0x3]
        %2282 = vrot.lane.b32.xlu0 %v2172, 1
        %v2283 = vpop.permute.xlu0 %2282
        %2284 = vrot.lane.b32.xlu0 %v2173, 1
        %v2285 = vpop.permute.xlu0 %2284
        %v2286 = vsel %vm756, %v2283, %v2285
        %v2287 = vsel %vm756, %v2285, %v2283
        %v2288 = vsel %vm769, %v2287, 0.0
        %v2289 = vsel %vm770, %v2286, 0.0
        %2291 = vset.pattern.permute.xlu0 0
        %2292 = vperm.xlu0 %2291, %v2281
        %v2293 = vpop.permute.xlu0 %2292
        %v2295 = vmul.f32 %v2293, %v2288
        %v2296 = vmul.f32 %v2293, %v2289
        %v2297 = vadd.f32 %v2278, %v2295
        %v2298 = vadd.f32 %v2279, %v2296
        %s2299 = scalar_lea.vmem %s4, 80
        %v2300 = vld [vmem:[%s2299] sm:$0x3]
        %2302 = vset.pattern.permute.xlu0 0
        %2303 = vperm.xlu0 %2302, %v2300
        %v2304 = vpop.permute.xlu0 %2303
        %v2306 = vmul.f32 %v2304, %v2172
        %v2307 = vmul.f32 %v2304, %v2173
        %v2308 = vadd.f32 %v2297, %v2306
        %v2309 = vadd.f32 %v2298, %v2307
        %s2310 = scalar_lea.vmem %s4, 82
        %v2311 = vld [vmem:[%s2310] sm:$0x3]
        %2312 = vrot.lane.b32.xlu0 %v2172, 127
        %v2313 = vpop.permute.xlu0 %2312
        %2314 = vrot.lane.b32.xlu0 %v2173, 127
        %v2315 = vpop.permute.xlu0 %2314
        %v2316 = vsel %vm799, %v2313, %v2315
        %v2317 = vsel %vm799, %v2315, %v2313
        %v2318 = vsel %vm812, %v2316, 0.0
        %v2319 = vsel %vm813, %v2317, 0.0
        %2321 = vset.pattern.permute.xlu0 0
        %2322 = vperm.xlu0 %2321, %v2311
        %v2323 = vpop.permute.xlu0 %2322
        %v2325 = vmul.f32 %v2323, %v2318
        %v2326 = vmul.f32 %v2323, %v2319
        %v2327 = vadd.f32 %v2308, %v2325
        %v2328 = vadd.f32 %v2309, %v2326
        %s2329 = scalar_lea.vmem %s4, 84
        %v2330 = vld [vmem:[%s2329] sm:$0x3]
        %2331 = vrot.lane.b32.xlu0 %v2172, 126
        %v2332 = vpop.permute.xlu0 %2331
        %2333 = vrot.lane.b32.xlu0 %v2173, 126
        %v2334 = vpop.permute.xlu0 %2333
        %v2335 = vsel %vm831, %v2332, %v2334
        %v2336 = vsel %vm831, %v2334, %v2332
        %v2337 = vsel %vm844, %v2335, 0.0
        %v2338 = vsel %vm845, %v2336, 0.0
        %2340 = vset.pattern.permute.xlu0 0
        %2341 = vperm.xlu0 %2340, %v2330
        %v2342 = vpop.permute.xlu0 %2341
        %v2344 = vmul.f32 %v2342, %v2337
        %v2345 = vmul.f32 %v2342, %v2338
        %v2346 = vadd.f32 %v2327, %v2344
        %v2347 = vadd.f32 %v2328, %v2345
        %s2348 = scalar_lea.vmem %s4, 86
        %v2349 = vld [vmem:[%s2348] sm:$0x3]
        %2350 = vrot.lane.b32.xlu0 %v2172, 125
        %v2351 = vpop.permute.xlu0 %2350
        %2352 = vrot.lane.b32.xlu0 %v2173, 125
        %v2353 = vpop.permute.xlu0 %2352
        %v2354 = vsel %vm1016, %v2351, %v2353
        %v2355 = vsel %vm1016, %v2353, %v2351
        %v2356 = vsel %vm1028, %v2354, 0.0
        %v2357 = vsel %vm1029, %v2355, 0.0
        %2359 = vset.pattern.permute.xlu0 0
        %2360 = vperm.xlu0 %2359, %v2349
        %v2361 = vpop.permute.xlu0 %2360
        %v2363 = vmul.f32 %v2361, %v2356
        %v2364 = vmul.f32 %v2361, %v2357
        %v2365 = vadd.f32 %v2346, %v2363
        %v2366 = vadd.f32 %v2347, %v2364
        %s2367 = scalar_lea.vmem %s4, 88
        %v2368 = vld [vmem:[%s2367] sm:$0x3]
        %2369 = vrot.lane.b32.xlu0 %v2172, 124
        %v2370 = vpop.permute.xlu0 %2369
        %2371 = vrot.lane.b32.xlu0 %v2173, 124
        %v2372 = vpop.permute.xlu0 %2371
        %v2373 = vsel %vm1563, %v2370, %v2372
        %v2374 = vsel %vm1563, %v2372, %v2370
        %v2375 = vsel %vm1576, %v2373, 0.0
        %v2376 = vsel %vm1577, %v2374, 0.0
        %2378 = vset.pattern.permute.xlu0 0
        %2379 = vperm.xlu0 %2378, %v2368
        %v2380 = vpop.permute.xlu0 %2379
        %v2382 = vmul.f32 %v2380, %v2375
        %v2383 = vmul.f32 %v2380, %v2376
        %v2384 = vadd.f32 %v2365, %v2382
        %v2385 = vadd.f32 %v2366, %v2383
        %s2386 = scalar_lea.vmem %s4, 90
        %v2387 = vld [vmem:[%s2386] sm:$0x3]
        %2388 = vrot.lane.b32.xlu0 %v2172, 123
        %v2389 = vpop.permute.xlu0 %2388
        %2390 = vrot.lane.b32.xlu0 %v2173, 123
        %v2391 = vpop.permute.xlu0 %2390
        %v2392 = vsel %vm1750, %v2389, %v2391
        %v2393 = vsel %vm1750, %v2391, %v2389
        %v2394 = vsel %vm1762, %v2392, 0.0
        %v2395 = vsel %vm1763, %v2393, 0.0
        %2397 = vset.pattern.permute.xlu0 0
        %2398 = vperm.xlu0 %2397, %v2387
        %v2399 = vpop.permute.xlu0 %2398
        %v2401 = vmul.f32 %v2399, %v2394
        %v2402 = vmul.f32 %v2399, %v2395
        %v2403 = vadd.f32 %v2384, %v2401
        %v2404 = vadd.f32 %v2385, %v2402
        %s2405 = scalar_lea.vmem %s4, 92
        %v2406 = vld [vmem:[%s2405] sm:$0x3]
        %2407 = vrot.lane.b32.xlu0 %v2172, 122
        %v2408 = vpop.permute.xlu0 %2407
        %2409 = vrot.lane.b32.xlu0 %v2173, 122
        %v2410 = vpop.permute.xlu0 %2409
        %vm2411 = vcmp.lt.s32.totalorder %v561, 122
        %v2412 = vsel %vm2411, %v2408, %v2410
        %v2413 = vsel %vm2411, %v2410, %v2408
        %vm2414 = vcmp.lt.s32.totalorder %v496, 10
        %v2415 = vsel %vm2414, 1, 0
        %v2416 = vlaneseq
        %v2417 = vshrl.u32 %v2416, 7
        %v2418 = vsub.s32 0, %v2417
        %v2419 = vrot.slane %v2415, %v2418
        %v2420 = vlaneseq
        %v2421 = vshrl.u32 %v2420, 7
        %v2422 = vsub.s32 1, %v2421
        %v2423 = vrot.slane %v2415, %v2422
        %vm2424 = vcmp.eq.s32.totalorder %v2419, 1
        %vm2425 = vcmp.eq.s32.totalorder %v2423, 1
        %v2426 = vsel %vm2424, %v2412, 0.0
        %v2427 = vsel %vm2425, %v2413, 0.0
        %2429 = vset.pattern.permute.xlu0 0
        %2430 = vperm.xlu0 %2429, %v2406
        %v2431 = vpop.permute.xlu0 %2430
        %v2433 = vmul.f32 %v2431, %v2426
        %v2434 = vmul.f32 %v2431, %v2427
        %v2435 = vadd.f32 %v2403, %v2433
        %v2436 = vadd.f32 %v2404, %v2434
        %s2437 = scalar_lea.vmem %s10, 4
        %v2438 = vld [vmem:[%s2437] sm:$0x3]
        %2440 = vset.pattern.permute.xlu0 0
        %2441 = vperm.xlu0 %2440, %v2438
        %v2442 = vpop.permute.xlu0 %2441
        %v2444 = vmul.f32 %v2435, %v2442
        %v2445 = vmul.f32 %v2436, %v2442
        %s2446 = scalar_lea.vmem %s11, 4
        %v2447 = vld [vmem:[%s2446] sm:$0x3]
        %2449 = vset.pattern.permute.xlu0 0
        %2450 = vperm.xlu0 %2449, %v2447
        %v2451 = vpop.permute.xlu0 %2450
        %v2453 = vadd.f32 %v2444, %v2451
        %v2454 = vadd.f32 %v2445, %v2451
        %s2455 = scalar_lea.vmem %s5, 36
        %v2456 = vld [vmem:[%s2455] sm:$0x3]
        %2457 = vrot.lane.b32.xlu0 %v2453, 119
        %v2458 = vpop.permute.xlu0 %2457
        %2459 = vrot.lane.b32.xlu0 %v2454, 119
        %v2460 = vpop.permute.xlu0 %2459
        %vm2461 = vcmp.lt.s32.totalorder %v561, 119
        %v2462 = vsel %vm2461, %v2458, %v2460
        %v2463 = vsel %vm2461, %v2460, %v2458
        %vm2464 = vcmp.ge.s32.totalorder %v494, 7
        %vm2465 = vcmp.ge.s32.totalorder %v496, 7
        %vm2466 = vmand %vm2464, %vm2465
        %v2467 = vsel %vm2466, 1, 0
        %v2468 = vlaneseq
        %v2469 = vshrl.u32 %v2468, 7
        %v2470 = vsub.s32 0, %v2469
        %v2471 = vrot.slane %v2467, %v2470
        %v2472 = vlaneseq
        %v2473 = vshrl.u32 %v2472, 7
        %v2474 = vsub.s32 1, %v2473
        %v2475 = vrot.slane %v2467, %v2474
        %vm2476 = vcmp.eq.s32.totalorder %v2471, 1
        %vm2477 = vcmp.eq.s32.totalorder %v2475, 1
        %v2478 = vsel %vm2476, %v2463, 0.0
        %v2479 = vsel %vm2477, %v2462, 0.0
        %2481 = vset.pattern.permute.xlu0 0
        %2482 = vperm.xlu0 %2481, %v2456
        %v2483 = vpop.permute.xlu0 %2482
        %v2485 = vmul.f32 %v2483, %v2478
        %v2486 = vmul.f32 %v2483, %v2479
        %s2487 = scalar_lea.vmem %s5, 38
        %v2488 = vld [vmem:[%s2487] sm:$0x3]
        %2489 = vrot.lane.b32.xlu0 %v2453, 112
        %v2490 = vpop.permute.xlu0 %2489
        %2491 = vrot.lane.b32.xlu0 %v2454, 112
        %v2492 = vpop.permute.xlu0 %2491
        %v2493 = vsel %vm635, %v2490, %v2492
        %v2494 = vsel %vm635, %v2492, %v2490
        %v2495 = vsel %vm2464, 1, 0
        %v2496 = vlaneseq
        %v2497 = vshrl.u32 %v2496, 7
        %v2498 = vsub.s32 0, %v2497
        %v2499 = vrot.slane %v2495, %v2498
        %v2500 = vlaneseq
        %v2501 = vshrl.u32 %v2500, 7
        %v2502 = vsub.s32 1, %v2501
        %v2503 = vrot.slane %v2495, %v2502
        %vm2504 = vcmp.eq.s32.totalorder %v2499, 1
        %vm2505 = vcmp.eq.s32.totalorder %v2503, 1
        %v2506 = vsel %vm2504, %v2494, 0.0
        %v2507 = vsel %vm2505, %v2493, 0.0
        %2509 = vset.pattern.permute.xlu0 0
        %2510 = vperm.xlu0 %2509, %v2488
        %v2511 = vpop.permute.xlu0 %2510
        %v2513 = vmul.f32 %v2511, %v2506
        %v2514 = vmul.f32 %v2511, %v2507
        %v2515 = vadd.f32 %v2485, %v2513
        %v2516 = vadd.f32 %v2486, %v2514
        %s2517 = scalar_lea.vmem %s5, 40
        %v2518 = vld [vmem:[%s2517] sm:$0x3]
        %2519 = vrot.lane.b32.xlu0 %v2453, 105
        %v2520 = vpop.permute.xlu0 %2519
        %2521 = vrot.lane.b32.xlu0 %v2454, 105
        %v2522 = vpop.permute.xlu0 %2521
        %vm2523 = vcmp.lt.s32.totalorder %v561, 105
        %v2524 = vsel %vm2523, %v2520, %v2522
        %v2525 = vsel %vm2523, %v2522, %v2520
        %vm2526 = vcmp.lt.s32.totalorder %v496, 9
        %vm2527 = vmand %vm2464, %vm2526
        %v2528 = vsel %vm2527, 1, 0
        %v2529 = vlaneseq
        %v2530 = vshrl.u32 %v2529, 7
        %v2531 = vsub.s32 0, %v2530
        %v2532 = vrot.slane %v2528, %v2531
        %v2533 = vlaneseq
        %v2534 = vshrl.u32 %v2533, 7
        %v2535 = vsub.s32 1, %v2534
        %v2536 = vrot.slane %v2528, %v2535
        %vm2537 = vcmp.eq.s32.totalorder %v2532, 1
        %vm2538 = vcmp.eq.s32.totalorder %v2536, 1
        %v2539 = vsel %vm2537, %v2525, 0.0
        %v2540 = vsel %vm2538, %v2524, 0.0
        %2542 = vset.pattern.permute.xlu0 0
        %2543 = vperm.xlu0 %2542, %v2518
        %v2544 = vpop.permute.xlu0 %2543
        %v2546 = vmul.f32 %v2544, %v2539
        %v2547 = vmul.f32 %v2544, %v2540
        %v2548 = vadd.f32 %v2515, %v2546
        %v2549 = vadd.f32 %v2516, %v2547
        %s2550 = scalar_lea.vmem %s5, 42
        %v2551 = vld [vmem:[%s2550] sm:$0x3]
        %2552 = vrot.lane.b32.xlu0 %v2453, 7
        %v2553 = vpop.permute.xlu0 %2552
        %2554 = vrot.lane.b32.xlu0 %v2454, 7
        %v2555 = vpop.permute.xlu0 %2554
        %vm2556 = vcmp.lt.s32.totalorder %v561, 7
        %v2557 = vsel %vm2556, %v2553, %v2555
        %v2558 = vsel %vm2556, %v2555, %v2553
        %v2559 = vsel %vm2465, 1, 0
        %v2560 = vlaneseq
        %v2561 = vshrl.u32 %v2560, 7
        %v2562 = vsub.s32 0, %v2561
        %v2563 = vrot.slane %v2559, %v2562
        %v2564 = vlaneseq
        %v2565 = vshrl.u32 %v2564, 7
        %v2566 = vsub.s32 1, %v2565
        %v2567 = vrot.slane %v2559, %v2566
        %vm2568 = vcmp.eq.s32.totalorder %v2563, 1
        %vm2569 = vcmp.eq.s32.totalorder %v2567, 1
        %v2570 = vsel %vm2568, %v2558, 0.0
        %v2571 = vsel %vm2569, %v2557, 0.0
        %2573 = vset.pattern.permute.xlu0 0
        %2574 = vperm.xlu0 %2573, %v2551
        %v2575 = vpop.permute.xlu0 %2574
        %v2577 = vmul.f32 %v2575, %v2570
        %v2578 = vmul.f32 %v2575, %v2571
        %v2579 = vadd.f32 %v2548, %v2577
        %v2580 = vadd.f32 %v2549, %v2578
        %s2581 = scalar_lea.vmem %s5, 44
        %v2582 = vld [vmem:[%s2581] sm:$0x3]
        %2584 = vset.pattern.permute.xlu0 0
        %2585 = vperm.xlu0 %2584, %v2582
        %v2586 = vpop.permute.xlu0 %2585
        %v2588 = vmul.f32 %v2586, %v2453
        %v2589 = vmul.f32 %v2586, %v2454
        %v2590 = vadd.f32 %v2579, %v2588
        %v2591 = vadd.f32 %v2580, %v2589
        %s2592 = scalar_lea.vmem %s5, 46
        %v2593 = vld [vmem:[%s2592] sm:$0x3]
        %2594 = vrot.lane.b32.xlu0 %v2453, 121
        %v2595 = vpop.permute.xlu0 %2594
        %2596 = vrot.lane.b32.xlu0 %v2454, 121
        %v2597 = vpop.permute.xlu0 %2596
        %vm2598 = vcmp.lt.s32.totalorder %v561, 121
        %v2599 = vsel %vm2598, %v2595, %v2597
        %v2600 = vsel %vm2598, %v2597, %v2595
        %v2601 = vsel %vm2526, 1, 0
        %v2602 = vlaneseq
        %v2603 = vshrl.u32 %v2602, 7
        %v2604 = vsub.s32 0, %v2603
        %v2605 = vrot.slane %v2601, %v2604
        %v2606 = vlaneseq
        %v2607 = vshrl.u32 %v2606, 7
        %v2608 = vsub.s32 1, %v2607
        %v2609 = vrot.slane %v2601, %v2608
        %vm2610 = vcmp.eq.s32.totalorder %v2605, 1
        %vm2611 = vcmp.eq.s32.totalorder %v2609, 1
        %v2612 = vsel %vm2610, %v2599, 0.0
        %v2613 = vsel %vm2611, %v2600, 0.0
        %2615 = vset.pattern.permute.xlu0 0
        %2616 = vperm.xlu0 %2615, %v2593
        %v2617 = vpop.permute.xlu0 %2616
        %v2619 = vmul.f32 %v2617, %v2612
        %v2620 = vmul.f32 %v2617, %v2613
        %v2621 = vadd.f32 %v2590, %v2619
        %v2622 = vadd.f32 %v2591, %v2620
        %s2623 = scalar_lea.vmem %s5, 48
        %v2624 = vld [vmem:[%s2623] sm:$0x3]
        %2625 = vrot.lane.b32.xlu0 %v2453, 23
        %v2626 = vpop.permute.xlu0 %2625
        %2627 = vrot.lane.b32.xlu0 %v2454, 23
        %v2628 = vpop.permute.xlu0 %2627
        %vm2629 = vcmp.lt.s32.totalorder %v561, 23
        %v2630 = vsel %vm2629, %v2626, %v2628
        %v2631 = vsel %vm2629, %v2628, %v2626
        %vm2632 = vcmp.lt.s32.totalorder %v494, 9
        %vm2633 = vmand %vm2632, %vm2465
        %v2634 = vsel %vm2633, 1, 0
        %v2635 = vlaneseq
        %v2636 = vshrl.u32 %v2635, 7
        %v2637 = vsub.s32 0, %v2636
        %v2638 = vrot.slane %v2634, %v2637
        %v2639 = vlaneseq
        %v2640 = vshrl.u32 %v2639, 7
        %v2641 = vsub.s32 1, %v2640
        %v2642 = vrot.slane %v2634, %v2641
        %vm2643 = vcmp.eq.s32.totalorder %v2638, 1
        %vm2644 = vcmp.eq.s32.totalorder %v2642, 1
        %v2645 = vsel %vm2643, %v2630, 0.0
        %v2646 = vsel %vm2644, %v2631, 0.0
        %2648 = vset.pattern.permute.xlu0 0
        %2649 = vperm.xlu0 %2648, %v2624
        %v2650 = vpop.permute.xlu0 %2649
        %v2652 = vmul.f32 %v2650, %v2645
        %v2653 = vmul.f32 %v2650, %v2646
        %v2654 = vadd.f32 %v2621, %v2652
        %v2655 = vadd.f32 %v2622, %v2653
        %s2656 = scalar_lea.vmem %s5, 50
        %v2657 = vld [vmem:[%s2656] sm:$0x3]
        %2658 = vrot.lane.b32.xlu0 %v2453, 16
        %v2659 = vpop.permute.xlu0 %2658
        %2660 = vrot.lane.b32.xlu0 %v2454, 16
        %v2661 = vpop.permute.xlu0 %2660
        %v2662 = vsel %vm592, %v2659, %v2661
        %v2663 = vsel %vm592, %v2661, %v2659
        %v2664 = vsel %vm2632, 1, 0
        %v2665 = vlaneseq
        %v2666 = vshrl.u32 %v2665, 7
        %v2667 = vsub.s32 0, %v2666
        %v2668 = vrot.slane %v2664, %v2667
        %v2669 = vlaneseq
        %v2670 = vshrl.u32 %v2669, 7
        %v2671 = vsub.s32 1, %v2670
        %v2672 = vrot.slane %v2664, %v2671
        %vm2673 = vcmp.eq.s32.totalorder %v2668, 1
        %vm2674 = vcmp.eq.s32.totalorder %v2672, 1
        %v2675 = vsel %vm2673, %v2662, 0.0
        %v2676 = vsel %vm2674, %v2663, 0.0
        %2678 = vset.pattern.permute.xlu0 0
        %2679 = vperm.xlu0 %2678, %v2657
        %v2680 = vpop.permute.xlu0 %2679
        %v2682 = vmul.f32 %v2680, %v2675
        %v2683 = vmul.f32 %v2680, %v2676
        %v2684 = vadd.f32 %v2654, %v2682
        %v2685 = vadd.f32 %v2655, %v2683
        %s2686 = scalar_lea.vmem %s5, 52
        %v2687 = vld [vmem:[%s2686] sm:$0x3]
        %2688 = vrot.lane.b32.xlu0 %v2453, 9
        %v2689 = vpop.permute.xlu0 %2688
        %2690 = vrot.lane.b32.xlu0 %v2454, 9
        %v2691 = vpop.permute.xlu0 %2690
        %vm2692 = vcmp.lt.s32.totalorder %v561, 9
        %v2693 = vsel %vm2692, %v2689, %v2691
        %v2694 = vsel %vm2692, %v2691, %v2689
        %vm2695 = vmand %vm2632, %vm2526
        %v2696 = vsel %vm2695, 1, 0
        %v2697 = vlaneseq
        %v2698 = vshrl.u32 %v2697, 7
        %v2699 = vsub.s32 0, %v2698
        %v2700 = vrot.slane %v2696, %v2699
        %v2701 = vlaneseq
        %v2702 = vshrl.u32 %v2701, 7
        %v2703 = vsub.s32 1, %v2702
        %v2704 = vrot.slane %v2696, %v2703
        %vm2705 = vcmp.eq.s32.totalorder %v2700, 1
        %vm2706 = vcmp.eq.s32.totalorder %v2704, 1
        %v2707 = vsel %vm2705, %v2693, 0.0
        %v2708 = vsel %vm2706, %v2694, 0.0
        %2710 = vset.pattern.permute.xlu0 0
        %2711 = vperm.xlu0 %2710, %v2687
        %v2712 = vpop.permute.xlu0 %2711
        %v2714 = vmul.f32 %v2712, %v2707
        %v2715 = vmul.f32 %v2712, %v2708
        %v2716 = vadd.f32 %v2684, %v2714
        %v2717 = vadd.f32 %v2685, %v2715
        %s2718 = scalar_lea.vmem %s6, 4
        %v2719 = vld [vmem:[%s2718] sm:$0x3]
        %v2720 = vpack.c.bf16 %v2719, %v2719
        %v2721 = vpack.c.bf16 %v2716, %v2716
        %v2722 = vpack.c.bf16 %v2717, %v2717
        %v2723 = vrot.slane %v497, 4
        %v2724 = vrot.slane %v498, 4
        %v2728 = vsel %vm1141, %v2720, 0
        %v2731 = vsel %vm1145, %v2721, 0
        %v2734 = vsel %vm1145, %v2722, 0
        %2736 = vmatprep.subr.bf16.mxu0 %v2734
        %2737 = vmatpush1.bf16.msra.mxu0 %v2731
        %2738 = vmatprep.subr.bf16.mxu0 0
        %2739 = vmatpush1.bf16.msra.mxu0 0
        %2740 = vmatprep.subr.bf16.mxu0 0
        %2741 = vmatpush1.bf16.msra.mxu0 0
        %2742 = vmatprep.subr.bf16.mxu0 0
        %2743 = vmatpush1.bf16.msra.mxu0 0
        %2744 = vmatprep.subr.bf16.mxu0 0
        %2745 = vmatpush1.bf16.msra.mxu0 0
        %2746 = vmatprep.subr.bf16.mxu0 0
        %2747 = vmatpush1.bf16.msra.mxu0 0
        %2748 = vmatprep.subr.bf16.mxu0 0
        %2749 = vmatpush1.bf16.msra.mxu0 0
        %2750 = vmatprep.subr.bf16.mxu0 0
        %2751 = vmatpush1.bf16.msra.mxu0 0
        %2752 = vmatprep.subr.bf16.mxu0 0
        %2753 = vmatpush1.bf16.msra.mxu0 0
        %2754 = vmatprep.subr.bf16.mxu0 0
        %2755 = vmatpush1.bf16.msra.mxu0 0
        %2756 = vmatprep.subr.bf16.mxu0 0
        %2757 = vmatpush1.bf16.msra.mxu0 0
        %2758 = vmatprep.subr.bf16.mxu0 0
        %2759 = vmatpush1.bf16.msra.mxu0 0
        %2760 = vmatprep.subr.bf16.mxu0 0
        %2761 = vmatpush1.bf16.msra.mxu0 0
        %2762 = vmatprep.subr.bf16.mxu0 0
        %2763 = vmatpush1.bf16.msra.mxu0 0
        %2764 = vmatprep.subr.bf16.mxu0 0
        %2765 = vmatpush1.bf16.msra.mxu0 0
        %2766 = vmatprep.subr.bf16.mxu0 0
        %2767 = vmatpush1.bf16.msra.mxu0 0
        %2768 = vmatprep.mubr.bf16.mxu0 0
        %2769 = vmatmul.mubr.bf16.gmra.mrb[0].mxu0 %v2728
        %v2770 = vpop.f32.mrb[0].mxu0
        %v2771 = vadd.f32 %v2723, %v2770
        %v2772 = vpop.f32.mrb[0].mxu0
        %v2773 = vadd.f32 %v2724, %v2772
        %v2774 = vpop.f32.mrb[0].mxu0
        %v2775 = vpop.f32.mrb[0].mxu0
        %2776 = vdwg.mxu0
        %s2777 = scalar_lea.vmem %s12, 4
        %v2778 = vld [vmem:[%s2777] sm:$0x3]
        %2780 = vset.pattern.permute.xlu0 0
        %2781 = vperm.xlu0 %2780, %v2778
        %v2782 = vpop.permute.xlu0 %2781
        %v2784 = vmul.f32 %v2771, %v2782
        %v2785 = vmul.f32 %v2773, %v2782
        %s2786 = scalar_lea.vmem %s13, 4
        %v2787 = vld [vmem:[%s2786] sm:$0x3]
        %2789 = vset.pattern.permute.xlu0 0
        %2790 = vperm.xlu0 %2789, %v2787
        %v2791 = vpop.permute.xlu0 %2790
        %v2793 = vadd.f32 %v2784, %v2791
        %v2794 = vadd.f32 %v2785, %v2791
        %vm2795 = vcmp.gt.f32.partialorder %v2793, 0.0
        %vm2796 = vcmp.gt.f32.partialorder %v2794, 0.0
        %s2797 = scalar_lea.vmem %s14, 4
        %v2798 = vld [vmem:[%s2797] sm:$0x3]
        %2800 = vset.pattern.permute.xlu0 0
        %2801 = vperm.xlu0 %2800, %v2798
        %v2802 = vpop.permute.xlu0 %2801
        %v2804 = vmul.f32 %v2802, %v2793
        %v2805 = vmul.f32 %v2802, %v2794
        %v2806 = vsel %vm2795, %v2793, %v2804
        %v2807 = vsel %vm2796, %v2794, %v2805
        %v2810 = vrot.slane %v2806, 4
        %v2811 = vrot.slane %v2807, 4
        %2814 = vst [vmem:[%s487] sm:$0x30] %v2810
        %2815 = vst [vmem:[%s487 + $0x8] sm:$0x30] %v2811
        %s2816 = scalar_lea.vmem %s3, 102
        %v2817 = vld [vmem:[%s2816] sm:$0x3]
        %vm2818 = vcmp.ge.s32.totalorder %v494, 8
        %v2819 = vsel %vm2818, 1, 0
        %v2820 = vlaneseq
        %v2821 = vshrl.u32 %v2820, 7
        %v2822 = vsub.s32 0, %v2821
        %v2823 = vrot.slane %v2819, %v2822
        %v2824 = vlaneseq
        %v2825 = vshrl.u32 %v2824, 7
        %v2826 = vsub.s32 1, %v2825
        %v2827 = vrot.slane %v2819, %v2826
        %vm2828 = vcmp.eq.s32.totalorder %v2823, 1
        %vm2829 = vcmp.eq.s32.totalorder %v2827, 1
        %v2830 = vsel %vm2828, %v551, 0.0
        %v2831 = vsel %vm2829, %v549, 0.0
        %2833 = vset.pattern.permute.xlu0 0
        %2834 = vperm.xlu0 %2833, %v2817
        %v2835 = vpop.permute.xlu0 %2834
        %v2837 = vmul.f32 %v2835, %v2830
        %v2838 = vmul.f32 %v2835, %v2831
        %s2839 = scalar_lea.vmem %s3, 104
        %v2840 = vld [vmem:[%s2839] sm:$0x3]
        %v2841 = vsel %vm2504, %v637, 0.0
        %v2842 = vsel %vm2505, %v636, 0.0
        %2844 = vset.pattern.permute.xlu0 0
        %2845 = vperm.xlu0 %2844, %v2840
        %v2846 = vpop.permute.xlu0 %2845
        %v2848 = vmul.f32 %v2846, %v2841
        %v2849 = vmul.f32 %v2846, %v2842
        %v2850 = vadd.f32 %v2837, %v2848
        %v2851 = vadd.f32 %v2838, %v2849
        %s2852 = scalar_lea.vmem %s3, 106
        %v2853 = vld [vmem:[%s2852] sm:$0x3]
        %2855 = vset.pattern.permute.xlu0 0
        %2856 = vperm.xlu0 %2855, %v2853
        %v2857 = vpop.permute.xlu0 %2856
        %v2859 = vmul.f32 %v2857, %v1984
        %v2860 = vmul.f32 %v2857, %v1985
        %v2861 = vadd.f32 %v2850, %v2859
        %v2862 = vadd.f32 %v2851, %v2860
        %s2863 = scalar_lea.vmem %s3, 108
        %v2864 = vld [vmem:[%s2863] sm:$0x3]
        %2866 = vset.pattern.permute.xlu0 0
        %2867 = vperm.xlu0 %2866, %v2864
        %v2868 = vpop.permute.xlu0 %2867
        %v2870 = vmul.f32 %v2868, %v1995
        %v2871 = vmul.f32 %v2868, %v1996
        %v2872 = vadd.f32 %v2861, %v2870
        %v2873 = vadd.f32 %v2862, %v2871
        %s2874 = scalar_lea.vmem %s3, 110
        %v2875 = vld [vmem:[%s2874] sm:$0x3]
        %2877 = vset.pattern.permute.xlu0 0
        %2878 = vperm.xlu0 %2877, %v2875
        %v2879 = vpop.permute.xlu0 %2878
        %v2881 = vmul.f32 %v2879, %v1244
        %v2882 = vmul.f32 %v2879, %v1245
        %v2883 = vadd.f32 %v2872, %v2881
        %v2884 = vadd.f32 %v2873, %v2882
        %s2885 = scalar_lea.vmem %s3, 112
        %v2886 = vld [vmem:[%s2885] sm:$0x3]
        %2888 = vset.pattern.permute.xlu0 0
        %2889 = vperm.xlu0 %2888, %v2886
        %v2890 = vpop.permute.xlu0 %2889
        %v2892 = vmul.f32 %v2890, %v1261
        %v2893 = vmul.f32 %v2890, %v1262
        %v2894 = vadd.f32 %v2883, %v2892
        %v2895 = vadd.f32 %v2884, %v2893
        %s2896 = scalar_lea.vmem %s3, 114
        %v2897 = vld [vmem:[%s2896] sm:$0x3]
        %2899 = vset.pattern.permute.xlu0 0
        %2900 = vperm.xlu0 %2899, %v2897
        %v2901 = vpop.permute.xlu0 %2900
        %v2903 = vmul.f32 %v2901, %v577
        %v2904 = vmul.f32 %v2901, %v578
        %v2905 = vadd.f32 %v2894, %v2903
        %v2906 = vadd.f32 %v2895, %v2904
        %s2907 = scalar_lea.vmem %s3, 116
        %v2908 = vld [vmem:[%s2907] sm:$0x3]
        %2910 = vset.pattern.permute.xlu0 0
        %2911 = vperm.xlu0 %2910, %v2908
        %v2912 = vpop.permute.xlu0 %2911
        %v2914 = vmul.f32 %v2912, %v607
        %v2915 = vmul.f32 %v2912, %v608
        %v2916 = vadd.f32 %v2905, %v2914
        %v2917 = vadd.f32 %v2906, %v2915
        %s2918 = scalar_lea.vmem %s3, 118
        %v2919 = vld [vmem:[%s2918] sm:$0x3]
        %2921 = vset.pattern.permute.xlu0 0
        %2922 = vperm.xlu0 %2921, %v2919
        %v2923 = vpop.permute.xlu0 %2922
        %v2925 = vmul.f32 %v2923, %v549
        %v2926 = vmul.f32 %v2923, %v551
        %v2927 = vadd.f32 %v2916, %v2925
        %v2928 = vadd.f32 %v2917, %v2926
        %s2929 = scalar_lea.vmem %s3, 120
        %v2930 = vld [vmem:[%s2929] sm:$0x3]
        %2932 = vset.pattern.permute.xlu0 0
        %2933 = vperm.xlu0 %2932, %v2930
        %v2934 = vpop.permute.xlu0 %2933
        %v2936 = vmul.f32 %v2934, %v650
        %v2937 = vmul.f32 %v2934, %v651
        %v2938 = vadd.f32 %v2927, %v2936
        %v2939 = vadd.f32 %v2928, %v2937
        %s2940 = scalar_lea.vmem %s3, 122
        %v2941 = vld [vmem:[%s2940] sm:$0x3]
        %2943 = vset.pattern.permute.xlu0 0
        %2944 = vperm.xlu0 %2943, %v2941
        %v2945 = vpop.permute.xlu0 %2944
        %v2947 = vmul.f32 %v2945, %v682
        %v2948 = vmul.f32 %v2945, %v683
        %v2949 = vadd.f32 %v2938, %v2947
        %v2950 = vadd.f32 %v2939, %v2948
        %s2951 = scalar_lea.vmem %s3, 124
        %v2952 = vld [vmem:[%s2951] sm:$0x3]
        %2954 = vset.pattern.permute.xlu0 0
        %2955 = vperm.xlu0 %2954, %v2952
        %v2956 = vpop.permute.xlu0 %2955
        %v2958 = vmul.f32 %v2956, %v1335
        %v2959 = vmul.f32 %v2956, %v1336
        %v2960 = vadd.f32 %v2949, %v2958
        %v2961 = vadd.f32 %v2950, %v2959
        %s2962 = scalar_lea.vmem %s3, 126
        %v2963 = vld [vmem:[%s2962] sm:$0x3]
        %2965 = vset.pattern.permute.xlu0 0
        %2966 = vperm.xlu0 %2965, %v2963
        %v2967 = vpop.permute.xlu0 %2966
        %v2969 = vmul.f32 %v2967, %v1360
        %v2970 = vmul.f32 %v2967, %v1361
        %v2971 = vadd.f32 %v2960, %v2969
        %v2972 = vadd.f32 %v2961, %v2970
        %s2973 = scalar_lea.vmem %s3, 128
        %v2974 = vld [vmem:[%s2973] sm:$0x3]
        %2976 = vset.pattern.permute.xlu0 0
        %2977 = vperm.xlu0 %2976, %v2974
        %v2978 = vpop.permute.xlu0 %2977
        %v2980 = vmul.f32 %v2978, %v2107
        %v2981 = vmul.f32 %v2978, %v2108
        %v2982 = vadd.f32 %v2971, %v2980
        %v2983 = vadd.f32 %v2972, %v2981
        %s2984 = scalar_lea.vmem %s3, 130
        %v2985 = vld [vmem:[%s2984] sm:$0x3]
        %2987 = vset.pattern.permute.xlu0 0
        %2988 = vperm.xlu0 %2987, %v2985
        %v2989 = vpop.permute.xlu0 %2988
        %v2991 = vmul.f32 %v2989, %v2132
        %v2992 = vmul.f32 %v2989, %v2133
        %v2993 = vadd.f32 %v2982, %v2991
        %v2994 = vadd.f32 %v2983, %v2992
        %s2995 = scalar_lea.vmem %s3, 132
        %v2996 = vld [vmem:[%s2995] sm:$0x3]
        %v2997 = vsel %vm2673, %v593, 0.0
        %v2998 = vsel %vm2674, %v594, 0.0
        %3000 = vset.pattern.permute.xlu0 0
        %3001 = vperm.xlu0 %3000, %v2996
        %v3002 = vpop.permute.xlu0 %3001
        %v3004 = vmul.f32 %v3002, %v2997
        %v3005 = vmul.f32 %v3002, %v2998
        %v3006 = vadd.f32 %v2993, %v3004
        %v3007 = vadd.f32 %v2994, %v3005
        %s3008 = scalar_lea.vmem %s3, 134
        %v3009 = vld [vmem:[%s3008] sm:$0x3]
        %vm3010 = vcmp.lt.s32.totalorder %v494, 8
        %v3011 = vsel %vm3010, 1, 0
        %v3012 = vlaneseq
        %v3013 = vshrl.u32 %v3012, 7
        %v3014 = vsub.s32 0, %v3013
        %v3015 = vrot.slane %v3011, %v3014
        %v3016 = vlaneseq
        %v3017 = vshrl.u32 %v3016, 7
        %v3018 = vsub.s32 1, %v3017
        %v3019 = vrot.slane %v3011, %v3018
        %vm3020 = vcmp.eq.s32.totalorder %v3015, 1
        %vm3021 = vcmp.eq.s32.totalorder %v3019, 1
        %v3022 = vsel %vm3020, %v551, 0.0
        %v3023 = vsel %vm3021, %v549, 0.0
        %3025 = vset.pattern.permute.xlu0 0
        %3026 = vperm.xlu0 %3025, %v3009
        %v3027 = vpop.permute.xlu0 %3026
        %v3029 = vmul.f32 %v3027, %v3022
        %v3030 = vmul.f32 %v3027, %v3023
        %v3031 = vadd.f32 %v3006, %v3029
        %v3032 = vadd.f32 %v3007, %v3030
        %s3033 = scalar_lea.vmem %s7, 6
        %v3034 = vld [vmem:[%s3033] sm:$0x3]
        %3036 = vset.pattern.permute.xlu0 0
        %3037 = vperm.xlu0 %3036, %v3034
        %v3038 = vpop.permute.xlu0 %3037
        %v3040 = vmul.f32 %v3031, %v3038
        %v3041 = vmul.f32 %v3032, %v3038
        %s3042 = scalar_lea.vmem %s8, 6
        %v3043 = vld [vmem:[%s3042] sm:$0x3]
        %3045 = vset.pattern.permute.xlu0 0
        %3046 = vperm.xlu0 %3045, %v3043
        %v3047 = vpop.permute.xlu0 %3046
        %v3049 = vadd.f32 %v3040, %v3047
        %v3050 = vadd.f32 %v3041, %v3047
        %vm3051 = vcmp.gt.f32.partialorder %v3049, 0.0
        %vm3052 = vcmp.gt.f32.partialorder %v3050, 0.0
        %s3053 = scalar_lea.vmem %s9, 6
        %v3054 = vld [vmem:[%s3053] sm:$0x3]
        %3056 = vset.pattern.permute.xlu0 0
        %3057 = vperm.xlu0 %3056, %v3054
        %v3058 = vpop.permute.xlu0 %3057
        %v3060 = vmul.f32 %v3058, %v3049
        %v3061 = vmul.f32 %v3058, %v3050
        %v3062 = vsel %vm3051, %v3049, %v3060
        %v3063 = vsel %vm3052, %v3050, %v3061
        %s3064 = scalar_lea.vmem %s4, 102
        %v3065 = vld [vmem:[%s3064] sm:$0x3]
        %3066 = vrot.lane.b32.xlu0 %v3062, 8
        %v3067 = vpop.permute.xlu0 %3066
        %3068 = vrot.lane.b32.xlu0 %v3063, 8
        %v3069 = vpop.permute.xlu0 %3068
        %vm3070 = vcmp.lt.s32.totalorder %v561, 8
        %v3071 = vsel %vm3070, %v3067, %v3069
        %v3072 = vsel %vm3070, %v3069, %v3067
        %vm3073 = vcmp.ge.s32.totalorder %v496, 8
        %v3074 = vsel %vm3073, 1, 0
        %v3075 = vlaneseq
        %v3076 = vshrl.u32 %v3075, 7
        %v3077 = vsub.s32 0, %v3076
        %v3078 = vrot.slane %v3074, %v3077
        %v3079 = vlaneseq
        %v3080 = vshrl.u32 %v3079, 7
        %v3081 = vsub.s32 1, %v3080
        %v3082 = vrot.slane %v3074, %v3081
        %vm3083 = vcmp.eq.s32.totalorder %v3078, 1
        %vm3084 = vcmp.eq.s32.totalorder %v3082, 1
        %v3085 = vsel %vm3083, %v3072, 0.0
        %v3086 = vsel %vm3084, %v3071, 0.0
        %3088 = vset.pattern.permute.xlu0 0
        %3089 = vperm.xlu0 %3088, %v3065
        %v3090 = vpop.permute.xlu0 %3089
        %v3092 = vmul.f32 %v3090, %v3085
        %v3093 = vmul.f32 %v3090, %v3086
        %s3094 = scalar_lea.vmem %s4, 104
        %v3095 = vld [vmem:[%s3094] sm:$0x3]
        %3096 = vrot.lane.b32.xlu0 %v3062, 7
        %v3097 = vpop.permute.xlu0 %3096
        %3098 = vrot.lane.b32.xlu0 %v3063, 7
        %v3099 = vpop.permute.xlu0 %3098
        %v3100 = vsel %vm2556, %v3097, %v3099
        %v3101 = vsel %vm2556, %v3099, %v3097
        %v3102 = vsel %vm2568, %v3101, 0.0
        %v3103 = vsel %vm2569, %v3100, 0.0
        %3105 = vset.pattern.permute.xlu0 0
        %3106 = vperm.xlu0 %3105, %v3095
        %v3107 = vpop.permute.xlu0 %3106
        %v3109 = vmul.f32 %v3107, %v3102
        %v3110 = vmul.f32 %v3107, %v3103
        %v3111 = vadd.f32 %v3092, %v3109
        %v3112 = vadd.f32 %v3093, %v3110
        %s3113 = scalar_lea.vmem %s4, 106
        %v3114 = vld [vmem:[%s3113] sm:$0x3]
        %3115 = vrot.lane.b32.xlu0 %v3062, 6
        %v3116 = vpop.permute.xlu0 %3115
        %3117 = vrot.lane.b32.xlu0 %v3063, 6
        %v3118 = vpop.permute.xlu0 %3117
        %v3119 = vsel %vm2180, %v3116, %v3118
        %v3120 = vsel %vm2180, %v3118, %v3116
        %v3121 = vsel %vm2193, %v3120, 0.0
        %v3122 = vsel %vm2194, %v3119, 0.0
        %3124 = vset.pattern.permute.xlu0 0
        %3125 = vperm.xlu0 %3124, %v3114
        %v3126 = vpop.permute.xlu0 %3125
        %v3128 = vmul.f32 %v3126, %v3121
        %v3129 = vmul.f32 %v3126, %v3122
        %v3130 = vadd.f32 %v3111, %v3128
        %v3131 = vadd.f32 %v3112, %v3129
        %s3132 = scalar_lea.vmem %s4, 108
        %v3133 = vld [vmem:[%s3132] sm:$0x3]
        %3134 = vrot.lane.b32.xlu0 %v3062, 5
        %v3135 = vpop.permute.xlu0 %3134
        %3136 = vrot.lane.b32.xlu0 %v3063, 5
        %v3137 = vpop.permute.xlu0 %3136
        %v3138 = vsel %vm1708, %v3135, %v3137
        %v3139 = vsel %vm1708, %v3137, %v3135
        %v3140 = vsel %vm1720, %v3139, 0.0
        %v3141 = vsel %vm1721, %v3138, 0.0
        %3143 = vset.pattern.permute.xlu0 0
        %3144 = vperm.xlu0 %3143, %v3133
        %v3145 = vpop.permute.xlu0 %3144
        %v3147 = vmul.f32 %v3145, %v3140
        %v3148 = vmul.f32 %v3145, %v3141
        %v3149 = vadd.f32 %v3130, %v3147
        %v3150 = vadd.f32 %v3131, %v3148
        %s3151 = scalar_lea.vmem %s4, 110
        %v3152 = vld [vmem:[%s3151] sm:$0x3]
        %3153 = vrot.lane.b32.xlu0 %v3062, 4
        %v3154 = vpop.permute.xlu0 %3153
        %3155 = vrot.lane.b32.xlu0 %v3063, 4
        %v3156 = vpop.permute.xlu0 %3155
        %v3157 = vsel %vm1408, %v3154, %v3156
        %v3158 = vsel %vm1408, %v3156, %v3154
        %v3159 = vsel %vm1421, %v3158, 0.0
        %v3160 = vsel %vm1422, %v3157, 0.0
        %3162 = vset.pattern.permute.xlu0 0
        %3163 = vperm.xlu0 %3162, %v3152
        %v3164 = vpop.permute.xlu0 %3163
        %v3166 = vmul.f32 %v3164, %v3159
        %v3167 = vmul.f32 %v3164, %v3160
        %v3168 = vadd.f32 %v3149, %v3166
        %v3169 = vadd.f32 %v3150, %v3167
        %s3170 = scalar_lea.vmem %s4, 112
        %v3171 = vld [vmem:[%s3170] sm:$0x3]
        %3172 = vrot.lane.b32.xlu0 %v3062, 3
        %v3173 = vpop.permute.xlu0 %3172
        %3174 = vrot.lane.b32.xlu0 %v3063, 3
        %v3175 = vpop.permute.xlu0 %3174
        %v3176 = vsel %vm974, %v3173, %v3175
        %v3177 = vsel %vm974, %v3175, %v3173
        %v3178 = vsel %vm986, %v3177, 0.0
        %v3179 = vsel %vm987, %v3176, 0.0
        %3181 = vset.pattern.permute.xlu0 0
        %3182 = vperm.xlu0 %3181, %v3171
        %v3183 = vpop.permute.xlu0 %3182
        %v3185 = vmul.f32 %v3183, %v3178
        %v3186 = vmul.f32 %v3183, %v3179
        %v3187 = vadd.f32 %v3168, %v3185
        %v3188 = vadd.f32 %v3169, %v3186
        %s3189 = scalar_lea.vmem %s4, 114
        %v3190 = vld [vmem:[%s3189] sm:$0x3]
        %3191 = vrot.lane.b32.xlu0 %v3062, 2
        %v3192 = vpop.permute.xlu0 %3191
        %3193 = vrot.lane.b32.xlu0 %v3063, 2
        %v3194 = vpop.permute.xlu0 %3193
        %v3195 = vsel %vm726, %v3192, %v3194
        %v3196 = vsel %vm726, %v3194, %v3192
        %v3197 = vsel %vm739, %v3196, 0.0
        %v3198 = vsel %vm740, %v3195, 0.0
        %3200 = vset.pattern.permute.xlu0 0
        %3201 = vperm.xlu0 %3200, %v3190
        %v3202 = vpop.permute.xlu0 %3201
        %v3204 = vmul.f32 %v3202, %v3197
        %v3205 = vmul.f32 %v3202, %v3198
        %v3206 = vadd.f32 %v3187, %v3204
        %v3207 = vadd.f32 %v3188, %v3205
        %s3208 = scalar_lea.vmem %s4, 116
        %v3209 = vld [vmem:[%s3208] sm:$0x3]
        %3210 = vrot.lane.b32.xlu0 %v3062, 1
        %v3211 = vpop.permute.xlu0 %3210
        %3212 = vrot.lane.b32.xlu0 %v3063, 1
        %v3213 = vpop.permute.xlu0 %3212
        %v3214 = vsel %vm756, %v3211, %v3213
        %v3215 = vsel %vm756, %v3213, %v3211
        %v3216 = vsel %vm769, %v3215, 0.0
        %v3217 = vsel %vm770, %v3214, 0.0
        %3219 = vset.pattern.permute.xlu0 0
        %3220 = vperm.xlu0 %3219, %v3209
        %v3221 = vpop.permute.xlu0 %3220
        %v3223 = vmul.f32 %v3221, %v3216
        %v3224 = vmul.f32 %v3221, %v3217
        %v3225 = vadd.f32 %v3206, %v3223
        %v3226 = vadd.f32 %v3207, %v3224
        %s3227 = scalar_lea.vmem %s4, 118
        %v3228 = vld [vmem:[%s3227] sm:$0x3]
        %3230 = vset.pattern.permute.xlu0 0
        %3231 = vperm.xlu0 %3230, %v3228
        %v3232 = vpop.permute.xlu0 %3231
        %v3234 = vmul.f32 %v3232, %v3062
        %v3235 = vmul.f32 %v3232, %v3063
        %v3236 = vadd.f32 %v3225, %v3234
        %v3237 = vadd.f32 %v3226, %v3235
        %s3238 = scalar_lea.vmem %s4, 120
        %v3239 = vld [vmem:[%s3238] sm:$0x3]
        %3240 = vrot.lane.b32.xlu0 %v3062, 127
        %v3241 = vpop.permute.xlu0 %3240
        %3242 = vrot.lane.b32.xlu0 %v3063, 127
        %v3243 = vpop.permute.xlu0 %3242
        %v3244 = vsel %vm799, %v3241, %v3243
        %v3245 = vsel %vm799, %v3243, %v3241
        %v3246 = vsel %vm812, %v3244, 0.0
        %v3247 = vsel %vm813, %v3245, 0.0
        %3249 = vset.pattern.permute.xlu0 0
        %3250 = vperm.xlu0 %3249, %v3239
        %v3251 = vpop.permute.xlu0 %3250
        %v3253 = vmul.f32 %v3251, %v3246
        %v3254 = vmul.f32 %v3251, %v3247
        %v3255 = vadd.f32 %v3236, %v3253
        %v3256 = vadd.f32 %v3237, %v3254
        %s3257 = scalar_lea.vmem %s4, 122
        %v3258 = vld [vmem:[%s3257] sm:$0x3]
        %3259 = vrot.lane.b32.xlu0 %v3062, 126
        %v3260 = vpop.permute.xlu0 %3259
        %3261 = vrot.lane.b32.xlu0 %v3063, 126
        %v3262 = vpop.permute.xlu0 %3261
        %v3263 = vsel %vm831, %v3260, %v3262
        %v3264 = vsel %vm831, %v3262, %v3260
        %v3265 = vsel %vm844, %v3263, 0.0
        %v3266 = vsel %vm845, %v3264, 0.0
        %3268 = vset.pattern.permute.xlu0 0
        %3269 = vperm.xlu0 %3268, %v3258
        %v3270 = vpop.permute.xlu0 %3269
        %v3272 = vmul.f32 %v3270, %v3265
        %v3273 = vmul.f32 %v3270, %v3266
        %v3274 = vadd.f32 %v3255, %v3272
        %v3275 = vadd.f32 %v3256, %v3273
        %s3276 = scalar_lea.vmem %s4, 124
        %v3277 = vld [vmem:[%s3276] sm:$0x3]
        %3278 = vrot.lane.b32.xlu0 %v3062, 125
        %v3279 = vpop.permute.xlu0 %3278
        %3280 = vrot.lane.b32.xlu0 %v3063, 125
        %v3281 = vpop.permute.xlu0 %3280
        %v3282 = vsel %vm1016, %v3279, %v3281
        %v3283 = vsel %vm1016, %v3281, %v3279
        %v3284 = vsel %vm1028, %v3282, 0.0
        %v3285 = vsel %vm1029, %v3283, 0.0
        %3287 = vset.pattern.permute.xlu0 0
        %3288 = vperm.xlu0 %3287, %v3277
        %v3289 = vpop.permute.xlu0 %3288
        %v3291 = vmul.f32 %v3289, %v3284
        %v3292 = vmul.f32 %v3289, %v3285
        %v3293 = vadd.f32 %v3274, %v3291
        %v3294 = vadd.f32 %v3275, %v3292
        %s3295 = scalar_lea.vmem %s4, 126
        %v3296 = vld [vmem:[%s3295] sm:$0x3]
        %3297 = vrot.lane.b32.xlu0 %v3062, 124
        %v3298 = vpop.permute.xlu0 %3297
        %3299 = vrot.lane.b32.xlu0 %v3063, 124
        %v3300 = vpop.permute.xlu0 %3299
        %v3301 = vsel %vm1563, %v3298, %v3300
        %v3302 = vsel %vm1563, %v3300, %v3298
        %v3303 = vsel %vm1576, %v3301, 0.0
        %v3304 = vsel %vm1577, %v3302, 0.0
        %3306 = vset.pattern.permute.xlu0 0
        %3307 = vperm.xlu0 %3306, %v3296
        %v3308 = vpop.permute.xlu0 %3307
        %v3310 = vmul.f32 %v3308, %v3303
        %v3311 = vmul.f32 %v3308, %v3304
        %v3312 = vadd.f32 %v3293, %v3310
        %v3313 = vadd.f32 %v3294, %v3311
        %s3314 = scalar_lea.vmem %s4, 128
        %v3315 = vld [vmem:[%s3314] sm:$0x3]
        %3316 = vrot.lane.b32.xlu0 %v3062, 123
        %v3317 = vpop.permute.xlu0 %3316
        %3318 = vrot.lane.b32.xlu0 %v3063, 123
        %v3319 = vpop.permute.xlu0 %3318
        %v3320 = vsel %vm1750, %v3317, %v3319
        %v3321 = vsel %vm1750, %v3319, %v3317
        %v3322 = vsel %vm1762, %v3320, 0.0
        %v3323 = vsel %vm1763, %v3321, 0.0
        %3325 = vset.pattern.permute.xlu0 0
        %3326 = vperm.xlu0 %3325, %v3315
        %v3327 = vpop.permute.xlu0 %3326
        %v3329 = vmul.f32 %v3327, %v3322
        %v3330 = vmul.f32 %v3327, %v3323
        %v3331 = vadd.f32 %v3312, %v3329
        %v3332 = vadd.f32 %v3313, %v3330
        %s3333 = scalar_lea.vmem %s4, 130
        %v3334 = vld [vmem:[%s3333] sm:$0x3]
        %3335 = vrot.lane.b32.xlu0 %v3062, 122
        %v3336 = vpop.permute.xlu0 %3335
        %3337 = vrot.lane.b32.xlu0 %v3063, 122
        %v3338 = vpop.permute.xlu0 %3337
        %v3339 = vsel %vm2411, %v3336, %v3338
        %v3340 = vsel %vm2411, %v3338, %v3336
        %v3341 = vsel %vm2424, %v3339, 0.0
        %v3342 = vsel %vm2425, %v3340, 0.0
        %3344 = vset.pattern.permute.xlu0 0
        %3345 = vperm.xlu0 %3344, %v3334
        %v3346 = vpop.permute.xlu0 %3345
        %v3348 = vmul.f32 %v3346, %v3341
        %v3349 = vmul.f32 %v3346, %v3342
        %v3350 = vadd.f32 %v3331, %v3348
        %v3351 = vadd.f32 %v3332, %v3349
        %s3352 = scalar_lea.vmem %s4, 132
        %v3353 = vld [vmem:[%s3352] sm:$0x3]
        %3354 = vrot.lane.b32.xlu0 %v3062, 121
        %v3355 = vpop.permute.xlu0 %3354
        %3356 = vrot.lane.b32.xlu0 %v3063, 121
        %v3357 = vpop.permute.xlu0 %3356
        %v3358 = vsel %vm2598, %v3355, %v3357
        %v3359 = vsel %vm2598, %v3357, %v3355
        %v3360 = vsel %vm2610, %v3358, 0.0
        %v3361 = vsel %vm2611, %v3359, 0.0
        %3363 = vset.pattern.permute.xlu0 0
        %3364 = vperm.xlu0 %3363, %v3353
        %v3365 = vpop.permute.xlu0 %3364
        %v3367 = vmul.f32 %v3365, %v3360
        %v3368 = vmul.f32 %v3365, %v3361
        %v3369 = vadd.f32 %v3350, %v3367
        %v3370 = vadd.f32 %v3351, %v3368
        %s3371 = scalar_lea.vmem %s4, 134
        %v3372 = vld [vmem:[%s3371] sm:$0x3]
        %3373 = vrot.lane.b32.xlu0 %v3062, 120
        %v3374 = vpop.permute.xlu0 %3373
        %3375 = vrot.lane.b32.xlu0 %v3063, 120
        %v3376 = vpop.permute.xlu0 %3375
        %vm3377 = vcmp.lt.s32.totalorder %v561, 120
        %v3378 = vsel %vm3377, %v3374, %v3376
        %v3379 = vsel %vm3377, %v3376, %v3374
        %vm3380 = vcmp.lt.s32.totalorder %v496, 8
        %v3381 = vsel %vm3380, 1, 0
        %v3382 = vlaneseq
        %v3383 = vshrl.u32 %v3382, 7
        %v3384 = vsub.s32 0, %v3383
        %v3385 = vrot.slane %v3381, %v3384
        %v3386 = vlaneseq
        %v3387 = vshrl.u32 %v3386, 7
        %v3388 = vsub.s32 1, %v3387
        %v3389 = vrot.slane %v3381, %v3388
        %vm3390 = vcmp.eq.s32.totalorder %v3385, 1
        %vm3391 = vcmp.eq.s32.totalorder %v3389, 1
        %v3392 = vsel %vm3390, %v3378, 0.0
        %v3393 = vsel %vm3391, %v3379, 0.0
        %3395 = vset.pattern.permute.xlu0 0
        %3396 = vperm.xlu0 %3395, %v3372
        %v3397 = vpop.permute.xlu0 %3396
        %v3399 = vmul.f32 %v3397, %v3392
        %v3400 = vmul.f32 %v3397, %v3393
        %v3401 = vadd.f32 %v3369, %v3399
        %v3402 = vadd.f32 %v3370, %v3400
        %s3403 = scalar_lea.vmem %s10, 6
        %v3404 = vld [vmem:[%s3403] sm:$0x3]
        %3406 = vset.pattern.permute.xlu0 0
        %3407 = vperm.xlu0 %3406, %v3404
        %v3408 = vpop.permute.xlu0 %3407
        %v3410 = vmul.f32 %v3401, %v3408
        %v3411 = vmul.f32 %v3402, %v3408
        %s3412 = scalar_lea.vmem %s11, 6
        %v3413 = vld [vmem:[%s3412] sm:$0x3]
        %3415 = vset.pattern.permute.xlu0 0
        %3416 = vperm.xlu0 %3415, %v3413
        %v3417 = vpop.permute.xlu0 %3416
        %v3419 = vadd.f32 %v3410, %v3417
        %v3420 = vadd.f32 %v3411, %v3417
        %s3421 = scalar_lea.vmem %s5, 54
        %v3422 = vld [vmem:[%s3421] sm:$0x3]
        %3423 = vrot.lane.b32.xlu0 %v3419, 25
        %v3424 = vpop.permute.xlu0 %3423
        %3425 = vrot.lane.b32.xlu0 %v3420, 25
        %v3426 = vpop.permute.xlu0 %3425
        %vm3427 = vcmp.lt.s32.totalorder %v561, 25
        %v3428 = vsel %vm3427, %v3424, %v3426
        %v3429 = vsel %vm3427, %v3426, %v3424
        %vm3430 = vcmp.ge.s32.totalorder %v494, 9
        %vm3431 = vcmp.ge.s32.totalorder %v496, 9
        %vm3432 = vmand %vm3430, %vm3431
        %v3433 = vsel %vm3432, 1, 0
        %v3434 = vlaneseq
        %v3435 = vshrl.u32 %v3434, 7
        %v3436 = vsub.s32 0, %v3435
        %v3437 = vrot.slane %v3433, %v3436
        %v3438 = vlaneseq
        %v3439 = vshrl.u32 %v3438, 7
        %v3440 = vsub.s32 1, %v3439
        %v3441 = vrot.slane %v3433, %v3440
        %vm3442 = vcmp.eq.s32.totalorder %v3437, 1
        %vm3443 = vcmp.eq.s32.totalorder %v3441, 1
        %v3444 = vsel %vm3442, %v3428, 0.0
        %v3445 = vsel %vm3443, %v3429, 0.0
        %3447 = vset.pattern.permute.xlu0 0
        %3448 = vperm.xlu0 %3447, %v3422
        %v3449 = vpop.permute.xlu0 %3448
        %v3451 = vmul.f32 %v3449, %v3444
        %v3452 = vmul.f32 %v3449, %v3445
        %s3453 = scalar_lea.vmem %s5, 56
        %v3454 = vld [vmem:[%s3453] sm:$0x3]
        %3455 = vrot.lane.b32.xlu0 %v3419, 16
        %v3456 = vpop.permute.xlu0 %3455
        %3457 = vrot.lane.b32.xlu0 %v3420, 16
        %v3458 = vpop.permute.xlu0 %3457
        %v3459 = vsel %vm592, %v3456, %v3458
        %v3460 = vsel %vm592, %v3458, %v3456
        %v3461 = vsel %vm3430, 1, 0
        %v3462 = vlaneseq
        %v3463 = vshrl.u32 %v3462, 7
        %v3464 = vsub.s32 0, %v3463
        %v3465 = vrot.slane %v3461, %v3464
        %v3466 = vlaneseq
        %v3467 = vshrl.u32 %v3466, 7
        %v3468 = vsub.s32 1, %v3467
        %v3469 = vrot.slane %v3461, %v3468
        %vm3470 = vcmp.eq.s32.totalorder %v3465, 1
        %vm3471 = vcmp.eq.s32.totalorder %v3469, 1
        %v3472 = vsel %vm3470, %v3459, 0.0
        %v3473 = vsel %vm3471, %v3460, 0.0
        %3475 = vset.pattern.permute.xlu0 0
        %3476 = vperm.xlu0 %3475, %v3454
        %v3477 = vpop.permute.xlu0 %3476
        %v3479 = vmul.f32 %v3477, %v3472
        %v3480 = vmul.f32 %v3477, %v3473
        %v3481 = vadd.f32 %v3451, %v3479
        %v3482 = vadd.f32 %v3452, %v3480
        %s3483 = scalar_lea.vmem %s5, 58
        %v3484 = vld [vmem:[%s3483] sm:$0x3]
        %3485 = vrot.lane.b32.xlu0 %v3419, 7
        %v3486 = vpop.permute.xlu0 %3485
        %3487 = vrot.lane.b32.xlu0 %v3420, 7
        %v3488 = vpop.permute.xlu0 %3487
        %v3489 = vsel %vm2556, %v3486, %v3488
        %v3490 = vsel %vm2556, %v3488, %v3486
        %vm3491 = vcmp.lt.s32.totalorder %v496, 7
        %vm3492 = vmand %vm3430, %vm3491
        %v3493 = vsel %vm3492, 1, 0
        %v3494 = vlaneseq
        %v3495 = vshrl.u32 %v3494, 7
        %v3496 = vsub.s32 0, %v3495
        %v3497 = vrot.slane %v3493, %v3496
        %v3498 = vlaneseq
        %v3499 = vshrl.u32 %v3498, 7
        %v3500 = vsub.s32 1, %v3499
        %v3501 = vrot.slane %v3493, %v3500
        %vm3502 = vcmp.eq.s32.totalorder %v3497, 1
        %vm3503 = vcmp.eq.s32.totalorder %v3501, 1
        %v3504 = vsel %vm3502, %v3489, 0.0
        %v3505 = vsel %vm3503, %v3490, 0.0
        %3507 = vset.pattern.permute.xlu0 0
        %3508 = vperm.xlu0 %3507, %v3484
        %v3509 = vpop.permute.xlu0 %3508
        %v3511 = vmul.f32 %v3509, %v3504
        %v3512 = vmul.f32 %v3509, %v3505
        %v3513 = vadd.f32 %v3481, %v3511
        %v3514 = vadd.f32 %v3482, %v3512
        %s3515 = scalar_lea.vmem %s5, 60
        %v3516 = vld [vmem:[%s3515] sm:$0x3]
        %3517 = vrot.lane.b32.xlu0 %v3419, 9
        %v3518 = vpop.permute.xlu0 %3517
        %3519 = vrot.lane.b32.xlu0 %v3420, 9
        %v3520 = vpop.permute.xlu0 %3519
        %v3521 = vsel %vm2692, %v3518, %v3520
        %v3522 = vsel %vm2692, %v3520, %v3518
        %v3523 = vsel %vm3431, 1, 0
        %v3524 = vlaneseq
        %v3525 = vshrl.u32 %v3524, 7
        %v3526 = vsub.s32 0, %v3525
        %v3527 = vrot.slane %v3523, %v3526
        %v3528 = vlaneseq
        %v3529 = vshrl.u32 %v3528, 7
        %v3530 = vsub.s32 1, %v3529
        %v3531 = vrot.slane %v3523, %v3530
        %vm3532 = vcmp.eq.s32.totalorder %v3527, 1
        %vm3533 = vcmp.eq.s32.totalorder %v3531, 1
        %v3534 = vsel %vm3532, %v3522, 0.0
        %v3535 = vsel %vm3533, %v3521, 0.0
        %3537 = vset.pattern.permute.xlu0 0
        %3538 = vperm.xlu0 %3537, %v3516
        %v3539 = vpop.permute.xlu0 %3538
        %v3541 = vmul.f32 %v3539, %v3534
        %v3542 = vmul.f32 %v3539, %v3535
        %v3543 = vadd.f32 %v3513, %v3541
        %v3544 = vadd.f32 %v3514, %v3542
        %s3545 = scalar_lea.vmem %s5, 62
        %v3546 = vld [vmem:[%s3545] sm:$0x3]
        %3548 = vset.pattern.permute.xlu0 0
        %3549 = vperm.xlu0 %3548, %v3546
        %v3550 = vpop.permute.xlu0 %3549
        %v3552 = vmul.f32 %v3550, %v3419
        %v3553 = vmul.f32 %v3550, %v3420
        %v3554 = vadd.f32 %v3543, %v3552
        %v3555 = vadd.f32 %v3544, %v3553
        %s3556 = scalar_lea.vmem %s5, 64
        %v3557 = vld [vmem:[%s3556] sm:$0x3]
        %3558 = vrot.lane.b32.xlu0 %v3419, 119
        %v3559 = vpop.permute.xlu0 %3558
        %3560 = vrot.lane.b32.xlu0 %v3420, 119
        %v3561 = vpop.permute.xlu0 %3560
        %v3562 = vsel %vm2461, %v3559, %v3561
        %v3563 = vsel %vm2461, %v3561, %v3559
        %v3564 = vsel %vm3491, 1, 0
        %v3565 = vlaneseq
        %v3566 = vshrl.u32 %v3565, 7
        %v3567 = vsub.s32 0, %v3566
        %v3568 = vrot.slane %v3564, %v3567
        %v3569 = vlaneseq
        %v3570 = vshrl.u32 %v3569, 7
        %v3571 = vsub.s32 1, %v3570
        %v3572 = vrot.slane %v3564, %v3571
        %vm3573 = vcmp.eq.s32.totalorder %v3568, 1
        %vm3574 = vcmp.eq.s32.totalorder %v3572, 1
        %v3575 = vsel %vm3573, %v3562, 0.0
        %v3576 = vsel %vm3574, %v3563, 0.0
        %3578 = vset.pattern.permute.xlu0 0
        %3579 = vperm.xlu0 %3578, %v3557
        %v3580 = vpop.permute.xlu0 %3579
        %v3582 = vmul.f32 %v3580, %v3575
        %v3583 = vmul.f32 %v3580, %v3576
        %v3584 = vadd.f32 %v3554, %v3582
        %v3585 = vadd.f32 %v3555, %v3583
        %s3586 = scalar_lea.vmem %s5, 66
        %v3587 = vld [vmem:[%s3586] sm:$0x3]
        %3588 = vrot.lane.b32.xlu0 %v3419, 121
        %v3589 = vpop.permute.xlu0 %3588
        %3590 = vrot.lane.b32.xlu0 %v3420, 121
        %v3591 = vpop.permute.xlu0 %3590
        %v3592 = vsel %vm2598, %v3589, %v3591
        %v3593 = vsel %vm2598, %v3591, %v3589
        %vm3594 = vcmp.lt.s32.totalorder %v494, 7
        %vm3595 = vmand %vm3594, %vm3431
        %v3596 = vsel %vm3595, 1, 0
        %v3597 = vlaneseq
        %v3598 = vshrl.u32 %v3597, 7
        %v3599 = vsub.s32 0, %v3598
        %v3600 = vrot.slane %v3596, %v3599
        %v3601 = vlaneseq
        %v3602 = vshrl.u32 %v3601, 7
        %v3603 = vsub.s32 1, %v3602
        %v3604 = vrot.slane %v3596, %v3603
        %vm3605 = vcmp.eq.s32.totalorder %v3600, 1
        %vm3606 = vcmp.eq.s32.totalorder %v3604, 1
        %v3607 = vsel %vm3605, %v3593, 0.0
        %v3608 = vsel %vm3606, %v3592, 0.0
        %3610 = vset.pattern.permute.xlu0 0
        %3611 = vperm.xlu0 %3610, %v3587
        %v3612 = vpop.permute.xlu0 %3611
        %v3614 = vmul.f32 %v3612, %v3607
        %v3615 = vmul.f32 %v3612, %v3608
        %v3616 = vadd.f32 %v3584, %v3614
        %v3617 = vadd.f32 %v3585, %v3615
        %s3618 = scalar_lea.vmem %s5, 68
        %v3619 = vld [vmem:[%s3618] sm:$0x3]
        %3620 = vrot.lane.b32.xlu0 %v3419, 112
        %v3621 = vpop.permute.xlu0 %3620
        %3622 = vrot.lane.b32.xlu0 %v3420, 112
        %v3623 = vpop.permute.xlu0 %3622
        %v3624 = vsel %vm635, %v3621, %v3623
        %v3625 = vsel %vm635, %v3623, %v3621
        %v3626 = vsel %vm3594, 1, 0
        %v3627 = vlaneseq
        %v3628 = vshrl.u32 %v3627, 7
        %v3629 = vsub.s32 0, %v3628
        %v3630 = vrot.slane %v3626, %v3629
        %v3631 = vlaneseq
        %v3632 = vshrl.u32 %v3631, 7
        %v3633 = vsub.s32 1, %v3632
        %v3634 = vrot.slane %v3626, %v3633
        %vm3635 = vcmp.eq.s32.totalorder %v3630, 1
        %vm3636 = vcmp.eq.s32.totalorder %v3634, 1
        %v3637 = vsel %vm3635, %v3625, 0.0
        %v3638 = vsel %vm3636, %v3624, 0.0
        %3640 = vset.pattern.permute.xlu0 0
        %3641 = vperm.xlu0 %3640, %v3619
        %v3642 = vpop.permute.xlu0 %3641
        %v3644 = vmul.f32 %v3642, %v3637
        %v3645 = vmul.f32 %v3642, %v3638
        %v3646 = vadd.f32 %v3616, %v3644
        %v3647 = vadd.f32 %v3617, %v3645
        %s3648 = scalar_lea.vmem %s5, 70
        %v3649 = vld [vmem:[%s3648] sm:$0x3]
        %3650 = vrot.lane.b32.xlu0 %v3419, 103
        %v3651 = vpop.permute.xlu0 %3650
        %3652 = vrot.lane.b32.xlu0 %v3420, 103
        %v3653 = vpop.permute.xlu0 %3652
        %vm3654 = vcmp.lt.s32.totalorder %v561, 103
        %v3655 = vsel %vm3654, %v3651, %v3653
        %v3656 = vsel %vm3654, %v3653, %v3651
        %vm3657 = vmand %vm3594, %vm3491
        %v3658 = vsel %vm3657, 1, 0
        %v3659 = vlaneseq
        %v3660 = vshrl.u32 %v3659, 7
        %v3661 = vsub.s32 0, %v3660
        %v3662 = vrot.slane %v3658, %v3661
        %v3663 = vlaneseq
        %v3664 = vshrl.u32 %v3663, 7
        %v3665 = vsub.s32 1, %v3664
        %v3666 = vrot.slane %v3658, %v3665
        %vm3667 = vcmp.eq.s32.totalorder %v3662, 1
        %vm3668 = vcmp.eq.s32.totalorder %v3666, 1
        %v3669 = vsel %vm3667, %v3656, 0.0
        %v3670 = vsel %vm3668, %v3655, 0.0
        %3672 = vset.pattern.permute.xlu0 0
        %3673 = vperm.xlu0 %3672, %v3649
        %v3674 = vpop.permute.xlu0 %3673
        %v3676 = vmul.f32 %v3674, %v3669
        %v3677 = vmul.f32 %v3674, %v3670
        %v3678 = vadd.f32 %v3646, %v3676
        %v3679 = vadd.f32 %v3647, %v3677
        %s3680 = scalar_lea.vmem %s6, 6
        %v3681 = vld [vmem:[%s3680] sm:$0x3]
        %v3682 = vpack.c.bf16 %v3681, %v3681
        %v3683 = vpack.c.bf16 %v3678, %v3678
        %v3684 = vpack.c.bf16 %v3679, %v3679
        %v3685 = vrot.slane %v497, 6
        %v3686 = vrot.slane %v498, 6
        %v3690 = vsel %vm1141, %v3682, 0
        %v3693 = vsel %vm1145, %v3683, 0
        %v3696 = vsel %vm1145, %v3684, 0
        %3698 = vmatprep.subr.bf16.mxu0 %v3696
        %3699 = vmatpush1.bf16.msra.mxu0 %v3693
        %3700 = vmatprep.subr.bf16.mxu0 0
        %3701 = vmatpush1.bf16.msra.mxu0 0
        %3702 = vmatprep.subr.bf16.mxu0 0
        %3703 = vmatpush1.bf16.msra.mxu0 0
        %3704 = vmatprep.subr.bf16.mxu0 0
        %3705 = vmatpush1.bf16.msra.mxu0 0
        %3706 = vmatprep.subr.bf16.mxu0 0
        %3707 = vmatpush1.bf16.msra.mxu0 0
        %3708 = vmatprep.subr.bf16.mxu0 0
        %3709 = vmatpush1.bf16.msra.mxu0 0
        %3710 = vmatprep.subr.bf16.mxu0 0
        %3711 = vmatpush1.bf16.msra.mxu0 0
        %3712 = vmatprep.subr.bf16.mxu0 0
        %3713 = vmatpush1.bf16.msra.mxu0 0
        %3714 = vmatprep.subr.bf16.mxu0 0
        %3715 = vmatpush1.bf16.msra.mxu0 0
        %3716 = vmatprep.subr.bf16.mxu0 0
        %3717 = vmatpush1.bf16.msra.mxu0 0
        %3718 = vmatprep.subr.bf16.mxu0 0
        %3719 = vmatpush1.bf16.msra.mxu0 0
        %3720 = vmatprep.subr.bf16.mxu0 0
        %3721 = vmatpush1.bf16.msra.mxu0 0
        %3722 = vmatprep.subr.bf16.mxu0 0
        %3723 = vmatpush1.bf16.msra.mxu0 0
        %3724 = vmatprep.subr.bf16.mxu0 0
        %3725 = vmatpush1.bf16.msra.mxu0 0
        %3726 = vmatprep.subr.bf16.mxu0 0
        %3727 = vmatpush1.bf16.msra.mxu0 0
        %3728 = vmatprep.subr.bf16.mxu0 0
        %3729 = vmatpush1.bf16.msra.mxu0 0
        %3730 = vmatprep.mubr.bf16.mxu0 0
        %3731 = vmatmul.mubr.bf16.gmra.mrb[0].mxu0 %v3690
        %v3732 = vpop.f32.mrb[0].mxu0
        %v3733 = vadd.f32 %v3685, %v3732
        %v3734 = vpop.f32.mrb[0].mxu0
        %v3735 = vadd.f32 %v3686, %v3734
        %v3736 = vpop.f32.mrb[0].mxu0
        %v3737 = vpop.f32.mrb[0].mxu0
        %3738 = vdwg.mxu0
        %s3739 = scalar_lea.vmem %s12, 6
        %v3740 = vld [vmem:[%s3739] sm:$0x3]
        %3742 = vset.pattern.permute.xlu0 0
        %3743 = vperm.xlu0 %3742, %v3740
        %v3744 = vpop.permute.xlu0 %3743
        %v3746 = vmul.f32 %v3733, %v3744
        %v3747 = vmul.f32 %v3735, %v3744
        %s3748 = scalar_lea.vmem %s13, 6
        %v3749 = vld [vmem:[%s3748] sm:$0x3]
        %3751 = vset.pattern.permute.xlu0 0
        %3752 = vperm.xlu0 %3751, %v3749
        %v3753 = vpop.permute.xlu0 %3752
        %v3755 = vadd.f32 %v3746, %v3753
        %v3756 = vadd.f32 %v3747, %v3753
        %vm3757 = vcmp.gt.f32.partialorder %v3755, 0.0
        %vm3758 = vcmp.gt.f32.partialorder %v3756, 0.0
        %s3759 = scalar_lea.vmem %s14, 6
        %v3760 = vld [vmem:[%s3759] sm:$0x3]
        %3762 = vset.pattern.permute.xlu0 0
        %3763 = vperm.xlu0 %3762, %v3760
        %v3764 = vpop.permute.xlu0 %3763
        %v3766 = vmul.f32 %v3764, %v3755
        %v3767 = vmul.f32 %v3764, %v3756
        %v3768 = vsel %vm3757, %v3755, %v3766
        %v3769 = vsel %vm3758, %v3756, %v3767
        %v3772 = vrot.slane %v3768, 2
        %v3773 = vrot.slane %v3769, 2
        %3776 = vst [vmem:[%s487] sm:$0xc0] %v3772
        %3777 = vst [vmem:[%s487 + $0x8] sm:$0xc0] %v3773
        %s3778 = sand.u32 %s357, 1
        %s3779 = scalar_lea.sflag [#allocation3], %s3778
        %s3780 = sand.u32 %s357, 1
        %s3781 = smul.addr %s3780, 16
        %s3782 = scalar_lea.vmem [#allocation2], %s3781
        // Predicated region
        $region81: #{tpu_custom_call.1} parent=79 // pred_check
          %p3783 = pneg %p367
        $region82: #{tpu_custom_call.1} parent=79 // pred_check_branch
          %3785 = sbr.rel (%p3783) target = $region84
        $region83: #{tpu_custom_call.1} parent=79 // pred_region
          %s3787 = ssub.s32 256, 256
          %3788 = vsyncadd %s3779, %s3787
          %s3789 = smul.addr %s29, 2
          %s3790 = smul.addr %s3789, 128
          %s3791 = scalar_lea.hbm %s15, %s3790
          %s3793 = sshll.u32 %s3782, 4
          %s3794 = int_to_ptr.vmem [resolvable:$true] %s3793
          %3796 = dma.vmem_to_hbm [thread:$0]  %s3794, 256, %s3791, %s3779
        $region84: #{tpu_custom_call.1} parent=79 // pred_fallthru
          _
      $region80: #{tpu_custom_call.1} parent=5 // pred_fallthru
        _
      %p3797 = scmp.le.s32.totalorder 2, %s24
      // Predicated region
      $region85: #{tpu_custom_call.1} parent=5 // pred_check
        %p3798 = pneg %p3797
      $region86: #{tpu_custom_call.1} parent=5 // pred_check_branch
        %3800 = sbr.rel (%p3798) target = $region88
      $region87: #{tpu_custom_call.1} parent=5 // pred_region
        %s3801 = ssub.s32 %s24, 2
        // Predicated region
        $region89: #{tpu_custom_call.1} parent=87 // pred_check
          %p3802 = pneg %p373
        $region90: #{tpu_custom_call.1} parent=87 // pred_check_branch
          %3804 = sbr.rel (%p3802) target = $region92
        $region91: #{tpu_custom_call.1} parent=87 // pred_region
          %s3805 = sand.u32 %s358, 1
          %s3806 = scalar_lea.sflag [#allocation3], %s3805
          %s3807 = sand.u32 %s358, 1
          %s3808 = smul.addr %s3807, 16
          %s3809 = scalar_lea.vmem [#allocation2], %s3808
          %3810 = dma.done %s3806, 256
        $region92: #{tpu_custom_call.1} parent=87 // pred_fallthru
          _
      $region88: #{tpu_custom_call.1} parent=5 // pred_fallthru
        _
    $region6: #{tpu_custom_call.1} parent=1 // loop_footer
      %s28 = sadd.s32 1, %s24
    $region7: #{tpu_custom_call.1} parent=1 // loop_footer_branch
      %23 = sbr.rel target = $region3
    $region8: #{tpu_custom_call.1} parent=1 // loop_exit
      _
    %3811 = vsyncpa [#allocation3], 1
    %s3812 = scalar_lea.sflag [#allocation3], 1
    %3813 = vsyncpa %s3812, 1

</llo_original>
